<compile_context>
chip_gen: v6e
topology: v6e:2x2x1
jax: 0.10.0
libtpu: 0.0.40
codegen_flags: <defaults>
</compile_context>

<pallas_src>
import math
import functools

import jax
import jax.numpy as jnp
from jax import lax
from jax.experimental import pallas as pl
from jax.experimental.pallas import tpu as pltpu


# ----------------------------------------------------------------------------
# Helpers
# ----------------------------------------------------------------------------

def _full(shape):
    """Full-array BlockSpec for a grid=(1,) call."""
    nd = len(shape)
    return pl.BlockSpec(shape, lambda i, _nd=nd: (0,) * _nd)


# ----------------------------------------------------------------------------
# Pallas kernels
# ----------------------------------------------------------------------------

def _linear_kernel(x_ref, w_ref, b_ref, o_ref):
    o_ref[...] = (jnp.dot(x_ref[...], w_ref[...],
                          preferred_element_type=jnp.float32) + b_ref[...])


def linear(x, w, b):
    """y = x @ w + b.  x:(M,K) w:(K,N) b:(1,N)."""
    M, K = x.shape
    N = w.shape[1]
    return pl.pallas_call(
        _linear_kernel,
        grid=(1,),
        in_specs=[_full((M, K)), _full((K, N)), _full((1, N))],
        out_specs=_full((M, N)),
        out_shape=jax.ShapeDtypeStruct((M, N), jnp.float32),
    )(x, w, b)


def _gnn_readout_kernel(adj_ref, h_ref, qs_ref,
                        w1_ref, b1_ref, s1_ref, t1_ref,
                        w2_ref, b2_ref, s2_ref, t2_ref,
                        eps_ref,
                        h_out_ref, xdec_ref):
    """Fused LayerGIN (aggregate + MLP) + spatial-attention readout."""
    bt, n, c = h_ref.shape
    eps = eps_ref[0, 0]                                       # SMEM scalar
    h3 = h_ref[...]                                           # (BT, N, C)

    # Block-diagonal sparse mm == batched dense matmul over the (b,t) blocks.
    agg = jnp.einsum('bij,bjc->bic', adj_ref[...], h3,
                     preferred_element_type=jnp.float32)
    hagg = (agg + eps * h3).reshape(bt * n, c)

    # LayerGIN MLP: Linear -> BN(eval, folded to scale/shift) -> ReLU, twice.
    h1 = jnp.maximum(
        (jnp.dot(hagg, w1_ref[...], preferred_element_type=jnp.float32)
         + b1_ref[...]) * s1_ref[...] + t1_ref[...], 0.0)
    h2 = jnp.maximum(
        (jnp.dot(h1, w2_ref[...], preferred_element_type=jnp.float32)
         + b2_ref[...]) * s2_ref[...] + t2_ref[...], 0.0)

    hb = h2.reshape(bt, n, c)
    h_out_ref[...] = hb

    # Spatial attention readout: SA = softmax_n(h . q) + 1 ; X_dec = sum_n h*SA
    qs = qs_ref[...]                                          # (BT, C)
    scores = jnp.sum(hb * qs[:, None, :], axis=-1)            # (BT, N)
    scores = scores - jnp.max(scores, axis=-1, keepdims=True)
    e = jnp.exp(scores)
    w = e / jnp.sum(e, axis=-1, keepdims=True) + 1.0          # (BT, N)
    xdec_ref[...] = jnp.sum(hb * w[:, :, None], axis=1)       # (BT, C)


def gnn_readout(adj, h, q_s, g):
    """adj:(BT,N,N) h:(BT,N,C) q_s:(BT,C) -> (h_new:(BT,N,C), x_dec:(BT,C))."""
    BT, N, C = h.shape
    return pl.pallas_call(
        _gnn_readout_kernel,
        grid=(1,),
        in_specs=[_full((BT, N, N)), _full((BT, N, C)), _full((BT, C)),
                  _full((C, C)), _full((1, C)), _full((1, C)), _full((1, C)),
                  _full((C, C)), _full((1, C)), _full((1, C)), _full((1, C)),
                  pl.BlockSpec(memory_space=pltpu.MemorySpace.SMEM)],
        out_specs=(_full((BT, N, C)), _full((BT, C))),
        out_shape=(jax.ShapeDtypeStruct((BT, N, C), jnp.float32),
                   jax.ShapeDtypeStruct((BT, C), jnp.float32)),
    )(adj, h, q_s, g['w1'], g['b1'], g['s1'], g['t1'],
      g['w2'], g['b2'], g['s2'], g['t2'], g['eps'])


def _transformer_cls_kernel(xdec_ref, xenc_ref,
                            wq_ref, bq_ref, wkv_ref, bkv_ref, wo_ref, bo_ref,
                            ln1g_ref, ln1b_ref, mw1_ref, mb1_ref,
                            mw2_ref, mb2_ref, ln2g_ref, ln2b_ref,
                            clsw_ref, clsb_ref,
                            logit_ref, attn_ref, *, num_heads):
    """Fused ModuleTransformer + cls-token sum + classifier head."""
    b_sz, t_len, c = xdec_ref.shape
    s_len = xenc_ref.shape[1]
    dh = c // num_heads
    scale = 1.0 / math.sqrt(dh)

    xdec = xdec_ref[...].reshape(b_sz * t_len, c)             # (B*T, C), b-major
    xenc = xenc_ref[...].reshape(b_sz * s_len, c)             # (B*S, C), b-major

    # Projections (K and V weights concatenated into one wider matmul).
    q = jnp.dot(xdec, wq_ref[...], preferred_element_type=jnp.float32) + bq_ref[...]
    kv = jnp.dot(xenc, wkv_ref[...], preferred_element_type=jnp.float32) + bkv_ref[...]
    k = kv[:, :c]
    v = kv[:, c:]
    wo = wo_ref[...]

    out_rows = []
    attn_rows = []
    for b in range(b_sz):                                     # unrolled (B small)
        q_b = q[b * t_len:(b + 1) * t_len, :]                 # (T, C)
        k_b = k[b * s_len:(b + 1) * s_len, :]                 # (S, C)
        v_b = v[b * s_len:(b + 1) * s_len, :]                 # (S, C)
        acc = jnp.zeros((t_len, c), jnp.float32)
        p_sum = jnp.zeros((t_len, s_len), jnp.float32)
        for h in range(num_heads):                            # unrolled (H small)
            lo, hi = h * dh, (h + 1) * dh
            sc = lax.dot_general(q_b[:, lo:hi] * scale, k_b[:, lo:hi],
                                 (((1,), (1,)), ((), ())),
                                 preferred_element_type=jnp.float32)  # (T, S)
            sc = sc - jnp.max(sc, axis=-1, keepdims=True)
            p = jnp.exp(sc)
            p = p / jnp.sum(p, axis=-1, keepdims=True)
            p_sum = p_sum + p
            ov = jnp.dot(p, v_b[:, lo:hi], preferred_element_type=jnp.float32)
            # Output projection folded per head: o @ Wo == sum_h o_h @ Wo[h-rows]
            acc = acc + jnp.dot(ov, wo[lo:hi, :],
                                preferred_element_type=jnp.float32)
        out_rows.append(acc)
        attn_rows.append(p_sum * (1.0 / num_heads))           # head-averaged

    attn_ref[...] = jnp.stack(attn_rows, axis=0)              # (B, T, S)
    o = jnp.concatenate(out_rows, axis=0) + bo_ref[...]       # (B*T, C)

    def _ln(x, g, bb):
        mu = jnp.mean(x, axis=-1, keepdims=True)
        var = jnp.mean(jnp.square(x - mu), axis=-1, keepdims=True)
        return (x - mu) * lax.rsqrt(var + 1e-5) * g + bb

    x1 = _ln(o, ln1g_ref[...], ln1b_ref[...])
    m = jnp.maximum(jnp.dot(x1, mw1_ref[...],
                            preferred_element_type=jnp.float32) + mb1_ref[...], 0.0)
    m = jnp.dot(m, mw2_ref[...], preferred_element_type=jnp.float32) + mb2_ref[...]
    x2 = _ln(x1 + m, ln2g_ref[...], ln2b_ref[...])            # (B*T, C)

    # cls_token = sum over time ; classifier head (dropout = identity in eval)
    h_dyn = jnp.sum(x2.reshape(b_sz, t_len, c), axis=1)       # (B, C)
    logit_ref[...] = (jnp.dot(h_dyn, clsw_ref[...],
                              preferred_element_type=jnp.float32) + clsb_ref[...])


def transformer_cls(x_dec, x_enc_b, t, cl, num_heads):
    """x_dec:(B,T,C) x_enc_b:(B,S,C) -> (logit:(B,NC), attn:(B,T,S))."""
    B, T, C = x_dec.shape
    S = x_enc_b.shape[1]
    NC = cl['w'].shape[1]
    wkv = jnp.concatenate([t['wk'], t['wv']], axis=1)         # (C, 2C)
    bkv = jnp.concatenate([t['bk'], t['bv']], axis=1)         # (1, 2C)
    return pl.pallas_call(
        functools.partial(_transformer_cls_kernel, num_heads=num_heads),
        grid=(1,),
        in_specs=[_full((B, T, C)), _full((B, S, C)),
                  _full((C, C)), _full((1, C)),
                  _full((C, 2 * C)), _full((1, 2 * C)),
                  _full((C, C)), _full((1, C)),
                  _full((1, C)), _full((1, C)),
                  _full((C, 2 * C)), _full((1, 2 * C)),
                  _full((2 * C, C)), _full((1, C)),
                  _full((1, C)), _full((1, C)),
                  _full((C, NC)), _full((1, NC))],
        out_specs=(_full((B, NC)), _full((B, T, S))),
        out_shape=(jax.ShapeDtypeStruct((B, NC), jnp.float32),
                   jax.ShapeDtypeStruct((B, T, S), jnp.float32)),
    )(x_dec, x_enc_b, t['wq'], t['bq'], wkv, bkv, t['wo'], t['bo'],
      t['ln1_g'], t['ln1_b'], t['mlp_w1'], t['mlp_b1'],
      t['mlp_w2'], t['mlp_b2'], t['ln2_g'], t['ln2_b'], cl['w'], cl['b'])


# ----------------------------------------------------------------------------
# Forward (glue in plain JAX: percentile threshold, reshapes, layer loop)
# ----------------------------------------------------------------------------

def brain_decoder_forward(params, dyn_t, dyn_a, e_s, X_enc, sampling_endpoints,
                          sparsity, num_heads):
    B, T, N, W = dyn_t.shape
    C = params['initial_w'].shape[1]
    num_layers = len(params['gnn'])
    num_classes = params['cls'][0]['w'].shape[1]

    # initial_linear on rearranged (b t n) c rows
    h = linear(dyn_t.reshape(B * T * N, W), params['initial_w'], params['initial_b'])
    h = h.reshape(B * T, N, C)

    # _collate_adjacency: per-(b,t) percentile threshold -> dense binary blocks.
    # (percentile is a sort-based op; kept in XLA glue, the mm runs in Pallas)
    thr = jnp.percentile(dyn_a.reshape(B, T, N * N), 100.0 - sparsity, axis=-1)
    adj = (dyn_a > thr[:, :, None, None]).astype(jnp.float32).reshape(B * T, N, N)

    # q_s = repeat(e_s, 'b c -> t b c') + X_enc[endpoints-1]  -> (B*T, C) b-major
    idx = jnp.asarray([p - 1 for p in sampling_endpoints], dtype=jnp.int32)
    q_base = e_s[None, :, :] + X_enc[idx]                     # (T, B, C)
    q_s = jnp.transpose(q_base, (1, 0, 2)).reshape(B * T, C)

    x_enc_b = jnp.transpose(X_enc, (1, 0, 2))                 # (B, S, C)

    logit = jnp.zeros((B, num_classes), jnp.float32)
    attn_list = []
    for layer in range(num_layers):
        h, x_dec = gnn_readout(adj, h, q_s, params['gnn'][layer])
        lg, attn_w = transformer_cls(x_dec.reshape(B, T, C), x_enc_b,
                                     params['transformer'][layer],
                                     params['cls'][layer], num_heads)
        logit = logit + lg
        attn_list.append(attn_w)

    time_attention = jnp.stack(attn_list, axis=1)             # (B, L, T, S)
    return logit, time_attention


# ----------------------------------------------------------------------------
# Deterministic parameter init (synthetic, shapes match the PyTorch module)
# ----------------------------------------------------------------------------

def _init_linear(key, fan_in, fan_out):
    kw, kb = jax.random.split(key)
    bound = 1.0 / math.sqrt(fan_in)
    w = jax.random.uniform(kw, (fan_in, fan_out), jnp.float32, -bound, bound)
    b = jax.random.uniform(kb, (1, fan_out), jnp.float32, -bound, bound)
    return w, b


def init_params(key, window_size, hidden, num_classes, num_layers):
    keys = iter(jax.random.split(key, 2 + 9 * num_layers))
    params = {}
    params['initial_w'], params['initial_b'] = _init_linear(next(keys), window_size, hidden)
    # BatchNorm1d defaults (weight=1, bias=0, running_mean=0, running_var=1), eval.
    bn_scale = jnp.full((1, hidden), 1.0 / math.sqrt(1.0 + 1e-5), jnp.float32)
    bn_shift = jnp.zeros((1, hidden), jnp.float32)
    gnn, trans, cls = [], [], []
    for _ in range(num_layers):
        w1, b1 = _init_linear(next(keys), hidden, hidden)
        w2, b2 = _init_linear(next(keys), hidden, hidden)
        gnn.append(dict(eps=jnp.zeros((1, 1), jnp.float32),   # nn.Parameter([[0.0]])
                        w1=w1, b1=b1, s1=bn_scale, t1=bn_shift,
                        w2=w2, b2=b2, s2=bn_scale, t2=bn_shift))
        wq, bq = _init_linear(next(keys), hidden, hidden)
        wk, bk = _init_linear(next(keys), hidden, hidden)
        wv, bv = _init_linear(next(keys), hidden, hidden)
        wo, bo = _init_linear(next(keys), hidden, hidden)
        mw1, mb1 = _init_linear(next(keys), hidden, 2 * hidden)
        mw2, mb2 = _init_linear(next(keys), 2 * hidden, hidden)
        trans.append(dict(wq=wq, bq=bq, wk=wk, bk=bk, wv=wv, bv=bv, wo=wo, bo=bo,
                          ln1_g=jnp.ones((1, hidden), jnp.float32),
                          ln1_b=jnp.zeros((1, hidden), jnp.float32),
                          ln2_g=jnp.ones((1, hidden), jnp.float32),
                          ln2_b=jnp.zeros((1, hidden), jnp.float32),
                          mlp_w1=mw1, mlp_b1=mb1, mlp_w2=mw2, mlp_b2=mb2))
        lw, lb = _init_linear(next(keys), hidden, num_classes)
        cls.append(dict(w=lw, b=lb))
    params['gnn'] = gnn
    params['transformer'] = trans
    params['cls'] = cls
    return params


# ----------------------------------------------------------------------------
# Main
# ----------------------------------------------------------------------------

if __name__ == "__main__":
    B, T, N, W = 2, 4, 8, 16           # batch, timepoints, nodes(regions), window
    HIDDEN, NUM_CLASSES, NUM_HEADS, NUM_LAYERS = 32, 3, 4, 2
    SPARSITY = 30
    S_ENC = 16                         # encoder sequence length

    key = jax.random.PRNGKey(0)
    k1, k2, k3, k4, kp = jax.random.split(key, 5)
    dyn_t = jax.random.normal(k1, (B, T, N, W), jnp.float32)
    dyn_a = jax.random.normal(k2, (B, T, N, N), jnp.float32)
    e_s = jax.random.normal(k3, (B, HIDDEN), jnp.float32)
    X_enc = jax.random.normal(k4, (S_ENC, B, HIDDEN), jnp.float32)
    sampling_endpoints = [4, 8, 12, 16]   # len == T, 1-indexed into X_enc

    params = init_params(kp, W, HIDDEN, NUM_CLASSES, NUM_LAYERS)

    fwd = jax.jit(lambda p, dt, da, es, xe: brain_decoder_forward(
        p, dt, da, es, xe, sampling_endpoints, SPARSITY, NUM_HEADS))

    logit, time_attention = fwd(params, dyn_t, dyn_a, e_s, X_enc)
    jax.block_until_ready((logit, time_attention))

    assert logit.shape == (B, NUM_CLASSES)
    assert time_attention.shape == (B, NUM_LAYERS, T, S_ENC)
    assert bool(jnp.all(jnp.isfinite(logit)))
    assert bool(jnp.all(jnp.isfinite(time_attention)))
    print("KERNEL_OK")
</pallas_src>

<mosaic_0001>
module attributes {stable_mosaic.version = 11 : i64} {
  func.func @_linear_kernel(%arg0: i32, %arg1: memref<64x16xf32, #tpu.memory_space<vmem>>, %arg2: memref<16x32xf32, #tpu.memory_space<vmem>>, %arg3: memref<1x32xf32, #tpu.memory_space<vmem>>, %arg4: memref<64x32xf32, #tpu.memory_space<vmem>>) attributes {dimension_semantics = [#tpu.dimension_semantics<arbitrary>], iteration_bounds = array<i64: 1>, scalar_prefetch = 0 : i64, scratch_operands = 0 : i64, tpu.core_type = #tpu.core_type<tc>, window_params = [{pipeline_mode = #tpu.pipeline_mode<synchronous>, transform_indices = @transform_0, window_bounds = array<i64: 64, 16>}, {pipeline_mode = #tpu.pipeline_mode<synchronous>, transform_indices = @transform_1, window_bounds = array<i64: 16, 32>}, {pipeline_mode = #tpu.pipeline_mode<synchronous>, transform_indices = @transform_2, window_bounds = array<i64: 1, 32>}, {pipeline_mode = #tpu.pipeline_mode<synchronous>, transform_indices = @transform_3, window_bounds = array<i64: 64, 32>}]} {
    %c0 = arith.constant 0 : index
    %c0_0 = arith.constant 0 : index
    %0 = vector.load %arg1[%c0, %c0_0] : memref<64x16xf32, #tpu.memory_space<vmem>>, vector<64x16xf32>
    %c0_1 = arith.constant 0 : index
    %c0_2 = arith.constant 0 : index
    %1 = vector.load %arg2[%c0_1, %c0_2] : memref<16x32xf32, #tpu.memory_space<vmem>>, vector<16x32xf32>
    %cst = arith.constant dense<0.000000e+00> : vector<64x32xf32>
    %2 = tpu.matmul %0, %1, %cst {dimension_numbers = #tpu.dot_dimension_numbers<[1], [0], [0], [1], [0, 0, 1, 1], [], []>} : vector<64x16xf32>, vector<16x32xf32>, vector<64x32xf32> -> vector<64x32xf32>
    %c0_3 = arith.constant 0 : index
    %c0_4 = arith.constant 0 : index
    %3 = vector.load %arg3[%c0_3, %c0_4] : memref<1x32xf32, #tpu.memory_space<vmem>>, vector<1x32xf32>
    %4 = vector.broadcast %3 : vector<1x32xf32> to vector<64x32xf32>
    %5 = arith.addf %2, %4 : vector<64x32xf32>
    %c0_5 = arith.constant 0 : index
    %c0_6 = arith.constant 0 : index
    %6 = vector.load %arg4[%c0_5, %c0_6] : memref<64x32xf32, #tpu.memory_space<vmem>>, vector<64x32xf32>
    tpu.vector_store %arg4[%c0_5, %c0_6], %5 {strides = array<i32>} : memref<64x32xf32, #tpu.memory_space<vmem>>, vector<64x32xf32>,
    return
  }
  func.func @transform_0(%arg0: i32) -> (i32, i32) {
    %c0_i32 = arith.constant 0 : i32
    %c0_i32_0 = arith.constant 0 : i32
    %c0_i32_1 = arith.constant 0 : i32
    return %c0_i32, %c0_i32_0 : i32, i32
  }
  func.func @transform_1(%arg0: i32) -> (i32, i32) {
    %c0_i32 = arith.constant 0 : i32
    %c0_i32_0 = arith.constant 0 : i32
    %c0_i32_1 = arith.constant 0 : i32
    return %c0_i32, %c0_i32_0 : i32, i32
  }
  func.func @transform_2(%arg0: i32) -> (i32, i32) {
    %c0_i32 = arith.constant 0 : i32
    %c0_i32_0 = arith.constant 0 : i32
    %c0_i32_1 = arith.constant 0 : i32
    return %c0_i32, %c0_i32_0 : i32, i32
  }
  func.func @transform_3(%arg0: i32) -> (i32, i32) {
    %c0_i32 = arith.constant 0 : i32
    %c0_i32_0 = arith.constant 0 : i32
    %c0_i32_1 = arith.constant 0 : i32
    return %c0_i32, %c0_i32_0 : i32, i32
  }
}

module attributes {stable_mosaic.version = 11 : i64} {
  func.func @_gnn_readout_kernel(%arg0: i32, %arg1: memref<8x8x8xf32, #tpu.memory_space<vmem>>, %arg2: memref<8x8x32xf32, #tpu.memory_space<vmem>>, %arg3: memref<8x32xf32, #tpu.memory_space<vmem>>, %arg4: memref<32x32xf32, #tpu.memory_space<vmem>>, %arg5: memref<1x32xf32, #tpu.memory_space<vmem>>, %arg6: memref<1x32xf32, #tpu.memory_space<vmem>>, %arg7: memref<1x32xf32, #tpu.memory_space<vmem>>, %arg8: memref<32x32xf32, #tpu.memory_space<vmem>>, %arg9: memref<1x32xf32, #tpu.memory_space<vmem>>, %arg10: memref<1x32xf32, #tpu.memory_space<vmem>>, %arg11: memref<1x32xf32, #tpu.memory_space<vmem>>, %arg12: memref<1x1xf32, #tpu.memory_space<smem>>, %arg13: memref<8x8x32xf32, #tpu.memory_space<vmem>>, %arg14: memref<8x32xf32, #tpu.memory_space<vmem>>) attributes {dimension_semantics = [#tpu.dimension_semantics<arbitrary>], iteration_bounds = array<i64: 1>, scalar_prefetch = 0 : i64, scratch_operands = 0 : i64, tpu.core_type = #tpu.core_type<tc>, window_params = [{pipeline_mode = #tpu.pipeline_mode<synchronous>, transform_indices = @transform_0, window_bounds = array<i64: 8, 8, 8>}, {pipeline_mode = #tpu.pipeline_mode<synchronous>, transform_indices = @transform_1, window_bounds = array<i64: 8, 8, 32>}, {pipeline_mode = #tpu.pipeline_mode<synchronous>, transform_indices = @transform_2, window_bounds = array<i64: 8, 32>}, {pipeline_mode = #tpu.pipeline_mode<synchronous>, transform_indices = @transform_3, window_bounds = array<i64: 32, 32>}, {pipeline_mode = #tpu.pipeline_mode<synchronous>, transform_indices = @transform_4, window_bounds = array<i64: 1, 32>}, {pipeline_mode = #tpu.pipeline_mode<synchronous>, transform_indices = @transform_5, window_bounds = array<i64: 1, 32>}, {pipeline_mode = #tpu.pipeline_mode<synchronous>, transform_indices = @transform_6, window_bounds = array<i64: 1, 32>}, {pipeline_mode = #tpu.pipeline_mode<synchronous>, transform_indices = @transform_7, window_bounds = array<i64: 32, 32>}, {pipeline_mode = #tpu.pipeline_mode<synchronous>, transform_indices = @transform_8, window_bounds = array<i64: 1, 32>}, {pipeline_mode = #tpu.pipeline_mode<synchronous>, transform_indices = @transform_9, window_bounds = array<i64: 1, 32>}, {pipeline_mode = #tpu.pipeline_mode<synchronous>, transform_indices = @transform_10, window_bounds = array<i64: 1, 32>}, {transform_indices = @transform_11, window_bounds = array<i64: 1, 1>}, {pipeline_mode = #tpu.pipeline_mode<synchronous>, transform_indices = @transform_12, window_bounds = array<i64: 8, 8, 32>}, {pipeline_mode = #tpu.pipeline_mode<synchronous>, transform_indices = @transform_13, window_bounds = array<i64: 8, 32>}]} {
    %c0 = arith.constant 0 : index
    %c0_0 = arith.constant 0 : index
    %0 = memref.load %arg12[%c0, %c0_0] : memref<1x1xf32, #tpu.memory_space<smem>>
    %c0_1 = arith.constant 0 : index
    %c0_2 = arith.constant 0 : index
    %c0_3 = arith.constant 0 : index
    %1 = vector.load %arg2[%c0_1, %c0_2, %c0_3] : memref<8x8x32xf32, #tpu.memory_space<vmem>>, vector<8x8x32xf32>
    %c0_4 = arith.constant 0 : index
    %c0_5 = arith.constant 0 : index
    %c0_6 = arith.constant 0 : index
    %2 = vector.load %arg1[%c0_4, %c0_5, %c0_6] : memref<8x8x8xf32, #tpu.memory_space<vmem>>, vector<8x8x8xf32>
    "tpu.trace_start"() <{level = 10 : i32, message = "bij,bjc->bic"}> : () -> ()
    %cst = arith.constant dense<0.000000e+00> : vector<8x8x32xf32>
    %3 = tpu.matmul %2, %1, %cst {dimension_numbers = #tpu.dot_dimension_numbers<[2], [1], [1], [2], [0, 0, 0, 1, 1, 2], [0], [0]>} : vector<8x8x8xf32>, vector<8x8x32xf32>, vector<8x8x32xf32> -> vector<8x8x32xf32>
    "tpu.trace_stop"() : () -> ()
    %4 = vector.broadcast %0 : f32 to vector<8x8x32xf32>
    %5 = arith.mulf %4, %1 : vector<8x8x32xf32>
    %6 = arith.addf %3, %5 : vector<8x8x32xf32>
    %7 = vector.shape_cast %6 : vector<8x8x32xf32> to vector<64x32xf32>
    %c0_7 = arith.constant 0 : index
    %c0_8 = arith.constant 0 : index
    %8 = vector.load %arg4[%c0_7, %c0_8] : memref<32x32xf32, #tpu.memory_space<vmem>>, vector<32x32xf32>
    %cst_9 = arith.constant dense<0.000000e+00> : vector<64x32xf32>
    %9 = tpu.matmul %7, %8, %cst_9 {dimension_numbers = #tpu.dot_dimension_numbers<[1], [0], [0], [1], [0, 0, 1, 1], [], []>} : vector<64x32xf32>, vector<32x32xf32>, vector<64x32xf32> -> vector<64x32xf32>
    %c0_10 = arith.constant 0 : index
    %c0_11 = arith.constant 0 : index
    %10 = vector.load %arg5[%c0_10, %c0_11] : memref<1x32xf32, #tpu.memory_space<vmem>>, vector<1x32xf32>
    %11 = vector.broadcast %10 : vector<1x32xf32> to vector<64x32xf32>
    %12 = arith.addf %9, %11 : vector<64x32xf32>
    %c0_12 = arith.constant 0 : index
    %c0_13 = arith.constant 0 : index
    %13 = vector.load %arg6[%c0_12, %c0_13] : memref<1x32xf32, #tpu.memory_space<vmem>>, vector<1x32xf32>
    %14 = vector.broadcast %13 : vector<1x32xf32> to vector<64x32xf32>
    %15 = arith.mulf %12, %14 : vector<64x32xf32>
    %c0_14 = arith.constant 0 : index
    %c0_15 = arith.constant 0 : index
    %16 = vector.load %arg7[%c0_14, %c0_15] : memref<1x32xf32, #tpu.memory_space<vmem>>, vector<1x32xf32>
    %17 = vector.broadcast %16 : vector<1x32xf32> to vector<64x32xf32>
    %18 = arith.addf %15, %17 : vector<64x32xf32>
    %cst_16 = arith.constant 0.000000e+00 : f32
    %19 = vector.broadcast %cst_16 : f32 to vector<64x32xf32>
    %20 = arith.maximumf %18, %19 : vector<64x32xf32>
    %c0_17 = arith.constant 0 : index
    %c0_18 = arith.constant 0 : index
    %21 = vector.load %arg8[%c0_17, %c0_18] : memref<32x32xf32, #tpu.memory_space<vmem>>, vector<32x32xf32>
    %cst_19 = arith.constant dense<0.000000e+00> : vector<64x32xf32>
    %22 = tpu.matmul %20, %21, %cst_19 {dimension_numbers = #tpu.dot_dimension_numbers<[1], [0], [0], [1], [0, 0, 1, 1], [], []>} : vector<64x32xf32>, vector<32x32xf32>, vector<64x32xf32> -> vector<64x32xf32>
    %c0_20 = arith.constant 0 : index
    %c0_21 = arith.constant 0 : index
    %23 = vector.load %arg9[%c0_20, %c0_21] : memref<1x32xf32, #tpu.memory_space<vmem>>, vector<1x32xf32>
    %24 = vector.broadcast %23 : vector<1x32xf32> to vector<64x32xf32>
    %25 = arith.addf %22, %24 : vector<64x32xf32>
    %c0_22 = arith.constant 0 : index
    %c0_23 = arith.constant 0 : index
    %26 = vector.load %arg10[%c0_22, %c0_23] : memref<1x32xf32, #tpu.memory_space<vmem>>, vector<1x32xf32>
    %27 = vector.broadcast %26 : vector<1x32xf32> to vector<64x32xf32>
    %28 = arith.mulf %25, %27 : vector<64x32xf32>
    %c0_24 = arith.constant 0 : index
    %c0_25 = arith.constant 0 : index
    %29 = vector.load %arg11[%c0_24, %c0_25] : memref<1x32xf32, #tpu.memory_space<vmem>>, vector<1x32xf32>
    %30 = vector.broadcast %29 : vector<1x32xf32> to vector<64x32xf32>
    %31 = arith.addf %28, %30 : vector<64x32xf32>
    %cst_26 = arith.constant 0.000000e+00 : f32
    %32 = vector.broadcast %cst_26 : f32 to vector<64x32xf32>
    %33 = arith.maximumf %31, %32 : vector<64x32xf32>
    %34 = vector.shape_cast %33 : vector<64x32xf32> to vector<8x8x32xf32>
    %c0_27 = arith.constant 0 : index
    %c0_28 = arith.constant 0 : index
    %c0_29 = arith.constant 0 : index
    %35 = vector.load %arg13[%c0_27, %c0_28, %c0_29] : memref<8x8x32xf32, #tpu.memory_space<vmem>>, vector<8x8x32xf32>
    tpu.vector_store %arg13[%c0_27, %c0_28, %c0_29], %34 {strides = array<i32>} : memref<8x8x32xf32, #tpu.memory_space<vmem>>, vector<8x8x32xf32>,
    %c0_30 = arith.constant 0 : index
    %c0_31 = arith.constant 0 : index
    %36 = vector.load %arg3[%c0_30, %c0_31] : memref<8x32xf32, #tpu.memory_space<vmem>>, vector<8x32xf32>
    %37 = vector.shape_cast %36 : vector<8x32xf32> to vector<8x1x32xf32>
    %38 = vector.broadcast %37 : vector<8x1x32xf32> to vector<8x8x32xf32>
    %39 = arith.mulf %34, %38 : vector<8x8x32xf32>
    %cst_32 = arith.constant dense<0.000000e+00> : vector<8x8xf32>
    %40 = vector.multi_reduction <add>, %39, %cst_32 [2] : vector<8x8x32xf32> to vector<8x8xf32>
    %cst_33 = arith.constant dense<0xFF800000> : vector<8xf32>
    %41 = vector.multi_reduction <maximumf>, %40, %cst_33 [1] : vector<8x8xf32> to vector<8xf32>
    %42 = vector.shape_cast %41 : vector<8xf32> to vector<8x1xf32>
    %43 = vector.broadcast %42 : vector<8x1xf32> to vector<8x8xf32>
    %44 = arith.subf %40, %43 : vector<8x8xf32>
    %45 = math.exp %44 : vector<8x8xf32>
    %cst_34 = arith.constant dense<0.000000e+00> : vector<8xf32>
    %46 = vector.multi_reduction <add>, %45, %cst_34 [1] : vector<8x8xf32> to vector<8xf32>
    %47 = vector.shape_cast %46 : vector<8xf32> to vector<8x1xf32>
    %48 = vector.broadcast %47 : vector<8x1xf32> to vector<8x8xf32>
    %49 = arith.divf %45, %48 : vector<8x8xf32>
    %cst_35 = arith.constant 1.000000e+00 : f32
    %50 = vector.broadcast %cst_35 : f32 to vector<8x8xf32>
    %51 = arith.addf %49, %50 : vector<8x8xf32>
    %52 = vector.shape_cast %51 : vector<8x8xf32> to vector<8x8x1xf32>
    %53 = vector.broadcast %52 : vector<8x8x1xf32> to vector<8x8x32xf32>
    %54 = arith.mulf %34, %53 : vector<8x8x32xf32>
    %cst_36 = arith.constant dense<0.000000e+00> : vector<8x32xf32>
    %55 = vector.multi_reduction <add>, %54, %cst_36 [1] : vector<8x8x32xf32> to vector<8x32xf32>
    %c0_37 = arith.constant 0 : index
    %c0_38 = arith.constant 0 : index
    %56 = vector.load %arg14[%c0_37, %c0_38] : memref<8x32xf32, #tpu.memory_space<vmem>>, vector<8x32xf32>
    tpu.vector_store %arg14[%c0_37, %c0_38], %55 {strides = array<i32>} : memref<8x32xf32, #tpu.memory_space<vmem>>, vector<8x32xf32>,
    return
  }
  func.func @transform_0(%arg0: i32) -> (i32, i32, i32) {
    %c0_i32 = arith.constant 0 : i32
    %c0_i32_0 = arith.constant 0 : i32
    %c0_i32_1 = arith.constant 0 : i32
    %c0_i32_2 = arith.constant 0 : i32
    return %c0_i32, %c0_i32_0, %c0_i32_1 : i32, i32, i32
  }
  func.func @transform_1(%arg0: i32) -> (i32, i32, i32) {
    %c0_i32 = arith.constant 0 : i32
    %c0_i32_0 = arith.constant 0 : i32
    %c0_i32_1 = arith.constant 0 : i32
    %c0_i32_2 = arith.constant 0 : i32
    return %c0_i32, %c0_i32_0, %c0_i32_1 : i32, i32, i32
  }
  func.func @transform_2(%arg0: i32) -> (i32, i32) {
    %c0_i32 = arith.constant 0 : i32
    %c0_i32_0 = arith.constant 0 : i32
    %c0_i32_1 = arith.constant 0 : i32
    return %c0_i32, %c0_i32_0 : i32, i32
  }
  func.func @transform_3(%arg0: i32) -> (i32, i32) {
    %c0_i32 = arith.constant 0 : i32
    %c0_i32_0 = arith.constant 0 : i32
    %c0_i32_1 = arith.constant 0 : i32
    return %c0_i32, %c0_i32_0 : i32, i32
  }
  func.func @transform_4(%arg0: i32) -> (i32, i32) {
    %c0_i32 = arith.constant 0 : i32
    %c0_i32_0 = arith.constant 0 : i32
    %c0_i32_1 = arith.constant 0 : i32
    return %c0_i32, %c0_i32_0 : i32, i32
  }
  func.func @transform_5(%arg0: i32) -> (i32, i32) {
    %c0_i32 = arith.constant 0 : i32
    %c0_i32_0 = arith.constant 0 : i32
    %c0_i32_1 = arith.constant 0 : i32
    return %c0_i32, %c0_i32_0 : i32, i32
  }
  func.func @transform_6(%arg0: i32) -> (i32, i32) {
    %c0_i32 = arith.constant 0 : i32
    %c0_i32_0 = arith.constant 0 : i32
    %c0_i32_1 = arith.constant 0 : i32
    return %c0_i32, %c0_i32_0 : i32, i32
  }
  func.func @transform_7(%arg0: i32) -> (i32, i32) {
    %c0_i32 = arith.constant 0 : i32
    %c0_i32_0 = arith.constant 0 : i32
    %c0_i32_1 = arith.constant 0 : i32
    return %c0_i32, %c0_i32_0 : i32, i32
  }
  func.func @transform_8(%arg0: i32) -> (i32, i32) {
    %c0_i32 = arith.constant 0 : i32
    %c0_i32_0 = arith.constant 0 : i32
    %c0_i32_1 = arith.constant 0 : i32
    return %c0_i32, %c0_i32_0 : i32, i32
  }
  func.func @transform_9(%arg0: i32) -> (i32, i32) {
    %c0_i32 = arith.constant 0 : i32
    %c0_i32_0 = arith.constant 0 : i32
    %c0_i32_1 = arith.constant 0 : i32
    return %c0_i32, %c0_i32_0 : i32, i32
  }
  func.func @transform_10(%arg0: i32) -> (i32, i32) {
    %c0_i32 = arith.constant 0 : i32
    %c0_i32_0 = arith.constant 0 : i32
    %c0_i32_1 = arith.constant 0 : i32
    return %c0_i32, %c0_i32_0 : i32, i32
  }
  func.func @transform_11(%arg0: i32) -> (i32, i32) {
    %c0_i32 = arith.constant 0 : i32
    %c0_i32_0 = arith.constant 0 : i32
    %c0_i32_1 = arith.constant 0 : i32
    return %c0_i32, %c0_i32_0 : i32, i32
  }
  func.func @transform_12(%arg0: i32) -> (i32, i32, i32) {
    %c0_i32 = arith.constant 0 : i32
    %c0_i32_0 = arith.constant 0 : i32
    %c0_i32_1 = arith.constant 0 : i32
    %c0_i32_2 = arith.constant 0 : i32
    return %c0_i32, %c0_i32_0, %c0_i32_1 : i32, i32, i32
  }
  func.func @transform_13(%arg0: i32) -> (i32, i32) {
    %c0_i32 = arith.constant 0 : i32
    %c0_i32_0 = arith.constant 0 : i32
    %c0_i32_1 = arith.constant 0 : i32
    return %c0_i32, %c0_i32_0 : i32, i32
  }
}

module attributes {stable_mosaic.version = 11 : i64} {
  func.func @_gnn_readout_kernel(%arg0: i32, %arg1: memref<8x8x8xf32, #tpu.memory_space<vmem>>, %arg2: memref<8x8x32xf32, #tpu.memory_space<vmem>>, %arg3: memref<8x32xf32, #tpu.memory_space<vmem>>, %arg4: memref<32x32xf32, #tpu.memory_space<vmem>>, %arg5: memref<1x32xf32, #tpu.memory_space<vmem>>, %arg6: memref<1x32xf32, #tpu.memory_space<vmem>>, %arg7: memref<1x32xf32, #tpu.memory_space<vmem>>, %arg8: memref<32x32xf32, #tpu.memory_space<vmem>>, %arg9: memref<1x32xf32, #tpu.memory_space<vmem>>, %arg10: memref<1x32xf32, #tpu.memory_space<vmem>>, %arg11: memref<1x32xf32, #tpu.memory_space<vmem>>, %arg12: memref<1x1xf32, #tpu.memory_space<smem>>, %arg13: memref<8x8x32xf32, #tpu.memory_space<vmem>>, %arg14: memref<8x32xf32, #tpu.memory_space<vmem>>) attributes {dimension_semantics = [#tpu.dimension_semantics<arbitrary>], iteration_bounds = array<i64: 1>, scalar_prefetch = 0 : i64, scratch_operands = 0 : i64, tpu.core_type = #tpu.core_type<tc>, window_params = [{pipeline_mode = #tpu.pipeline_mode<synchronous>, transform_indices = @transform_0, window_bounds = array<i64: 8, 8, 8>}, {pipeline_mode = #tpu.pipeline_mode<synchronous>, transform_indices = @transform_1, window_bounds = array<i64: 8, 8, 32>}, {pipeline_mode = #tpu.pipeline_mode<synchronous>, transform_indices = @transform_2, window_bounds = array<i64: 8, 32>}, {pipeline_mode = #tpu.pipeline_mode<synchronous>, transform_indices = @transform_3, window_bounds = array<i64: 32, 32>}, {pipeline_mode = #tpu.pipeline_mode<synchronous>, transform_indices = @transform_4, window_bounds = array<i64: 1, 32>}, {pipeline_mode = #tpu.pipeline_mode<synchronous>, transform_indices = @transform_5, window_bounds = array<i64: 1, 32>}, {pipeline_mode = #tpu.pipeline_mode<synchronous>, transform_indices = @transform_6, window_bounds = array<i64: 1, 32>}, {pipeline_mode = #tpu.pipeline_mode<synchronous>, transform_indices = @transform_7, window_bounds = array<i64: 32, 32>}, {pipeline_mode = #tpu.pipeline_mode<synchronous>, transform_indices = @transform_8, window_bounds = array<i64: 1, 32>}, {pipeline_mode = #tpu.pipeline_mode<synchronous>, transform_indices = @transform_9, window_bounds = array<i64: 1, 32>}, {pipeline_mode = #tpu.pipeline_mode<synchronous>, transform_indices = @transform_10, window_bounds = array<i64: 1, 32>}, {transform_indices = @transform_11, window_bounds = array<i64: 1, 1>}, {pipeline_mode = #tpu.pipeline_mode<synchronous>, transform_indices = @transform_12, window_bounds = array<i64: 8, 8, 32>}, {pipeline_mode = #tpu.pipeline_mode<synchronous>, transform_indices = @transform_13, window_bounds = array<i64: 8, 32>}]} {
    %c0 = arith.constant 0 : index
    %c0_0 = arith.constant 0 : index
    %0 = memref.load %arg12[%c0, %c0_0] : memref<1x1xf32, #tpu.memory_space<smem>>
    %c0_1 = arith.constant 0 : index
    %c0_2 = arith.constant 0 : index
    %c0_3 = arith.constant 0 : index
    %1 = vector.load %arg2[%c0_1, %c0_2, %c0_3] : memref<8x8x32xf32, #tpu.memory_space<vmem>>, vector<8x8x32xf32>
    %c0_4 = arith.constant 0 : index
    %c0_5 = arith.constant 0 : index
    %c0_6 = arith.constant 0 : index
    %2 = vector.load %arg1[%c0_4, %c0_5, %c0_6] : memref<8x8x8xf32, #tpu.memory_space<vmem>>, vector<8x8x8xf32>
    "tpu.trace_start"() <{level = 10 : i32, message = "bij,bjc->bic"}> : () -> ()
    %cst = arith.constant dense<0.000000e+00> : vector<8x8x32xf32>
    %3 = tpu.matmul %2, %1, %cst {dimension_numbers = #tpu.dot_dimension_numbers<[2], [1], [1], [2], [0, 0, 0, 1, 1, 2], [0], [0]>} : vector<8x8x8xf32>, vector<8x8x32xf32>, vector<8x8x32xf32> -> vector<8x8x32xf32>
    "tpu.trace_stop"() : () -> ()
    %4 = vector.broadcast %0 : f32 to vector<8x8x32xf32>
    %5 = arith.mulf %4, %1 : vector<8x8x32xf32>
    %6 = arith.addf %3, %5 : vector<8x8x32xf32>
    %7 = vector.shape_cast %6 : vector<8x8x32xf32> to vector<64x32xf32>
    %c0_7 = arith.constant 0 : index
    %c0_8 = arith.constant 0 : index
    %8 = vector.load %arg4[%c0_7, %c0_8] : memref<32x32xf32, #tpu.memory_space<vmem>>, vector<32x32xf32>
    %cst_9 = arith.constant dense<0.000000e+00> : vector<64x32xf32>
    %9 = tpu.matmul %7, %8, %cst_9 {dimension_numbers = #tpu.dot_dimension_numbers<[1], [0], [0], [1], [0, 0, 1, 1], [], []>} : vector<64x32xf32>, vector<32x32xf32>, vector<64x32xf32> -> vector<64x32xf32>
    %c0_10 = arith.constant 0 : index
    %c0_11 = arith.constant 0 : index
    %10 = vector.load %arg5[%c0_10, %c0_11] : memref<1x32xf32, #tpu.memory_space<vmem>>, vector<1x32xf32>
    %11 = vector.broadcast %10 : vector<1x32xf32> to vector<64x32xf32>
    %12 = arith.addf %9, %11 : vector<64x32xf32>
    %c0_12 = arith.constant 0 : index
    %c0_13 = arith.constant 0 : index
    %13 = vector.load %arg6[%c0_12, %c0_13] : memref<1x32xf32, #tpu.memory_space<vmem>>, vector<1x32xf32>
    %14 = vector.broadcast %13 : vector<1x32xf32> to vector<64x32xf32>
    %15 = arith.mulf %12, %14 : vector<64x32xf32>
    %c0_14 = arith.constant 0 : index
    %c0_15 = arith.constant 0 : index
    %16 = vector.load %arg7[%c0_14, %c0_15] : memref<1x32xf32, #tpu.memory_space<vmem>>, vector<1x32xf32>
    %17 = vector.broadcast %16 : vector<1x32xf32> to vector<64x32xf32>
    %18 = arith.addf %15, %17 : vector<64x32xf32>
    %cst_16 = arith.constant 0.000000e+00 : f32
    %19 = vector.broadcast %cst_16 : f32 to vector<64x32xf32>
    %20 = arith.maximumf %18, %19 : vector<64x32xf32>
    %c0_17 = arith.constant 0 : index
    %c0_18 = arith.constant 0 : index
    %21 = vector.load %arg8[%c0_17, %c0_18] : memref<32x32xf32, #tpu.memory_space<vmem>>, vector<32x32xf32>
    %cst_19 = arith.constant dense<0.000000e+00> : vector<64x32xf32>
    %22 = tpu.matmul %20, %21, %cst_19 {dimension_numbers = #tpu.dot_dimension_numbers<[1], [0], [0], [1], [0, 0, 1, 1], [], []>} : vector<64x32xf32>, vector<32x32xf32>, vector<64x32xf32> -> vector<64x32xf32>
    %c0_20 = arith.constant 0 : index
    %c0_21 = arith.constant 0 : index
    %23 = vector.load %arg9[%c0_20, %c0_21] : memref<1x32xf32, #tpu.memory_space<vmem>>, vector<1x32xf32>
    %24 = vector.broadcast %23 : vector<1x32xf32> to vector<64x32xf32>
    %25 = arith.addf %22, %24 : vector<64x32xf32>
    %c0_22 = arith.constant 0 : index
    %c0_23 = arith.constant 0 : index
    %26 = vector.load %arg10[%c0_22, %c0_23] : memref<1x32xf32, #tpu.memory_space<vmem>>, vector<1x32xf32>
    %27 = vector.broadcast %26 : vector<1x32xf32> to vector<64x32xf32>
    %28 = arith.mulf %25, %27 : vector<64x32xf32>
    %c0_24 = arith.constant 0 : index
    %c0_25 = arith.constant 0 : index
    %29 = vector.load %arg11[%c0_24, %c0_25] : memref<1x32xf32, #tpu.memory_space<vmem>>, vector<1x32xf32>
    %30 = vector.broadcast %29 : vector<1x32xf32> to vector<64x32xf32>
    %31 = arith.addf %28, %30 : vector<64x32xf32>
    %cst_26 = arith.constant 0.000000e+00 : f32
    %32 = vector.broadcast %cst_26 : f32 to vector<64x32xf32>
    %33 = arith.maximumf %31, %32 : vector<64x32xf32>
    %34 = vector.shape_cast %33 : vector<64x32xf32> to vector<8x8x32xf32>
    %c0_27 = arith.constant 0 : index
    %c0_28 = arith.constant 0 : index
    %c0_29 = arith.constant 0 : index
    %35 = vector.load %arg13[%c0_27, %c0_28, %c0_29] : memref<8x8x32xf32, #tpu.memory_space<vmem>>, vector<8x8x32xf32>
    tpu.vector_store %arg13[%c0_27, %c0_28, %c0_29], %34 {strides = array<i32>} : memref<8x8x32xf32, #tpu.memory_space<vmem>>, vector<8x8x32xf32>,
    %c0_30 = arith.constant 0 : index
    %c0_31 = arith.constant 0 : index
    %36 = vector.load %arg3[%c0_30, %c0_31] : memref<8x32xf32, #tpu.memory_space<vmem>>, vector<8x32xf32>
    %37 = vector.shape_cast %36 : vector<8x32xf32> to vector<8x1x32xf32>
    %38 = vector.broadcast %37 : vector<8x1x32xf32> to vector<8x8x32xf32>
    %39 = arith.mulf %34, %38 : vector<8x8x32xf32>
    %cst_32 = arith.constant dense<0.000000e+00> : vector<8x8xf32>
    %40 = vector.multi_reduction <add>, %39, %cst_32 [2] : vector<8x8x32xf32> to vector<8x8xf32>
    %cst_33 = arith.constant dense<0xFF800000> : vector<8xf32>
    %41 = vector.multi_reduction <maximumf>, %40, %cst_33 [1] : vector<8x8xf32> to vector<8xf32>
    %42 = vector.shape_cast %41 : vector<8xf32> to vector<8x1xf32>
    %43 = vector.broadcast %42 : vector<8x1xf32> to vector<8x8xf32>
    %44 = arith.subf %40, %43 : vector<8x8xf32>
    %45 = math.exp %44 : vector<8x8xf32>
    %cst_34 = arith.constant dense<0.000000e+00> : vector<8xf32>
    %46 = vector.multi_reduction <add>, %45, %cst_34 [1] : vector<8x8xf32> to vector<8xf32>
    %47 = vector.shape_cast %46 : vector<8xf32> to vector<8x1xf32>
    %48 = vector.broadcast %47 : vector<8x1xf32> to vector<8x8xf32>
    %49 = arith.divf %45, %48 : vector<8x8xf32>
    %cst_35 = arith.constant 1.000000e+00 : f32
    %50 = vector.broadcast %cst_35 : f32 to vector<8x8xf32>
    %51 = arith.addf %49, %50 : vector<8x8xf32>
    %52 = vector.shape_cast %51 : vector<8x8xf32> to vector<8x8x1xf32>
    %53 = vector.broadcast %52 : vector<8x8x1xf32> to vector<8x8x32xf32>
    %54 = arith.mulf %34, %53 : vector<8x8x32xf32>
    %cst_36 = arith.constant dense<0.000000e+00> : vector<8x32xf32>
    %55 = vector.multi_reduction <add>, %54, %cst_36 [1] : vector<8x8x32xf32> to vector<8x32xf32>
    %c0_37 = arith.constant 0 : index
    %c0_38 = arith.constant 0 : index
    %56 = vector.load %arg14[%c0_37, %c0_38] : memref<8x32xf32, #tpu.memory_space<vmem>>, vector<8x32xf32>
    tpu.vector_store %arg14[%c0_37, %c0_38], %55 {strides = array<i32>} : memref<8x32xf32, #tpu.memory_space<vmem>>, vector<8x32xf32>,
    return
  }
  func.func @transform_0(%arg0: i32) -> (i32, i32, i32) {
    %c0_i32 = arith.constant 0 : i32
    %c0_i32_0 = arith.constant 0 : i32
    %c0_i32_1 = arith.constant 0 : i32
    %c0_i32_2 = arith.constant 0 : i32
    return %c0_i32, %c0_i32_0, %c0_i32_1 : i32, i32, i32
  }
  func.func @transform_1(%arg0: i32) -> (i32, i32, i32) {
    %c0_i32 = arith.constant 0 : i32
    %c0_i32_0 = arith.constant 0 : i32
    %c0_i32_1 = arith.constant 0 : i32
    %c0_i32_2 = arith.constant 0 : i32
    return %c0_i32, %c0_i32_0, %c0_i32_1 : i32, i32, i32
  }
  func.func @transform_2(%arg0: i32) -> (i32, i32) {
    %c0_i32 = arith.constant 0 : i32
    %c0_i32_0 = arith.constant 0 : i32
    %c0_i32_1 = arith.constant 0 : i32
    return %c0_i32, %c0_i32_0 : i32, i32
  }
  func.func @transform_3(%arg0: i32) -> (i32, i32) {
    %c0_i32 = arith.constant 0 : i32
    %c0_i32_0 = arith.constant 0 : i32
    %c0_i32_1 = arith.constant 0 : i32
    return %c0_i32, %c0_i32_0 : i32, i32
  }
  func.func @transform_4(%arg0: i32) -> (i32, i32) {
    %c0_i32 = arith.constant 0 : i32
    %c0_i32_0 = arith.constant 0 : i32
    %c0_i32_1 = arith.constant 0 : i32
    return %c0_i32, %c0_i32_0 : i32, i32
  }
  func.func @transform_5(%arg0: i32) -> (i32, i32) {
    %c0_i32 = arith.constant 0 : i32
    %c0_i32_0 = arith.constant 0 : i32
    %c0_i32_1 = arith.constant 0 : i32
    return %c0_i32, %c0_i32_0 : i32, i32
  }
  func.func @transform_6(%arg0: i32) -> (i32, i32) {
    %c0_i32 = arith.constant 0 : i32
    %c0_i32_0 = arith.constant 0 : i32
    %c0_i32_1 = arith.constant 0 : i32
    return %c0_i32, %c0_i32_0 : i32, i32
  }
  func.func @transform_7(%arg0: i32) -> (i32, i32) {
    %c0_i32 = arith.constant 0 : i32
    %c0_i32_0 = arith.constant 0 : i32
    %c0_i32_1 = arith.constant 0 : i32
    return %c0_i32, %c0_i32_0 : i32, i32
  }
  func.func @transform_8(%arg0: i32) -> (i32, i32) {
    %c0_i32 = arith.constant 0 : i32
    %c0_i32_0 = arith.constant 0 : i32
    %c0_i32_1 = arith.constant 0 : i32
    return %c0_i32, %c0_i32_0 : i32, i32
  }
  func.func @transform_9(%arg0: i32) -> (i32, i32) {
    %c0_i32 = arith.constant 0 : i32
    %c0_i32_0 = arith.constant 0 : i32
    %c0_i32_1 = arith.constant 0 : i32
    return %c0_i32, %c0_i32_0 : i32, i32
  }
  func.func @transform_10(%arg0: i32) -> (i32, i32) {
    %c0_i32 = arith.constant 0 : i32
    %c0_i32_0 = arith.constant 0 : i32
    %c0_i32_1 = arith.constant 0 : i32
    return %c0_i32, %c0_i32_0 : i32, i32
  }
  func.func @transform_11(%arg0: i32) -> (i32, i32) {
    %c0_i32 = arith.constant 0 : i32
    %c0_i32_0 = arith.constant 0 : i32
    %c0_i32_1 = arith.constant 0 : i32
    return %c0_i32, %c0_i32_0 : i32, i32
  }
  func.func @transform_12(%arg0: i32) -> (i32, i32, i32) {
    %c0_i32 = arith.constant 0 : i32
    %c0_i32_0 = arith.constant 0 : i32
    %c0_i32_1 = arith.constant 0 : i32
    %c0_i32_2 = arith.constant 0 : i32
    return %c0_i32, %c0_i32_0, %c0_i32_1 : i32, i32, i32
  }
  func.func @transform_13(%arg0: i32) -> (i32, i32) {
    %c0_i32 = arith.constant 0 : i32
    %c0_i32_0 = arith.constant 0 : i32
    %c0_i32_1 = arith.constant 0 : i32
    return %c0_i32, %c0_i32_0 : i32, i32
  }
}

module attributes {stable_mosaic.version = 11 : i64} {
  func.func @_transformer_cls_kernel(%arg0: i32, %arg1: memref<2x4x32xf32, #tpu.memory_space<vmem>>, %arg2: memref<2x16x32xf32, #tpu.memory_space<vmem>>, %arg3: memref<32x32xf32, #tpu.memory_space<vmem>>, %arg4: memref<1x32xf32, #tpu.memory_space<vmem>>, %arg5: memref<32x64xf32, #tpu.memory_space<vmem>>, %arg6: memref<1x64xf32, #tpu.memory_space<vmem>>, %arg7: memref<32x32xf32, #tpu.memory_space<vmem>>, %arg8: memref<1x32xf32, #tpu.memory_space<vmem>>, %arg9: memref<1x32xf32, #tpu.memory_space<vmem>>, %arg10: memref<1x32xf32, #tpu.memory_space<vmem>>, %arg11: memref<32x64xf32, #tpu.memory_space<vmem>>, %arg12: memref<1x64xf32, #tpu.memory_space<vmem>>, %arg13: memref<64x32xf32, #tpu.memory_space<vmem>>, %arg14: memref<1x32xf32, #tpu.memory_space<vmem>>, %arg15: memref<1x32xf32, #tpu.memory_space<vmem>>, %arg16: memref<1x32xf32, #tpu.memory_space<vmem>>, %arg17: memref<32x3xf32, #tpu.memory_space<vmem>>, %arg18: memref<1x3xf32, #tpu.memory_space<vmem>>, %arg19: memref<2x3xf32, #tpu.memory_space<vmem>>, %arg20: memref<2x4x16xf32, #tpu.memory_space<vmem>>) attributes {dimension_semantics = [#tpu.dimension_semantics<arbitrary>], iteration_bounds = array<i64: 1>, scalar_prefetch = 0 : i64, scratch_operands = 0 : i64, tpu.core_type = #tpu.core_type<tc>, window_params = [{pipeline_mode = #tpu.pipeline_mode<synchronous>, transform_indices = @transform_0, window_bounds = array<i64: 2, 4, 32>}, {pipeline_mode = #tpu.pipeline_mode<synchronous>, transform_indices = @transform_1, window_bounds = array<i64: 2, 16, 32>}, {pipeline_mode = #tpu.pipeline_mode<synchronous>, transform_indices = @transform_2, window_bounds = array<i64: 32, 32>}, {pipeline_mode = #tpu.pipeline_mode<synchronous>, transform_indices = @transform_3, window_bounds = array<i64: 1, 32>}, {pipeline_mode = #tpu.pipeline_mode<synchronous>, transform_indices = @transform_4, window_bounds = array<i64: 32, 64>}, {pipeline_mode = #tpu.pipeline_mode<synchronous>, transform_indices = @transform_5, window_bounds = array<i64: 1, 64>}, {pipeline_mode = #tpu.pipeline_mode<synchronous>, transform_indices = @transform_6, window_bounds = array<i64: 32, 32>}, {pipeline_mode = #tpu.pipeline_mode<synchronous>, transform_indices = @transform_7, window_bounds = array<i64: 1, 32>}, {pipeline_mode = #tpu.pipeline_mode<synchronous>, transform_indices = @transform_8, window_bounds = array<i64: 1, 32>}, {pipeline_mode = #tpu.pipeline_mode<synchronous>, transform_indices = @transform_9, window_bounds = array<i64: 1, 32>}, {pipeline_mode = #tpu.pipeline_mode<synchronous>, transform_indices = @transform_10, window_bounds = array<i64: 32, 64>}, {pipeline_mode = #tpu.pipeline_mode<synchronous>, transform_indices = @transform_11, window_bounds = array<i64: 1, 64>}, {pipeline_mode = #tpu.pipeline_mode<synchronous>, transform_indices = @transform_12, window_bounds = array<i64: 64, 32>}, {pipeline_mode = #tpu.pipeline_mode<synchronous>, transform_indices = @transform_13, window_bounds = array<i64: 1, 32>}, {pipeline_mode = #tpu.pipeline_mode<synchronous>, transform_indices = @transform_14, window_bounds = array<i64: 1, 32>}, {pipeline_mode = #tpu.pipeline_mode<synchronous>, transform_indices = @transform_15, window_bounds = array<i64: 1, 32>}, {pipeline_mode = #tpu.pipeline_mode<synchronous>, transform_indices = @transform_16, window_bounds = array<i64: 32, 3>}, {pipeline_mode = #tpu.pipeline_mode<synchronous>, transform_indices = @transform_17, window_bounds = array<i64: 1, 3>}, {pipeline_mode = #tpu.pipeline_mode<synchronous>, transform_indices = @transform_18, window_bounds = array<i64: 2, 3>}, {pipeline_mode = #tpu.pipeline_mode<synchronous>, transform_indices = @transform_19, window_bounds = array<i64: 2, 4, 16>}]} {
    %c0 = arith.constant 0 : index
    %c0_0 = arith.constant 0 : index
    %c0_1 = arith.constant 0 : index
    %0 = vector.load %arg1[%c0, %c0_0, %c0_1] : memref<2x4x32xf32, #tpu.memory_space<vmem>>, vector<2x4x32xf32>
    %1 = vector.shape_cast %0 : vector<2x4x32xf32> to vector<8x32xf32>
    %c0_2 = arith.constant 0 : index
    %c0_3 = arith.constant 0 : index
    %c0_4 = arith.constant 0 : index
    %2 = vector.load %arg2[%c0_2, %c0_3, %c0_4] : memref<2x16x32xf32, #tpu.memory_space<vmem>>, vector<2x16x32xf32>
    %3 = vector.shape_cast %2 : vector<2x16x32xf32> to vector<32x32xf32>
    %c0_5 = arith.constant 0 : index
    %c0_6 = arith.constant 0 : index
    %4 = vector.load %arg3[%c0_5, %c0_6] : memref<32x32xf32, #tpu.memory_space<vmem>>, vector<32x32xf32>
    %cst = arith.constant dense<0.000000e+00> : vector<8x32xf32>
    %5 = tpu.matmul %1, %4, %cst {dimension_numbers = #tpu.dot_dimension_numbers<[1], [0], [0], [1], [0, 0, 1, 1], [], []>} : vector<8x32xf32>, vector<32x32xf32>, vector<8x32xf32> -> vector<8x32xf32>
    %c0_7 = arith.constant 0 : index
    %c0_8 = arith.constant 0 : index
    %6 = vector.load %arg4[%c0_7, %c0_8] : memref<1x32xf32, #tpu.memory_space<vmem>>, vector<1x32xf32>
    %7 = vector.broadcast %6 : vector<1x32xf32> to vector<8x32xf32>
    %8 = arith.addf %5, %7 : vector<8x32xf32>
    %c0_9 = arith.constant 0 : index
    %c0_10 = arith.constant 0 : index
    %9 = vector.load %arg5[%c0_9, %c0_10] : memref<32x64xf32, #tpu.memory_space<vmem>>, vector<32x64xf32>
    %cst_11 = arith.constant dense<0.000000e+00> : vector<32x64xf32>
    %10 = tpu.matmul %3, %9, %cst_11 {dimension_numbers = #tpu.dot_dimension_numbers<[1], [0], [0], [1], [0, 0, 1, 1], [], []>} : vector<32x32xf32>, vector<32x64xf32>, vector<32x64xf32> -> vector<32x64xf32>
    %c0_12 = arith.constant 0 : index
    %c0_13 = arith.constant 0 : index
    %11 = vector.load %arg6[%c0_12, %c0_13] : memref<1x64xf32, #tpu.memory_space<vmem>>, vector<1x64xf32>
    %12 = vector.broadcast %11 : vector<1x64xf32> to vector<32x64xf32>
    %13 = arith.addf %10, %12 : vector<32x64xf32>
    %14 = vector.extract_strided_slice %13 {offsets = [0, 0], sizes = [32, 32], strides = [1, 1]} : vector<32x64xf32> to vector<32x32xf32>
    %15 = vector.extract_strided_slice %13 {offsets = [0, 32], sizes = [32, 32], strides = [1, 1]} : vector<32x64xf32> to vector<32x32xf32>
    %c0_14 = arith.constant 0 : index
    %c0_15 = arith.constant 0 : index
    %16 = vector.load %arg7[%c0_14, %c0_15] : memref<32x32xf32, #tpu.memory_space<vmem>>, vector<32x32xf32>
    %17 = vector.extract_strided_slice %8 {offsets = [0, 0], sizes = [4, 32], strides = [1, 1]} : vector<8x32xf32> to vector<4x32xf32>
    %18 = vector.extract_strided_slice %14 {offsets = [0, 0], sizes = [16, 32], strides = [1, 1]} : vector<32x32xf32> to vector<16x32xf32>
    %19 = vector.extract_strided_slice %15 {offsets = [0, 0], sizes = [16, 32], strides = [1, 1]} : vector<32x32xf32> to vector<16x32xf32>
    %cst_16 = arith.constant 0.000000e+00 : f32
    %20 = vector.broadcast %cst_16 : f32 to vector<4x32xf32>
    %cst_17 = arith.constant 0.000000e+00 : f32
    %21 = vector.broadcast %cst_17 : f32 to vector<4x16xf32>
    %22 = vector.extract_strided_slice %17 {offsets = [0, 0], sizes = [4, 8], strides = [1, 1]} : vector<4x32xf32> to vector<4x8xf32>
    %cst_18 = arith.constant 0.353553385 : f32
    %23 = vector.broadcast %cst_18 : f32 to vector<4x8xf32>
    %24 = arith.mulf %22, %23 : vector<4x8xf32>
    %25 = vector.extract_strided_slice %18 {offsets = [0, 0], sizes = [16, 8], strides = [1, 1]} : vector<16x32xf32> to vector<16x8xf32>
    %cst_19 = arith.constant dense<0.000000e+00> : vector<4x16xf32>
    %26 = tpu.matmul %24, %25, %cst_19 {dimension_numbers = #tpu.dot_dimension_numbers<[1], [1], [0], [0], [0, 0, 1, 0], [], []>} : vector<4x8xf32>, vector<16x8xf32>, vector<4x16xf32> -> vector<4x16xf32>
    %cst_20 = arith.constant dense<0xFF800000> : vector<4xf32>
    %27 = vector.multi_reduction <maximumf>, %26, %cst_20 [1] : vector<4x16xf32> to vector<4xf32>
    %28 = vector.shape_cast %27 : vector<4xf32> to vector<4x1xf32>
    %29 = vector.broadcast %28 : vector<4x1xf32> to vector<4x16xf32>
    %30 = arith.subf %26, %29 : vector<4x16xf32>
    %31 = math.exp %30 : vector<4x16xf32>
    %cst_21 = arith.constant dense<0.000000e+00> : vector<4xf32>
    %32 = vector.multi_reduction <add>, %31, %cst_21 [1] : vector<4x16xf32> to vector<4xf32>
    %33 = vector.shape_cast %32 : vector<4xf32> to vector<4x1xf32>
    %34 = vector.broadcast %33 : vector<4x1xf32> to vector<4x16xf32>
    %35 = arith.divf %31, %34 : vector<4x16xf32>
    %36 = arith.addf %21, %35 : vector<4x16xf32>
    %37 = vector.extract_strided_slice %19 {offsets = [0, 0], sizes = [16, 8], strides = [1, 1]} : vector<16x32xf32> to vector<16x8xf32>
    %cst_22 = arith.constant dense<0.000000e+00> : vector<4x8xf32>
    %38 = tpu.matmul %35, %37, %cst_22 {dimension_numbers = #tpu.dot_dimension_numbers<[1], [0], [0], [1], [0, 0, 1, 1], [], []>} : vector<4x16xf32>, vector<16x8xf32>, vector<4x8xf32> -> vector<4x8xf32>
    %39 = vector.extract_strided_slice %16 {offsets = [0, 0], sizes = [8, 32], strides = [1, 1]} : vector<32x32xf32> to vector<8x32xf32>
    %cst_23 = arith.constant dense<0.000000e+00> : vector<4x32xf32>
    %40 = tpu.matmul %38, %39, %cst_23 {dimension_numbers = #tpu.dot_dimension_numbers<[1], [0], [0], [1], [0, 0, 1, 1], [], []>} : vector<4x8xf32>, vector<8x32xf32>, vector<4x32xf32> -> vector<4x32xf32>
    %41 = arith.addf %20, %40 : vector<4x32xf32>
    %42 = vector.extract_strided_slice %17 {offsets = [0, 8], sizes = [4, 8], strides = [1, 1]} : vector<4x32xf32> to vector<4x8xf32>
    %cst_24 = arith.constant 0.353553385 : f32
    %43 = vector.broadcast %cst_24 : f32 to vector<4x8xf32>
    %44 = arith.mulf %42, %43 : vector<4x8xf32>
    %45 = vector.extract_strided_slice %18 {offsets = [0, 8], sizes = [16, 8], strides = [1, 1]} : vector<16x32xf32> to vector<16x8xf32>
    %cst_25 = arith.constant dense<0.000000e+00> : vector<4x16xf32>
    %46 = tpu.matmul %44, %45, %cst_25 {dimension_numbers = #tpu.dot_dimension_numbers<[1], [1], [0], [0], [0, 0, 1, 0], [], []>} : vector<4x8xf32>, vector<16x8xf32>, vector<4x16xf32> -> vector<4x16xf32>
    %cst_26 = arith.constant dense<0xFF800000> : vector<4xf32>
    %47 = vector.multi_reduction <maximumf>, %46, %cst_26 [1] : vector<4x16xf32> to vector<4xf32>
    %48 = vector.shape_cast %47 : vector<4xf32> to vector<4x1xf32>
    %49 = vector.broadcast %48 : vector<4x1xf32> to vector<4x16xf32>
    %50 = arith.subf %46, %49 : vector<4x16xf32>
    %51 = math.exp %50 : vector<4x16xf32>
    %cst_27 = arith.constant dense<0.000000e+00> : vector<4xf32>
    %52 = vector.multi_reduction <add>, %51, %cst_27 [1] : vector<4x16xf32> to vector<4xf32>
    %53 = vector.shape_cast %52 : vector<4xf32> to vector<4x1xf32>
    %54 = vector.broadcast %53 : vector<4x1xf32> to vector<4x16xf32>
    %55 = arith.divf %51, %54 : vector<4x16xf32>
    %56 = arith.addf %36, %55 : vector<4x16xf32>
    %57 = vector.extract_strided_slice %19 {offsets = [0, 8], sizes = [16, 8], strides = [1, 1]} : vector<16x32xf32> to vector<16x8xf32>
    %cst_28 = arith.constant dense<0.000000e+00> : vector<4x8xf32>
    %58 = tpu.matmul %55, %57, %cst_28 {dimension_numbers = #tpu.dot_dimension_numbers<[1], [0], [0], [1], [0, 0, 1, 1], [], []>} : vector<4x16xf32>, vector<16x8xf32>, vector<4x8xf32> -> vector<4x8xf32>
    %59 = vector.extract_strided_slice %16 {offsets = [8, 0], sizes = [8, 32], strides = [1, 1]} : vector<32x32xf32> to vector<8x32xf32>
    %cst_29 = arith.constant dense<0.000000e+00> : vector<4x32xf32>
    %60 = tpu.matmul %58, %59, %cst_29 {dimension_numbers = #tpu.dot_dimension_numbers<[1], [0], [0], [1], [0, 0, 1, 1], [], []>} : vector<4x8xf32>, vector<8x32xf32>, vector<4x32xf32> -> vector<4x32xf32>
    %61 = arith.addf %41, %60 : vector<4x32xf32>
    %62 = vector.extract_strided_slice %17 {offsets = [0, 16], sizes = [4, 8], strides = [1, 1]} : vector<4x32xf32> to vector<4x8xf32>
    %cst_30 = arith.constant 0.353553385 : f32
    %63 = vector.broadcast %cst_30 : f32 to vector<4x8xf32>
    %64 = arith.mulf %62, %63 : vector<4x8xf32>
    %65 = vector.extract_strided_slice %18 {offsets = [0, 16], sizes = [16, 8], strides = [1, 1]} : vector<16x32xf32> to vector<16x8xf32>
    %cst_31 = arith.constant dense<0.000000e+00> : vector<4x16xf32>
    %66 = tpu.matmul %64, %65, %cst_31 {dimension_numbers = #tpu.dot_dimension_numbers<[1], [1], [0], [0], [0, 0, 1, 0], [], []>} : vector<4x8xf32>, vector<16x8xf32>, vector<4x16xf32> -> vector<4x16xf32>
    %cst_32 = arith.constant dense<0xFF800000> : vector<4xf32>
    %67 = vector.multi_reduction <maximumf>, %66, %cst_32 [1] : vector<4x16xf32> to vector<4xf32>
    %68 = vector.shape_cast %67 : vector<4xf32> to vector<4x1xf32>
    %69 = vector.broadcast %68 : vector<4x1xf32> to vector<4x16xf32>
    %70 = arith.subf %66, %69 : vector<4x16xf32>
    %71 = math.exp %70 : vector<4x16xf32>
    %cst_33 = arith.constant dense<0.000000e+00> : vector<4xf32>
    %72 = vector.multi_reduction <add>, %71, %cst_33 [1] : vector<4x16xf32> to vector<4xf32>
    %73 = vector.shape_cast %72 : vector<4xf32> to vector<4x1xf32>
    %74 = vector.broadcast %73 : vector<4x1xf32> to vector<4x16xf32>
    %75 = arith.divf %71, %74 : vector<4x16xf32>
    %76 = arith.addf %56, %75 : vector<4x16xf32>
    %77 = vector.extract_strided_slice %19 {offsets = [0, 16], sizes = [16, 8], strides = [1, 1]} : vector<16x32xf32> to vector<16x8xf32>
    %cst_34 = arith.constant dense<0.000000e+00> : vector<4x8xf32>
    %78 = tpu.matmul %75, %77, %cst_34 {dimension_numbers = #tpu.dot_dimension_numbers<[1], [0], [0], [1], [0, 0, 1, 1], [], []>} : vector<4x16xf32>, vector<16x8xf32>, vector<4x8xf32> -> vector<4x8xf32>
    %79 = vector.extract_strided_slice %16 {offsets = [16, 0], sizes = [8, 32], strides = [1, 1]} : vector<32x32xf32> to vector<8x32xf32>
    %cst_35 = arith.constant dense<0.000000e+00> : vector<4x32xf32>
    %80 = tpu.matmul %78, %79, %cst_35 {dimension_numbers = #tpu.dot_dimension_numbers<[1], [0], [0], [1], [0, 0, 1, 1], [], []>} : vector<4x8xf32>, vector<8x32xf32>, vector<4x32xf32> -> vector<4x32xf32>
    %81 = arith.addf %61, %80 : vector<4x32xf32>
    %82 = vector.extract_strided_slice %17 {offsets = [0, 24], sizes = [4, 8], strides = [1, 1]} : vector<4x32xf32> to vector<4x8xf32>
    %cst_36 = arith.constant 0.353553385 : f32
    %83 = vector.broadcast %cst_36 : f32 to vector<4x8xf32>
    %84 = arith.mulf %82, %83 : vector<4x8xf32>
    %85 = vector.extract_strided_slice %18 {offsets = [0, 24], sizes = [16, 8], strides = [1, 1]} : vector<16x32xf32> to vector<16x8xf32>
    %cst_37 = arith.constant dense<0.000000e+00> : vector<4x16xf32>
    %86 = tpu.matmul %84, %85, %cst_37 {dimension_numbers = #tpu.dot_dimension_numbers<[1], [1], [0], [0], [0, 0, 1, 0], [], []>} : vector<4x8xf32>, vector<16x8xf32>, vector<4x16xf32> -> vector<4x16xf32>
    %cst_38 = arith.constant dense<0xFF800000> : vector<4xf32>
    %87 = vector.multi_reduction <maximumf>, %86, %cst_38 [1] : vector<4x16xf32> to vector<4xf32>
    %88 = vector.shape_cast %87 : vector<4xf32> to vector<4x1xf32>
    %89 = vector.broadcast %88 : vector<4x1xf32> to vector<4x16xf32>
    %90 = arith.subf %86, %89 : vector<4x16xf32>
    %91 = math.exp %90 : vector<4x16xf32>
    %cst_39 = arith.constant dense<0.000000e+00> : vector<4xf32>
    %92 = vector.multi_reduction <add>, %91, %cst_39 [1] : vector<4x16xf32> to vector<4xf32>
    %93 = vector.shape_cast %92 : vector<4xf32> to vector<4x1xf32>
    %94 = vector.broadcast %93 : vector<4x1xf32> to vector<4x16xf32>
    %95 = arith.divf %91, %94 : vector<4x16xf32>
    %96 = arith.addf %76, %95 : vector<4x16xf32>
    %97 = vector.extract_strided_slice %19 {offsets = [0, 24], sizes = [16, 8], strides = [1, 1]} : vector<16x32xf32> to vector<16x8xf32>
    %cst_40 = arith.constant dense<0.000000e+00> : vector<4x8xf32>
    %98 = tpu.matmul %95, %97, %cst_40 {dimension_numbers = #tpu.dot_dimension_numbers<[1], [0], [0], [1], [0, 0, 1, 1], [], []>} : vector<4x16xf32>, vector<16x8xf32>, vector<4x8xf32> -> vector<4x8xf32>
    %99 = vector.extract_strided_slice %16 {offsets = [24, 0], sizes = [8, 32], strides = [1, 1]} : vector<32x32xf32> to vector<8x32xf32>
    %cst_41 = arith.constant dense<0.000000e+00> : vector<4x32xf32>
    %100 = tpu.matmul %98, %99, %cst_41 {dimension_numbers = #tpu.dot_dimension_numbers<[1], [0], [0], [1], [0, 0, 1, 1], [], []>} : vector<4x8xf32>, vector<8x32xf32>, vector<4x32xf32> -> vector<4x32xf32>
    %101 = arith.addf %81, %100 : vector<4x32xf32>
    %cst_42 = arith.constant 2.500000e-01 : f32
    %102 = vector.broadcast %cst_42 : f32 to vector<4x16xf32>
    %103 = arith.mulf %96, %102 : vector<4x16xf32>
    %104 = vector.extract_strided_slice %8 {offsets = [4, 0], sizes = [4, 32], strides = [1, 1]} : vector<8x32xf32> to vector<4x32xf32>
    %105 = vector.extract_strided_slice %14 {offsets = [16, 0], sizes = [16, 32], strides = [1, 1]} : vector<32x32xf32> to vector<16x32xf32>
    %106 = vector.extract_strided_slice %15 {offsets = [16, 0], sizes = [16, 32], strides = [1, 1]} : vector<32x32xf32> to vector<16x32xf32>
    %cst_43 = arith.constant 0.000000e+00 : f32
    %107 = vector.broadcast %cst_43 : f32 to vector<4x32xf32>
    %cst_44 = arith.constant 0.000000e+00 : f32
    %108 = vector.broadcast %cst_44 : f32 to vector<4x16xf32>
    %109 = vector.extract_strided_slice %104 {offsets = [0, 0], sizes = [4, 8], strides = [1, 1]} : vector<4x32xf32> to vector<4x8xf32>
    %cst_45 = arith.constant 0.353553385 : f32
    %110 = vector.broadcast %cst_45 : f32 to vector<4x8xf32>
    %111 = arith.mulf %109, %110 : vector<4x8xf32>
    %112 = vector.extract_strided_slice %105 {offsets = [0, 0], sizes = [16, 8], strides = [1, 1]} : vector<16x32xf32> to vector<16x8xf32>
    %cst_46 = arith.constant dense<0.000000e+00> : vector<4x16xf32>
    %113 = tpu.matmul %111, %112, %cst_46 {dimension_numbers = #tpu.dot_dimension_numbers<[1], [1], [0], [0], [0, 0, 1, 0], [], []>} : vector<4x8xf32>, vector<16x8xf32>, vector<4x16xf32> -> vector<4x16xf32>
    %cst_47 = arith.constant dense<0xFF800000> : vector<4xf32>
    %114 = vector.multi_reduction <maximumf>, %113, %cst_47 [1] : vector<4x16xf32> to vector<4xf32>
    %115 = vector.shape_cast %114 : vector<4xf32> to vector<4x1xf32>
    %116 = vector.broadcast %115 : vector<4x1xf32> to vector<4x16xf32>
    %117 = arith.subf %113, %116 : vector<4x16xf32>
    %118 = math.exp %117 : vector<4x16xf32>
    %cst_48 = arith.constant dense<0.000000e+00> : vector<4xf32>
    %119 = vector.multi_reduction <add>, %118, %cst_48 [1] : vector<4x16xf32> to vector<4xf32>
    %120 = vector.shape_cast %119 : vector<4xf32> to vector<4x1xf32>
    %121 = vector.broadcast %120 : vector<4x1xf32> to vector<4x16xf32>
    %122 = arith.divf %118, %121 : vector<4x16xf32>
    %123 = arith.addf %108, %122 : vector<4x16xf32>
    %124 = vector.extract_strided_slice %106 {offsets = [0, 0], sizes = [16, 8], strides = [1, 1]} : vector<16x32xf32> to vector<16x8xf32>
    %cst_49 = arith.constant dense<0.000000e+00> : vector<4x8xf32>
    %125 = tpu.matmul %122, %124, %cst_49 {dimension_numbers = #tpu.dot_dimension_numbers<[1], [0], [0], [1], [0, 0, 1, 1], [], []>} : vector<4x16xf32>, vector<16x8xf32>, vector<4x8xf32> -> vector<4x8xf32>
    %126 = vector.extract_strided_slice %16 {offsets = [0, 0], sizes = [8, 32], strides = [1, 1]} : vector<32x32xf32> to vector<8x32xf32>
    %cst_50 = arith.constant dense<0.000000e+00> : vector<4x32xf32>
    %127 = tpu.matmul %125, %126, %cst_50 {dimension_numbers = #tpu.dot_dimension_numbers<[1], [0], [0], [1], [0, 0, 1, 1], [], []>} : vector<4x8xf32>, vector<8x32xf32>, vector<4x32xf32> -> vector<4x32xf32>
    %128 = arith.addf %107, %127 : vector<4x32xf32>
    %129 = vector.extract_strided_slice %104 {offsets = [0, 8], sizes = [4, 8], strides = [1, 1]} : vector<4x32xf32> to vector<4x8xf32>
    %cst_51 = arith.constant 0.353553385 : f32
    %130 = vector.broadcast %cst_51 : f32 to vector<4x8xf32>
    %131 = arith.mulf %129, %130 : vector<4x8xf32>
    %132 = vector.extract_strided_slice %105 {offsets = [0, 8], sizes = [16, 8], strides = [1, 1]} : vector<16x32xf32> to vector<16x8xf32>
    %cst_52 = arith.constant dense<0.000000e+00> : vector<4x16xf32>
    %133 = tpu.matmul %131, %132, %cst_52 {dimension_numbers = #tpu.dot_dimension_numbers<[1], [1], [0], [0], [0, 0, 1, 0], [], []>} : vector<4x8xf32>, vector<16x8xf32>, vector<4x16xf32> -> vector<4x16xf32>
    %cst_53 = arith.constant dense<0xFF800000> : vector<4xf32>
    %134 = vector.multi_reduction <maximumf>, %133, %cst_53 [1] : vector<4x16xf32> to vector<4xf32>
    %135 = vector.shape_cast %134 : vector<4xf32> to vector<4x1xf32>
    %136 = vector.broadcast %135 : vector<4x1xf32> to vector<4x16xf32>
    %137 = arith.subf %133, %136 : vector<4x16xf32>
    %138 = math.exp %137 : vector<4x16xf32>
    %cst_54 = arith.constant dense<0.000000e+00> : vector<4xf32>
    %139 = vector.multi_reduction <add>, %138, %cst_54 [1] : vector<4x16xf32> to vector<4xf32>
    %140 = vector.shape_cast %139 : vector<4xf32> to vector<4x1xf32>
    %141 = vector.broadcast %140 : vector<4x1xf32> to vector<4x16xf32>
    %142 = arith.divf %138, %141 : vector<4x16xf32>
    %143 = arith.addf %123, %142 : vector<4x16xf32>
    %144 = vector.extract_strided_slice %106 {offsets = [0, 8], sizes = [16, 8], strides = [1, 1]} : vector<16x32xf32> to vector<16x8xf32>
    %cst_55 = arith.constant dense<0.000000e+00> : vector<4x8xf32>
    %145 = tpu.matmul %142, %144, %cst_55 {dimension_numbers = #tpu.dot_dimension_numbers<[1], [0], [0], [1], [0, 0, 1, 1], [], []>} : vector<4x16xf32>, vector<16x8xf32>, vector<4x8xf32> -> vector<4x8xf32>
    %146 = vector.extract_strided_slice %16 {offsets = [8, 0], sizes = [8, 32], strides = [1, 1]} : vector<32x32xf32> to vector<8x32xf32>
    %cst_56 = arith.constant dense<0.000000e+00> : vector<4x32xf32>
    %147 = tpu.matmul %145, %146, %cst_56 {dimension_numbers = #tpu.dot_dimension_numbers<[1], [0], [0], [1], [0, 0, 1, 1], [], []>} : vector<4x8xf32>, vector<8x32xf32>, vector<4x32xf32> -> vector<4x32xf32>
    %148 = arith.addf %128, %147 : vector<4x32xf32>
    %149 = vector.extract_strided_slice %104 {offsets = [0, 16], sizes = [4, 8], strides = [1, 1]} : vector<4x32xf32> to vector<4x8xf32>
    %cst_57 = arith.constant 0.353553385 : f32
    %150 = vector.broadcast %cst_57 : f32 to vector<4x8xf32>
    %151 = arith.mulf %149, %150 : vector<4x8xf32>
    %152 = vector.extract_strided_slice %105 {offsets = [0, 16], sizes = [16, 8], strides = [1, 1]} : vector<16x32xf32> to vector<16x8xf32>
    %cst_58 = arith.constant dense<0.000000e+00> : vector<4x16xf32>
    %153 = tpu.matmul %151, %152, %cst_58 {dimension_numbers = #tpu.dot_dimension_numbers<[1], [1], [0], [0], [0, 0, 1, 0], [], []>} : vector<4x8xf32>, vector<16x8xf32>, vector<4x16xf32> -> vector<4x16xf32>
    %cst_59 = arith.constant dense<0xFF800000> : vector<4xf32>
    %154 = vector.multi_reduction <maximumf>, %153, %cst_59 [1] : vector<4x16xf32> to vector<4xf32>
    %155 = vector.shape_cast %154 : vector<4xf32> to vector<4x1xf32>
    %156 = vector.broadcast %155 : vector<4x1xf32> to vector<4x16xf32>
    %157 = arith.subf %153, %156 : vector<4x16xf32>
    %158 = math.exp %157 : vector<4x16xf32>
    %cst_60 = arith.constant dense<0.000000e+00> : vector<4xf32>
    %159 = vector.multi_reduction <add>, %158, %cst_60 [1] : vector<4x16xf32> to vector<4xf32>
    %160 = vector.shape_cast %159 : vector<4xf32> to vector<4x1xf32>
    %161 = vector.broadcast %160 : vector<4x1xf32> to vector<4x16xf32>
    %162 = arith.divf %158, %161 : vector<4x16xf32>
    %163 = arith.addf %143, %162 : vector<4x16xf32>
    %164 = vector.extract_strided_slice %106 {offsets = [0, 16], sizes = [16, 8], strides = [1, 1]} : vector<16x32xf32> to vector<16x8xf32>
    %cst_61 = arith.constant dense<0.000000e+00> : vector<4x8xf32>
    %165 = tpu.matmul %162, %164, %cst_61 {dimension_numbers = #tpu.dot_dimension_numbers<[1], [0], [0], [1], [0, 0, 1, 1], [], []>} : vector<4x16xf32>, vector<16x8xf32>, vector<4x8xf32> -> vector<4x8xf32>
    %166 = vector.extract_strided_slice %16 {offsets = [16, 0], sizes = [8, 32], strides = [1, 1]} : vector<32x32xf32> to vector<8x32xf32>
    %cst_62 = arith.constant dense<0.000000e+00> : vector<4x32xf32>
    %167 = tpu.matmul %165, %166, %cst_62 {dimension_numbers = #tpu.dot_dimension_numbers<[1], [0], [0], [1], [0, 0, 1, 1], [], []>} : vector<4x8xf32>, vector<8x32xf32>, vector<4x32xf32> -> vector<4x32xf32>
    %168 = arith.addf %148, %167 : vector<4x32xf32>
    %169 = vector.extract_strided_slice %104 {offsets = [0, 24], sizes = [4, 8], strides = [1, 1]} : vector<4x32xf32> to vector<4x8xf32>
    %cst_63 = arith.constant 0.353553385 : f32
    %170 = vector.broadcast %cst_63 : f32 to vector<4x8xf32>
    %171 = arith.mulf %169, %170 : vector<4x8xf32>
    %172 = vector.extract_strided_slice %105 {offsets = [0, 24], sizes = [16, 8], strides = [1, 1]} : vector<16x32xf32> to vector<16x8xf32>
    %cst_64 = arith.constant dense<0.000000e+00> : vector<4x16xf32>
    %173 = tpu.matmul %171, %172, %cst_64 {dimension_numbers = #tpu.dot_dimension_numbers<[1], [1], [0], [0], [0, 0, 1, 0], [], []>} : vector<4x8xf32>, vector<16x8xf32>, vector<4x16xf32> -> vector<4x16xf32>
    %cst_65 = arith.constant dense<0xFF800000> : vector<4xf32>
    %174 = vector.multi_reduction <maximumf>, %173, %cst_65 [1] : vector<4x16xf32> to vector<4xf32>
    %175 = vector.shape_cast %174 : vector<4xf32> to vector<4x1xf32>
    %176 = vector.broadcast %175 : vector<4x1xf32> to vector<4x16xf32>
    %177 = arith.subf %173, %176 : vector<4x16xf32>
    %178 = math.exp %177 : vector<4x16xf32>
    %cst_66 = arith.constant dense<0.000000e+00> : vector<4xf32>
    %179 = vector.multi_reduction <add>, %178, %cst_66 [1] : vector<4x16xf32> to vector<4xf32>
    %180 = vector.shape_cast %179 : vector<4xf32> to vector<4x1xf32>
    %181 = vector.broadcast %180 : vector<4x1xf32> to vector<4x16xf32>
    %182 = arith.divf %178, %181 : vector<4x16xf32>
    %183 = arith.addf %163, %182 : vector<4x16xf32>
    %184 = vector.extract_strided_slice %106 {offsets = [0, 24], sizes = [16, 8], strides = [1, 1]} : vector<16x32xf32> to vector<16x8xf32>
    %cst_67 = arith.constant dense<0.000000e+00> : vector<4x8xf32>
    %185 = tpu.matmul %182, %184, %cst_67 {dimension_numbers = #tpu.dot_dimension_numbers<[1], [0], [0], [1], [0, 0, 1, 1], [], []>} : vector<4x16xf32>, vector<16x8xf32>, vector<4x8xf32> -> vector<4x8xf32>
    %186 = vector.extract_strided_slice %16 {offsets = [24, 0], sizes = [8, 32], strides = [1, 1]} : vector<32x32xf32> to vector<8x32xf32>
    %cst_68 = arith.constant dense<0.000000e+00> : vector<4x32xf32>
    %187 = tpu.matmul %185, %186, %cst_68 {dimension_numbers = #tpu.dot_dimension_numbers<[1], [0], [0], [1], [0, 0, 1, 1], [], []>} : vector<4x8xf32>, vector<8x32xf32>, vector<4x32xf32> -> vector<4x32xf32>
    %188 = arith.addf %168, %187 : vector<4x32xf32>
    %cst_69 = arith.constant 2.500000e-01 : f32
    %189 = vector.broadcast %cst_69 : f32 to vector<4x16xf32>
    %190 = arith.mulf %183, %189 : vector<4x16xf32>
    %191 = vector.shape_cast %103 : vector<4x16xf32> to vector<1x4x16xf32>
    %192 = vector.shape_cast %190 : vector<4x16xf32> to vector<1x4x16xf32>
    %193 = tpu.concatenate %191, %192 in 0 : vector<1x4x16xf32>, vector<1x4x16xf32> -> vector<2x4x16xf32>
    %c0_70 = arith.constant 0 : index
    %c0_71 = arith.constant 0 : index
    %c0_72 = arith.constant 0 : index
    %194 = vector.load %arg20[%c0_70, %c0_71, %c0_72] : memref<2x4x16xf32, #tpu.memory_space<vmem>>, vector<2x4x16xf32>
    tpu.vector_store %arg20[%c0_70, %c0_71, %c0_72], %193 {strides = array<i32>} : memref<2x4x16xf32, #tpu.memory_space<vmem>>, vector<2x4x16xf32>,
    %195 = tpu.concatenate %101, %188 in 0 : vector<4x32xf32>, vector<4x32xf32> -> vector<8x32xf32>
    %c0_73 = arith.constant 0 : index
    %c0_74 = arith.constant 0 : index
    %196 = vector.load %arg8[%c0_73, %c0_74] : memref<1x32xf32, #tpu.memory_space<vmem>>, vector<1x32xf32>
    %197 = vector.broadcast %196 : vector<1x32xf32> to vector<8x32xf32>
    %198 = arith.addf %195, %197 : vector<8x32xf32>
    %c0_75 = arith.constant 0 : index
    %c0_76 = arith.constant 0 : index
    %199 = vector.load %arg9[%c0_75, %c0_76] : memref<1x32xf32, #tpu.memory_space<vmem>>, vector<1x32xf32>
    %c0_77 = arith.constant 0 : index
    %c0_78 = arith.constant 0 : index
    %200 = vector.load %arg10[%c0_77, %c0_78] : memref<1x32xf32, #tpu.memory_space<vmem>>, vector<1x32xf32>
    %cst_79 = arith.constant dense<0.000000e+00> : vector<8xf32>
    %201 = vector.multi_reduction <add>, %198, %cst_79 [1] : vector<8x32xf32> to vector<8xf32>
    %202 = vector.shape_cast %201 : vector<8xf32> to vector<8x1xf32>
    %cst_80 = arith.constant 3.200000e+01 : f32
    %203 = vector.broadcast %cst_80 : f32 to vector<8x1xf32>
    %204 = arith.divf %202, %203 : vector<8x1xf32>
    %205 = vector.broadcast %204 : vector<8x1xf32> to vector<8x32xf32>
    %206 = arith.subf %198, %205 : vector<8x32xf32>
    %207 = arith.mulf %206, %206 : vector<8x32xf32>
    %cst_81 = arith.constant dense<0.000000e+00> : vector<8xf32>
    %208 = vector.multi_reduction <add>, %207, %cst_81 [1] : vector<8x32xf32> to vector<8xf32>
    %209 = vector.shape_cast %208 : vector<8xf32> to vector<8x1xf32>
    %cst_82 = arith.constant 3.200000e+01 : f32
    %210 = vector.broadcast %cst_82 : f32 to vector<8x1xf32>
    %211 = arith.divf %209, %210 : vector<8x1xf32>
    %212 = vector.broadcast %204 : vector<8x1xf32> to vector<8x32xf32>
    %213 = arith.subf %198, %212 : vector<8x32xf32>
    %cst_83 = arith.constant 9.99999974E-6 : f32
    %214 = vector.broadcast %cst_83 : f32 to vector<8x1xf32>
    %215 = arith.addf %211, %214 : vector<8x1xf32>
    %216 = math.rsqrt %215 : vector<8x1xf32>
    %217 = vector.broadcast %216 : vector<8x1xf32> to vector<8x32xf32>
    %218 = arith.mulf %213, %217 : vector<8x32xf32>
    %219 = vector.broadcast %199 : vector<1x32xf32> to vector<8x32xf32>
    %220 = arith.mulf %218, %219 : vector<8x32xf32>
    %221 = vector.broadcast %200 : vector<1x32xf32> to vector<8x32xf32>
    %222 = arith.addf %220, %221 : vector<8x32xf32>
    %c0_84 = arith.constant 0 : index
    %c0_85 = arith.constant 0 : index
    %223 = vector.load %arg11[%c0_84, %c0_85] : memref<32x64xf32, #tpu.memory_space<vmem>>, vector<32x64xf32>
    %cst_86 = arith.constant dense<0.000000e+00> : vector<8x64xf32>
    %224 = tpu.matmul %222, %223, %cst_86 {dimension_numbers = #tpu.dot_dimension_numbers<[1], [0], [0], [1], [0, 0, 1, 1], [], []>} : vector<8x32xf32>, vector<32x64xf32>, vector<8x64xf32> -> vector<8x64xf32>
    %c0_87 = arith.constant 0 : index
    %c0_88 = arith.constant 0 : index
    %225 = vector.load %arg12[%c0_87, %c0_88] : memref<1x64xf32, #tpu.memory_space<vmem>>, vector<1x64xf32>
    %226 = vector.broadcast %225 : vector<1x64xf32> to vector<8x64xf32>
    %227 = arith.addf %224, %226 : vector<8x64xf32>
    %cst_89 = arith.constant 0.000000e+00 : f32
    %228 = vector.broadcast %cst_89 : f32 to vector<8x64xf32>
    %229 = arith.maximumf %227, %228 : vector<8x64xf32>
    %c0_90 = arith.constant 0 : index
    %c0_91 = arith.constant 0 : index
    %230 = vector.load %arg13[%c0_90, %c0_91] : memref<64x32xf32, #tpu.memory_space<vmem>>, vector<64x32xf32>
    %cst_92 = arith.constant dense<0.000000e+00> : vector<8x32xf32>
    %231 = tpu.matmul %229, %230, %cst_92 {dimension_numbers = #tpu.dot_dimension_numbers<[1], [0], [0], [1], [0, 0, 1, 1], [], []>} : vector<8x64xf32>, vector<64x32xf32>, vector<8x32xf32> -> vector<8x32xf32>
    %c0_93 = arith.constant 0 : index
    %c0_94 = arith.constant 0 : index
    %232 = vector.load %arg14[%c0_93, %c0_94] : memref<1x32xf32, #tpu.memory_space<vmem>>, vector<1x32xf32>
    %233 = vector.broadcast %232 : vector<1x32xf32> to vector<8x32xf32>
    %234 = arith.addf %231, %233 : vector<8x32xf32>
    %235 = arith.addf %222, %234 : vector<8x32xf32>
    %c0_95 = arith.constant 0 : index
    %c0_96 = arith.constant 0 : index
    %236 = vector.load %arg15[%c0_95, %c0_96] : memref<1x32xf32, #tpu.memory_space<vmem>>, vector<1x32xf32>
    %c0_97 = arith.constant 0 : index
    %c0_98 = arith.constant 0 : index
    %237 = vector.load %arg16[%c0_97, %c0_98] : memref<1x32xf32, #tpu.memory_space<vmem>>, vector<1x32xf32>
    %cst_99 = arith.constant dense<0.000000e+00> : vector<8xf32>
    %238 = vector.multi_reduction <add>, %235, %cst_99 [1] : vector<8x32xf32> to vector<8xf32>
    %239 = vector.shape_cast %238 : vector<8xf32> to vector<8x1xf32>
    %cst_100 = arith.constant 3.200000e+01 : f32
    %240 = vector.broadcast %cst_100 : f32 to vector<8x1xf32>
    %241 = arith.divf %239, %240 : vector<8x1xf32>
    %242 = vector.broadcast %241 : vector<8x1xf32> to vector<8x32xf32>
    %243 = arith.subf %235, %242 : vector<8x32xf32>
    %244 = arith.mulf %243, %243 : vector<8x32xf32>
    %cst_101 = arith.constant dense<0.000000e+00> : vector<8xf32>
    %245 = vector.multi_reduction <add>, %244, %cst_101 [1] : vector<8x32xf32> to vector<8xf32>
    %246 = vector.shape_cast %245 : vector<8xf32> to vector<8x1xf32>
    %cst_102 = arith.constant 3.200000e+01 : f32
    %247 = vector.broadcast %cst_102 : f32 to vector<8x1xf32>
    %248 = arith.divf %246, %247 : vector<8x1xf32>
    %249 = vector.broadcast %241 : vector<8x1xf32> to vector<8x32xf32>
    %250 = arith.subf %235, %249 : vector<8x32xf32>
    %cst_103 = arith.constant 9.99999974E-6 : f32
    %251 = vector.broadcast %cst_103 : f32 to vector<8x1xf32>
    %252 = arith.addf %248, %251 : vector<8x1xf32>
    %253 = math.rsqrt %252 : vector<8x1xf32>
    %254 = vector.broadcast %253 : vector<8x1xf32> to vector<8x32xf32>
    %255 = arith.mulf %250, %254 : vector<8x32xf32>
    %256 = vector.broadcast %236 : vector<1x32xf32> to vector<8x32xf32>
    %257 = arith.mulf %255, %256 : vector<8x32xf32>
    %258 = vector.broadcast %237 : vector<1x32xf32> to vector<8x32xf32>
    %259 = arith.addf %257, %258 : vector<8x32xf32>
    %260 = vector.shape_cast %259 : vector<8x32xf32> to vector<2x4x32xf32>
    %cst_104 = arith.constant dense<0.000000e+00> : vector<2x32xf32>
    %261 = vector.multi_reduction <add>, %260, %cst_104 [1] : vector<2x4x32xf32> to vector<2x32xf32>
    %c0_105 = arith.constant 0 : index
    %c0_106 = arith.constant 0 : index
    %262 = vector.load %arg17[%c0_105, %c0_106] : memref<32x3xf32, #tpu.memory_space<vmem>>, vector<32x3xf32>
    %cst_107 = arith.constant dense<0.000000e+00> : vector<2x3xf32>
    %263 = tpu.matmul %261, %262, %cst_107 {dimension_numbers = #tpu.dot_dimension_numbers<[1], [0], [0], [1], [0, 0, 1, 1], [], []>} : vector<2x32xf32>, vector<32x3xf32>, vector<2x3xf32> -> vector<2x3xf32>
    %c0_108 = arith.constant 0 : index
    %c0_109 = arith.constant 0 : index
    %264 = vector.load %arg18[%c0_108, %c0_109] : memref<1x3xf32, #tpu.memory_space<vmem>>, vector<1x3xf32>
    %265 = vector.broadcast %264 : vector<1x3xf32> to vector<2x3xf32>
    %266 = arith.addf %263, %265 : vector<2x3xf32>
    %c0_110 = arith.constant 0 : index
    %c0_111 = arith.constant 0 : index
    %267 = vector.load %arg19[%c0_110, %c0_111] : memref<2x3xf32, #tpu.memory_space<vmem>>, vector<2x3xf32>
    tpu.vector_store %arg19[%c0_110, %c0_111], %266 {strides = array<i32>} : memref<2x3xf32, #tpu.memory_space<vmem>>, vector<2x3xf32>,
    return
  }
  func.func @transform_0(%arg0: i32) -> (i32, i32, i32) {
    %c0_i32 = arith.constant 0 : i32
    %c0_i32_0 = arith.constant 0 : i32
    %c0_i32_1 = arith.constant 0 : i32
    %c0_i32_2 = arith.constant 0 : i32
    return %c0_i32, %c0_i32_0, %c0_i32_1 : i32, i32, i32
  }
  func.func @transform_1(%arg0: i32) -> (i32, i32, i32) {
    %c0_i32 = arith.constant 0 : i32
    %c0_i32_0 = arith.constant 0 : i32
    %c0_i32_1 = arith.constant 0 : i32
    %c0_i32_2 = arith.constant 0 : i32
    return %c0_i32, %c0_i32_0, %c0_i32_1 : i32, i32, i32
  }
  func.func @transform_2(%arg0: i32) -> (i32, i32) {
    %c0_i32 = arith.constant 0 : i32
    %c0_i32_0 = arith.constant 0 : i32
    %c0_i32_1 = arith.constant 0 : i32
    return %c0_i32, %c0_i32_0 : i32, i32
  }
  func.func @transform_3(%arg0: i32) -> (i32, i32) {
    %c0_i32 = arith.constant 0 : i32
    %c0_i32_0 = arith.constant 0 : i32
    %c0_i32_1 = arith.constant 0 : i32
    return %c0_i32, %c0_i32_0 : i32, i32
  }
  func.func @transform_4(%arg0: i32) -> (i32, i32) {
    %c0_i32 = arith.constant 0 : i32
    %c0_i32_0 = arith.constant 0 : i32
    %c0_i32_1 = arith.constant 0 : i32
    return %c0_i32, %c0_i32_0 : i32, i32
  }
  func.func @transform_5(%arg0: i32) -> (i32, i32) {
    %c0_i32 = arith.constant 0 : i32
    %c0_i32_0 = arith.constant 0 : i32
    %c0_i32_1 = arith.constant 0 : i32
    return %c0_i32, %c0_i32_0 : i32, i32
  }
  func.func @transform_6(%arg0: i32) -> (i32, i32) {
    %c0_i32 = arith.constant 0 : i32
    %c0_i32_0 = arith.constant 0 : i32
    %c0_i32_1 = arith.constant 0 : i32
    return %c0_i32, %c0_i32_0 : i32, i32
  }
  func.func @transform_7(%arg0: i32) -> (i32, i32) {
    %c0_i32 = arith.constant 0 : i32
    %c0_i32_0 = arith.constant 0 : i32
    %c0_i32_1 = arith.constant 0 : i32
    return %c0_i32, %c0_i32_0 : i32, i32
  }
  func.func @transform_8(%arg0: i32) -> (i32, i32) {
    %c0_i32 = arith.constant 0 : i32
    %c0_i32_0 = arith.constant 0 : i32
    %c0_i32_1 = arith.constant 0 : i32
    return %c0_i32, %c0_i32_0 : i32, i32
  }
  func.func @transform_9(%arg0: i32) -> (i32, i32) {
    %c0_i32 = arith.constant 0 : i32
    %c0_i32_0 = arith.constant 0 : i32
    %c0_i32_1 = arith.constant 0 : i32
    return %c0_i32, %c0_i32_0 : i32, i32
  }
  func.func @transform_10(%arg0: i32) -> (i32, i32) {
    %c0_i32 = arith.constant 0 : i32
    %c0_i32_0 = arith.constant 0 : i32
    %c0_i32_1 = arith.constant 0 : i32
    return %c0_i32, %c0_i32_0 : i32, i32
  }
  func.func @transform_11(%arg0: i32) -> (i32, i32) {
    %c0_i32 = arith.constant 0 : i32
    %c0_i32_0 = arith.constant 0 : i32
    %c0_i32_1 = arith.constant 0 : i32
    return %c0_i32, %c0_i32_0 : i32, i32
  }
  func.func @transform_12(%arg0: i32) -> (i32, i32) {
    %c0_i32 = arith.constant 0 : i32
    %c0_i32_0 = arith.constant 0 : i32
    %c0_i32_1 = arith.constant 0 : i32
    return %c0_i32, %c0_i32_0 : i32, i32
  }
  func.func @transform_13(%arg0: i32) -> (i32, i32) {
    %c0_i32 = arith.constant 0 : i32
    %c0_i32_0 = arith.constant 0 : i32
    %c0_i32_1 = arith.constant 0 : i32
    return %c0_i32, %c0_i32_0 : i32, i32
  }
  func.func @transform_14(%arg0: i32) -> (i32, i32) {
    %c0_i32 = arith.constant 0 : i32
    %c0_i32_0 = arith.constant 0 : i32
    %c0_i32_1 = arith.constant 0 : i32
    return %c0_i32, %c0_i32_0 : i32, i32
  }
  func.func @transform_15(%arg0: i32) -> (i32, i32) {
    %c0_i32 = arith.constant 0 : i32
    %c0_i32_0 = arith.constant 0 : i32
    %c0_i32_1 = arith.constant 0 : i32
    return %c0_i32, %c0_i32_0 : i32, i32
  }
  func.func @transform_16(%arg0: i32) -> (i32, i32) {
    %c0_i32 = arith.constant 0 : i32
    %c0_i32_0 = arith.constant 0 : i32
    %c0_i32_1 = arith.constant 0 : i32
    return %c0_i32, %c0_i32_0 : i32, i32
  }
  func.func @transform_17(%arg0: i32) -> (i32, i32) {
    %c0_i32 = arith.constant 0 : i32
    %c0_i32_0 = arith.constant 0 : i32
    %c0_i32_1 = arith.constant 0 : i32
    return %c0_i32, %c0_i32_0 : i32, i32
  }
  func.func @transform_18(%arg0: i32) -> (i32, i32) {
    %c0_i32 = arith.constant 0 : i32
    %c0_i32_0 = arith.constant 0 : i32
    %c0_i32_1 = arith.constant 0 : i32
    return %c0_i32, %c0_i32_0 : i32, i32
  }
  func.func @transform_19(%arg0: i32) -> (i32, i32, i32) {
    %c0_i32 = arith.constant 0 : i32
    %c0_i32_0 = arith.constant 0 : i32
    %c0_i32_1 = arith.constant 0 : i32
    %c0_i32_2 = arith.constant 0 : i32
    return %c0_i32, %c0_i32_0, %c0_i32_1 : i32, i32, i32
  }
}

</mosaic_0001>

<llo_original>
// kernel: _lambda_.5
$region0: #{_lambda_.5}
  #allocation0 [shape = 'u32[]', space=smem, size = 0x4, offset = 0x4, fixed_abs, tag = 'smem constant byte address 0x4 - core index']
  #allocation1 [shape = 'u32[144,128]{1,0:T(1,128)}', space=vmem, size = 0x12000, scoped, tag = 'internal scratch']
  %s0 = inlined_call_operand.vmem [shape: f32[64,16], index: 0, kind: input, shape index: {}]
  %s1 = inlined_call_operand.vmem [shape: f32[16,32], index: 1, kind: input, shape index: {}]
  %s2 = inlined_call_operand.vmem [shape: f32[1,32], index: 2, kind: input, shape index: {}]
  %s3 = inlined_call_operand.vmem [shape: f32[64,32], index: 3, kind: output, shape index: {}]
  %s4 = sld [smem:[#allocation0]]
  $region22: #{_lambda_.5} parent=0
    _
  %s6 = ssub.s32 1, %s4
  %s7 = scalar_select 0, %s6, %s4
  // Predicated region
  $region2: #{_lambda_.5} parent=0 // pred_check
    _
  $region3: #{_lambda_.5} parent=0 // pred_check_branch
    %9 = sbr.rel (0) target = $region5
  $region4: #{_lambda_.5} parent=0 // pred_region
    _
  $region5: #{_lambda_.5} parent=0 // pred_fallthru
    _
  // Predicated region
  $region6: #{_lambda_.5} parent=0 // pred_check
    _
  $region7: #{_lambda_.5} parent=0 // pred_check_branch
    %11 = sbr.rel (0) target = $region9
  $region8: #{_lambda_.5} parent=0 // pred_region
    _
  $region9: #{_lambda_.5} parent=0 // pred_fallthru
    _
  // Predicated region
  $region10: #{_lambda_.5} parent=0 // pred_check
    _
  $region11: #{_lambda_.5} parent=0 // pred_check_branch
    %13 = sbr.rel (0) target = $region13
  $region12: #{_lambda_.5} parent=0 // pred_region
    _
  $region13: #{_lambda_.5} parent=0 // pred_fallthru
    _
  %v14 = vld [vmem:[%s0] sm:$0xff]
  %v15 = vld [vmem:[%s0 + $0x8] sm:$0xff]
  %v16 = vld [vmem:[%s0 + $0x10] sm:$0xff]
  %v17 = vld [vmem:[%s0 + $0x18] sm:$0xff]
  %v18 = vld [vmem:[%s0 + $0x20] sm:$0xff]
  %v19 = vld [vmem:[%s0 + $0x28] sm:$0xff]
  %v20 = vld [vmem:[%s0 + $0x30] sm:$0xff]
  %v21 = vld [vmem:[%s0 + $0x38] sm:$0xff]
  %v22 = vld [vmem:[%s1] sm:$0xff]
  %v23 = vld [vmem:[%s1 + $0x8] sm:$0xff]
  %v24 = vld [vmem:[%s2] sm:$0x1]
  %v26 = vlaneseq
  %v27 = vshrl.u32 %v26, 7
  %v28 = vsub.s32 0, %v27
  %v29 = vrot.slane %v24, %v28
  %vm31 = vcmask 130048
  %v33 = vsel %vm31, %v14, 0
  %v36 = vsel %vm31, %v15, 0
  %v39 = vsel %vm31, %v16, 0
  %v42 = vsel %vm31, %v17, 0
  %v45 = vsel %vm31, %v18, 0
  %v48 = vsel %vm31, %v19, 0
  %v51 = vsel %vm31, %v20, 0
  %v54 = vsel %vm31, %v21, 0
  %56 = vmatprep.subr.mxu0 0.0
  %57 = vmatpush1.msra.mxu0 0.0
  %58 = vmatprep.subr.mxu0 0.0
  %59 = vmatpush1.msra.mxu0 0.0
  %60 = vmatprep.subr.mxu0 0.0
  %61 = vmatpush1.msra.mxu0 0.0
  %62 = vmatprep.subr.mxu0 0.0
  %63 = vmatpush1.msra.mxu0 0.0
  %64 = vmatprep.subr.mxu0 0.0
  %65 = vmatpush1.msra.mxu0 0.0
  %66 = vmatprep.subr.mxu0 0.0
  %67 = vmatpush1.msra.mxu0 0.0
  %68 = vmatprep.subr.mxu0 0.0
  %69 = vmatpush1.msra.mxu0 0.0
  %70 = vmatprep.subr.mxu0 0.0
  %71 = vmatpush1.msra.mxu0 0.0
  %72 = vmatprep.subr.mxu0 0.0
  %73 = vmatpush1.msra.mxu0 0.0
  %74 = vmatprep.subr.mxu0 0.0
  %75 = vmatpush1.msra.mxu0 0.0
  %76 = vmatprep.subr.mxu0 0.0
  %77 = vmatpush1.msra.mxu0 0.0
  %78 = vmatprep.subr.mxu0 0.0
  %79 = vmatpush1.msra.mxu0 0.0
  %80 = vmatprep.subr.mxu0 0.0
  %81 = vmatpush1.msra.mxu0 0.0
  %82 = vmatprep.subr.mxu0 0.0
  %83 = vmatpush1.msra.mxu0 0.0
  %84 = vmatprep.subr.mxu0 0.0
  %85 = vmatpush1.msra.mxu0 %v23
  %86 = vmatprep.subr.mxu0 0.0
  %87 = vmatpush1.msra.mxu0 %v22
  %88 = vmatprep.subr.mxu0 0.0
  %89 = vmatpush2.msra.mxu0 0.0
  %90 = vmatprep.subr.mxu0 0.0
  %91 = vmatpush2.msra.mxu0 0.0
  %92 = vmatprep.subr.mxu0 0.0
  %93 = vmatpush2.msra.mxu0 0.0
  %94 = vmatprep.subr.mxu0 0.0
  %95 = vmatpush2.msra.mxu0 0.0
  %96 = vmatprep.subr.mxu0 0.0
  %97 = vmatpush2.msra.mxu0 0.0
  %98 = vmatprep.subr.mxu0 0.0
  %99 = vmatpush2.msra.mxu0 0.0
  %100 = vmatprep.subr.mxu0 0.0
  %101 = vmatpush2.msra.mxu0 0.0
  %102 = vmatprep.subr.mxu0 0.0
  %103 = vmatpush2.msra.mxu0 0.0
  %104 = vmatprep.subr.mxu0 0.0
  %105 = vmatpush2.msra.mxu0 0.0
  %106 = vmatprep.subr.mxu0 0.0
  %107 = vmatpush2.msra.mxu0 0.0
  %108 = vmatprep.subr.mxu0 0.0
  %109 = vmatpush2.msra.mxu0 0.0
  %110 = vmatprep.subr.mxu0 0.0
  %111 = vmatpush2.msra.mxu0 0.0
  %112 = vmatprep.subr.mxu0 0.0
  %113 = vmatpush2.msra.mxu0 0.0
  %114 = vmatprep.subr.mxu0 0.0
  %115 = vmatpush2.msra.mxu0 0.0
  %116 = vmatprep.subr.mxu0 0.0
  %117 = vmatpush2.msra.mxu0 0.0
  %118 = vmatprep.subr.mxu0 0.0
  %119 = vmatpush2.msra.mxu0 0.0
  %120 = vmatprep.mubr.f32.mxu0 0.0
  %121 = vmatmul.mubr.f32.gmra.mxu0 %v33
  %v122 = vpop.f32.mrf.mxu0
  %v123 = vadd.f32 %v29, %v122
  %v124 = vpop.f32.mrf.mxu0
  %125 = vmatprep.mubr.f32.mxu0 0.0
  %126 = vmatmul.mubr.f32.gmra.mxu0 %v36
  %v127 = vpop.f32.mrf.mxu0
  %v128 = vadd.f32 %v29, %v127
  %v129 = vpop.f32.mrf.mxu0
  %130 = vmatprep.mubr.f32.mxu0 0.0
  %131 = vmatmul.mubr.f32.gmra.mxu0 %v39
  %v132 = vpop.f32.mrf.mxu0
  %v133 = vadd.f32 %v29, %v132
  %v134 = vpop.f32.mrf.mxu0
  %135 = vmatprep.mubr.f32.mxu0 0.0
  %136 = vmatmul.mubr.f32.gmra.mxu0 %v42
  %v137 = vpop.f32.mrf.mxu0
  %v138 = vadd.f32 %v29, %v137
  %v139 = vpop.f32.mrf.mxu0
  %140 = vmatprep.mubr.f32.mxu0 0.0
  %141 = vmatmul.mubr.f32.gmra.mxu0 %v45
  %v142 = vpop.f32.mrf.mxu0
  %v143 = vadd.f32 %v29, %v142
  %v144 = vpop.f32.mrf.mxu0
  %145 = vmatprep.mubr.f32.mxu0 0.0
  %146 = vmatmul.mubr.f32.gmra.mxu0 %v48
  %v147 = vpop.f32.mrf.mxu0
  %v148 = vadd.f32 %v29, %v147
  %v149 = vpop.f32.mrf.mxu0
  %150 = vmatprep.mubr.f32.mxu0 0.0
  %151 = vmatmul.mubr.f32.gmra.mxu0 %v51
  %v152 = vpop.f32.mrf.mxu0
  %v153 = vadd.f32 %v29, %v152
  %v154 = vpop.f32.mrf.mxu0
  %155 = vmatprep.mubr.f32.mxu0 0.0
  %156 = vmatmul.mubr.f32.gmra.mxu0 %v54
  %v157 = vpop.f32.mrf.mxu0
  %v158 = vadd.f32 %v29, %v157
  %v159 = vpop.f32.mrf.mxu0
  %160 = vdwg.mxu0
  %vm161 = vcmask 261120
  %162 = vst.msk [vmem:[%s3] sm:$0xff] %vm161, %v123
  %163 = vst.msk [vmem:[%s3 + $0x8] sm:$0xff] %vm161, %v128
  %164 = vst.msk [vmem:[%s3 + $0x10] sm:$0xff] %vm161, %v133
  %165 = vst.msk [vmem:[%s3 + $0x18] sm:$0xff] %vm161, %v138
  %166 = vst.msk [vmem:[%s3 + $0x20] sm:$0xff] %vm161, %v143
  %167 = vst.msk [vmem:[%s3 + $0x28] sm:$0xff] %vm161, %v148
  %168 = vst.msk [vmem:[%s3 + $0x30] sm:$0xff] %vm161, %v153
  %169 = vst.msk [vmem:[%s3 + $0x38] sm:$0xff] %vm161, %v158
  // Predicated region
  $region14: #{_lambda_.5} parent=0 // pred_check
    _
  $region15: #{_lambda_.5} parent=0 // pred_check_branch
    %171 = sbr.rel (0) target = $region17
  $region16: #{_lambda_.5} parent=0 // pred_region
    _
  $region17: #{_lambda_.5} parent=0 // pred_fallthru
    _
  // Predicated region
  $region18: #{_lambda_.5} parent=0 // pred_check
    _
  $region19: #{_lambda_.5} parent=0 // pred_check_branch
    %173 = sbr.rel (0) target = $region21
  $region20: #{_lambda_.5} parent=0 // pred_region
    _
  $region21: #{_lambda_.5} parent=0 // pred_fallthru
    _

// kernel: _lambda_.8
$region0: #{_lambda_.8}
  #allocation0 [shape = 'u32[]', space=smem, size = 0x4, offset = 0x4, fixed_abs, tag = 'smem constant byte address 0x4 - core index']
  #allocation1 [shape = 'u32[144,128]{1,0:T(1,128)}', space=vmem, size = 0x12000, scoped, tag = 'internal scratch']
  #allocation2 [shape = 'f32[1,1]{1,0:T(1,128)S(6)}', space=smem, size = 0x200, scoped, tag = 'scoped memory for _lambda_.8']
  %s0 = inlined_call_operand.vmem [shape: f32[8,8,8], index: 0, kind: input, shape index: {}]
  %s1 = inlined_call_operand.vmem [shape: f32[8,8,32], index: 1, kind: input, shape index: {}]
  %s2 = inlined_call_operand.vmem [shape: f32[8,32], index: 2, kind: input, shape index: {}]
  %s3 = inlined_call_operand.vmem [shape: f32[32,32], index: 3, kind: input, shape index: {}]
  %s4 = inlined_call_operand.vmem [shape: f32[1,32], index: 4, kind: input, shape index: {}]
  %s5 = inlined_call_operand.vmem [shape: f32[1,32], index: 5, kind: input, shape index: {}]
  %s6 = inlined_call_operand.vmem [shape: f32[1,32], index: 6, kind: input, shape index: {}]
  %s7 = inlined_call_operand.vmem [shape: f32[32,32], index: 7, kind: input, shape index: {}]
  %s8 = inlined_call_operand.vmem [shape: f32[1,32], index: 8, kind: input, shape index: {}]
  %s9 = inlined_call_operand.vmem [shape: f32[1,32], index: 9, kind: input, shape index: {}]
  %s10 = inlined_call_operand.vmem [shape: f32[1,32], index: 10, kind: input, shape index: {}]
  %s11 = inlined_call_operand.<no memory space> [shape: f32[1,1], index: 11, kind: input, shape index: {}]
  %s12 = inlined_call_operand.hbm [shape: f32[8,8,32], index: 12, kind: output, shape index: {0}]
  %s13 = inlined_call_operand.vmem [shape: f32[8,32], index: 13, kind: output, shape index: {1}]
  %14 = xla_tuple %s12, %s13
  %s15 = sld [smem:[#allocation0]]
  $region66: #{_lambda_.8} parent=0
    _
  %s17 = ssub.s32 1, %s15
  %s18 = scalar_select 0, %s17, %s15
  %19 = sst [smem:[#allocation2]] %s11
  $region1: #{_lambda_.8} parent=0
    #allocation3 [shape = 'u8[32768]{0}', space=vmem, size = 0x8000, scoped, tag = 'output window, operand 0, single buffered']
    #allocation4 [shape = 's32[1]{0}', space=sflag, size = 0x4, scoped, tag = 'scoped memory for _lambda_.8']
    %20 = vsyncpa [#allocation4], 0
    // Predicated region
    $region2: #{_lambda_.8} parent=1 // pred_check
      _
    $region3: #{_lambda_.8} parent=1 // pred_check_branch
      %22 = sbr.rel (0) target = $region5
    $region4: #{_lambda_.8} parent=1 // pred_region
      _
    $region5: #{_lambda_.8} parent=1 // pred_fallthru
      _
    // Predicated region
    $region6: #{_lambda_.8} parent=1 // pred_check
      _
    $region7: #{_lambda_.8} parent=1 // pred_check_branch
      %24 = sbr.rel (0) target = $region9
    $region8: #{_lambda_.8} parent=1 // pred_region
      _
    $region9: #{_lambda_.8} parent=1 // pred_fallthru
      _
    // Predicated region
    $region10: #{_lambda_.8} parent=1 // pred_check
      _
    $region11: #{_lambda_.8} parent=1 // pred_check_branch
      %26 = sbr.rel (0) target = $region13
    $region12: #{_lambda_.8} parent=1 // pred_region
      _
    $region13: #{_lambda_.8} parent=1 // pred_fallthru
      _
    // Predicated region
    $region14: #{_lambda_.8} parent=1 // pred_check
      _
    $region15: #{_lambda_.8} parent=1 // pred_check_branch
      %28 = sbr.rel (0) target = $region17
    $region16: #{_lambda_.8} parent=1 // pred_region
      _
    $region17: #{_lambda_.8} parent=1 // pred_fallthru
      _
    // Predicated region
    $region18: #{_lambda_.8} parent=1 // pred_check
      _
    $region19: #{_lambda_.8} parent=1 // pred_check_branch
      %30 = sbr.rel (0) target = $region21
    $region20: #{_lambda_.8} parent=1 // pred_region
      _
    $region21: #{_lambda_.8} parent=1 // pred_fallthru
      _
    // Predicated region
    $region22: #{_lambda_.8} parent=1 // pred_check
      _
    $region23: #{_lambda_.8} parent=1 // pred_check_branch
      %32 = sbr.rel (0) target = $region25
    $region24: #{_lambda_.8} parent=1 // pred_region
      _
    $region25: #{_lambda_.8} parent=1 // pred_fallthru
      _
    // Predicated region
    $region26: #{_lambda_.8} parent=1 // pred_check
      _
    $region27: #{_lambda_.8} parent=1 // pred_check_branch
      %34 = sbr.rel (0) target = $region29
    $region28: #{_lambda_.8} parent=1 // pred_region
      _
    $region29: #{_lambda_.8} parent=1 // pred_fallthru
      _
    // Predicated region
    $region30: #{_lambda_.8} parent=1 // pred_check
      _
    $region31: #{_lambda_.8} parent=1 // pred_check_branch
      %36 = sbr.rel (0) target = $region33
    $region32: #{_lambda_.8} parent=1 // pred_region
      _
    $region33: #{_lambda_.8} parent=1 // pred_fallthru
      _
    // Predicated region
    $region34: #{_lambda_.8} parent=1 // pred_check
      _
    $region35: #{_lambda_.8} parent=1 // pred_check_branch
      %38 = sbr.rel (0) target = $region37
    $region36: #{_lambda_.8} parent=1 // pred_region
      _
    $region37: #{_lambda_.8} parent=1 // pred_fallthru
      _
    // Predicated region
    $region38: #{_lambda_.8} parent=1 // pred_check
      _
    $region39: #{_lambda_.8} parent=1 // pred_check_branch
      %40 = sbr.rel (0) target = $region41
    $region40: #{_lambda_.8} parent=1 // pred_region
      _
    $region41: #{_lambda_.8} parent=1 // pred_fallthru
      _
    // Predicated region
    $region42: #{_lambda_.8} parent=1 // pred_check
      _
    $region43: #{_lambda_.8} parent=1 // pred_check_branch
      %42 = sbr.rel (0) target = $region45
    $region44: #{_lambda_.8} parent=1 // pred_region
      _
    $region45: #{_lambda_.8} parent=1 // pred_fallthru
      _
    // Predicated region
    $region46: #{_lambda_.8} parent=1 // pred_check
      _
    $region47: #{_lambda_.8} parent=1 // pred_check_branch
      %44 = sbr.rel (0) target = $region49
    $region48: #{_lambda_.8} parent=1 // pred_region
      _
    $region49: #{_lambda_.8} parent=1 // pred_fallthru
      _
    %s45 = sld [smem:[#allocation2]]
    %v46 = vld [vmem:[%s1] sm:$0xff]
    %v47 = vld [vmem:[%s1 + $0x8] sm:$0xff]
    %v48 = vld [vmem:[%s1 + $0x10] sm:$0xff]
    %v49 = vld [vmem:[%s1 + $0x18] sm:$0xff]
    %v50 = vld [vmem:[%s1 + $0x20] sm:$0xff]
    %v51 = vld [vmem:[%s1 + $0x28] sm:$0xff]
    %v52 = vld [vmem:[%s1 + $0x30] sm:$0xff]
    %v53 = vld [vmem:[%s1 + $0x38] sm:$0xff]
    %v54 = vld [vmem:[%s0] sm:$0xff]
    %v55 = vld [vmem:[%s0 + $0x8] sm:$0xff]
    %v56 = vld [vmem:[%s0 + $0x10] sm:$0xff]
    %v57 = vld [vmem:[%s0 + $0x18] sm:$0xff]
    %v58 = vld [vmem:[%s0 + $0x20] sm:$0xff]
    %v59 = vld [vmem:[%s0 + $0x28] sm:$0xff]
    %v60 = vld [vmem:[%s0 + $0x30] sm:$0xff]
    %v61 = vld [vmem:[%s0 + $0x38] sm:$0xff]
    %v62 = vstv %s45
    %v63 = vmul.f32 %v62, %v46
    %v64 = vmul.f32 %v62, %v47
    %v65 = vmul.f32 %v62, %v48
    %v66 = vmul.f32 %v62, %v49
    %v67 = vmul.f32 %v62, %v50
    %v68 = vmul.f32 %v62, %v51
    %v69 = vmul.f32 %v62, %v52
    %v70 = vmul.f32 %v62, %v53
    %vm71 = vcmask 64512
    %v73 = vsel %vm71, %v54, 0
    %75 = vmatprep.subr.mxu0 0.0
    %76 = vmatpush1.msra.mxu0 0.0
    %77 = vmatprep.subr.mxu0 0.0
    %78 = vmatpush1.msra.mxu0 0.0
    %79 = vmatprep.subr.mxu0 0.0
    %80 = vmatpush1.msra.mxu0 0.0
    %81 = vmatprep.subr.mxu0 0.0
    %82 = vmatpush1.msra.mxu0 0.0
    %83 = vmatprep.subr.mxu0 0.0
    %84 = vmatpush1.msra.mxu0 0.0
    %85 = vmatprep.subr.mxu0 0.0
    %86 = vmatpush1.msra.mxu0 0.0
    %87 = vmatprep.subr.mxu0 0.0
    %88 = vmatpush1.msra.mxu0 0.0
    %89 = vmatprep.subr.mxu0 0.0
    %90 = vmatpush1.msra.mxu0 0.0
    %91 = vmatprep.subr.mxu0 0.0
    %92 = vmatpush1.msra.mxu0 0.0
    %93 = vmatprep.subr.mxu0 0.0
    %94 = vmatpush1.msra.mxu0 0.0
    %95 = vmatprep.subr.mxu0 0.0
    %96 = vmatpush1.msra.mxu0 0.0
    %97 = vmatprep.subr.mxu0 0.0
    %98 = vmatpush1.msra.mxu0 0.0
    %99 = vmatprep.subr.mxu0 0.0
    %100 = vmatpush1.msra.mxu0 0.0
    %101 = vmatprep.subr.mxu0 0.0
    %102 = vmatpush1.msra.mxu0 0.0
    %103 = vmatprep.subr.mxu0 0.0
    %104 = vmatpush1.msra.mxu0 0.0
    %105 = vmatprep.subr.mxu0 0.0
    %106 = vmatpush1.msra.mxu0 %v46
    %107 = vmatprep.subr.mxu0 0.0
    %108 = vmatpush2.msra.mxu0 0.0
    %109 = vmatprep.subr.mxu0 0.0
    %110 = vmatpush2.msra.mxu0 0.0
    %111 = vmatprep.subr.mxu0 0.0
    %112 = vmatpush2.msra.mxu0 0.0
    %113 = vmatprep.subr.mxu0 0.0
    %114 = vmatpush2.msra.mxu0 0.0
    %115 = vmatprep.subr.mxu0 0.0
    %116 = vmatpush2.msra.mxu0 0.0
    %117 = vmatprep.subr.mxu0 0.0
    %118 = vmatpush2.msra.mxu0 0.0
    %119 = vmatprep.subr.mxu0 0.0
    %120 = vmatpush2.msra.mxu0 0.0
    %121 = vmatprep.subr.mxu0 0.0
    %122 = vmatpush2.msra.mxu0 0.0
    %123 = vmatprep.subr.mxu0 0.0
    %124 = vmatpush2.msra.mxu0 0.0
    %125 = vmatprep.subr.mxu0 0.0
    %126 = vmatpush2.msra.mxu0 0.0
    %127 = vmatprep.subr.mxu0 0.0
    %128 = vmatpush2.msra.mxu0 0.0
    %129 = vmatprep.subr.mxu0 0.0
    %130 = vmatpush2.msra.mxu0 0.0
    %131 = vmatprep.subr.mxu0 0.0
    %132 = vmatpush2.msra.mxu0 0.0
    %133 = vmatprep.subr.mxu0 0.0
    %134 = vmatpush2.msra.mxu0 0.0
    %135 = vmatprep.subr.mxu0 0.0
    %136 = vmatpush2.msra.mxu0 0.0
    %137 = vmatprep.subr.mxu0 0.0
    %138 = vmatpush2.msra.mxu0 0.0
    %139 = vmatprep.mubr.f32.mxu0 0.0
    %140 = vmatmul.mubr.f32.gmra.mxu0 %v73
    %v141 = vpop.f32.mrf.mxu0
    %v142 = vadd.f32 %v63, %v141
    %v143 = vpop.f32.mrf.mxu0
    %144 = vdwg.mxu0
    %v146 = vsel %vm71, %v55, 0
    %148 = vmatprep.subr.mxu0 0.0
    %149 = vmatpush1.msra.mxu0 0.0
    %150 = vmatprep.subr.mxu0 0.0
    %151 = vmatpush1.msra.mxu0 0.0
    %152 = vmatprep.subr.mxu0 0.0
    %153 = vmatpush1.msra.mxu0 0.0
    %154 = vmatprep.subr.mxu0 0.0
    %155 = vmatpush1.msra.mxu0 0.0
    %156 = vmatprep.subr.mxu0 0.0
    %157 = vmatpush1.msra.mxu0 0.0
    %158 = vmatprep.subr.mxu0 0.0
    %159 = vmatpush1.msra.mxu0 0.0
    %160 = vmatprep.subr.mxu0 0.0
    %161 = vmatpush1.msra.mxu0 0.0
    %162 = vmatprep.subr.mxu0 0.0
    %163 = vmatpush1.msra.mxu0 0.0
    %164 = vmatprep.subr.mxu0 0.0
    %165 = vmatpush1.msra.mxu0 0.0
    %166 = vmatprep.subr.mxu0 0.0
    %167 = vmatpush1.msra.mxu0 0.0
    %168 = vmatprep.subr.mxu0 0.0
    %169 = vmatpush1.msra.mxu0 0.0
    %170 = vmatprep.subr.mxu0 0.0
    %171 = vmatpush1.msra.mxu0 0.0
    %172 = vmatprep.subr.mxu0 0.0
    %173 = vmatpush1.msra.mxu0 0.0
    %174 = vmatprep.subr.mxu0 0.0
    %175 = vmatpush1.msra.mxu0 0.0
    %176 = vmatprep.subr.mxu0 0.0
    %177 = vmatpush1.msra.mxu0 0.0
    %178 = vmatprep.subr.mxu0 0.0
    %179 = vmatpush1.msra.mxu0 %v47
    %180 = vmatprep.subr.mxu0 0.0
    %181 = vmatpush2.msra.mxu0 0.0
    %182 = vmatprep.subr.mxu0 0.0
    %183 = vmatpush2.msra.mxu0 0.0
    %184 = vmatprep.subr.mxu0 0.0
    %185 = vmatpush2.msra.mxu0 0.0
    %186 = vmatprep.subr.mxu0 0.0
    %187 = vmatpush2.msra.mxu0 0.0
    %188 = vmatprep.subr.mxu0 0.0
    %189 = vmatpush2.msra.mxu0 0.0
    %190 = vmatprep.subr.mxu0 0.0
    %191 = vmatpush2.msra.mxu0 0.0
    %192 = vmatprep.subr.mxu0 0.0
    %193 = vmatpush2.msra.mxu0 0.0
    %194 = vmatprep.subr.mxu0 0.0
    %195 = vmatpush2.msra.mxu0 0.0
    %196 = vmatprep.subr.mxu0 0.0
    %197 = vmatpush2.msra.mxu0 0.0
    %198 = vmatprep.subr.mxu0 0.0
    %199 = vmatpush2.msra.mxu0 0.0
    %200 = vmatprep.subr.mxu0 0.0
    %201 = vmatpush2.msra.mxu0 0.0
    %202 = vmatprep.subr.mxu0 0.0
    %203 = vmatpush2.msra.mxu0 0.0
    %204 = vmatprep.subr.mxu0 0.0
    %205 = vmatpush2.msra.mxu0 0.0
    %206 = vmatprep.subr.mxu0 0.0
    %207 = vmatpush2.msra.mxu0 0.0
    %208 = vmatprep.subr.mxu0 0.0
    %209 = vmatpush2.msra.mxu0 0.0
    %210 = vmatprep.subr.mxu0 0.0
    %211 = vmatpush2.msra.mxu0 0.0
    %212 = vmatprep.mubr.f32.mxu0 0.0
    %213 = vmatmul.mubr.f32.gmra.mxu0 %v146
    %v214 = vpop.f32.mrf.mxu0
    %v215 = vadd.f32 %v64, %v214
    %v216 = vpop.f32.mrf.mxu0
    %217 = vdwg.mxu0
    %v219 = vsel %vm71, %v56, 0
    %221 = vmatprep.subr.mxu0 0.0
    %222 = vmatpush1.msra.mxu0 0.0
    %223 = vmatprep.subr.mxu0 0.0
    %224 = vmatpush1.msra.mxu0 0.0
    %225 = vmatprep.subr.mxu0 0.0
    %226 = vmatpush1.msra.mxu0 0.0
    %227 = vmatprep.subr.mxu0 0.0
    %228 = vmatpush1.msra.mxu0 0.0
    %229 = vmatprep.subr.mxu0 0.0
    %230 = vmatpush1.msra.mxu0 0.0
    %231 = vmatprep.subr.mxu0 0.0
    %232 = vmatpush1.msra.mxu0 0.0
    %233 = vmatprep.subr.mxu0 0.0
    %234 = vmatpush1.msra.mxu0 0.0
    %235 = vmatprep.subr.mxu0 0.0
    %236 = vmatpush1.msra.mxu0 0.0
    %237 = vmatprep.subr.mxu0 0.0
    %238 = vmatpush1.msra.mxu0 0.0
    %239 = vmatprep.subr.mxu0 0.0
    %240 = vmatpush1.msra.mxu0 0.0
    %241 = vmatprep.subr.mxu0 0.0
    %242 = vmatpush1.msra.mxu0 0.0
    %243 = vmatprep.subr.mxu0 0.0
    %244 = vmatpush1.msra.mxu0 0.0
    %245 = vmatprep.subr.mxu0 0.0
    %246 = vmatpush1.msra.mxu0 0.0
    %247 = vmatprep.subr.mxu0 0.0
    %248 = vmatpush1.msra.mxu0 0.0
    %249 = vmatprep.subr.mxu0 0.0
    %250 = vmatpush1.msra.mxu0 0.0
    %251 = vmatprep.subr.mxu0 0.0
    %252 = vmatpush1.msra.mxu0 %v48
    %253 = vmatprep.subr.mxu0 0.0
    %254 = vmatpush2.msra.mxu0 0.0
    %255 = vmatprep.subr.mxu0 0.0
    %256 = vmatpush2.msra.mxu0 0.0
    %257 = vmatprep.subr.mxu0 0.0
    %258 = vmatpush2.msra.mxu0 0.0
    %259 = vmatprep.subr.mxu0 0.0
    %260 = vmatpush2.msra.mxu0 0.0
    %261 = vmatprep.subr.mxu0 0.0
    %262 = vmatpush2.msra.mxu0 0.0
    %263 = vmatprep.subr.mxu0 0.0
    %264 = vmatpush2.msra.mxu0 0.0
    %265 = vmatprep.subr.mxu0 0.0
    %266 = vmatpush2.msra.mxu0 0.0
    %267 = vmatprep.subr.mxu0 0.0
    %268 = vmatpush2.msra.mxu0 0.0
    %269 = vmatprep.subr.mxu0 0.0
    %270 = vmatpush2.msra.mxu0 0.0
    %271 = vmatprep.subr.mxu0 0.0
    %272 = vmatpush2.msra.mxu0 0.0
    %273 = vmatprep.subr.mxu0 0.0
    %274 = vmatpush2.msra.mxu0 0.0
    %275 = vmatprep.subr.mxu0 0.0
    %276 = vmatpush2.msra.mxu0 0.0
    %277 = vmatprep.subr.mxu0 0.0
    %278 = vmatpush2.msra.mxu0 0.0
    %279 = vmatprep.subr.mxu0 0.0
    %280 = vmatpush2.msra.mxu0 0.0
    %281 = vmatprep.subr.mxu0 0.0
    %282 = vmatpush2.msra.mxu0 0.0
    %283 = vmatprep.subr.mxu0 0.0
    %284 = vmatpush2.msra.mxu0 0.0
    %285 = vmatprep.mubr.f32.mxu0 0.0
    %286 = vmatmul.mubr.f32.gmra.mxu0 %v219
    %v287 = vpop.f32.mrf.mxu0
    %v288 = vadd.f32 %v65, %v287
    %v289 = vpop.f32.mrf.mxu0
    %290 = vdwg.mxu0
    %v292 = vsel %vm71, %v57, 0
    %294 = vmatprep.subr.mxu0 0.0
    %295 = vmatpush1.msra.mxu0 0.0
    %296 = vmatprep.subr.mxu0 0.0
    %297 = vmatpush1.msra.mxu0 0.0
    %298 = vmatprep.subr.mxu0 0.0
    %299 = vmatpush1.msra.mxu0 0.0
    %300 = vmatprep.subr.mxu0 0.0
    %301 = vmatpush1.msra.mxu0 0.0
    %302 = vmatprep.subr.mxu0 0.0
    %303 = vmatpush1.msra.mxu0 0.0
    %304 = vmatprep.subr.mxu0 0.0
    %305 = vmatpush1.msra.mxu0 0.0
    %306 = vmatprep.subr.mxu0 0.0
    %307 = vmatpush1.msra.mxu0 0.0
    %308 = vmatprep.subr.mxu0 0.0
    %309 = vmatpush1.msra.mxu0 0.0
    %310 = vmatprep.subr.mxu0 0.0
    %311 = vmatpush1.msra.mxu0 0.0
    %312 = vmatprep.subr.mxu0 0.0
    %313 = vmatpush1.msra.mxu0 0.0
    %314 = vmatprep.subr.mxu0 0.0
    %315 = vmatpush1.msra.mxu0 0.0
    %316 = vmatprep.subr.mxu0 0.0
    %317 = vmatpush1.msra.mxu0 0.0
    %318 = vmatprep.subr.mxu0 0.0
    %319 = vmatpush1.msra.mxu0 0.0
    %320 = vmatprep.subr.mxu0 0.0
    %321 = vmatpush1.msra.mxu0 0.0
    %322 = vmatprep.subr.mxu0 0.0
    %323 = vmatpush1.msra.mxu0 0.0
    %324 = vmatprep.subr.mxu0 0.0
    %325 = vmatpush1.msra.mxu0 %v49
    %326 = vmatprep.subr.mxu0 0.0
    %327 = vmatpush2.msra.mxu0 0.0
    %328 = vmatprep.subr.mxu0 0.0
    %329 = vmatpush2.msra.mxu0 0.0
    %330 = vmatprep.subr.mxu0 0.0
    %331 = vmatpush2.msra.mxu0 0.0
    %332 = vmatprep.subr.mxu0 0.0
    %333 = vmatpush2.msra.mxu0 0.0
    %334 = vmatprep.subr.mxu0 0.0
    %335 = vmatpush2.msra.mxu0 0.0
    %336 = vmatprep.subr.mxu0 0.0
    %337 = vmatpush2.msra.mxu0 0.0
    %338 = vmatprep.subr.mxu0 0.0
    %339 = vmatpush2.msra.mxu0 0.0
    %340 = vmatprep.subr.mxu0 0.0
    %341 = vmatpush2.msra.mxu0 0.0
    %342 = vmatprep.subr.mxu0 0.0
    %343 = vmatpush2.msra.mxu0 0.0
    %344 = vmatprep.subr.mxu0 0.0
    %345 = vmatpush2.msra.mxu0 0.0
    %346 = vmatprep.subr.mxu0 0.0
    %347 = vmatpush2.msra.mxu0 0.0
    %348 = vmatprep.subr.mxu0 0.0
    %349 = vmatpush2.msra.mxu0 0.0
    %350 = vmatprep.subr.mxu0 0.0
    %351 = vmatpush2.msra.mxu0 0.0
    %352 = vmatprep.subr.mxu0 0.0
    %353 = vmatpush2.msra.mxu0 0.0
    %354 = vmatprep.subr.mxu0 0.0
    %355 = vmatpush2.msra.mxu0 0.0
    %356 = vmatprep.subr.mxu0 0.0
    %357 = vmatpush2.msra.mxu0 0.0
    %358 = vmatprep.mubr.f32.mxu0 0.0
    %359 = vmatmul.mubr.f32.gmra.mxu0 %v292
    %v360 = vpop.f32.mrf.mxu0
    %v361 = vadd.f32 %v66, %v360
    %v362 = vpop.f32.mrf.mxu0
    %363 = vdwg.mxu0
    %v365 = vsel %vm71, %v58, 0
    %367 = vmatprep.subr.mxu0 0.0
    %368 = vmatpush1.msra.mxu0 0.0
    %369 = vmatprep.subr.mxu0 0.0
    %370 = vmatpush1.msra.mxu0 0.0
    %371 = vmatprep.subr.mxu0 0.0
    %372 = vmatpush1.msra.mxu0 0.0
    %373 = vmatprep.subr.mxu0 0.0
    %374 = vmatpush1.msra.mxu0 0.0
    %375 = vmatprep.subr.mxu0 0.0
    %376 = vmatpush1.msra.mxu0 0.0
    %377 = vmatprep.subr.mxu0 0.0
    %378 = vmatpush1.msra.mxu0 0.0
    %379 = vmatprep.subr.mxu0 0.0
    %380 = vmatpush1.msra.mxu0 0.0
    %381 = vmatprep.subr.mxu0 0.0
    %382 = vmatpush1.msra.mxu0 0.0
    %383 = vmatprep.subr.mxu0 0.0
    %384 = vmatpush1.msra.mxu0 0.0
    %385 = vmatprep.subr.mxu0 0.0
    %386 = vmatpush1.msra.mxu0 0.0
    %387 = vmatprep.subr.mxu0 0.0
    %388 = vmatpush1.msra.mxu0 0.0
    %389 = vmatprep.subr.mxu0 0.0
    %390 = vmatpush1.msra.mxu0 0.0
    %391 = vmatprep.subr.mxu0 0.0
    %392 = vmatpush1.msra.mxu0 0.0
    %393 = vmatprep.subr.mxu0 0.0
    %394 = vmatpush1.msra.mxu0 0.0
    %395 = vmatprep.subr.mxu0 0.0
    %396 = vmatpush1.msra.mxu0 0.0
    %397 = vmatprep.subr.mxu0 0.0
    %398 = vmatpush1.msra.mxu0 %v50
    %399 = vmatprep.subr.mxu0 0.0
    %400 = vmatpush2.msra.mxu0 0.0
    %401 = vmatprep.subr.mxu0 0.0
    %402 = vmatpush2.msra.mxu0 0.0
    %403 = vmatprep.subr.mxu0 0.0
    %404 = vmatpush2.msra.mxu0 0.0
    %405 = vmatprep.subr.mxu0 0.0
    %406 = vmatpush2.msra.mxu0 0.0
    %407 = vmatprep.subr.mxu0 0.0
    %408 = vmatpush2.msra.mxu0 0.0
    %409 = vmatprep.subr.mxu0 0.0
    %410 = vmatpush2.msra.mxu0 0.0
    %411 = vmatprep.subr.mxu0 0.0
    %412 = vmatpush2.msra.mxu0 0.0
    %413 = vmatprep.subr.mxu0 0.0
    %414 = vmatpush2.msra.mxu0 0.0
    %415 = vmatprep.subr.mxu0 0.0
    %416 = vmatpush2.msra.mxu0 0.0
    %417 = vmatprep.subr.mxu0 0.0
    %418 = vmatpush2.msra.mxu0 0.0
    %419 = vmatprep.subr.mxu0 0.0
    %420 = vmatpush2.msra.mxu0 0.0
    %421 = vmatprep.subr.mxu0 0.0
    %422 = vmatpush2.msra.mxu0 0.0
    %423 = vmatprep.subr.mxu0 0.0
    %424 = vmatpush2.msra.mxu0 0.0
    %425 = vmatprep.subr.mxu0 0.0
    %426 = vmatpush2.msra.mxu0 0.0
    %427 = vmatprep.subr.mxu0 0.0
    %428 = vmatpush2.msra.mxu0 0.0
    %429 = vmatprep.subr.mxu0 0.0
    %430 = vmatpush2.msra.mxu0 0.0
    %431 = vmatprep.mubr.f32.mxu0 0.0
    %432 = vmatmul.mubr.f32.gmra.mxu0 %v365
    %v433 = vpop.f32.mrf.mxu0
    %v434 = vadd.f32 %v67, %v433
    %v435 = vpop.f32.mrf.mxu0
    %436 = vdwg.mxu0
    %v438 = vsel %vm71, %v59, 0
    %440 = vmatprep.subr.mxu0 0.0
    %441 = vmatpush1.msra.mxu0 0.0
    %442 = vmatprep.subr.mxu0 0.0
    %443 = vmatpush1.msra.mxu0 0.0
    %444 = vmatprep.subr.mxu0 0.0
    %445 = vmatpush1.msra.mxu0 0.0
    %446 = vmatprep.subr.mxu0 0.0
    %447 = vmatpush1.msra.mxu0 0.0
    %448 = vmatprep.subr.mxu0 0.0
    %449 = vmatpush1.msra.mxu0 0.0
    %450 = vmatprep.subr.mxu0 0.0
    %451 = vmatpush1.msra.mxu0 0.0
    %452 = vmatprep.subr.mxu0 0.0
    %453 = vmatpush1.msra.mxu0 0.0
    %454 = vmatprep.subr.mxu0 0.0
    %455 = vmatpush1.msra.mxu0 0.0
    %456 = vmatprep.subr.mxu0 0.0
    %457 = vmatpush1.msra.mxu0 0.0
    %458 = vmatprep.subr.mxu0 0.0
    %459 = vmatpush1.msra.mxu0 0.0
    %460 = vmatprep.subr.mxu0 0.0
    %461 = vmatpush1.msra.mxu0 0.0
    %462 = vmatprep.subr.mxu0 0.0
    %463 = vmatpush1.msra.mxu0 0.0
    %464 = vmatprep.subr.mxu0 0.0
    %465 = vmatpush1.msra.mxu0 0.0
    %466 = vmatprep.subr.mxu0 0.0
    %467 = vmatpush1.msra.mxu0 0.0
    %468 = vmatprep.subr.mxu0 0.0
    %469 = vmatpush1.msra.mxu0 0.0
    %470 = vmatprep.subr.mxu0 0.0
    %471 = vmatpush1.msra.mxu0 %v51
    %472 = vmatprep.subr.mxu0 0.0
    %473 = vmatpush2.msra.mxu0 0.0
    %474 = vmatprep.subr.mxu0 0.0
    %475 = vmatpush2.msra.mxu0 0.0
    %476 = vmatprep.subr.mxu0 0.0
    %477 = vmatpush2.msra.mxu0 0.0
    %478 = vmatprep.subr.mxu0 0.0
    %479 = vmatpush2.msra.mxu0 0.0
    %480 = vmatprep.subr.mxu0 0.0
    %481 = vmatpush2.msra.mxu0 0.0
    %482 = vmatprep.subr.mxu0 0.0
    %483 = vmatpush2.msra.mxu0 0.0
    %484 = vmatprep.subr.mxu0 0.0
    %485 = vmatpush2.msra.mxu0 0.0
    %486 = vmatprep.subr.mxu0 0.0
    %487 = vmatpush2.msra.mxu0 0.0
    %488 = vmatprep.subr.mxu0 0.0
    %489 = vmatpush2.msra.mxu0 0.0
    %490 = vmatprep.subr.mxu0 0.0
    %491 = vmatpush2.msra.mxu0 0.0
    %492 = vmatprep.subr.mxu0 0.0
    %493 = vmatpush2.msra.mxu0 0.0
    %494 = vmatprep.subr.mxu0 0.0
    %495 = vmatpush2.msra.mxu0 0.0
    %496 = vmatprep.subr.mxu0 0.0
    %497 = vmatpush2.msra.mxu0 0.0
    %498 = vmatprep.subr.mxu0 0.0
    %499 = vmatpush2.msra.mxu0 0.0
    %500 = vmatprep.subr.mxu0 0.0
    %501 = vmatpush2.msra.mxu0 0.0
    %502 = vmatprep.subr.mxu0 0.0
    %503 = vmatpush2.msra.mxu0 0.0
    %504 = vmatprep.mubr.f32.mxu0 0.0
    %505 = vmatmul.mubr.f32.gmra.mxu0 %v438
    %v506 = vpop.f32.mrf.mxu0
    %v507 = vadd.f32 %v68, %v506
    %v508 = vpop.f32.mrf.mxu0
    %509 = vdwg.mxu0
    %v511 = vsel %vm71, %v60, 0
    %513 = vmatprep.subr.mxu0 0.0
    %514 = vmatpush1.msra.mxu0 0.0
    %515 = vmatprep.subr.mxu0 0.0
    %516 = vmatpush1.msra.mxu0 0.0
    %517 = vmatprep.subr.mxu0 0.0
    %518 = vmatpush1.msra.mxu0 0.0
    %519 = vmatprep.subr.mxu0 0.0
    %520 = vmatpush1.msra.mxu0 0.0
    %521 = vmatprep.subr.mxu0 0.0
    %522 = vmatpush1.msra.mxu0 0.0
    %523 = vmatprep.subr.mxu0 0.0
    %524 = vmatpush1.msra.mxu0 0.0
    %525 = vmatprep.subr.mxu0 0.0
    %526 = vmatpush1.msra.mxu0 0.0
    %527 = vmatprep.subr.mxu0 0.0
    %528 = vmatpush1.msra.mxu0 0.0
    %529 = vmatprep.subr.mxu0 0.0
    %530 = vmatpush1.msra.mxu0 0.0
    %531 = vmatprep.subr.mxu0 0.0
    %532 = vmatpush1.msra.mxu0 0.0
    %533 = vmatprep.subr.mxu0 0.0
    %534 = vmatpush1.msra.mxu0 0.0
    %535 = vmatprep.subr.mxu0 0.0
    %536 = vmatpush1.msra.mxu0 0.0
    %537 = vmatprep.subr.mxu0 0.0
    %538 = vmatpush1.msra.mxu0 0.0
    %539 = vmatprep.subr.mxu0 0.0
    %540 = vmatpush1.msra.mxu0 0.0
    %541 = vmatprep.subr.mxu0 0.0
    %542 = vmatpush1.msra.mxu0 0.0
    %543 = vmatprep.subr.mxu0 0.0
    %544 = vmatpush1.msra.mxu0 %v52
    %545 = vmatprep.subr.mxu0 0.0
    %546 = vmatpush2.msra.mxu0 0.0
    %547 = vmatprep.subr.mxu0 0.0
    %548 = vmatpush2.msra.mxu0 0.0
    %549 = vmatprep.subr.mxu0 0.0
    %550 = vmatpush2.msra.mxu0 0.0
    %551 = vmatprep.subr.mxu0 0.0
    %552 = vmatpush2.msra.mxu0 0.0
    %553 = vmatprep.subr.mxu0 0.0
    %554 = vmatpush2.msra.mxu0 0.0
    %555 = vmatprep.subr.mxu0 0.0
    %556 = vmatpush2.msra.mxu0 0.0
    %557 = vmatprep.subr.mxu0 0.0
    %558 = vmatpush2.msra.mxu0 0.0
    %559 = vmatprep.subr.mxu0 0.0
    %560 = vmatpush2.msra.mxu0 0.0
    %561 = vmatprep.subr.mxu0 0.0
    %562 = vmatpush2.msra.mxu0 0.0
    %563 = vmatprep.subr.mxu0 0.0
    %564 = vmatpush2.msra.mxu0 0.0
    %565 = vmatprep.subr.mxu0 0.0
    %566 = vmatpush2.msra.mxu0 0.0
    %567 = vmatprep.subr.mxu0 0.0
    %568 = vmatpush2.msra.mxu0 0.0
    %569 = vmatprep.subr.mxu0 0.0
    %570 = vmatpush2.msra.mxu0 0.0
    %571 = vmatprep.subr.mxu0 0.0
    %572 = vmatpush2.msra.mxu0 0.0
    %573 = vmatprep.subr.mxu0 0.0
    %574 = vmatpush2.msra.mxu0 0.0
    %575 = vmatprep.subr.mxu0 0.0
    %576 = vmatpush2.msra.mxu0 0.0
    %577 = vmatprep.mubr.f32.mxu0 0.0
    %578 = vmatmul.mubr.f32.gmra.mxu0 %v511
    %v579 = vpop.f32.mrf.mxu0
    %v580 = vadd.f32 %v69, %v579
    %v581 = vpop.f32.mrf.mxu0
    %582 = vdwg.mxu0
    %v584 = vsel %vm71, %v61, 0
    %586 = vmatprep.subr.mxu0 0.0
    %587 = vmatpush1.msra.mxu0 0.0
    %588 = vmatprep.subr.mxu0 0.0
    %589 = vmatpush1.msra.mxu0 0.0
    %590 = vmatprep.subr.mxu0 0.0
    %591 = vmatpush1.msra.mxu0 0.0
    %592 = vmatprep.subr.mxu0 0.0
    %593 = vmatpush1.msra.mxu0 0.0
    %594 = vmatprep.subr.mxu0 0.0
    %595 = vmatpush1.msra.mxu0 0.0
    %596 = vmatprep.subr.mxu0 0.0
    %597 = vmatpush1.msra.mxu0 0.0
    %598 = vmatprep.subr.mxu0 0.0
    %599 = vmatpush1.msra.mxu0 0.0
    %600 = vmatprep.subr.mxu0 0.0
    %601 = vmatpush1.msra.mxu0 0.0
    %602 = vmatprep.subr.mxu0 0.0
    %603 = vmatpush1.msra.mxu0 0.0
    %604 = vmatprep.subr.mxu0 0.0
    %605 = vmatpush1.msra.mxu0 0.0
    %606 = vmatprep.subr.mxu0 0.0
    %607 = vmatpush1.msra.mxu0 0.0
    %608 = vmatprep.subr.mxu0 0.0
    %609 = vmatpush1.msra.mxu0 0.0
    %610 = vmatprep.subr.mxu0 0.0
    %611 = vmatpush1.msra.mxu0 0.0
    %612 = vmatprep.subr.mxu0 0.0
    %613 = vmatpush1.msra.mxu0 0.0
    %614 = vmatprep.subr.mxu0 0.0
    %615 = vmatpush1.msra.mxu0 0.0
    %616 = vmatprep.subr.mxu0 0.0
    %617 = vmatpush1.msra.mxu0 %v53
    %618 = vmatprep.subr.mxu0 0.0
    %619 = vmatpush2.msra.mxu0 0.0
    %620 = vmatprep.subr.mxu0 0.0
    %621 = vmatpush2.msra.mxu0 0.0
    %622 = vmatprep.subr.mxu0 0.0
    %623 = vmatpush2.msra.mxu0 0.0
    %624 = vmatprep.subr.mxu0 0.0
    %625 = vmatpush2.msra.mxu0 0.0
    %626 = vmatprep.subr.mxu0 0.0
    %627 = vmatpush2.msra.mxu0 0.0
    %628 = vmatprep.subr.mxu0 0.0
    %629 = vmatpush2.msra.mxu0 0.0
    %630 = vmatprep.subr.mxu0 0.0
    %631 = vmatpush2.msra.mxu0 0.0
    %632 = vmatprep.subr.mxu0 0.0
    %633 = vmatpush2.msra.mxu0 0.0
    %634 = vmatprep.subr.mxu0 0.0
    %635 = vmatpush2.msra.mxu0 0.0
    %636 = vmatprep.subr.mxu0 0.0
    %637 = vmatpush2.msra.mxu0 0.0
    %638 = vmatprep.subr.mxu0 0.0
    %639 = vmatpush2.msra.mxu0 0.0
    %640 = vmatprep.subr.mxu0 0.0
    %641 = vmatpush2.msra.mxu0 0.0
    %642 = vmatprep.subr.mxu0 0.0
    %643 = vmatpush2.msra.mxu0 0.0
    %644 = vmatprep.subr.mxu0 0.0
    %645 = vmatpush2.msra.mxu0 0.0
    %646 = vmatprep.subr.mxu0 0.0
    %647 = vmatpush2.msra.mxu0 0.0
    %648 = vmatprep.subr.mxu0 0.0
    %649 = vmatpush2.msra.mxu0 0.0
    %650 = vmatprep.mubr.f32.mxu0 0.0
    %651 = vmatmul.mubr.f32.gmra.mxu0 %v584
    %v652 = vpop.f32.mrf.mxu0
    %v653 = vadd.f32 %v70, %v652
    %v654 = vpop.f32.mrf.mxu0
    %655 = vdwg.mxu0
    %v656 = vld [vmem:[%s3] sm:$0xff]
    %v657 = vld [vmem:[%s3 + $0x8] sm:$0xff]
    %v658 = vld [vmem:[%s3 + $0x10] sm:$0xff]
    %v659 = vld [vmem:[%s3 + $0x18] sm:$0xff]
    %v660 = vld [vmem:[%s4] sm:$0x1]
    %v662 = vlaneseq
    %v663 = vshrl.u32 %v662, 7
    %v664 = vsub.s32 0, %v663
    %v665 = vrot.slane %v660, %v664
    %vm667 = vcmask 261120
    %v669 = vsel %vm667, %v142, 0
    %v672 = vsel %vm667, %v215, 0
    %v675 = vsel %vm667, %v288, 0
    %v678 = vsel %vm667, %v361, 0
    %v681 = vsel %vm667, %v434, 0
    %v684 = vsel %vm667, %v507, 0
    %v687 = vsel %vm667, %v580, 0
    %v690 = vsel %vm667, %v653, 0
    %692 = vmatprep.subr.mxu0 0.0
    %693 = vmatpush1.msra.mxu0 0.0
    %694 = vmatprep.subr.mxu0 0.0
    %695 = vmatpush1.msra.mxu0 0.0
    %696 = vmatprep.subr.mxu0 0.0
    %697 = vmatpush1.msra.mxu0 0.0
    %698 = vmatprep.subr.mxu0 0.0
    %699 = vmatpush1.msra.mxu0 0.0
    %700 = vmatprep.subr.mxu0 0.0
    %701 = vmatpush1.msra.mxu0 0.0
    %702 = vmatprep.subr.mxu0 0.0
    %703 = vmatpush1.msra.mxu0 0.0
    %704 = vmatprep.subr.mxu0 0.0
    %705 = vmatpush1.msra.mxu0 0.0
    %706 = vmatprep.subr.mxu0 0.0
    %707 = vmatpush1.msra.mxu0 0.0
    %708 = vmatprep.subr.mxu0 0.0
    %709 = vmatpush1.msra.mxu0 0.0
    %710 = vmatprep.subr.mxu0 0.0
    %711 = vmatpush1.msra.mxu0 0.0
    %712 = vmatprep.subr.mxu0 0.0
    %713 = vmatpush1.msra.mxu0 0.0
    %714 = vmatprep.subr.mxu0 0.0
    %715 = vmatpush1.msra.mxu0 0.0
    %716 = vmatprep.subr.mxu0 0.0
    %717 = vmatpush1.msra.mxu0 %v659
    %718 = vmatprep.subr.mxu0 0.0
    %719 = vmatpush1.msra.mxu0 %v658
    %720 = vmatprep.subr.mxu0 0.0
    %721 = vmatpush1.msra.mxu0 %v657
    %722 = vmatprep.subr.mxu0 0.0
    %723 = vmatpush1.msra.mxu0 %v656
    %724 = vmatprep.subr.mxu0 0.0
    %725 = vmatpush2.msra.mxu0 0.0
    %726 = vmatprep.subr.mxu0 0.0
    %727 = vmatpush2.msra.mxu0 0.0
    %728 = vmatprep.subr.mxu0 0.0
    %729 = vmatpush2.msra.mxu0 0.0
    %730 = vmatprep.subr.mxu0 0.0
    %731 = vmatpush2.msra.mxu0 0.0
    %732 = vmatprep.subr.mxu0 0.0
    %733 = vmatpush2.msra.mxu0 0.0
    %734 = vmatprep.subr.mxu0 0.0
    %735 = vmatpush2.msra.mxu0 0.0
    %736 = vmatprep.subr.mxu0 0.0
    %737 = vmatpush2.msra.mxu0 0.0
    %738 = vmatprep.subr.mxu0 0.0
    %739 = vmatpush2.msra.mxu0 0.0
    %740 = vmatprep.subr.mxu0 0.0
    %741 = vmatpush2.msra.mxu0 0.0
    %742 = vmatprep.subr.mxu0 0.0
    %743 = vmatpush2.msra.mxu0 0.0
    %744 = vmatprep.subr.mxu0 0.0
    %745 = vmatpush2.msra.mxu0 0.0
    %746 = vmatprep.subr.mxu0 0.0
    %747 = vmatpush2.msra.mxu0 0.0
    %748 = vmatprep.subr.mxu0 0.0
    %749 = vmatpush2.msra.mxu0 0.0
    %750 = vmatprep.subr.mxu0 0.0
    %751 = vmatpush2.msra.mxu0 0.0
    %752 = vmatprep.subr.mxu0 0.0
    %753 = vmatpush2.msra.mxu0 0.0
    %754 = vmatprep.subr.mxu0 0.0
    %755 = vmatpush2.msra.mxu0 0.0
    %756 = vmatprep.mubr.f32.mxu0 0.0
    %757 = vmatmul.mubr.f32.gmra.mxu0 %v669
    %v758 = vpop.f32.mrf.mxu0
    %v759 = vadd.f32 %v665, %v758
    %v760 = vpop.f32.mrf.mxu0
    %761 = vmatprep.mubr.f32.mxu0 0.0
    %762 = vmatmul.mubr.f32.gmra.mxu0 %v672
    %v763 = vpop.f32.mrf.mxu0
    %v764 = vadd.f32 %v665, %v763
    %v765 = vpop.f32.mrf.mxu0
    %766 = vmatprep.mubr.f32.mxu0 0.0
    %767 = vmatmul.mubr.f32.gmra.mxu0 %v675
    %v768 = vpop.f32.mrf.mxu0
    %v769 = vadd.f32 %v665, %v768
    %v770 = vpop.f32.mrf.mxu0
    %771 = vmatprep.mubr.f32.mxu0 0.0
    %772 = vmatmul.mubr.f32.gmra.mxu0 %v678
    %v773 = vpop.f32.mrf.mxu0
    %v774 = vadd.f32 %v665, %v773
    %v775 = vpop.f32.mrf.mxu0
    %776 = vmatprep.mubr.f32.mxu0 0.0
    %777 = vmatmul.mubr.f32.gmra.mxu0 %v681
    %v778 = vpop.f32.mrf.mxu0
    %v779 = vadd.f32 %v665, %v778
    %v780 = vpop.f32.mrf.mxu0
    %781 = vmatprep.mubr.f32.mxu0 0.0
    %782 = vmatmul.mubr.f32.gmra.mxu0 %v684
    %v783 = vpop.f32.mrf.mxu0
    %v784 = vadd.f32 %v665, %v783
    %v785 = vpop.f32.mrf.mxu0
    %786 = vmatprep.mubr.f32.mxu0 0.0
    %787 = vmatmul.mubr.f32.gmra.mxu0 %v687
    %v788 = vpop.f32.mrf.mxu0
    %v789 = vadd.f32 %v665, %v788
    %v790 = vpop.f32.mrf.mxu0
    %791 = vmatprep.mubr.f32.mxu0 0.0
    %792 = vmatmul.mubr.f32.gmra.mxu0 %v690
    %v793 = vpop.f32.mrf.mxu0
    %v794 = vadd.f32 %v665, %v793
    %v795 = vpop.f32.mrf.mxu0
    %796 = vdwg.mxu0
    %v797 = vld [vmem:[%s5] sm:$0x1]
    %v799 = vlaneseq
    %v800 = vshrl.u32 %v799, 7
    %v801 = vsub.s32 0, %v800
    %v802 = vrot.slane %v797, %v801
    %v804 = vmul.f32 %v759, %v802
    %v805 = vmul.f32 %v764, %v802
    %v806 = vmul.f32 %v769, %v802
    %v807 = vmul.f32 %v774, %v802
    %v808 = vmul.f32 %v779, %v802
    %v809 = vmul.f32 %v784, %v802
    %v810 = vmul.f32 %v789, %v802
    %v811 = vmul.f32 %v794, %v802
    %v812 = vld [vmem:[%s6] sm:$0x1]
    %v814 = vlaneseq
    %v815 = vshrl.u32 %v814, 7
    %v816 = vsub.s32 0, %v815
    %v817 = vrot.slane %v812, %v816
    %v819 = vadd.f32 %v804, %v817
    %v820 = vadd.f32 %v805, %v817
    %v821 = vadd.f32 %v806, %v817
    %v822 = vadd.f32 %v807, %v817
    %v823 = vadd.f32 %v808, %v817
    %v824 = vadd.f32 %v809, %v817
    %v825 = vadd.f32 %v810, %v817
    %v826 = vadd.f32 %v811, %v817
    %v827 = vmax.f32 %v819, 0.0
    %v828 = vmax.f32 %v820, 0.0
    %v829 = vmax.f32 %v821, 0.0
    %v830 = vmax.f32 %v822, 0.0
    %v831 = vmax.f32 %v823, 0.0
    %v832 = vmax.f32 %v824, 0.0
    %v833 = vmax.f32 %v825, 0.0
    %v834 = vmax.f32 %v826, 0.0
    %v835 = vld [vmem:[%s7] sm:$0xff]
    %v836 = vld [vmem:[%s7 + $0x8] sm:$0xff]
    %v837 = vld [vmem:[%s7 + $0x10] sm:$0xff]
    %v838 = vld [vmem:[%s7 + $0x18] sm:$0xff]
    %v839 = vld [vmem:[%s8] sm:$0x1]
    %v841 = vlaneseq
    %v842 = vshrl.u32 %v841, 7
    %v843 = vsub.s32 0, %v842
    %v844 = vrot.slane %v839, %v843
    %v847 = vsel %vm667, %v827, 0
    %v850 = vsel %vm667, %v828, 0
    %v853 = vsel %vm667, %v829, 0
    %v856 = vsel %vm667, %v830, 0
    %v859 = vsel %vm667, %v831, 0
    %v862 = vsel %vm667, %v832, 0
    %v865 = vsel %vm667, %v833, 0
    %v868 = vsel %vm667, %v834, 0
    %870 = vmatprep.subr.mxu0 0.0
    %871 = vmatpush1.msra.mxu0 0.0
    %872 = vmatprep.subr.mxu0 0.0
    %873 = vmatpush1.msra.mxu0 0.0
    %874 = vmatprep.subr.mxu0 0.0
    %875 = vmatpush1.msra.mxu0 0.0
    %876 = vmatprep.subr.mxu0 0.0
    %877 = vmatpush1.msra.mxu0 0.0
    %878 = vmatprep.subr.mxu0 0.0
    %879 = vmatpush1.msra.mxu0 0.0
    %880 = vmatprep.subr.mxu0 0.0
    %881 = vmatpush1.msra.mxu0 0.0
    %882 = vmatprep.subr.mxu0 0.0
    %883 = vmatpush1.msra.mxu0 0.0
    %884 = vmatprep.subr.mxu0 0.0
    %885 = vmatpush1.msra.mxu0 0.0
    %886 = vmatprep.subr.mxu0 0.0
    %887 = vmatpush1.msra.mxu0 0.0
    %888 = vmatprep.subr.mxu0 0.0
    %889 = vmatpush1.msra.mxu0 0.0
    %890 = vmatprep.subr.mxu0 0.0
    %891 = vmatpush1.msra.mxu0 0.0
    %892 = vmatprep.subr.mxu0 0.0
    %893 = vmatpush1.msra.mxu0 0.0
    %894 = vmatprep.subr.mxu0 0.0
    %895 = vmatpush1.msra.mxu0 %v838
    %896 = vmatprep.subr.mxu0 0.0
    %897 = vmatpush1.msra.mxu0 %v837
    %898 = vmatprep.subr.mxu0 0.0
    %899 = vmatpush1.msra.mxu0 %v836
    %900 = vmatprep.subr.mxu0 0.0
    %901 = vmatpush1.msra.mxu0 %v835
    %902 = vmatprep.subr.mxu0 0.0
    %903 = vmatpush2.msra.mxu0 0.0
    %904 = vmatprep.subr.mxu0 0.0
    %905 = vmatpush2.msra.mxu0 0.0
    %906 = vmatprep.subr.mxu0 0.0
    %907 = vmatpush2.msra.mxu0 0.0
    %908 = vmatprep.subr.mxu0 0.0
    %909 = vmatpush2.msra.mxu0 0.0
    %910 = vmatprep.subr.mxu0 0.0
    %911 = vmatpush2.msra.mxu0 0.0
    %912 = vmatprep.subr.mxu0 0.0
    %913 = vmatpush2.msra.mxu0 0.0
    %914 = vmatprep.subr.mxu0 0.0
    %915 = vmatpush2.msra.mxu0 0.0
    %916 = vmatprep.subr.mxu0 0.0
    %917 = vmatpush2.msra.mxu0 0.0
    %918 = vmatprep.subr.mxu0 0.0
    %919 = vmatpush2.msra.mxu0 0.0
    %920 = vmatprep.subr.mxu0 0.0
    %921 = vmatpush2.msra.mxu0 0.0
    %922 = vmatprep.subr.mxu0 0.0
    %923 = vmatpush2.msra.mxu0 0.0
    %924 = vmatprep.subr.mxu0 0.0
    %925 = vmatpush2.msra.mxu0 0.0
    %926 = vmatprep.subr.mxu0 0.0
    %927 = vmatpush2.msra.mxu0 0.0
    %928 = vmatprep.subr.mxu0 0.0
    %929 = vmatpush2.msra.mxu0 0.0
    %930 = vmatprep.subr.mxu0 0.0
    %931 = vmatpush2.msra.mxu0 0.0
    %932 = vmatprep.subr.mxu0 0.0
    %933 = vmatpush2.msra.mxu0 0.0
    %934 = vmatprep.mubr.f32.mxu0 0.0
    %935 = vmatmul.mubr.f32.gmra.mxu0 %v847
    %v936 = vpop.f32.mrf.mxu0
    %v937 = vadd.f32 %v844, %v936
    %v938 = vpop.f32.mrf.mxu0
    %939 = vmatprep.mubr.f32.mxu0 0.0
    %940 = vmatmul.mubr.f32.gmra.mxu0 %v850
    %v941 = vpop.f32.mrf.mxu0
    %v942 = vadd.f32 %v844, %v941
    %v943 = vpop.f32.mrf.mxu0
    %944 = vmatprep.mubr.f32.mxu0 0.0
    %945 = vmatmul.mubr.f32.gmra.mxu0 %v853
    %v946 = vpop.f32.mrf.mxu0
    %v947 = vadd.f32 %v844, %v946
    %v948 = vpop.f32.mrf.mxu0
    %949 = vmatprep.mubr.f32.mxu0 0.0
    %950 = vmatmul.mubr.f32.gmra.mxu0 %v856
    %v951 = vpop.f32.mrf.mxu0
    %v952 = vadd.f32 %v844, %v951
    %v953 = vpop.f32.mrf.mxu0
    %954 = vmatprep.mubr.f32.mxu0 0.0
    %955 = vmatmul.mubr.f32.gmra.mxu0 %v859
    %v956 = vpop.f32.mrf.mxu0
    %v957 = vadd.f32 %v844, %v956
    %v958 = vpop.f32.mrf.mxu0
    %959 = vmatprep.mubr.f32.mxu0 0.0
    %960 = vmatmul.mubr.f32.gmra.mxu0 %v862
    %v961 = vpop.f32.mrf.mxu0
    %v962 = vadd.f32 %v844, %v961
    %v963 = vpop.f32.mrf.mxu0
    %964 = vmatprep.mubr.f32.mxu0 0.0
    %965 = vmatmul.mubr.f32.gmra.mxu0 %v865
    %v966 = vpop.f32.mrf.mxu0
    %v967 = vadd.f32 %v844, %v966
    %v968 = vpop.f32.mrf.mxu0
    %969 = vmatprep.mubr.f32.mxu0 0.0
    %970 = vmatmul.mubr.f32.gmra.mxu0 %v868
    %v971 = vpop.f32.mrf.mxu0
    %v972 = vadd.f32 %v844, %v971
    %v973 = vpop.f32.mrf.mxu0
    %974 = vdwg.mxu0
    %v975 = vld [vmem:[%s9] sm:$0x1]
    %v977 = vlaneseq
    %v978 = vshrl.u32 %v977, 7
    %v979 = vsub.s32 0, %v978
    %v980 = vrot.slane %v975, %v979
    %v982 = vmul.f32 %v937, %v980
    %v983 = vmul.f32 %v942, %v980
    %v984 = vmul.f32 %v947, %v980
    %v985 = vmul.f32 %v952, %v980
    %v986 = vmul.f32 %v957, %v980
    %v987 = vmul.f32 %v962, %v980
    %v988 = vmul.f32 %v967, %v980
    %v989 = vmul.f32 %v972, %v980
    %v990 = vld [vmem:[%s10] sm:$0x1]
    %v992 = vlaneseq
    %v993 = vshrl.u32 %v992, 7
    %v994 = vsub.s32 0, %v993
    %v995 = vrot.slane %v990, %v994
    %v997 = vadd.f32 %v982, %v995
    %v998 = vadd.f32 %v983, %v995
    %v999 = vadd.f32 %v984, %v995
    %v1000 = vadd.f32 %v985, %v995
    %v1001 = vadd.f32 %v986, %v995
    %v1002 = vadd.f32 %v987, %v995
    %v1003 = vadd.f32 %v988, %v995
    %v1004 = vadd.f32 %v989, %v995
    %v1005 = vmax.f32 %v997, 0.0
    %v1006 = vmax.f32 %v998, 0.0
    %v1007 = vmax.f32 %v999, 0.0
    %v1008 = vmax.f32 %v1000, 0.0
    %v1009 = vmax.f32 %v1001, 0.0
    %v1010 = vmax.f32 %v1002, 0.0
    %v1011 = vmax.f32 %v1003, 0.0
    %v1012 = vmax.f32 %v1004, 0.0
    %1013 = vst.msk [vmem:[#allocation3] sm:$0xff] %vm667, %v1005
    %1014 = vst.msk [vmem:[#allocation3 + $0x8] sm:$0xff] %vm667, %v1006
    %1015 = vst.msk [vmem:[#allocation3 + $0x10] sm:$0xff] %vm667, %v1007
    %1016 = vst.msk [vmem:[#allocation3 + $0x18] sm:$0xff] %vm667, %v1008
    %1017 = vst.msk [vmem:[#allocation3 + $0x20] sm:$0xff] %vm667, %v1009
    %1018 = vst.msk [vmem:[#allocation3 + $0x28] sm:$0xff] %vm667, %v1010
    %1019 = vst.msk [vmem:[#allocation3 + $0x30] sm:$0xff] %vm667, %v1011
    %1020 = vst.msk [vmem:[#allocation3 + $0x38] sm:$0xff] %vm667, %v1012
    %v1021 = vld [vmem:[%s2] sm:$0xff]
    %v1023 = vcombine.high %v1021, %v1021
    %v1025 = vunpack.c.l.s4 1966171168
    %v1026 = vunpack.c.0.s8 %v1025
    %v1027 = vlaneseq
    %v1028 = vshrl.u32 %v1027, 7
    %v1029 = vsub.s32 %v1026, %v1028
    %v1030 = vrot.slane %v1021, %v1029
    %v1032 = vunpack.c.l.s4 1966171168
    %v1033 = vunpack.c.0.s8 %v1032
    %v1034 = vlaneseq
    %v1035 = vshrl.u32 %v1034, 7
    %v1036 = vsub.s32 %v1033, %v1035
    %v1037 = vrot.slane %v1023, %v1036
    %v1038 = vcombine.high %v1030, %v1030
    %v1039 = vcombine.high %v1037, %v1037
    %v1041 = vunpack.c.l.s4 1966171168
    %v1042 = vunpack.c.0.s8 %v1041
    %v1043 = vlaneseq
    %v1044 = vshrl.u32 %v1043, 7
    %v1045 = vsub.s32 %v1042, %v1044
    %v1046 = vrot.slane %v1030, %v1045
    %v1048 = vunpack.c.l.s4 1966171168
    %v1049 = vunpack.c.0.s8 %v1048
    %v1050 = vlaneseq
    %v1051 = vshrl.u32 %v1050, 7
    %v1052 = vsub.s32 %v1049, %v1051
    %v1053 = vrot.slane %v1037, %v1052
    %v1055 = vunpack.c.l.s4 1966171168
    %v1056 = vunpack.c.0.s8 %v1055
    %v1057 = vlaneseq
    %v1058 = vshrl.u32 %v1057, 7
    %v1059 = vsub.s32 %v1056, %v1058
    %v1060 = vrot.slane %v1038, %v1059
    %v1062 = vunpack.c.l.s4 1966171168
    %v1063 = vunpack.c.0.s8 %v1062
    %v1064 = vlaneseq
    %v1065 = vshrl.u32 %v1064, 7
    %v1066 = vsub.s32 %v1063, %v1065
    %v1067 = vrot.slane %v1039, %v1066
    %v1068 = vcombine.high %v1046, %v1046
    %v1069 = vcombine.high %v1053, %v1053
    %v1070 = vcombine.high %v1060, %v1060
    %v1071 = vcombine.high %v1067, %v1067
    %v1072 = vlaneseq
    %v1073 = vshrl.u32 %v1072, 7
    %v1074 = vsub.s32 0, %v1073
    %v1075 = vrot.slane %v1046, %v1074
    %v1076 = vlaneseq
    %v1077 = vshrl.u32 %v1076, 7
    %v1078 = vsub.s32 0, %v1077
    %v1079 = vrot.slane %v1060, %v1078
    %v1080 = vlaneseq
    %v1081 = vshrl.u32 %v1080, 7
    %v1082 = vsub.s32 0, %v1081
    %v1083 = vrot.slane %v1068, %v1082
    %v1084 = vlaneseq
    %v1085 = vshrl.u32 %v1084, 7
    %v1086 = vsub.s32 0, %v1085
    %v1087 = vrot.slane %v1070, %v1086
    %v1088 = vlaneseq
    %v1089 = vshrl.u32 %v1088, 7
    %v1090 = vsub.s32 0, %v1089
    %v1091 = vrot.slane %v1053, %v1090
    %v1092 = vlaneseq
    %v1093 = vshrl.u32 %v1092, 7
    %v1094 = vsub.s32 0, %v1093
    %v1095 = vrot.slane %v1067, %v1094
    %v1096 = vlaneseq
    %v1097 = vshrl.u32 %v1096, 7
    %v1098 = vsub.s32 0, %v1097
    %v1099 = vrot.slane %v1069, %v1098
    %v1100 = vlaneseq
    %v1101 = vshrl.u32 %v1100, 7
    %v1102 = vsub.s32 0, %v1101
    %v1103 = vrot.slane %v1071, %v1102
    %v1112 = vmul.f32 %v1005, %v1075
    %v1113 = vmul.f32 %v1006, %v1079
    %v1114 = vmul.f32 %v1007, %v1083
    %v1115 = vmul.f32 %v1008, %v1087
    %v1116 = vmul.f32 %v1009, %v1091
    %v1117 = vmul.f32 %v1010, %v1095
    %v1118 = vmul.f32 %v1011, %v1099
    %v1119 = vmul.f32 %v1012, %v1103
    %v1120 = vsel %vm667, %v1112, 0.0
    %1121 = vadd.xlane.f32.xlu0 %v1120
    %v1122 = vpop.xlane.xlu0 %1121
    %v1123 = vsel %vm667, %v1113, 0.0
    %1124 = vadd.xlane.f32.xlu0 %v1123
    %v1125 = vpop.xlane.xlu0 %1124
    %v1126 = vsel %vm667, %v1114, 0.0
    %1127 = vadd.xlane.f32.xlu0 %v1126
    %v1128 = vpop.xlane.xlu0 %1127
    %v1129 = vsel %vm667, %v1115, 0.0
    %1130 = vadd.xlane.f32.xlu0 %v1129
    %v1131 = vpop.xlane.xlu0 %1130
    %v1132 = vsel %vm667, %v1116, 0.0
    %1133 = vadd.xlane.f32.xlu0 %v1132
    %v1134 = vpop.xlane.xlu0 %1133
    %v1135 = vsel %vm667, %v1117, 0.0
    %1136 = vadd.xlane.f32.xlu0 %v1135
    %v1137 = vpop.xlane.xlu0 %1136
    %v1138 = vsel %vm667, %v1118, 0.0
    %1139 = vadd.xlane.f32.xlu0 %v1138
    %v1140 = vpop.xlane.xlu0 %1139
    %v1141 = vsel %vm667, %v1119, 0.0
    %1142 = vadd.xlane.f32.xlu0 %v1141
    %v1143 = vpop.xlane.xlu0 %1142
    %v1152 = vlaneseq
    %v1153 = vand.u32 %v1152, 127
    %v1154 = vlaneseq
    %v1155 = vshrl.u32 %v1154, 7
    %v1156 = vsub.s32 %v1153, %v1155
    %v1157 = vrot.slane %v1122, %v1156
    %v1158 = vlaneseq
    %v1159 = vshrl.u32 %v1158, 7
    %v1160 = vsub.s32 %v1153, %v1159
    %v1161 = vrot.slane %v1125, %v1160
    %v1162 = vlaneseq
    %v1163 = vshrl.u32 %v1162, 7
    %v1164 = vsub.s32 %v1153, %v1163
    %v1165 = vrot.slane %v1128, %v1164
    %v1166 = vlaneseq
    %v1167 = vshrl.u32 %v1166, 7
    %v1168 = vsub.s32 %v1153, %v1167
    %v1169 = vrot.slane %v1131, %v1168
    %v1170 = vlaneseq
    %v1171 = vshrl.u32 %v1170, 7
    %v1172 = vsub.s32 %v1153, %v1171
    %v1173 = vrot.slane %v1134, %v1172
    %v1174 = vlaneseq
    %v1175 = vshrl.u32 %v1174, 7
    %v1176 = vsub.s32 %v1153, %v1175
    %v1177 = vrot.slane %v1137, %v1176
    %v1178 = vlaneseq
    %v1179 = vshrl.u32 %v1178, 7
    %v1180 = vsub.s32 %v1153, %v1179
    %v1181 = vrot.slane %v1140, %v1180
    %v1182 = vlaneseq
    %v1183 = vshrl.u32 %v1182, 7
    %v1184 = vsub.s32 %v1153, %v1183
    %v1185 = vrot.slane %v1143, %v1184
    %vm1186 = vcmask 1041409
    %v1187 = vsel %vm1186, %v1161, %v1157
    %vm1188 = vcmask 1042434
    %v1189 = vsel %vm1188, %v1165, %v1187
    %vm1190 = vcmask 1043459
    %v1191 = vsel %vm1190, %v1169, %v1189
    %vm1192 = vcmask 1044484
    %v1193 = vsel %vm1192, %v1173, %v1191
    %vm1194 = vcmask 1045509
    %v1195 = vsel %vm1194, %v1177, %v1193
    %vm1196 = vcmask 1046534
    %v1197 = vsel %vm1196, %v1181, %v1195
    %vm1198 = vcmask 1047559
    %v1199 = vsel %vm1198, %v1185, %v1197
    %v1201 = vsel %vm71, %v1199, -inf
    %1202 = vmax.xlane.f32.xlu0 %v1201
    %v1203 = vpop.xlane.xlu0 %1202
    %v1205 = vlaneseq
    %v1206 = vshrl.u32 %v1205, 7
    %v1207 = vsub.s32 0, %v1206
    %v1208 = vrot.slane %v1203, %v1207
    %v1209 = vlaneseq
    %v1210 = vshrl.u32 %v1209, 7
    %v1211 = vsub.s32 1, %v1210
    %v1212 = vrot.slane %v1203, %v1211
    %v1213 = vlaneseq
    %v1214 = vshrl.u32 %v1213, 7
    %v1215 = vsub.s32 2, %v1214
    %v1216 = vrot.slane %v1203, %v1215
    %v1217 = vlaneseq
    %v1218 = vshrl.u32 %v1217, 7
    %v1219 = vsub.s32 3, %v1218
    %v1220 = vrot.slane %v1203, %v1219
    %v1221 = vlaneseq
    %v1222 = vshrl.u32 %v1221, 7
    %v1223 = vsub.s32 4, %v1222
    %v1224 = vrot.slane %v1203, %v1223
    %v1225 = vlaneseq
    %v1226 = vshrl.u32 %v1225, 7
    %v1227 = vsub.s32 5, %v1226
    %v1228 = vrot.slane %v1203, %v1227
    %v1229 = vlaneseq
    %v1230 = vshrl.u32 %v1229, 7
    %v1231 = vsub.s32 6, %v1230
    %v1232 = vrot.slane %v1203, %v1231
    %v1233 = vlaneseq
    %v1234 = vshrl.u32 %v1233, 7
    %v1235 = vsub.s32 7, %v1234
    %v1236 = vrot.slane %v1203, %v1235
    %v1245 = vsub.f32 %v1122, %v1208
    %v1246 = vsub.f32 %v1125, %v1212
    %v1247 = vsub.f32 %v1128, %v1216
    %v1248 = vsub.f32 %v1131, %v1220
    %v1249 = vsub.f32 %v1134, %v1224
    %v1250 = vsub.f32 %v1137, %v1228
    %v1251 = vsub.f32 %v1140, %v1232
    %v1252 = vsub.f32 %v1143, %v1236
    %v1253 = vmul.f32 %v1245, 1.442695
    %v1254 = vpow.pop %v1253
    %v1255 = vmul.f32 %v1246, 1.442695
    %v1256 = vpow.pop %v1255
    %v1257 = vmul.f32 %v1247, 1.442695
    %v1258 = vpow.pop %v1257
    %v1259 = vmul.f32 %v1248, 1.442695
    %v1260 = vpow.pop %v1259
    %v1261 = vmul.f32 %v1249, 1.442695
    %v1262 = vpow.pop %v1261
    %v1263 = vmul.f32 %v1250, 1.442695
    %v1264 = vpow.pop %v1263
    %v1265 = vmul.f32 %v1251, 1.442695
    %v1266 = vpow.pop %v1265
    %v1267 = vmul.f32 %v1252, 1.442695
    %v1268 = vpow.pop %v1267
    %1277 = vset.pattern.permute.xlu0 0
    %1278 = vperm.xlu0 %1277, %v1254
    %v1279 = vpop.permute.xlu0 %1278
    %1280 = vset.pattern.permute.xlu0 0
    %1281 = vperm.xlu0 %1280, %v1256
    %v1282 = vpop.permute.xlu0 %1281
    %1283 = vset.pattern.permute.xlu0 0
    %1284 = vperm.xlu0 %1283, %v1258
    %v1285 = vpop.permute.xlu0 %1284
    %1286 = vset.pattern.permute.xlu0 0
    %1287 = vperm.xlu0 %1286, %v1260
    %v1288 = vpop.permute.xlu0 %1287
    %1289 = vset.pattern.permute.xlu0 0
    %1290 = vperm.xlu0 %1289, %v1262
    %v1291 = vpop.permute.xlu0 %1290
    %1292 = vset.pattern.permute.xlu0 0
    %1293 = vperm.xlu0 %1292, %v1264
    %v1294 = vpop.permute.xlu0 %1293
    %1295 = vset.pattern.permute.xlu0 0
    %1296 = vperm.xlu0 %1295, %v1266
    %v1297 = vpop.permute.xlu0 %1296
    %1298 = vset.pattern.permute.xlu0 0
    %1299 = vperm.xlu0 %1298, %v1268
    %v1300 = vpop.permute.xlu0 %1299
    %v1301 = vlaneseq
    %v1302 = vshrl.u32 %v1301, 7
    %v1303 = vsub.s32 %v1153, %v1302
    %v1304 = vrot.slane %v1279, %v1303
    %v1305 = vlaneseq
    %v1306 = vshrl.u32 %v1305, 7
    %v1307 = vsub.s32 %v1153, %v1306
    %v1308 = vrot.slane %v1282, %v1307
    %v1309 = vlaneseq
    %v1310 = vshrl.u32 %v1309, 7
    %v1311 = vsub.s32 %v1153, %v1310
    %v1312 = vrot.slane %v1285, %v1311
    %v1313 = vlaneseq
    %v1314 = vshrl.u32 %v1313, 7
    %v1315 = vsub.s32 %v1153, %v1314
    %v1316 = vrot.slane %v1288, %v1315
    %v1317 = vlaneseq
    %v1318 = vshrl.u32 %v1317, 7
    %v1319 = vsub.s32 %v1153, %v1318
    %v1320 = vrot.slane %v1291, %v1319
    %v1321 = vlaneseq
    %v1322 = vshrl.u32 %v1321, 7
    %v1323 = vsub.s32 %v1153, %v1322
    %v1324 = vrot.slane %v1294, %v1323
    %v1325 = vlaneseq
    %v1326 = vshrl.u32 %v1325, 7
    %v1327 = vsub.s32 %v1153, %v1326
    %v1328 = vrot.slane %v1297, %v1327
    %v1329 = vlaneseq
    %v1330 = vshrl.u32 %v1329, 7
    %v1331 = vsub.s32 %v1153, %v1330
    %v1332 = vrot.slane %v1300, %v1331
    %v1333 = vsel %vm1186, %v1308, %v1304
    %v1334 = vsel %vm1188, %v1312, %v1333
    %v1335 = vsel %vm1190, %v1316, %v1334
    %v1336 = vsel %vm1192, %v1320, %v1335
    %v1337 = vsel %vm1194, %v1324, %v1336
    %v1338 = vsel %vm1196, %v1328, %v1337
    %v1339 = vsel %vm1198, %v1332, %v1338
    %v1341 = vsel %vm71, %v1339, 0.0
    %1342 = vadd.xlane.f32.xlu0 %v1341
    %v1343 = vpop.xlane.xlu0 %1342
    %v1345 = vlaneseq
    %v1346 = vshrl.u32 %v1345, 7
    %v1347 = vsub.s32 0, %v1346
    %v1348 = vrot.slane %v1343, %v1347
    %v1349 = vlaneseq
    %v1350 = vshrl.u32 %v1349, 7
    %v1351 = vsub.s32 1, %v1350
    %v1352 = vrot.slane %v1343, %v1351
    %v1353 = vlaneseq
    %v1354 = vshrl.u32 %v1353, 7
    %v1355 = vsub.s32 2, %v1354
    %v1356 = vrot.slane %v1343, %v1355
    %v1357 = vlaneseq
    %v1358 = vshrl.u32 %v1357, 7
    %v1359 = vsub.s32 3, %v1358
    %v1360 = vrot.slane %v1343, %v1359
    %v1361 = vlaneseq
    %v1362 = vshrl.u32 %v1361, 7
    %v1363 = vsub.s32 4, %v1362
    %v1364 = vrot.slane %v1343, %v1363
    %v1365 = vlaneseq
    %v1366 = vshrl.u32 %v1365, 7
    %v1367 = vsub.s32 5, %v1366
    %v1368 = vrot.slane %v1343, %v1367
    %v1369 = vlaneseq
    %v1370 = vshrl.u32 %v1369, 7
    %v1371 = vsub.s32 6, %v1370
    %v1372 = vrot.slane %v1343, %v1371
    %v1373 = vlaneseq
    %v1374 = vshrl.u32 %v1373, 7
    %v1375 = vsub.s32 7, %v1374
    %v1376 = vrot.slane %v1343, %v1375
    %v1385 = vrcp.pop %v1348
    %v1386 = vmul.f32 %v1254, %v1385
    %v1387 = vrcp.pop %v1352
    %v1388 = vmul.f32 %v1256, %v1387
    %v1389 = vrcp.pop %v1356
    %v1390 = vmul.f32 %v1258, %v1389
    %v1391 = vrcp.pop %v1360
    %v1392 = vmul.f32 %v1260, %v1391
    %v1393 = vrcp.pop %v1364
    %v1394 = vmul.f32 %v1262, %v1393
    %v1395 = vrcp.pop %v1368
    %v1396 = vmul.f32 %v1264, %v1395
    %v1397 = vrcp.pop %v1372
    %v1398 = vmul.f32 %v1266, %v1397
    %v1399 = vrcp.pop %v1376
    %v1400 = vmul.f32 %v1268, %v1399
    %v1401 = vadd.f32 %v1386, 1.0
    %v1402 = vadd.f32 %v1388, 1.0
    %v1403 = vadd.f32 %v1390, 1.0
    %v1404 = vadd.f32 %v1392, 1.0
    %v1405 = vadd.f32 %v1394, 1.0
    %v1406 = vadd.f32 %v1396, 1.0
    %v1407 = vadd.f32 %v1398, 1.0
    %v1408 = vadd.f32 %v1400, 1.0
    %1410 = vset.pattern.permute.xlu0 0
    %1411 = vperm.xlu0 %1410, %v1401
    %v1412 = vpop.permute.xlu0 %1411
    %1415 = vset.pattern.permute.xlu0 0
    %1416 = vperm.xlu0 %1415, %v1402
    %v1417 = vpop.permute.xlu0 %1416
    %1420 = vset.pattern.permute.xlu0 0
    %1421 = vperm.xlu0 %1420, %v1403
    %v1422 = vpop.permute.xlu0 %1421
    %1425 = vset.pattern.permute.xlu0 0
    %1426 = vperm.xlu0 %1425, %v1404
    %v1427 = vpop.permute.xlu0 %1426
    %1430 = vset.pattern.permute.xlu0 0
    %1431 = vperm.xlu0 %1430, %v1405
    %v1432 = vpop.permute.xlu0 %1431
    %1435 = vset.pattern.permute.xlu0 0
    %1436 = vperm.xlu0 %1435, %v1406
    %v1437 = vpop.permute.xlu0 %1436
    %1440 = vset.pattern.permute.xlu0 0
    %1441 = vperm.xlu0 %1440, %v1407
    %v1442 = vpop.permute.xlu0 %1441
    %1445 = vset.pattern.permute.xlu0 0
    %1446 = vperm.xlu0 %1445, %v1408
    %v1447 = vpop.permute.xlu0 %1446
    %v1449 = vmul.f32 %v1005, %v1412
    %v1450 = vmul.f32 %v1006, %v1417
    %v1451 = vmul.f32 %v1007, %v1422
    %v1452 = vmul.f32 %v1008, %v1427
    %v1453 = vmul.f32 %v1009, %v1432
    %v1454 = vmul.f32 %v1010, %v1437
    %v1455 = vmul.f32 %v1011, %v1442
    %v1456 = vmul.f32 %v1012, %v1447
    %v1457 = vsel %vm667, %v1449, 0.0
    %v1458 = vrot.slane %v1457, 4
    %v1459 = vadd.f32 %v1457, %v1458
    %v1460 = vrot.slane %v1459, 2
    %v1461 = vadd.f32 %v1459, %v1460
    %v1462 = vrot.slane %v1461, 1
    %v1463 = vadd.f32 %v1461, %v1462
    %v1464 = vsel %vm667, %v1450, 0.0
    %v1465 = vrot.slane %v1464, 4
    %v1466 = vadd.f32 %v1464, %v1465
    %v1467 = vrot.slane %v1466, 2
    %v1468 = vadd.f32 %v1466, %v1467
    %v1469 = vrot.slane %v1468, 1
    %v1470 = vadd.f32 %v1468, %v1469
    %v1471 = vsel %vm667, %v1451, 0.0
    %v1472 = vrot.slane %v1471, 4
    %v1473 = vadd.f32 %v1471, %v1472
    %v1474 = vrot.slane %v1473, 2
    %v1475 = vadd.f32 %v1473, %v1474
    %v1476 = vrot.slane %v1475, 1
    %v1477 = vadd.f32 %v1475, %v1476
    %v1478 = vsel %vm667, %v1452, 0.0
    %v1479 = vrot.slane %v1478, 4
    %v1480 = vadd.f32 %v1478, %v1479
    %v1481 = vrot.slane %v1480, 2
    %v1482 = vadd.f32 %v1480, %v1481
    %v1483 = vrot.slane %v1482, 1
    %v1484 = vadd.f32 %v1482, %v1483
    %v1485 = vsel %vm667, %v1453, 0.0
    %v1486 = vrot.slane %v1485, 4
    %v1487 = vadd.f32 %v1485, %v1486
    %v1488 = vrot.slane %v1487, 2
    %v1489 = vadd.f32 %v1487, %v1488
    %v1490 = vrot.slane %v1489, 1
    %v1491 = vadd.f32 %v1489, %v1490
    %v1492 = vsel %vm667, %v1454, 0.0
    %v1493 = vrot.slane %v1492, 4
    %v1494 = vadd.f32 %v1492, %v1493
    %v1495 = vrot.slane %v1494, 2
    %v1496 = vadd.f32 %v1494, %v1495
    %v1497 = vrot.slane %v1496, 1
    %v1498 = vadd.f32 %v1496, %v1497
    %v1499 = vsel %vm667, %v1455, 0.0
    %v1500 = vrot.slane %v1499, 4
    %v1501 = vadd.f32 %v1499, %v1500
    %v1502 = vrot.slane %v1501, 2
    %v1503 = vadd.f32 %v1501, %v1502
    %v1504 = vrot.slane %v1503, 1
    %v1505 = vadd.f32 %v1503, %v1504
    %v1506 = vsel %vm667, %v1456, 0.0
    %v1507 = vrot.slane %v1506, 4
    %v1508 = vadd.f32 %v1506, %v1507
    %v1509 = vrot.slane %v1508, 2
    %v1510 = vadd.f32 %v1508, %v1509
    %v1511 = vrot.slane %v1510, 1
    %v1512 = vadd.f32 %v1510, %v1511
    %v1521 = vsel %vm1186, %v1470, %v1463
    %v1522 = vsel %vm1188, %v1477, %v1521
    %v1523 = vsel %vm1190, %v1484, %v1522
    %v1524 = vsel %vm1192, %v1491, %v1523
    %v1525 = vsel %vm1194, %v1498, %v1524
    %v1526 = vsel %vm1196, %v1505, %v1525
    %v1527 = vsel %vm1198, %v1512, %v1526
    %1529 = vst.msk [vmem:[%s13] sm:$0xff] %vm667, %v1527
    // Predicated region
    $region50: #{_lambda_.8} parent=1 // pred_check
      _
    $region51: #{_lambda_.8} parent=1 // pred_check_branch
      %1531 = sbr.rel (0) target = $region53
    $region52: #{_lambda_.8} parent=1 // pred_region
      %s1533 = ssub.s32 1024, 1024
      %1534 = vsyncadd [#allocation4], %s1533
      %s1535 = sshll.u32 [#allocation3], 4
      %s1536 = int_to_ptr.vmem [resolvable:$true] %s1535
      %1541 = dma.vmem_to_hbm [thread:$0]  %s1536, 1024, %s12, [#allocation4], 128, 128, 8
    $region53: #{_lambda_.8} parent=1 // pred_fallthru
      _
    // Predicated region
    $region54: #{_lambda_.8} parent=1 // pred_check
      _
    $region55: #{_lambda_.8} parent=1 // pred_check_branch
      %1543 = sbr.rel (0) target = $region57
    $region56: #{_lambda_.8} parent=1 // pred_region
      _
    $region57: #{_lambda_.8} parent=1 // pred_fallthru
      _
    // Predicated region
    $region58: #{_lambda_.8} parent=1 // pred_check
      _
    $region59: #{_lambda_.8} parent=1 // pred_check_branch
      %1545 = sbr.rel (0) target = $region61
    $region60: #{_lambda_.8} parent=1 // pred_region
      %1546 = dma.done [#allocation4], 1024
    $region61: #{_lambda_.8} parent=1 // pred_fallthru
      _
    // Predicated region
    $region62: #{_lambda_.8} parent=1 // pred_check
      _
    $region63: #{_lambda_.8} parent=1 // pred_check_branch
      %1548 = sbr.rel (0) target = $region65
    $region64: #{_lambda_.8} parent=1 // pred_region
      _
    $region65: #{_lambda_.8} parent=1 // pred_fallthru
      _
    %1549 = vsyncpa [#allocation4], 1

// kernel: _lambda_.6
$region0: #{_lambda_.6}
  #allocation0 [shape = 'u32[]', space=smem, size = 0x4, offset = 0x4, fixed_abs, tag = 'smem constant byte address 0x4 - core index']
  #allocation1 [shape = 'u32[144,128]{1,0:T(1,128)}', space=vmem, size = 0x12000, scoped, tag = 'internal scratch']
  #allocation2 [shape = 'f32[1,1]{1,0:T(1,128)S(6)}', space=smem, size = 0x200, scoped, tag = 'scoped memory for _lambda_.6']
  %s0 = inlined_call_operand.vmem [shape: f32[8,8,8], index: 0, kind: input, shape index: {}]
  %s1 = inlined_call_operand.vmem [shape: f32[8,8,32], index: 1, kind: input, shape index: {}]
  %s2 = inlined_call_operand.vmem [shape: f32[8,32], index: 2, kind: input, shape index: {}]
  %s3 = inlined_call_operand.vmem [shape: f32[32,32], index: 3, kind: input, shape index: {}]
  %s4 = inlined_call_operand.vmem [shape: f32[1,32], index: 4, kind: input, shape index: {}]
  %s5 = inlined_call_operand.vmem [shape: f32[1,32], index: 5, kind: input, shape index: {}]
  %s6 = inlined_call_operand.vmem [shape: f32[1,32], index: 6, kind: input, shape index: {}]
  %s7 = inlined_call_operand.vmem [shape: f32[32,32], index: 7, kind: input, shape index: {}]
  %s8 = inlined_call_operand.vmem [shape: f32[1,32], index: 8, kind: input, shape index: {}]
  %s9 = inlined_call_operand.vmem [shape: f32[1,32], index: 9, kind: input, shape index: {}]
  %s10 = inlined_call_operand.vmem [shape: f32[1,32], index: 10, kind: input, shape index: {}]
  %s11 = inlined_call_operand.<no memory space> [shape: f32[1,1], index: 11, kind: input, shape index: {}]
  %s12 = inlined_call_operand.vmem [shape: f32[8,8,32], index: 12, kind: output, shape index: {0}]
  %s13 = inlined_call_operand.vmem [shape: f32[8,32], index: 13, kind: output, shape index: {1}]
  %14 = xla_tuple %s12, %s13
  %s15 = sld [smem:[#allocation0]]
  $region66: #{_lambda_.6} parent=0
    _
  %s17 = ssub.s32 1, %s15
  %s18 = scalar_select 0, %s17, %s15
  %19 = sst [smem:[#allocation2]] %s11
  // Predicated region
  $region2: #{_lambda_.6} parent=0 // pred_check
    _
  $region3: #{_lambda_.6} parent=0 // pred_check_branch
    %21 = sbr.rel (0) target = $region5
  $region4: #{_lambda_.6} parent=0 // pred_region
    _
  $region5: #{_lambda_.6} parent=0 // pred_fallthru
    _
  // Predicated region
  $region6: #{_lambda_.6} parent=0 // pred_check
    _
  $region7: #{_lambda_.6} parent=0 // pred_check_branch
    %23 = sbr.rel (0) target = $region9
  $region8: #{_lambda_.6} parent=0 // pred_region
    _
  $region9: #{_lambda_.6} parent=0 // pred_fallthru
    _
  // Predicated region
  $region10: #{_lambda_.6} parent=0 // pred_check
    _
  $region11: #{_lambda_.6} parent=0 // pred_check_branch
    %25 = sbr.rel (0) target = $region13
  $region12: #{_lambda_.6} parent=0 // pred_region
    _
  $region13: #{_lambda_.6} parent=0 // pred_fallthru
    _
  // Predicated region
  $region14: #{_lambda_.6} parent=0 // pred_check
    _
  $region15: #{_lambda_.6} parent=0 // pred_check_branch
    %27 = sbr.rel (0) target = $region17
  $region16: #{_lambda_.6} parent=0 // pred_region
    _
  $region17: #{_lambda_.6} parent=0 // pred_fallthru
    _
  // Predicated region
  $region18: #{_lambda_.6} parent=0 // pred_check
    _
  $region19: #{_lambda_.6} parent=0 // pred_check_branch
    %29 = sbr.rel (0) target = $region21
  $region20: #{_lambda_.6} parent=0 // pred_region
    _
  $region21: #{_lambda_.6} parent=0 // pred_fallthru
    _
  // Predicated region
  $region22: #{_lambda_.6} parent=0 // pred_check
    _
  $region23: #{_lambda_.6} parent=0 // pred_check_branch
    %31 = sbr.rel (0) target = $region25
  $region24: #{_lambda_.6} parent=0 // pred_region
    _
  $region25: #{_lambda_.6} parent=0 // pred_fallthru
    _
  // Predicated region
  $region26: #{_lambda_.6} parent=0 // pred_check
    _
  $region27: #{_lambda_.6} parent=0 // pred_check_branch
    %33 = sbr.rel (0) target = $region29
  $region28: #{_lambda_.6} parent=0 // pred_region
    _
  $region29: #{_lambda_.6} parent=0 // pred_fallthru
    _
  // Predicated region
  $region30: #{_lambda_.6} parent=0 // pred_check
    _
  $region31: #{_lambda_.6} parent=0 // pred_check_branch
    %35 = sbr.rel (0) target = $region33
  $region32: #{_lambda_.6} parent=0 // pred_region
    _
  $region33: #{_lambda_.6} parent=0 // pred_fallthru
    _
  // Predicated region
  $region34: #{_lambda_.6} parent=0 // pred_check
    _
  $region35: #{_lambda_.6} parent=0 // pred_check_branch
    %37 = sbr.rel (0) target = $region37
  $region36: #{_lambda_.6} parent=0 // pred_region
    _
  $region37: #{_lambda_.6} parent=0 // pred_fallthru
    _
  // Predicated region
  $region38: #{_lambda_.6} parent=0 // pred_check
    _
  $region39: #{_lambda_.6} parent=0 // pred_check_branch
    %39 = sbr.rel (0) target = $region41
  $region40: #{_lambda_.6} parent=0 // pred_region
    _
  $region41: #{_lambda_.6} parent=0 // pred_fallthru
    _
  // Predicated region
  $region42: #{_lambda_.6} parent=0 // pred_check
    _
  $region43: #{_lambda_.6} parent=0 // pred_check_branch
    %41 = sbr.rel (0) target = $region45
  $region44: #{_lambda_.6} parent=0 // pred_region
    _
  $region45: #{_lambda_.6} parent=0 // pred_fallthru
    _
  // Predicated region
  $region46: #{_lambda_.6} parent=0 // pred_check
    _
  $region47: #{_lambda_.6} parent=0 // pred_check_branch
    %43 = sbr.rel (0) target = $region49
  $region48: #{_lambda_.6} parent=0 // pred_region
    _
  $region49: #{_lambda_.6} parent=0 // pred_fallthru
    _
  %s44 = sld [smem:[#allocation2]]
  %v45 = vld [vmem:[%s1] sm:$0xff]
  %v46 = vld [vmem:[%s1 + $0x8] sm:$0xff]
  %v47 = vld [vmem:[%s1 + $0x10] sm:$0xff]
  %v48 = vld [vmem:[%s1 + $0x18] sm:$0xff]
  %v49 = vld [vmem:[%s1 + $0x20] sm:$0xff]
  %v50 = vld [vmem:[%s1 + $0x28] sm:$0xff]
  %v51 = vld [vmem:[%s1 + $0x30] sm:$0xff]
  %v52 = vld [vmem:[%s1 + $0x38] sm:$0xff]
  %v53 = vld [vmem:[%s0] sm:$0xff]
  %v54 = vld [vmem:[%s0 + $0x8] sm:$0xff]
  %v55 = vld [vmem:[%s0 + $0x10] sm:$0xff]
  %v56 = vld [vmem:[%s0 + $0x18] sm:$0xff]
  %v57 = vld [vmem:[%s0 + $0x20] sm:$0xff]
  %v58 = vld [vmem:[%s0 + $0x28] sm:$0xff]
  %v59 = vld [vmem:[%s0 + $0x30] sm:$0xff]
  %v60 = vld [vmem:[%s0 + $0x38] sm:$0xff]
  %v61 = vstv %s44
  %v62 = vmul.f32 %v61, %v45
  %v63 = vmul.f32 %v61, %v46
  %v64 = vmul.f32 %v61, %v47
  %v65 = vmul.f32 %v61, %v48
  %v66 = vmul.f32 %v61, %v49
  %v67 = vmul.f32 %v61, %v50
  %v68 = vmul.f32 %v61, %v51
  %v69 = vmul.f32 %v61, %v52
  %vm70 = vcmask 64512
  %v72 = vsel %vm70, %v53, 0
  %74 = vmatprep.subr.mxu0 0.0
  %75 = vmatpush1.msra.mxu0 0.0
  %76 = vmatprep.subr.mxu0 0.0
  %77 = vmatpush1.msra.mxu0 0.0
  %78 = vmatprep.subr.mxu0 0.0
  %79 = vmatpush1.msra.mxu0 0.0
  %80 = vmatprep.subr.mxu0 0.0
  %81 = vmatpush1.msra.mxu0 0.0
  %82 = vmatprep.subr.mxu0 0.0
  %83 = vmatpush1.msra.mxu0 0.0
  %84 = vmatprep.subr.mxu0 0.0
  %85 = vmatpush1.msra.mxu0 0.0
  %86 = vmatprep.subr.mxu0 0.0
  %87 = vmatpush1.msra.mxu0 0.0
  %88 = vmatprep.subr.mxu0 0.0
  %89 = vmatpush1.msra.mxu0 0.0
  %90 = vmatprep.subr.mxu0 0.0
  %91 = vmatpush1.msra.mxu0 0.0
  %92 = vmatprep.subr.mxu0 0.0
  %93 = vmatpush1.msra.mxu0 0.0
  %94 = vmatprep.subr.mxu0 0.0
  %95 = vmatpush1.msra.mxu0 0.0
  %96 = vmatprep.subr.mxu0 0.0
  %97 = vmatpush1.msra.mxu0 0.0
  %98 = vmatprep.subr.mxu0 0.0
  %99 = vmatpush1.msra.mxu0 0.0
  %100 = vmatprep.subr.mxu0 0.0
  %101 = vmatpush1.msra.mxu0 0.0
  %102 = vmatprep.subr.mxu0 0.0
  %103 = vmatpush1.msra.mxu0 0.0
  %104 = vmatprep.subr.mxu0 0.0
  %105 = vmatpush1.msra.mxu0 %v45
  %106 = vmatprep.subr.mxu0 0.0
  %107 = vmatpush2.msra.mxu0 0.0
  %108 = vmatprep.subr.mxu0 0.0
  %109 = vmatpush2.msra.mxu0 0.0
  %110 = vmatprep.subr.mxu0 0.0
  %111 = vmatpush2.msra.mxu0 0.0
  %112 = vmatprep.subr.mxu0 0.0
  %113 = vmatpush2.msra.mxu0 0.0
  %114 = vmatprep.subr.mxu0 0.0
  %115 = vmatpush2.msra.mxu0 0.0
  %116 = vmatprep.subr.mxu0 0.0
  %117 = vmatpush2.msra.mxu0 0.0
  %118 = vmatprep.subr.mxu0 0.0
  %119 = vmatpush2.msra.mxu0 0.0
  %120 = vmatprep.subr.mxu0 0.0
  %121 = vmatpush2.msra.mxu0 0.0
  %122 = vmatprep.subr.mxu0 0.0
  %123 = vmatpush2.msra.mxu0 0.0
  %124 = vmatprep.subr.mxu0 0.0
  %125 = vmatpush2.msra.mxu0 0.0
  %126 = vmatprep.subr.mxu0 0.0
  %127 = vmatpush2.msra.mxu0 0.0
  %128 = vmatprep.subr.mxu0 0.0
  %129 = vmatpush2.msra.mxu0 0.0
  %130 = vmatprep.subr.mxu0 0.0
  %131 = vmatpush2.msra.mxu0 0.0
  %132 = vmatprep.subr.mxu0 0.0
  %133 = vmatpush2.msra.mxu0 0.0
  %134 = vmatprep.subr.mxu0 0.0
  %135 = vmatpush2.msra.mxu0 0.0
  %136 = vmatprep.subr.mxu0 0.0
  %137 = vmatpush2.msra.mxu0 0.0
  %138 = vmatprep.mubr.f32.mxu0 0.0
  %139 = vmatmul.mubr.f32.gmra.mxu0 %v72
  %v140 = vpop.f32.mrf.mxu0
  %v141 = vadd.f32 %v62, %v140
  %v142 = vpop.f32.mrf.mxu0
  %143 = vdwg.mxu0
  %v145 = vsel %vm70, %v54, 0
  %147 = vmatprep.subr.mxu0 0.0
  %148 = vmatpush1.msra.mxu0 0.0
  %149 = vmatprep.subr.mxu0 0.0
  %150 = vmatpush1.msra.mxu0 0.0
  %151 = vmatprep.subr.mxu0 0.0
  %152 = vmatpush1.msra.mxu0 0.0
  %153 = vmatprep.subr.mxu0 0.0
  %154 = vmatpush1.msra.mxu0 0.0
  %155 = vmatprep.subr.mxu0 0.0
  %156 = vmatpush1.msra.mxu0 0.0
  %157 = vmatprep.subr.mxu0 0.0
  %158 = vmatpush1.msra.mxu0 0.0
  %159 = vmatprep.subr.mxu0 0.0
  %160 = vmatpush1.msra.mxu0 0.0
  %161 = vmatprep.subr.mxu0 0.0
  %162 = vmatpush1.msra.mxu0 0.0
  %163 = vmatprep.subr.mxu0 0.0
  %164 = vmatpush1.msra.mxu0 0.0
  %165 = vmatprep.subr.mxu0 0.0
  %166 = vmatpush1.msra.mxu0 0.0
  %167 = vmatprep.subr.mxu0 0.0
  %168 = vmatpush1.msra.mxu0 0.0
  %169 = vmatprep.subr.mxu0 0.0
  %170 = vmatpush1.msra.mxu0 0.0
  %171 = vmatprep.subr.mxu0 0.0
  %172 = vmatpush1.msra.mxu0 0.0
  %173 = vmatprep.subr.mxu0 0.0
  %174 = vmatpush1.msra.mxu0 0.0
  %175 = vmatprep.subr.mxu0 0.0
  %176 = vmatpush1.msra.mxu0 0.0
  %177 = vmatprep.subr.mxu0 0.0
  %178 = vmatpush1.msra.mxu0 %v46
  %179 = vmatprep.subr.mxu0 0.0
  %180 = vmatpush2.msra.mxu0 0.0
  %181 = vmatprep.subr.mxu0 0.0
  %182 = vmatpush2.msra.mxu0 0.0
  %183 = vmatprep.subr.mxu0 0.0
  %184 = vmatpush2.msra.mxu0 0.0
  %185 = vmatprep.subr.mxu0 0.0
  %186 = vmatpush2.msra.mxu0 0.0
  %187 = vmatprep.subr.mxu0 0.0
  %188 = vmatpush2.msra.mxu0 0.0
  %189 = vmatprep.subr.mxu0 0.0
  %190 = vmatpush2.msra.mxu0 0.0
  %191 = vmatprep.subr.mxu0 0.0
  %192 = vmatpush2.msra.mxu0 0.0
  %193 = vmatprep.subr.mxu0 0.0
  %194 = vmatpush2.msra.mxu0 0.0
  %195 = vmatprep.subr.mxu0 0.0
  %196 = vmatpush2.msra.mxu0 0.0
  %197 = vmatprep.subr.mxu0 0.0
  %198 = vmatpush2.msra.mxu0 0.0
  %199 = vmatprep.subr.mxu0 0.0
  %200 = vmatpush2.msra.mxu0 0.0
  %201 = vmatprep.subr.mxu0 0.0
  %202 = vmatpush2.msra.mxu0 0.0
  %203 = vmatprep.subr.mxu0 0.0
  %204 = vmatpush2.msra.mxu0 0.0
  %205 = vmatprep.subr.mxu0 0.0
  %206 = vmatpush2.msra.mxu0 0.0
  %207 = vmatprep.subr.mxu0 0.0
  %208 = vmatpush2.msra.mxu0 0.0
  %209 = vmatprep.subr.mxu0 0.0
  %210 = vmatpush2.msra.mxu0 0.0
  %211 = vmatprep.mubr.f32.mxu0 0.0
  %212 = vmatmul.mubr.f32.gmra.mxu0 %v145
  %v213 = vpop.f32.mrf.mxu0
  %v214 = vadd.f32 %v63, %v213
  %v215 = vpop.f32.mrf.mxu0
  %216 = vdwg.mxu0
  %v218 = vsel %vm70, %v55, 0
  %220 = vmatprep.subr.mxu0 0.0
  %221 = vmatpush1.msra.mxu0 0.0
  %222 = vmatprep.subr.mxu0 0.0
  %223 = vmatpush1.msra.mxu0 0.0
  %224 = vmatprep.subr.mxu0 0.0
  %225 = vmatpush1.msra.mxu0 0.0
  %226 = vmatprep.subr.mxu0 0.0
  %227 = vmatpush1.msra.mxu0 0.0
  %228 = vmatprep.subr.mxu0 0.0
  %229 = vmatpush1.msra.mxu0 0.0
  %230 = vmatprep.subr.mxu0 0.0
  %231 = vmatpush1.msra.mxu0 0.0
  %232 = vmatprep.subr.mxu0 0.0
  %233 = vmatpush1.msra.mxu0 0.0
  %234 = vmatprep.subr.mxu0 0.0
  %235 = vmatpush1.msra.mxu0 0.0
  %236 = vmatprep.subr.mxu0 0.0
  %237 = vmatpush1.msra.mxu0 0.0
  %238 = vmatprep.subr.mxu0 0.0
  %239 = vmatpush1.msra.mxu0 0.0
  %240 = vmatprep.subr.mxu0 0.0
  %241 = vmatpush1.msra.mxu0 0.0
  %242 = vmatprep.subr.mxu0 0.0
  %243 = vmatpush1.msra.mxu0 0.0
  %244 = vmatprep.subr.mxu0 0.0
  %245 = vmatpush1.msra.mxu0 0.0
  %246 = vmatprep.subr.mxu0 0.0
  %247 = vmatpush1.msra.mxu0 0.0
  %248 = vmatprep.subr.mxu0 0.0
  %249 = vmatpush1.msra.mxu0 0.0
  %250 = vmatprep.subr.mxu0 0.0
  %251 = vmatpush1.msra.mxu0 %v47
  %252 = vmatprep.subr.mxu0 0.0
  %253 = vmatpush2.msra.mxu0 0.0
  %254 = vmatprep.subr.mxu0 0.0
  %255 = vmatpush2.msra.mxu0 0.0
  %256 = vmatprep.subr.mxu0 0.0
  %257 = vmatpush2.msra.mxu0 0.0
  %258 = vmatprep.subr.mxu0 0.0
  %259 = vmatpush2.msra.mxu0 0.0
  %260 = vmatprep.subr.mxu0 0.0
  %261 = vmatpush2.msra.mxu0 0.0
  %262 = vmatprep.subr.mxu0 0.0
  %263 = vmatpush2.msra.mxu0 0.0
  %264 = vmatprep.subr.mxu0 0.0
  %265 = vmatpush2.msra.mxu0 0.0
  %266 = vmatprep.subr.mxu0 0.0
  %267 = vmatpush2.msra.mxu0 0.0
  %268 = vmatprep.subr.mxu0 0.0
  %269 = vmatpush2.msra.mxu0 0.0
  %270 = vmatprep.subr.mxu0 0.0
  %271 = vmatpush2.msra.mxu0 0.0
  %272 = vmatprep.subr.mxu0 0.0
  %273 = vmatpush2.msra.mxu0 0.0
  %274 = vmatprep.subr.mxu0 0.0
  %275 = vmatpush2.msra.mxu0 0.0
  %276 = vmatprep.subr.mxu0 0.0
  %277 = vmatpush2.msra.mxu0 0.0
  %278 = vmatprep.subr.mxu0 0.0
  %279 = vmatpush2.msra.mxu0 0.0
  %280 = vmatprep.subr.mxu0 0.0
  %281 = vmatpush2.msra.mxu0 0.0
  %282 = vmatprep.subr.mxu0 0.0
  %283 = vmatpush2.msra.mxu0 0.0
  %284 = vmatprep.mubr.f32.mxu0 0.0
  %285 = vmatmul.mubr.f32.gmra.mxu0 %v218
  %v286 = vpop.f32.mrf.mxu0
  %v287 = vadd.f32 %v64, %v286
  %v288 = vpop.f32.mrf.mxu0
  %289 = vdwg.mxu0
  %v291 = vsel %vm70, %v56, 0
  %293 = vmatprep.subr.mxu0 0.0
  %294 = vmatpush1.msra.mxu0 0.0
  %295 = vmatprep.subr.mxu0 0.0
  %296 = vmatpush1.msra.mxu0 0.0
  %297 = vmatprep.subr.mxu0 0.0
  %298 = vmatpush1.msra.mxu0 0.0
  %299 = vmatprep.subr.mxu0 0.0
  %300 = vmatpush1.msra.mxu0 0.0
  %301 = vmatprep.subr.mxu0 0.0
  %302 = vmatpush1.msra.mxu0 0.0
  %303 = vmatprep.subr.mxu0 0.0
  %304 = vmatpush1.msra.mxu0 0.0
  %305 = vmatprep.subr.mxu0 0.0
  %306 = vmatpush1.msra.mxu0 0.0
  %307 = vmatprep.subr.mxu0 0.0
  %308 = vmatpush1.msra.mxu0 0.0
  %309 = vmatprep.subr.mxu0 0.0
  %310 = vmatpush1.msra.mxu0 0.0
  %311 = vmatprep.subr.mxu0 0.0
  %312 = vmatpush1.msra.mxu0 0.0
  %313 = vmatprep.subr.mxu0 0.0
  %314 = vmatpush1.msra.mxu0 0.0
  %315 = vmatprep.subr.mxu0 0.0
  %316 = vmatpush1.msra.mxu0 0.0
  %317 = vmatprep.subr.mxu0 0.0
  %318 = vmatpush1.msra.mxu0 0.0
  %319 = vmatprep.subr.mxu0 0.0
  %320 = vmatpush1.msra.mxu0 0.0
  %321 = vmatprep.subr.mxu0 0.0
  %322 = vmatpush1.msra.mxu0 0.0
  %323 = vmatprep.subr.mxu0 0.0
  %324 = vmatpush1.msra.mxu0 %v48
  %325 = vmatprep.subr.mxu0 0.0
  %326 = vmatpush2.msra.mxu0 0.0
  %327 = vmatprep.subr.mxu0 0.0
  %328 = vmatpush2.msra.mxu0 0.0
  %329 = vmatprep.subr.mxu0 0.0
  %330 = vmatpush2.msra.mxu0 0.0
  %331 = vmatprep.subr.mxu0 0.0
  %332 = vmatpush2.msra.mxu0 0.0
  %333 = vmatprep.subr.mxu0 0.0
  %334 = vmatpush2.msra.mxu0 0.0
  %335 = vmatprep.subr.mxu0 0.0
  %336 = vmatpush2.msra.mxu0 0.0
  %337 = vmatprep.subr.mxu0 0.0
  %338 = vmatpush2.msra.mxu0 0.0
  %339 = vmatprep.subr.mxu0 0.0
  %340 = vmatpush2.msra.mxu0 0.0
  %341 = vmatprep.subr.mxu0 0.0
  %342 = vmatpush2.msra.mxu0 0.0
  %343 = vmatprep.subr.mxu0 0.0
  %344 = vmatpush2.msra.mxu0 0.0
  %345 = vmatprep.subr.mxu0 0.0
  %346 = vmatpush2.msra.mxu0 0.0
  %347 = vmatprep.subr.mxu0 0.0
  %348 = vmatpush2.msra.mxu0 0.0
  %349 = vmatprep.subr.mxu0 0.0
  %350 = vmatpush2.msra.mxu0 0.0
  %351 = vmatprep.subr.mxu0 0.0
  %352 = vmatpush2.msra.mxu0 0.0
  %353 = vmatprep.subr.mxu0 0.0
  %354 = vmatpush2.msra.mxu0 0.0
  %355 = vmatprep.subr.mxu0 0.0
  %356 = vmatpush2.msra.mxu0 0.0
  %357 = vmatprep.mubr.f32.mxu0 0.0
  %358 = vmatmul.mubr.f32.gmra.mxu0 %v291
  %v359 = vpop.f32.mrf.mxu0
  %v360 = vadd.f32 %v65, %v359
  %v361 = vpop.f32.mrf.mxu0
  %362 = vdwg.mxu0
  %v364 = vsel %vm70, %v57, 0
  %366 = vmatprep.subr.mxu0 0.0
  %367 = vmatpush1.msra.mxu0 0.0
  %368 = vmatprep.subr.mxu0 0.0
  %369 = vmatpush1.msra.mxu0 0.0
  %370 = vmatprep.subr.mxu0 0.0
  %371 = vmatpush1.msra.mxu0 0.0
  %372 = vmatprep.subr.mxu0 0.0
  %373 = vmatpush1.msra.mxu0 0.0
  %374 = vmatprep.subr.mxu0 0.0
  %375 = vmatpush1.msra.mxu0 0.0
  %376 = vmatprep.subr.mxu0 0.0
  %377 = vmatpush1.msra.mxu0 0.0
  %378 = vmatprep.subr.mxu0 0.0
  %379 = vmatpush1.msra.mxu0 0.0
  %380 = vmatprep.subr.mxu0 0.0
  %381 = vmatpush1.msra.mxu0 0.0
  %382 = vmatprep.subr.mxu0 0.0
  %383 = vmatpush1.msra.mxu0 0.0
  %384 = vmatprep.subr.mxu0 0.0
  %385 = vmatpush1.msra.mxu0 0.0
  %386 = vmatprep.subr.mxu0 0.0
  %387 = vmatpush1.msra.mxu0 0.0
  %388 = vmatprep.subr.mxu0 0.0
  %389 = vmatpush1.msra.mxu0 0.0
  %390 = vmatprep.subr.mxu0 0.0
  %391 = vmatpush1.msra.mxu0 0.0
  %392 = vmatprep.subr.mxu0 0.0
  %393 = vmatpush1.msra.mxu0 0.0
  %394 = vmatprep.subr.mxu0 0.0
  %395 = vmatpush1.msra.mxu0 0.0
  %396 = vmatprep.subr.mxu0 0.0
  %397 = vmatpush1.msra.mxu0 %v49
  %398 = vmatprep.subr.mxu0 0.0
  %399 = vmatpush2.msra.mxu0 0.0
  %400 = vmatprep.subr.mxu0 0.0
  %401 = vmatpush2.msra.mxu0 0.0
  %402 = vmatprep.subr.mxu0 0.0
  %403 = vmatpush2.msra.mxu0 0.0
  %404 = vmatprep.subr.mxu0 0.0
  %405 = vmatpush2.msra.mxu0 0.0
  %406 = vmatprep.subr.mxu0 0.0
  %407 = vmatpush2.msra.mxu0 0.0
  %408 = vmatprep.subr.mxu0 0.0
  %409 = vmatpush2.msra.mxu0 0.0
  %410 = vmatprep.subr.mxu0 0.0
  %411 = vmatpush2.msra.mxu0 0.0
  %412 = vmatprep.subr.mxu0 0.0
  %413 = vmatpush2.msra.mxu0 0.0
  %414 = vmatprep.subr.mxu0 0.0
  %415 = vmatpush2.msra.mxu0 0.0
  %416 = vmatprep.subr.mxu0 0.0
  %417 = vmatpush2.msra.mxu0 0.0
  %418 = vmatprep.subr.mxu0 0.0
  %419 = vmatpush2.msra.mxu0 0.0
  %420 = vmatprep.subr.mxu0 0.0
  %421 = vmatpush2.msra.mxu0 0.0
  %422 = vmatprep.subr.mxu0 0.0
  %423 = vmatpush2.msra.mxu0 0.0
  %424 = vmatprep.subr.mxu0 0.0
  %425 = vmatpush2.msra.mxu0 0.0
  %426 = vmatprep.subr.mxu0 0.0
  %427 = vmatpush2.msra.mxu0 0.0
  %428 = vmatprep.subr.mxu0 0.0
  %429 = vmatpush2.msra.mxu0 0.0
  %430 = vmatprep.mubr.f32.mxu0 0.0
  %431 = vmatmul.mubr.f32.gmra.mxu0 %v364
  %v432 = vpop.f32.mrf.mxu0
  %v433 = vadd.f32 %v66, %v432
  %v434 = vpop.f32.mrf.mxu0
  %435 = vdwg.mxu0
  %v437 = vsel %vm70, %v58, 0
  %439 = vmatprep.subr.mxu0 0.0
  %440 = vmatpush1.msra.mxu0 0.0
  %441 = vmatprep.subr.mxu0 0.0
  %442 = vmatpush1.msra.mxu0 0.0
  %443 = vmatprep.subr.mxu0 0.0
  %444 = vmatpush1.msra.mxu0 0.0
  %445 = vmatprep.subr.mxu0 0.0
  %446 = vmatpush1.msra.mxu0 0.0
  %447 = vmatprep.subr.mxu0 0.0
  %448 = vmatpush1.msra.mxu0 0.0
  %449 = vmatprep.subr.mxu0 0.0
  %450 = vmatpush1.msra.mxu0 0.0
  %451 = vmatprep.subr.mxu0 0.0
  %452 = vmatpush1.msra.mxu0 0.0
  %453 = vmatprep.subr.mxu0 0.0
  %454 = vmatpush1.msra.mxu0 0.0
  %455 = vmatprep.subr.mxu0 0.0
  %456 = vmatpush1.msra.mxu0 0.0
  %457 = vmatprep.subr.mxu0 0.0
  %458 = vmatpush1.msra.mxu0 0.0
  %459 = vmatprep.subr.mxu0 0.0
  %460 = vmatpush1.msra.mxu0 0.0
  %461 = vmatprep.subr.mxu0 0.0
  %462 = vmatpush1.msra.mxu0 0.0
  %463 = vmatprep.subr.mxu0 0.0
  %464 = vmatpush1.msra.mxu0 0.0
  %465 = vmatprep.subr.mxu0 0.0
  %466 = vmatpush1.msra.mxu0 0.0
  %467 = vmatprep.subr.mxu0 0.0
  %468 = vmatpush1.msra.mxu0 0.0
  %469 = vmatprep.subr.mxu0 0.0
  %470 = vmatpush1.msra.mxu0 %v50
  %471 = vmatprep.subr.mxu0 0.0
  %472 = vmatpush2.msra.mxu0 0.0
  %473 = vmatprep.subr.mxu0 0.0
  %474 = vmatpush2.msra.mxu0 0.0
  %475 = vmatprep.subr.mxu0 0.0
  %476 = vmatpush2.msra.mxu0 0.0
  %477 = vmatprep.subr.mxu0 0.0
  %478 = vmatpush2.msra.mxu0 0.0
  %479 = vmatprep.subr.mxu0 0.0
  %480 = vmatpush2.msra.mxu0 0.0
  %481 = vmatprep.subr.mxu0 0.0
  %482 = vmatpush2.msra.mxu0 0.0
  %483 = vmatprep.subr.mxu0 0.0
  %484 = vmatpush2.msra.mxu0 0.0
  %485 = vmatprep.subr.mxu0 0.0
  %486 = vmatpush2.msra.mxu0 0.0
  %487 = vmatprep.subr.mxu0 0.0
  %488 = vmatpush2.msra.mxu0 0.0
  %489 = vmatprep.subr.mxu0 0.0
  %490 = vmatpush2.msra.mxu0 0.0
  %491 = vmatprep.subr.mxu0 0.0
  %492 = vmatpush2.msra.mxu0 0.0
  %493 = vmatprep.subr.mxu0 0.0
  %494 = vmatpush2.msra.mxu0 0.0
  %495 = vmatprep.subr.mxu0 0.0
  %496 = vmatpush2.msra.mxu0 0.0
  %497 = vmatprep.subr.mxu0 0.0
  %498 = vmatpush2.msra.mxu0 0.0
  %499 = vmatprep.subr.mxu0 0.0
  %500 = vmatpush2.msra.mxu0 0.0
  %501 = vmatprep.subr.mxu0 0.0
  %502 = vmatpush2.msra.mxu0 0.0
  %503 = vmatprep.mubr.f32.mxu0 0.0
  %504 = vmatmul.mubr.f32.gmra.mxu0 %v437
  %v505 = vpop.f32.mrf.mxu0
  %v506 = vadd.f32 %v67, %v505
  %v507 = vpop.f32.mrf.mxu0
  %508 = vdwg.mxu0
  %v510 = vsel %vm70, %v59, 0
  %512 = vmatprep.subr.mxu0 0.0
  %513 = vmatpush1.msra.mxu0 0.0
  %514 = vmatprep.subr.mxu0 0.0
  %515 = vmatpush1.msra.mxu0 0.0
  %516 = vmatprep.subr.mxu0 0.0
  %517 = vmatpush1.msra.mxu0 0.0
  %518 = vmatprep.subr.mxu0 0.0
  %519 = vmatpush1.msra.mxu0 0.0
  %520 = vmatprep.subr.mxu0 0.0
  %521 = vmatpush1.msra.mxu0 0.0
  %522 = vmatprep.subr.mxu0 0.0
  %523 = vmatpush1.msra.mxu0 0.0
  %524 = vmatprep.subr.mxu0 0.0
  %525 = vmatpush1.msra.mxu0 0.0
  %526 = vmatprep.subr.mxu0 0.0
  %527 = vmatpush1.msra.mxu0 0.0
  %528 = vmatprep.subr.mxu0 0.0
  %529 = vmatpush1.msra.mxu0 0.0
  %530 = vmatprep.subr.mxu0 0.0
  %531 = vmatpush1.msra.mxu0 0.0
  %532 = vmatprep.subr.mxu0 0.0
  %533 = vmatpush1.msra.mxu0 0.0
  %534 = vmatprep.subr.mxu0 0.0
  %535 = vmatpush1.msra.mxu0 0.0
  %536 = vmatprep.subr.mxu0 0.0
  %537 = vmatpush1.msra.mxu0 0.0
  %538 = vmatprep.subr.mxu0 0.0
  %539 = vmatpush1.msra.mxu0 0.0
  %540 = vmatprep.subr.mxu0 0.0
  %541 = vmatpush1.msra.mxu0 0.0
  %542 = vmatprep.subr.mxu0 0.0
  %543 = vmatpush1.msra.mxu0 %v51
  %544 = vmatprep.subr.mxu0 0.0
  %545 = vmatpush2.msra.mxu0 0.0
  %546 = vmatprep.subr.mxu0 0.0
  %547 = vmatpush2.msra.mxu0 0.0
  %548 = vmatprep.subr.mxu0 0.0
  %549 = vmatpush2.msra.mxu0 0.0
  %550 = vmatprep.subr.mxu0 0.0
  %551 = vmatpush2.msra.mxu0 0.0
  %552 = vmatprep.subr.mxu0 0.0
  %553 = vmatpush2.msra.mxu0 0.0
  %554 = vmatprep.subr.mxu0 0.0
  %555 = vmatpush2.msra.mxu0 0.0
  %556 = vmatprep.subr.mxu0 0.0
  %557 = vmatpush2.msra.mxu0 0.0
  %558 = vmatprep.subr.mxu0 0.0
  %559 = vmatpush2.msra.mxu0 0.0
  %560 = vmatprep.subr.mxu0 0.0
  %561 = vmatpush2.msra.mxu0 0.0
  %562 = vmatprep.subr.mxu0 0.0
  %563 = vmatpush2.msra.mxu0 0.0
  %564 = vmatprep.subr.mxu0 0.0
  %565 = vmatpush2.msra.mxu0 0.0
  %566 = vmatprep.subr.mxu0 0.0
  %567 = vmatpush2.msra.mxu0 0.0
  %568 = vmatprep.subr.mxu0 0.0
  %569 = vmatpush2.msra.mxu0 0.0
  %570 = vmatprep.subr.mxu0 0.0
  %571 = vmatpush2.msra.mxu0 0.0
  %572 = vmatprep.subr.mxu0 0.0
  %573 = vmatpush2.msra.mxu0 0.0
  %574 = vmatprep.subr.mxu0 0.0
  %575 = vmatpush2.msra.mxu0 0.0
  %576 = vmatprep.mubr.f32.mxu0 0.0
  %577 = vmatmul.mubr.f32.gmra.mxu0 %v510
  %v578 = vpop.f32.mrf.mxu0
  %v579 = vadd.f32 %v68, %v578
  %v580 = vpop.f32.mrf.mxu0
  %581 = vdwg.mxu0
  %v583 = vsel %vm70, %v60, 0
  %585 = vmatprep.subr.mxu0 0.0
  %586 = vmatpush1.msra.mxu0 0.0
  %587 = vmatprep.subr.mxu0 0.0
  %588 = vmatpush1.msra.mxu0 0.0
  %589 = vmatprep.subr.mxu0 0.0
  %590 = vmatpush1.msra.mxu0 0.0
  %591 = vmatprep.subr.mxu0 0.0
  %592 = vmatpush1.msra.mxu0 0.0
  %593 = vmatprep.subr.mxu0 0.0
  %594 = vmatpush1.msra.mxu0 0.0
  %595 = vmatprep.subr.mxu0 0.0
  %596 = vmatpush1.msra.mxu0 0.0
  %597 = vmatprep.subr.mxu0 0.0
  %598 = vmatpush1.msra.mxu0 0.0
  %599 = vmatprep.subr.mxu0 0.0
  %600 = vmatpush1.msra.mxu0 0.0
  %601 = vmatprep.subr.mxu0 0.0
  %602 = vmatpush1.msra.mxu0 0.0
  %603 = vmatprep.subr.mxu0 0.0
  %604 = vmatpush1.msra.mxu0 0.0
  %605 = vmatprep.subr.mxu0 0.0
  %606 = vmatpush1.msra.mxu0 0.0
  %607 = vmatprep.subr.mxu0 0.0
  %608 = vmatpush1.msra.mxu0 0.0
  %609 = vmatprep.subr.mxu0 0.0
  %610 = vmatpush1.msra.mxu0 0.0
  %611 = vmatprep.subr.mxu0 0.0
  %612 = vmatpush1.msra.mxu0 0.0
  %613 = vmatprep.subr.mxu0 0.0
  %614 = vmatpush1.msra.mxu0 0.0
  %615 = vmatprep.subr.mxu0 0.0
  %616 = vmatpush1.msra.mxu0 %v52
  %617 = vmatprep.subr.mxu0 0.0
  %618 = vmatpush2.msra.mxu0 0.0
  %619 = vmatprep.subr.mxu0 0.0
  %620 = vmatpush2.msra.mxu0 0.0
  %621 = vmatprep.subr.mxu0 0.0
  %622 = vmatpush2.msra.mxu0 0.0
  %623 = vmatprep.subr.mxu0 0.0
  %624 = vmatpush2.msra.mxu0 0.0
  %625 = vmatprep.subr.mxu0 0.0
  %626 = vmatpush2.msra.mxu0 0.0
  %627 = vmatprep.subr.mxu0 0.0
  %628 = vmatpush2.msra.mxu0 0.0
  %629 = vmatprep.subr.mxu0 0.0
  %630 = vmatpush2.msra.mxu0 0.0
  %631 = vmatprep.subr.mxu0 0.0
  %632 = vmatpush2.msra.mxu0 0.0
  %633 = vmatprep.subr.mxu0 0.0
  %634 = vmatpush2.msra.mxu0 0.0
  %635 = vmatprep.subr.mxu0 0.0
  %636 = vmatpush2.msra.mxu0 0.0
  %637 = vmatprep.subr.mxu0 0.0
  %638 = vmatpush2.msra.mxu0 0.0
  %639 = vmatprep.subr.mxu0 0.0
  %640 = vmatpush2.msra.mxu0 0.0
  %641 = vmatprep.subr.mxu0 0.0
  %642 = vmatpush2.msra.mxu0 0.0
  %643 = vmatprep.subr.mxu0 0.0
  %644 = vmatpush2.msra.mxu0 0.0
  %645 = vmatprep.subr.mxu0 0.0
  %646 = vmatpush2.msra.mxu0 0.0
  %647 = vmatprep.subr.mxu0 0.0
  %648 = vmatpush2.msra.mxu0 0.0
  %649 = vmatprep.mubr.f32.mxu0 0.0
  %650 = vmatmul.mubr.f32.gmra.mxu0 %v583
  %v651 = vpop.f32.mrf.mxu0
  %v652 = vadd.f32 %v69, %v651
  %v653 = vpop.f32.mrf.mxu0
  %654 = vdwg.mxu0
  %v655 = vld [vmem:[%s3] sm:$0xff]
  %v656 = vld [vmem:[%s3 + $0x8] sm:$0xff]
  %v657 = vld [vmem:[%s3 + $0x10] sm:$0xff]
  %v658 = vld [vmem:[%s3 + $0x18] sm:$0xff]
  %v659 = vld [vmem:[%s4] sm:$0x1]
  %v661 = vlaneseq
  %v662 = vshrl.u32 %v661, 7
  %v663 = vsub.s32 0, %v662
  %v664 = vrot.slane %v659, %v663
  %vm666 = vcmask 261120
  %v668 = vsel %vm666, %v141, 0
  %v671 = vsel %vm666, %v214, 0
  %v674 = vsel %vm666, %v287, 0
  %v677 = vsel %vm666, %v360, 0
  %v680 = vsel %vm666, %v433, 0
  %v683 = vsel %vm666, %v506, 0
  %v686 = vsel %vm666, %v579, 0
  %v689 = vsel %vm666, %v652, 0
  %691 = vmatprep.subr.mxu0 0.0
  %692 = vmatpush1.msra.mxu0 0.0
  %693 = vmatprep.subr.mxu0 0.0
  %694 = vmatpush1.msra.mxu0 0.0
  %695 = vmatprep.subr.mxu0 0.0
  %696 = vmatpush1.msra.mxu0 0.0
  %697 = vmatprep.subr.mxu0 0.0
  %698 = vmatpush1.msra.mxu0 0.0
  %699 = vmatprep.subr.mxu0 0.0
  %700 = vmatpush1.msra.mxu0 0.0
  %701 = vmatprep.subr.mxu0 0.0
  %702 = vmatpush1.msra.mxu0 0.0
  %703 = vmatprep.subr.mxu0 0.0
  %704 = vmatpush1.msra.mxu0 0.0
  %705 = vmatprep.subr.mxu0 0.0
  %706 = vmatpush1.msra.mxu0 0.0
  %707 = vmatprep.subr.mxu0 0.0
  %708 = vmatpush1.msra.mxu0 0.0
  %709 = vmatprep.subr.mxu0 0.0
  %710 = vmatpush1.msra.mxu0 0.0
  %711 = vmatprep.subr.mxu0 0.0
  %712 = vmatpush1.msra.mxu0 0.0
  %713 = vmatprep.subr.mxu0 0.0
  %714 = vmatpush1.msra.mxu0 0.0
  %715 = vmatprep.subr.mxu0 0.0
  %716 = vmatpush1.msra.mxu0 %v658
  %717 = vmatprep.subr.mxu0 0.0
  %718 = vmatpush1.msra.mxu0 %v657
  %719 = vmatprep.subr.mxu0 0.0
  %720 = vmatpush1.msra.mxu0 %v656
  %721 = vmatprep.subr.mxu0 0.0
  %722 = vmatpush1.msra.mxu0 %v655
  %723 = vmatprep.subr.mxu0 0.0
  %724 = vmatpush2.msra.mxu0 0.0
  %725 = vmatprep.subr.mxu0 0.0
  %726 = vmatpush2.msra.mxu0 0.0
  %727 = vmatprep.subr.mxu0 0.0
  %728 = vmatpush2.msra.mxu0 0.0
  %729 = vmatprep.subr.mxu0 0.0
  %730 = vmatpush2.msra.mxu0 0.0
  %731 = vmatprep.subr.mxu0 0.0
  %732 = vmatpush2.msra.mxu0 0.0
  %733 = vmatprep.subr.mxu0 0.0
  %734 = vmatpush2.msra.mxu0 0.0
  %735 = vmatprep.subr.mxu0 0.0
  %736 = vmatpush2.msra.mxu0 0.0
  %737 = vmatprep.subr.mxu0 0.0
  %738 = vmatpush2.msra.mxu0 0.0
  %739 = vmatprep.subr.mxu0 0.0
  %740 = vmatpush2.msra.mxu0 0.0
  %741 = vmatprep.subr.mxu0 0.0
  %742 = vmatpush2.msra.mxu0 0.0
  %743 = vmatprep.subr.mxu0 0.0
  %744 = vmatpush2.msra.mxu0 0.0
  %745 = vmatprep.subr.mxu0 0.0
  %746 = vmatpush2.msra.mxu0 0.0
  %747 = vmatprep.subr.mxu0 0.0
  %748 = vmatpush2.msra.mxu0 0.0
  %749 = vmatprep.subr.mxu0 0.0
  %750 = vmatpush2.msra.mxu0 0.0
  %751 = vmatprep.subr.mxu0 0.0
  %752 = vmatpush2.msra.mxu0 0.0
  %753 = vmatprep.subr.mxu0 0.0
  %754 = vmatpush2.msra.mxu0 0.0
  %755 = vmatprep.mubr.f32.mxu0 0.0
  %756 = vmatmul.mubr.f32.gmra.mxu0 %v668
  %v757 = vpop.f32.mrf.mxu0
  %v758 = vadd.f32 %v664, %v757
  %v759 = vpop.f32.mrf.mxu0
  %760 = vmatprep.mubr.f32.mxu0 0.0
  %761 = vmatmul.mubr.f32.gmra.mxu0 %v671
  %v762 = vpop.f32.mrf.mxu0
  %v763 = vadd.f32 %v664, %v762
  %v764 = vpop.f32.mrf.mxu0
  %765 = vmatprep.mubr.f32.mxu0 0.0
  %766 = vmatmul.mubr.f32.gmra.mxu0 %v674
  %v767 = vpop.f32.mrf.mxu0
  %v768 = vadd.f32 %v664, %v767
  %v769 = vpop.f32.mrf.mxu0
  %770 = vmatprep.mubr.f32.mxu0 0.0
  %771 = vmatmul.mubr.f32.gmra.mxu0 %v677
  %v772 = vpop.f32.mrf.mxu0
  %v773 = vadd.f32 %v664, %v772
  %v774 = vpop.f32.mrf.mxu0
  %775 = vmatprep.mubr.f32.mxu0 0.0
  %776 = vmatmul.mubr.f32.gmra.mxu0 %v680
  %v777 = vpop.f32.mrf.mxu0
  %v778 = vadd.f32 %v664, %v777
  %v779 = vpop.f32.mrf.mxu0
  %780 = vmatprep.mubr.f32.mxu0 0.0
  %781 = vmatmul.mubr.f32.gmra.mxu0 %v683
  %v782 = vpop.f32.mrf.mxu0
  %v783 = vadd.f32 %v664, %v782
  %v784 = vpop.f32.mrf.mxu0
  %785 = vmatprep.mubr.f32.mxu0 0.0
  %786 = vmatmul.mubr.f32.gmra.mxu0 %v686
  %v787 = vpop.f32.mrf.mxu0
  %v788 = vadd.f32 %v664, %v787
  %v789 = vpop.f32.mrf.mxu0
  %790 = vmatprep.mubr.f32.mxu0 0.0
  %791 = vmatmul.mubr.f32.gmra.mxu0 %v689
  %v792 = vpop.f32.mrf.mxu0
  %v793 = vadd.f32 %v664, %v792
  %v794 = vpop.f32.mrf.mxu0
  %795 = vdwg.mxu0
  %v796 = vld [vmem:[%s5] sm:$0x1]
  %v798 = vlaneseq
  %v799 = vshrl.u32 %v798, 7
  %v800 = vsub.s32 0, %v799
  %v801 = vrot.slane %v796, %v800
  %v803 = vmul.f32 %v758, %v801
  %v804 = vmul.f32 %v763, %v801
  %v805 = vmul.f32 %v768, %v801
  %v806 = vmul.f32 %v773, %v801
  %v807 = vmul.f32 %v778, %v801
  %v808 = vmul.f32 %v783, %v801
  %v809 = vmul.f32 %v788, %v801
  %v810 = vmul.f32 %v793, %v801
  %v811 = vld [vmem:[%s6] sm:$0x1]
  %v813 = vlaneseq
  %v814 = vshrl.u32 %v813, 7
  %v815 = vsub.s32 0, %v814
  %v816 = vrot.slane %v811, %v815
  %v818 = vadd.f32 %v803, %v816
  %v819 = vadd.f32 %v804, %v816
  %v820 = vadd.f32 %v805, %v816
  %v821 = vadd.f32 %v806, %v816
  %v822 = vadd.f32 %v807, %v816
  %v823 = vadd.f32 %v808, %v816
  %v824 = vadd.f32 %v809, %v816
  %v825 = vadd.f32 %v810, %v816
  %v826 = vmax.f32 %v818, 0.0
  %v827 = vmax.f32 %v819, 0.0
  %v828 = vmax.f32 %v820, 0.0
  %v829 = vmax.f32 %v821, 0.0
  %v830 = vmax.f32 %v822, 0.0
  %v831 = vmax.f32 %v823, 0.0
  %v832 = vmax.f32 %v824, 0.0
  %v833 = vmax.f32 %v825, 0.0
  %v834 = vld [vmem:[%s7] sm:$0xff]
  %v835 = vld [vmem:[%s7 + $0x8] sm:$0xff]
  %v836 = vld [vmem:[%s7 + $0x10] sm:$0xff]
  %v837 = vld [vmem:[%s7 + $0x18] sm:$0xff]
  %v838 = vld [vmem:[%s8] sm:$0x1]
  %v840 = vlaneseq
  %v841 = vshrl.u32 %v840, 7
  %v842 = vsub.s32 0, %v841
  %v843 = vrot.slane %v838, %v842
  %v846 = vsel %vm666, %v826, 0
  %v849 = vsel %vm666, %v827, 0
  %v852 = vsel %vm666, %v828, 0
  %v855 = vsel %vm666, %v829, 0
  %v858 = vsel %vm666, %v830, 0
  %v861 = vsel %vm666, %v831, 0
  %v864 = vsel %vm666, %v832, 0
  %v867 = vsel %vm666, %v833, 0
  %869 = vmatprep.subr.mxu0 0.0
  %870 = vmatpush1.msra.mxu0 0.0
  %871 = vmatprep.subr.mxu0 0.0
  %872 = vmatpush1.msra.mxu0 0.0
  %873 = vmatprep.subr.mxu0 0.0
  %874 = vmatpush1.msra.mxu0 0.0
  %875 = vmatprep.subr.mxu0 0.0
  %876 = vmatpush1.msra.mxu0 0.0
  %877 = vmatprep.subr.mxu0 0.0
  %878 = vmatpush1.msra.mxu0 0.0
  %879 = vmatprep.subr.mxu0 0.0
  %880 = vmatpush1.msra.mxu0 0.0
  %881 = vmatprep.subr.mxu0 0.0
  %882 = vmatpush1.msra.mxu0 0.0
  %883 = vmatprep.subr.mxu0 0.0
  %884 = vmatpush1.msra.mxu0 0.0
  %885 = vmatprep.subr.mxu0 0.0
  %886 = vmatpush1.msra.mxu0 0.0
  %887 = vmatprep.subr.mxu0 0.0
  %888 = vmatpush1.msra.mxu0 0.0
  %889 = vmatprep.subr.mxu0 0.0
  %890 = vmatpush1.msra.mxu0 0.0
  %891 = vmatprep.subr.mxu0 0.0
  %892 = vmatpush1.msra.mxu0 0.0
  %893 = vmatprep.subr.mxu0 0.0
  %894 = vmatpush1.msra.mxu0 %v837
  %895 = vmatprep.subr.mxu0 0.0
  %896 = vmatpush1.msra.mxu0 %v836
  %897 = vmatprep.subr.mxu0 0.0
  %898 = vmatpush1.msra.mxu0 %v835
  %899 = vmatprep.subr.mxu0 0.0
  %900 = vmatpush1.msra.mxu0 %v834
  %901 = vmatprep.subr.mxu0 0.0
  %902 = vmatpush2.msra.mxu0 0.0
  %903 = vmatprep.subr.mxu0 0.0
  %904 = vmatpush2.msra.mxu0 0.0
  %905 = vmatprep.subr.mxu0 0.0
  %906 = vmatpush2.msra.mxu0 0.0
  %907 = vmatprep.subr.mxu0 0.0
  %908 = vmatpush2.msra.mxu0 0.0
  %909 = vmatprep.subr.mxu0 0.0
  %910 = vmatpush2.msra.mxu0 0.0
  %911 = vmatprep.subr.mxu0 0.0
  %912 = vmatpush2.msra.mxu0 0.0
  %913 = vmatprep.subr.mxu0 0.0
  %914 = vmatpush2.msra.mxu0 0.0
  %915 = vmatprep.subr.mxu0 0.0
  %916 = vmatpush2.msra.mxu0 0.0
  %917 = vmatprep.subr.mxu0 0.0
  %918 = vmatpush2.msra.mxu0 0.0
  %919 = vmatprep.subr.mxu0 0.0
  %920 = vmatpush2.msra.mxu0 0.0
  %921 = vmatprep.subr.mxu0 0.0
  %922 = vmatpush2.msra.mxu0 0.0
  %923 = vmatprep.subr.mxu0 0.0
  %924 = vmatpush2.msra.mxu0 0.0
  %925 = vmatprep.subr.mxu0 0.0
  %926 = vmatpush2.msra.mxu0 0.0
  %927 = vmatprep.subr.mxu0 0.0
  %928 = vmatpush2.msra.mxu0 0.0
  %929 = vmatprep.subr.mxu0 0.0
  %930 = vmatpush2.msra.mxu0 0.0
  %931 = vmatprep.subr.mxu0 0.0
  %932 = vmatpush2.msra.mxu0 0.0
  %933 = vmatprep.mubr.f32.mxu0 0.0
  %934 = vmatmul.mubr.f32.gmra.mxu0 %v846
  %v935 = vpop.f32.mrf.mxu0
  %v936 = vadd.f32 %v843, %v935
  %v937 = vpop.f32.mrf.mxu0
  %938 = vmatprep.mubr.f32.mxu0 0.0
  %939 = vmatmul.mubr.f32.gmra.mxu0 %v849
  %v940 = vpop.f32.mrf.mxu0
  %v941 = vadd.f32 %v843, %v940
  %v942 = vpop.f32.mrf.mxu0
  %943 = vmatprep.mubr.f32.mxu0 0.0
  %944 = vmatmul.mubr.f32.gmra.mxu0 %v852
  %v945 = vpop.f32.mrf.mxu0
  %v946 = vadd.f32 %v843, %v945
  %v947 = vpop.f32.mrf.mxu0
  %948 = vmatprep.mubr.f32.mxu0 0.0
  %949 = vmatmul.mubr.f32.gmra.mxu0 %v855
  %v950 = vpop.f32.mrf.mxu0
  %v951 = vadd.f32 %v843, %v950
  %v952 = vpop.f32.mrf.mxu0
  %953 = vmatprep.mubr.f32.mxu0 0.0
  %954 = vmatmul.mubr.f32.gmra.mxu0 %v858
  %v955 = vpop.f32.mrf.mxu0
  %v956 = vadd.f32 %v843, %v955
  %v957 = vpop.f32.mrf.mxu0
  %958 = vmatprep.mubr.f32.mxu0 0.0
  %959 = vmatmul.mubr.f32.gmra.mxu0 %v861
  %v960 = vpop.f32.mrf.mxu0
  %v961 = vadd.f32 %v843, %v960
  %v962 = vpop.f32.mrf.mxu0
  %963 = vmatprep.mubr.f32.mxu0 0.0
  %964 = vmatmul.mubr.f32.gmra.mxu0 %v864
  %v965 = vpop.f32.mrf.mxu0
  %v966 = vadd.f32 %v843, %v965
  %v967 = vpop.f32.mrf.mxu0
  %968 = vmatprep.mubr.f32.mxu0 0.0
  %969 = vmatmul.mubr.f32.gmra.mxu0 %v867
  %v970 = vpop.f32.mrf.mxu0
  %v971 = vadd.f32 %v843, %v970
  %v972 = vpop.f32.mrf.mxu0
  %973 = vdwg.mxu0
  %v974 = vld [vmem:[%s9] sm:$0x1]
  %v976 = vlaneseq
  %v977 = vshrl.u32 %v976, 7
  %v978 = vsub.s32 0, %v977
  %v979 = vrot.slane %v974, %v978
  %v981 = vmul.f32 %v936, %v979
  %v982 = vmul.f32 %v941, %v979
  %v983 = vmul.f32 %v946, %v979
  %v984 = vmul.f32 %v951, %v979
  %v985 = vmul.f32 %v956, %v979
  %v986 = vmul.f32 %v961, %v979
  %v987 = vmul.f32 %v966, %v979
  %v988 = vmul.f32 %v971, %v979
  %v989 = vld [vmem:[%s10] sm:$0x1]
  %v991 = vlaneseq
  %v992 = vshrl.u32 %v991, 7
  %v993 = vsub.s32 0, %v992
  %v994 = vrot.slane %v989, %v993
  %v996 = vadd.f32 %v981, %v994
  %v997 = vadd.f32 %v982, %v994
  %v998 = vadd.f32 %v983, %v994
  %v999 = vadd.f32 %v984, %v994
  %v1000 = vadd.f32 %v985, %v994
  %v1001 = vadd.f32 %v986, %v994
  %v1002 = vadd.f32 %v987, %v994
  %v1003 = vadd.f32 %v988, %v994
  %v1004 = vmax.f32 %v996, 0.0
  %v1005 = vmax.f32 %v997, 0.0
  %v1006 = vmax.f32 %v998, 0.0
  %v1007 = vmax.f32 %v999, 0.0
  %v1008 = vmax.f32 %v1000, 0.0
  %v1009 = vmax.f32 %v1001, 0.0
  %v1010 = vmax.f32 %v1002, 0.0
  %v1011 = vmax.f32 %v1003, 0.0
  %1012 = vst.msk [vmem:[%s12] sm:$0xff] %vm666, %v1004
  %1013 = vst.msk [vmem:[%s12 + $0x8] sm:$0xff] %vm666, %v1005
  %1014 = vst.msk [vmem:[%s12 + $0x10] sm:$0xff] %vm666, %v1006
  %1015 = vst.msk [vmem:[%s12 + $0x18] sm:$0xff] %vm666, %v1007
  %1016 = vst.msk [vmem:[%s12 + $0x20] sm:$0xff] %vm666, %v1008
  %1017 = vst.msk [vmem:[%s12 + $0x28] sm:$0xff] %vm666, %v1009
  %1018 = vst.msk [vmem:[%s12 + $0x30] sm:$0xff] %vm666, %v1010
  %1019 = vst.msk [vmem:[%s12 + $0x38] sm:$0xff] %vm666, %v1011
  %v1020 = vld [vmem:[%s2] sm:$0xff]
  %v1022 = vcombine.high %v1020, %v1020
  %v1024 = vunpack.c.l.s4 1966171168
  %v1025 = vunpack.c.0.s8 %v1024
  %v1026 = vlaneseq
  %v1027 = vshrl.u32 %v1026, 7
  %v1028 = vsub.s32 %v1025, %v1027
  %v1029 = vrot.slane %v1020, %v1028
  %v1031 = vunpack.c.l.s4 1966171168
  %v1032 = vunpack.c.0.s8 %v1031
  %v1033 = vlaneseq
  %v1034 = vshrl.u32 %v1033, 7
  %v1035 = vsub.s32 %v1032, %v1034
  %v1036 = vrot.slane %v1022, %v1035
  %v1037 = vcombine.high %v1029, %v1029
  %v1038 = vcombine.high %v1036, %v1036
  %v1040 = vunpack.c.l.s4 1966171168
  %v1041 = vunpack.c.0.s8 %v1040
  %v1042 = vlaneseq
  %v1043 = vshrl.u32 %v1042, 7
  %v1044 = vsub.s32 %v1041, %v1043
  %v1045 = vrot.slane %v1029, %v1044
  %v1047 = vunpack.c.l.s4 1966171168
  %v1048 = vunpack.c.0.s8 %v1047
  %v1049 = vlaneseq
  %v1050 = vshrl.u32 %v1049, 7
  %v1051 = vsub.s32 %v1048, %v1050
  %v1052 = vrot.slane %v1036, %v1051
  %v1054 = vunpack.c.l.s4 1966171168
  %v1055 = vunpack.c.0.s8 %v1054
  %v1056 = vlaneseq
  %v1057 = vshrl.u32 %v1056, 7
  %v1058 = vsub.s32 %v1055, %v1057
  %v1059 = vrot.slane %v1037, %v1058
  %v1061 = vunpack.c.l.s4 1966171168
  %v1062 = vunpack.c.0.s8 %v1061
  %v1063 = vlaneseq
  %v1064 = vshrl.u32 %v1063, 7
  %v1065 = vsub.s32 %v1062, %v1064
  %v1066 = vrot.slane %v1038, %v1065
  %v1067 = vcombine.high %v1045, %v1045
  %v1068 = vcombine.high %v1052, %v1052
  %v1069 = vcombine.high %v1059, %v1059
  %v1070 = vcombine.high %v1066, %v1066
  %v1071 = vlaneseq
  %v1072 = vshrl.u32 %v1071, 7
  %v1073 = vsub.s32 0, %v1072
  %v1074 = vrot.slane %v1045, %v1073
  %v1075 = vlaneseq
  %v1076 = vshrl.u32 %v1075, 7
  %v1077 = vsub.s32 0, %v1076
  %v1078 = vrot.slane %v1059, %v1077
  %v1079 = vlaneseq
  %v1080 = vshrl.u32 %v1079, 7
  %v1081 = vsub.s32 0, %v1080
  %v1082 = vrot.slane %v1067, %v1081
  %v1083 = vlaneseq
  %v1084 = vshrl.u32 %v1083, 7
  %v1085 = vsub.s32 0, %v1084
  %v1086 = vrot.slane %v1069, %v1085
  %v1087 = vlaneseq
  %v1088 = vshrl.u32 %v1087, 7
  %v1089 = vsub.s32 0, %v1088
  %v1090 = vrot.slane %v1052, %v1089
  %v1091 = vlaneseq
  %v1092 = vshrl.u32 %v1091, 7
  %v1093 = vsub.s32 0, %v1092
  %v1094 = vrot.slane %v1066, %v1093
  %v1095 = vlaneseq
  %v1096 = vshrl.u32 %v1095, 7
  %v1097 = vsub.s32 0, %v1096
  %v1098 = vrot.slane %v1068, %v1097
  %v1099 = vlaneseq
  %v1100 = vshrl.u32 %v1099, 7
  %v1101 = vsub.s32 0, %v1100
  %v1102 = vrot.slane %v1070, %v1101
  %v1111 = vmul.f32 %v1004, %v1074
  %v1112 = vmul.f32 %v1005, %v1078
  %v1113 = vmul.f32 %v1006, %v1082
  %v1114 = vmul.f32 %v1007, %v1086
  %v1115 = vmul.f32 %v1008, %v1090
  %v1116 = vmul.f32 %v1009, %v1094
  %v1117 = vmul.f32 %v1010, %v1098
  %v1118 = vmul.f32 %v1011, %v1102
  %v1119 = vsel %vm666, %v1111, 0.0
  %1120 = vadd.xlane.f32.xlu0 %v1119
  %v1121 = vpop.xlane.xlu0 %1120
  %v1122 = vsel %vm666, %v1112, 0.0
  %1123 = vadd.xlane.f32.xlu0 %v1122
  %v1124 = vpop.xlane.xlu0 %1123
  %v1125 = vsel %vm666, %v1113, 0.0
  %1126 = vadd.xlane.f32.xlu0 %v1125
  %v1127 = vpop.xlane.xlu0 %1126
  %v1128 = vsel %vm666, %v1114, 0.0
  %1129 = vadd.xlane.f32.xlu0 %v1128
  %v1130 = vpop.xlane.xlu0 %1129
  %v1131 = vsel %vm666, %v1115, 0.0
  %1132 = vadd.xlane.f32.xlu0 %v1131
  %v1133 = vpop.xlane.xlu0 %1132
  %v1134 = vsel %vm666, %v1116, 0.0
  %1135 = vadd.xlane.f32.xlu0 %v1134
  %v1136 = vpop.xlane.xlu0 %1135
  %v1137 = vsel %vm666, %v1117, 0.0
  %1138 = vadd.xlane.f32.xlu0 %v1137
  %v1139 = vpop.xlane.xlu0 %1138
  %v1140 = vsel %vm666, %v1118, 0.0
  %1141 = vadd.xlane.f32.xlu0 %v1140
  %v1142 = vpop.xlane.xlu0 %1141
  %v1151 = vlaneseq
  %v1152 = vand.u32 %v1151, 127
  %v1153 = vlaneseq
  %v1154 = vshrl.u32 %v1153, 7
  %v1155 = vsub.s32 %v1152, %v1154
  %v1156 = vrot.slane %v1121, %v1155
  %v1157 = vlaneseq
  %v1158 = vshrl.u32 %v1157, 7
  %v1159 = vsub.s32 %v1152, %v1158
  %v1160 = vrot.slane %v1124, %v1159
  %v1161 = vlaneseq
  %v1162 = vshrl.u32 %v1161, 7
  %v1163 = vsub.s32 %v1152, %v1162
  %v1164 = vrot.slane %v1127, %v1163
  %v1165 = vlaneseq
  %v1166 = vshrl.u32 %v1165, 7
  %v1167 = vsub.s32 %v1152, %v1166
  %v1168 = vrot.slane %v1130, %v1167
  %v1169 = vlaneseq
  %v1170 = vshrl.u32 %v1169, 7
  %v1171 = vsub.s32 %v1152, %v1170
  %v1172 = vrot.slane %v1133, %v1171
  %v1173 = vlaneseq
  %v1174 = vshrl.u32 %v1173, 7
  %v1175 = vsub.s32 %v1152, %v1174
  %v1176 = vrot.slane %v1136, %v1175
  %v1177 = vlaneseq
  %v1178 = vshrl.u32 %v1177, 7
  %v1179 = vsub.s32 %v1152, %v1178
  %v1180 = vrot.slane %v1139, %v1179
  %v1181 = vlaneseq
  %v1182 = vshrl.u32 %v1181, 7
  %v1183 = vsub.s32 %v1152, %v1182
  %v1184 = vrot.slane %v1142, %v1183
  %vm1185 = vcmask 1041409
  %v1186 = vsel %vm1185, %v1160, %v1156
  %vm1187 = vcmask 1042434
  %v1188 = vsel %vm1187, %v1164, %v1186
  %vm1189 = vcmask 1043459
  %v1190 = vsel %vm1189, %v1168, %v1188
  %vm1191 = vcmask 1044484
  %v1192 = vsel %vm1191, %v1172, %v1190
  %vm1193 = vcmask 1045509
  %v1194 = vsel %vm1193, %v1176, %v1192
  %vm1195 = vcmask 1046534
  %v1196 = vsel %vm1195, %v1180, %v1194
  %vm1197 = vcmask 1047559
  %v1198 = vsel %vm1197, %v1184, %v1196
  %v1200 = vsel %vm70, %v1198, -inf
  %1201 = vmax.xlane.f32.xlu0 %v1200
  %v1202 = vpop.xlane.xlu0 %1201
  %v1204 = vlaneseq
  %v1205 = vshrl.u32 %v1204, 7
  %v1206 = vsub.s32 0, %v1205
  %v1207 = vrot.slane %v1202, %v1206
  %v1208 = vlaneseq
  %v1209 = vshrl.u32 %v1208, 7
  %v1210 = vsub.s32 1, %v1209
  %v1211 = vrot.slane %v1202, %v1210
  %v1212 = vlaneseq
  %v1213 = vshrl.u32 %v1212, 7
  %v1214 = vsub.s32 2, %v1213
  %v1215 = vrot.slane %v1202, %v1214
  %v1216 = vlaneseq
  %v1217 = vshrl.u32 %v1216, 7
  %v1218 = vsub.s32 3, %v1217
  %v1219 = vrot.slane %v1202, %v1218
  %v1220 = vlaneseq
  %v1221 = vshrl.u32 %v1220, 7
  %v1222 = vsub.s32 4, %v1221
  %v1223 = vrot.slane %v1202, %v1222
  %v1224 = vlaneseq
  %v1225 = vshrl.u32 %v1224, 7
  %v1226 = vsub.s32 5, %v1225
  %v1227 = vrot.slane %v1202, %v1226
  %v1228 = vlaneseq
  %v1229 = vshrl.u32 %v1228, 7
  %v1230 = vsub.s32 6, %v1229
  %v1231 = vrot.slane %v1202, %v1230
  %v1232 = vlaneseq
  %v1233 = vshrl.u32 %v1232, 7
  %v1234 = vsub.s32 7, %v1233
  %v1235 = vrot.slane %v1202, %v1234
  %v1244 = vsub.f32 %v1121, %v1207
  %v1245 = vsub.f32 %v1124, %v1211
  %v1246 = vsub.f32 %v1127, %v1215
  %v1247 = vsub.f32 %v1130, %v1219
  %v1248 = vsub.f32 %v1133, %v1223
  %v1249 = vsub.f32 %v1136, %v1227
  %v1250 = vsub.f32 %v1139, %v1231
  %v1251 = vsub.f32 %v1142, %v1235
  %v1252 = vmul.f32 %v1244, 1.442695
  %v1253 = vpow.pop %v1252
  %v1254 = vmul.f32 %v1245, 1.442695
  %v1255 = vpow.pop %v1254
  %v1256 = vmul.f32 %v1246, 1.442695
  %v1257 = vpow.pop %v1256
  %v1258 = vmul.f32 %v1247, 1.442695
  %v1259 = vpow.pop %v1258
  %v1260 = vmul.f32 %v1248, 1.442695
  %v1261 = vpow.pop %v1260
  %v1262 = vmul.f32 %v1249, 1.442695
  %v1263 = vpow.pop %v1262
  %v1264 = vmul.f32 %v1250, 1.442695
  %v1265 = vpow.pop %v1264
  %v1266 = vmul.f32 %v1251, 1.442695
  %v1267 = vpow.pop %v1266
  %1276 = vset.pattern.permute.xlu0 0
  %1277 = vperm.xlu0 %1276, %v1253
  %v1278 = vpop.permute.xlu0 %1277
  %1279 = vset.pattern.permute.xlu0 0
  %1280 = vperm.xlu0 %1279, %v1255
  %v1281 = vpop.permute.xlu0 %1280
  %1282 = vset.pattern.permute.xlu0 0
  %1283 = vperm.xlu0 %1282, %v1257
  %v1284 = vpop.permute.xlu0 %1283
  %1285 = vset.pattern.permute.xlu0 0
  %1286 = vperm.xlu0 %1285, %v1259
  %v1287 = vpop.permute.xlu0 %1286
  %1288 = vset.pattern.permute.xlu0 0
  %1289 = vperm.xlu0 %1288, %v1261
  %v1290 = vpop.permute.xlu0 %1289
  %1291 = vset.pattern.permute.xlu0 0
  %1292 = vperm.xlu0 %1291, %v1263
  %v1293 = vpop.permute.xlu0 %1292
  %1294 = vset.pattern.permute.xlu0 0
  %1295 = vperm.xlu0 %1294, %v1265
  %v1296 = vpop.permute.xlu0 %1295
  %1297 = vset.pattern.permute.xlu0 0
  %1298 = vperm.xlu0 %1297, %v1267
  %v1299 = vpop.permute.xlu0 %1298
  %v1300 = vlaneseq
  %v1301 = vshrl.u32 %v1300, 7
  %v1302 = vsub.s32 %v1152, %v1301
  %v1303 = vrot.slane %v1278, %v1302
  %v1304 = vlaneseq
  %v1305 = vshrl.u32 %v1304, 7
  %v1306 = vsub.s32 %v1152, %v1305
  %v1307 = vrot.slane %v1281, %v1306
  %v1308 = vlaneseq
  %v1309 = vshrl.u32 %v1308, 7
  %v1310 = vsub.s32 %v1152, %v1309
  %v1311 = vrot.slane %v1284, %v1310
  %v1312 = vlaneseq
  %v1313 = vshrl.u32 %v1312, 7
  %v1314 = vsub.s32 %v1152, %v1313
  %v1315 = vrot.slane %v1287, %v1314
  %v1316 = vlaneseq
  %v1317 = vshrl.u32 %v1316, 7
  %v1318 = vsub.s32 %v1152, %v1317
  %v1319 = vrot.slane %v1290, %v1318
  %v1320 = vlaneseq
  %v1321 = vshrl.u32 %v1320, 7
  %v1322 = vsub.s32 %v1152, %v1321
  %v1323 = vrot.slane %v1293, %v1322
  %v1324 = vlaneseq
  %v1325 = vshrl.u32 %v1324, 7
  %v1326 = vsub.s32 %v1152, %v1325
  %v1327 = vrot.slane %v1296, %v1326
  %v1328 = vlaneseq
  %v1329 = vshrl.u32 %v1328, 7
  %v1330 = vsub.s32 %v1152, %v1329
  %v1331 = vrot.slane %v1299, %v1330
  %v1332 = vsel %vm1185, %v1307, %v1303
  %v1333 = vsel %vm1187, %v1311, %v1332
  %v1334 = vsel %vm1189, %v1315, %v1333
  %v1335 = vsel %vm1191, %v1319, %v1334
  %v1336 = vsel %vm1193, %v1323, %v1335
  %v1337 = vsel %vm1195, %v1327, %v1336
  %v1338 = vsel %vm1197, %v1331, %v1337
  %v1340 = vsel %vm70, %v1338, 0.0
  %1341 = vadd.xlane.f32.xlu0 %v1340
  %v1342 = vpop.xlane.xlu0 %1341
  %v1344 = vlaneseq
  %v1345 = vshrl.u32 %v1344, 7
  %v1346 = vsub.s32 0, %v1345
  %v1347 = vrot.slane %v1342, %v1346
  %v1348 = vlaneseq
  %v1349 = vshrl.u32 %v1348, 7
  %v1350 = vsub.s32 1, %v1349
  %v1351 = vrot.slane %v1342, %v1350
  %v1352 = vlaneseq
  %v1353 = vshrl.u32 %v1352, 7
  %v1354 = vsub.s32 2, %v1353
  %v1355 = vrot.slane %v1342, %v1354
  %v1356 = vlaneseq
  %v1357 = vshrl.u32 %v1356, 7
  %v1358 = vsub.s32 3, %v1357
  %v1359 = vrot.slane %v1342, %v1358
  %v1360 = vlaneseq
  %v1361 = vshrl.u32 %v1360, 7
  %v1362 = vsub.s32 4, %v1361
  %v1363 = vrot.slane %v1342, %v1362
  %v1364 = vlaneseq
  %v1365 = vshrl.u32 %v1364, 7
  %v1366 = vsub.s32 5, %v1365
  %v1367 = vrot.slane %v1342, %v1366
  %v1368 = vlaneseq
  %v1369 = vshrl.u32 %v1368, 7
  %v1370 = vsub.s32 6, %v1369
  %v1371 = vrot.slane %v1342, %v1370
  %v1372 = vlaneseq
  %v1373 = vshrl.u32 %v1372, 7
  %v1374 = vsub.s32 7, %v1373
  %v1375 = vrot.slane %v1342, %v1374
  %v1384 = vrcp.pop %v1347
  %v1385 = vmul.f32 %v1253, %v1384
  %v1386 = vrcp.pop %v1351
  %v1387 = vmul.f32 %v1255, %v1386
  %v1388 = vrcp.pop %v1355
  %v1389 = vmul.f32 %v1257, %v1388
  %v1390 = vrcp.pop %v1359
  %v1391 = vmul.f32 %v1259, %v1390
  %v1392 = vrcp.pop %v1363
  %v1393 = vmul.f32 %v1261, %v1392
  %v1394 = vrcp.pop %v1367
  %v1395 = vmul.f32 %v1263, %v1394
  %v1396 = vrcp.pop %v1371
  %v1397 = vmul.f32 %v1265, %v1396
  %v1398 = vrcp.pop %v1375
  %v1399 = vmul.f32 %v1267, %v1398
  %v1400 = vadd.f32 %v1385, 1.0
  %v1401 = vadd.f32 %v1387, 1.0
  %v1402 = vadd.f32 %v1389, 1.0
  %v1403 = vadd.f32 %v1391, 1.0
  %v1404 = vadd.f32 %v1393, 1.0
  %v1405 = vadd.f32 %v1395, 1.0
  %v1406 = vadd.f32 %v1397, 1.0
  %v1407 = vadd.f32 %v1399, 1.0
  %1409 = vset.pattern.permute.xlu0 0
  %1410 = vperm.xlu0 %1409, %v1400
  %v1411 = vpop.permute.xlu0 %1410
  %1414 = vset.pattern.permute.xlu0 0
  %1415 = vperm.xlu0 %1414, %v1401
  %v1416 = vpop.permute.xlu0 %1415
  %1419 = vset.pattern.permute.xlu0 0
  %1420 = vperm.xlu0 %1419, %v1402
  %v1421 = vpop.permute.xlu0 %1420
  %1424 = vset.pattern.permute.xlu0 0
  %1425 = vperm.xlu0 %1424, %v1403
  %v1426 = vpop.permute.xlu0 %1425
  %1429 = vset.pattern.permute.xlu0 0
  %1430 = vperm.xlu0 %1429, %v1404
  %v1431 = vpop.permute.xlu0 %1430
  %1434 = vset.pattern.permute.xlu0 0
  %1435 = vperm.xlu0 %1434, %v1405
  %v1436 = vpop.permute.xlu0 %1435
  %1439 = vset.pattern.permute.xlu0 0
  %1440 = vperm.xlu0 %1439, %v1406
  %v1441 = vpop.permute.xlu0 %1440
  %1444 = vset.pattern.permute.xlu0 0
  %1445 = vperm.xlu0 %1444, %v1407
  %v1446 = vpop.permute.xlu0 %1445
  %v1448 = vmul.f32 %v1004, %v1411
  %v1449 = vmul.f32 %v1005, %v1416
  %v1450 = vmul.f32 %v1006, %v1421
  %v1451 = vmul.f32 %v1007, %v1426
  %v1452 = vmul.f32 %v1008, %v1431
  %v1453 = vmul.f32 %v1009, %v1436
  %v1454 = vmul.f32 %v1010, %v1441
  %v1455 = vmul.f32 %v1011, %v1446
  %v1456 = vsel %vm666, %v1448, 0.0
  %v1457 = vrot.slane %v1456, 4
  %v1458 = vadd.f32 %v1456, %v1457
  %v1459 = vrot.slane %v1458, 2
  %v1460 = vadd.f32 %v1458, %v1459
  %v1461 = vrot.slane %v1460, 1
  %v1462 = vadd.f32 %v1460, %v1461
  %v1463 = vsel %vm666, %v1449, 0.0
  %v1464 = vrot.slane %v1463, 4
  %v1465 = vadd.f32 %v1463, %v1464
  %v1466 = vrot.slane %v1465, 2
  %v1467 = vadd.f32 %v1465, %v1466
  %v1468 = vrot.slane %v1467, 1
  %v1469 = vadd.f32 %v1467, %v1468
  %v1470 = vsel %vm666, %v1450, 0.0
  %v1471 = vrot.slane %v1470, 4
  %v1472 = vadd.f32 %v1470, %v1471
  %v1473 = vrot.slane %v1472, 2
  %v1474 = vadd.f32 %v1472, %v1473
  %v1475 = vrot.slane %v1474, 1
  %v1476 = vadd.f32 %v1474, %v1475
  %v1477 = vsel %vm666, %v1451, 0.0
  %v1478 = vrot.slane %v1477, 4
  %v1479 = vadd.f32 %v1477, %v1478
  %v1480 = vrot.slane %v1479, 2
  %v1481 = vadd.f32 %v1479, %v1480
  %v1482 = vrot.slane %v1481, 1
  %v1483 = vadd.f32 %v1481, %v1482
  %v1484 = vsel %vm666, %v1452, 0.0
  %v1485 = vrot.slane %v1484, 4
  %v1486 = vadd.f32 %v1484, %v1485
  %v1487 = vrot.slane %v1486, 2
  %v1488 = vadd.f32 %v1486, %v1487
  %v1489 = vrot.slane %v1488, 1
  %v1490 = vadd.f32 %v1488, %v1489
  %v1491 = vsel %vm666, %v1453, 0.0
  %v1492 = vrot.slane %v1491, 4
  %v1493 = vadd.f32 %v1491, %v1492
  %v1494 = vrot.slane %v1493, 2
  %v1495 = vadd.f32 %v1493, %v1494
  %v1496 = vrot.slane %v1495, 1
  %v1497 = vadd.f32 %v1495, %v1496
  %v1498 = vsel %vm666, %v1454, 0.0
  %v1499 = vrot.slane %v1498, 4
  %v1500 = vadd.f32 %v1498, %v1499
  %v1501 = vrot.slane %v1500, 2
  %v1502 = vadd.f32 %v1500, %v1501
  %v1503 = vrot.slane %v1502, 1
  %v1504 = vadd.f32 %v1502, %v1503
  %v1505 = vsel %vm666, %v1455, 0.0
  %v1506 = vrot.slane %v1505, 4
  %v1507 = vadd.f32 %v1505, %v1506
  %v1508 = vrot.slane %v1507, 2
  %v1509 = vadd.f32 %v1507, %v1508
  %v1510 = vrot.slane %v1509, 1
  %v1511 = vadd.f32 %v1509, %v1510
  %v1520 = vsel %vm1185, %v1469, %v1462
  %v1521 = vsel %vm1187, %v1476, %v1520
  %v1522 = vsel %vm1189, %v1483, %v1521
  %v1523 = vsel %vm1191, %v1490, %v1522
  %v1524 = vsel %vm1193, %v1497, %v1523
  %v1525 = vsel %vm1195, %v1504, %v1524
  %v1526 = vsel %vm1197, %v1511, %v1525
  %1528 = vst.msk [vmem:[%s13] sm:$0xff] %vm666, %v1526
  // Predicated region
  $region50: #{_lambda_.6} parent=0 // pred_check
    _
  $region51: #{_lambda_.6} parent=0 // pred_check_branch
    %1530 = sbr.rel (0) target = $region53
  $region52: #{_lambda_.6} parent=0 // pred_region
    _
  $region53: #{_lambda_.6} parent=0 // pred_fallthru
    _
  // Predicated region
  $region54: #{_lambda_.6} parent=0 // pred_check
    _
  $region55: #{_lambda_.6} parent=0 // pred_check_branch
    %1532 = sbr.rel (0) target = $region57
  $region56: #{_lambda_.6} parent=0 // pred_region
    _
  $region57: #{_lambda_.6} parent=0 // pred_fallthru
    _
  // Predicated region
  $region58: #{_lambda_.6} parent=0 // pred_check
    _
  $region59: #{_lambda_.6} parent=0 // pred_check_branch
    %1534 = sbr.rel (0) target = $region61
  $region60: #{_lambda_.6} parent=0 // pred_region
    _
  $region61: #{_lambda_.6} parent=0 // pred_fallthru
    _
  // Predicated region
  $region62: #{_lambda_.6} parent=0 // pred_check
    _
  $region63: #{_lambda_.6} parent=0 // pred_check_branch
    %1536 = sbr.rel (0) target = $region65
  $region64: #{_lambda_.6} parent=0 // pred_region
    _
  $region65: #{_lambda_.6} parent=0 // pred_fallthru
    _

// kernel: _lambda_.9
$region0: #{_lambda_.9}
  #allocation0 [shape = 'u32[]', space=smem, size = 0x4, offset = 0x4, fixed_abs, tag = 'smem constant byte address 0x4 - core index']
  #allocation1 [shape = 'u32[144,128]{1,0:T(1,128)}', space=vmem, size = 0x12000, scoped, tag = 'internal scratch']
  %s0 = inlined_call_operand.vmem [shape: f32[2,4,32], index: 0, kind: input, shape index: {}]
  %s1 = inlined_call_operand.vmem [shape: f32[2,16,32], index: 1, kind: input, shape index: {}]
  %s2 = inlined_call_operand.vmem [shape: f32[32,32], index: 2, kind: input, shape index: {}]
  %s3 = inlined_call_operand.vmem [shape: f32[1,32], index: 3, kind: input, shape index: {}]
  %s4 = inlined_call_operand.vmem [shape: f32[32,64], index: 4, kind: input, shape index: {}]
  %s5 = inlined_call_operand.vmem [shape: f32[1,64], index: 5, kind: input, shape index: {}]
  %s6 = inlined_call_operand.vmem [shape: f32[32,32], index: 6, kind: input, shape index: {}]
  %s7 = inlined_call_operand.vmem [shape: f32[1,32], index: 7, kind: input, shape index: {}]
  %s8 = inlined_call_operand.vmem [shape: f32[1,32], index: 8, kind: input, shape index: {}]
  %s9 = inlined_call_operand.vmem [shape: f32[1,32], index: 9, kind: input, shape index: {}]
  %s10 = inlined_call_operand.vmem [shape: f32[32,64], index: 10, kind: input, shape index: {}]
  %s11 = inlined_call_operand.vmem [shape: f32[1,64], index: 11, kind: input, shape index: {}]
  %s12 = inlined_call_operand.vmem [shape: f32[64,32], index: 12, kind: input, shape index: {}]
  %s13 = inlined_call_operand.vmem [shape: f32[1,32], index: 13, kind: input, shape index: {}]
  %s14 = inlined_call_operand.vmem [shape: f32[1,32], index: 14, kind: input, shape index: {}]
  %s15 = inlined_call_operand.vmem [shape: f32[1,32], index: 15, kind: input, shape index: {}]
  %s16 = inlined_call_operand.vmem [shape: f32[32,3], index: 16, kind: input, shape index: {}]
  %s17 = inlined_call_operand.vmem [shape: f32[1,3], index: 17, kind: input, shape index: {}]
  %s18 = inlined_call_operand.vmem [shape: f32[2,3], index: 18, kind: output, shape index: {0}]
  %s19 = inlined_call_operand.vmem [shape: f32[2,4,16], index: 19, kind: output, shape index: {1}]
  %20 = xla_tuple %s18, %s19
  %s21 = sld [smem:[#allocation0]]
  $region90: #{_lambda_.9} parent=0
    _
  %s23 = ssub.s32 1, %s21
  %s24 = scalar_select 0, %s23, %s21
  // Predicated region
  $region2: #{_lambda_.9} parent=0 // pred_check
    _
  $region3: #{_lambda_.9} parent=0 // pred_check_branch
    %26 = sbr.rel (0) target = $region5
  $region4: #{_lambda_.9} parent=0 // pred_region
    _
  $region5: #{_lambda_.9} parent=0 // pred_fallthru
    _
  // Predicated region
  $region6: #{_lambda_.9} parent=0 // pred_check
    _
  $region7: #{_lambda_.9} parent=0 // pred_check_branch
    %28 = sbr.rel (0) target = $region9
  $region8: #{_lambda_.9} parent=0 // pred_region
    _
  $region9: #{_lambda_.9} parent=0 // pred_fallthru
    _
  // Predicated region
  $region10: #{_lambda_.9} parent=0 // pred_check
    _
  $region11: #{_lambda_.9} parent=0 // pred_check_branch
    %30 = sbr.rel (0) target = $region13
  $region12: #{_lambda_.9} parent=0 // pred_region
    _
  $region13: #{_lambda_.9} parent=0 // pred_fallthru
    _
  // Predicated region
  $region14: #{_lambda_.9} parent=0 // pred_check
    _
  $region15: #{_lambda_.9} parent=0 // pred_check_branch
    %32 = sbr.rel (0) target = $region17
  $region16: #{_lambda_.9} parent=0 // pred_region
    _
  $region17: #{_lambda_.9} parent=0 // pred_fallthru
    _
  // Predicated region
  $region18: #{_lambda_.9} parent=0 // pred_check
    _
  $region19: #{_lambda_.9} parent=0 // pred_check_branch
    %34 = sbr.rel (0) target = $region21
  $region20: #{_lambda_.9} parent=0 // pred_region
    _
  $region21: #{_lambda_.9} parent=0 // pred_fallthru
    _
  // Predicated region
  $region22: #{_lambda_.9} parent=0 // pred_check
    _
  $region23: #{_lambda_.9} parent=0 // pred_check_branch
    %36 = sbr.rel (0) target = $region25
  $region24: #{_lambda_.9} parent=0 // pred_region
    _
  $region25: #{_lambda_.9} parent=0 // pred_fallthru
    _
  // Predicated region
  $region26: #{_lambda_.9} parent=0 // pred_check
    _
  $region27: #{_lambda_.9} parent=0 // pred_check_branch
    %38 = sbr.rel (0) target = $region29
  $region28: #{_lambda_.9} parent=0 // pred_region
    _
  $region29: #{_lambda_.9} parent=0 // pred_fallthru
    _
  // Predicated region
  $region30: #{_lambda_.9} parent=0 // pred_check
    _
  $region31: #{_lambda_.9} parent=0 // pred_check_branch
    %40 = sbr.rel (0) target = $region33
  $region32: #{_lambda_.9} parent=0 // pred_region
    _
  $region33: #{_lambda_.9} parent=0 // pred_fallthru
    _
  // Predicated region
  $region34: #{_lambda_.9} parent=0 // pred_check
    _
  $region35: #{_lambda_.9} parent=0 // pred_check_branch
    %42 = sbr.rel (0) target = $region37
  $region36: #{_lambda_.9} parent=0 // pred_region
    _
  $region37: #{_lambda_.9} parent=0 // pred_fallthru
    _
  // Predicated region
  $region38: #{_lambda_.9} parent=0 // pred_check
    _
  $region39: #{_lambda_.9} parent=0 // pred_check_branch
    %44 = sbr.rel (0) target = $region41
  $region40: #{_lambda_.9} parent=0 // pred_region
    _
  $region41: #{_lambda_.9} parent=0 // pred_fallthru
    _
  // Predicated region
  $region42: #{_lambda_.9} parent=0 // pred_check
    _
  $region43: #{_lambda_.9} parent=0 // pred_check_branch
    %46 = sbr.rel (0) target = $region45
  $region44: #{_lambda_.9} parent=0 // pred_region
    _
  $region45: #{_lambda_.9} parent=0 // pred_fallthru
    _
  // Predicated region
  $region46: #{_lambda_.9} parent=0 // pred_check
    _
  $region47: #{_lambda_.9} parent=0 // pred_check_branch
    %48 = sbr.rel (0) target = $region49
  $region48: #{_lambda_.9} parent=0 // pred_region
    _
  $region49: #{_lambda_.9} parent=0 // pred_fallthru
    _
  // Predicated region
  $region50: #{_lambda_.9} parent=0 // pred_check
    _
  $region51: #{_lambda_.9} parent=0 // pred_check_branch
    %50 = sbr.rel (0) target = $region53
  $region52: #{_lambda_.9} parent=0 // pred_region
    _
  $region53: #{_lambda_.9} parent=0 // pred_fallthru
    _
  // Predicated region
  $region54: #{_lambda_.9} parent=0 // pred_check
    _
  $region55: #{_lambda_.9} parent=0 // pred_check_branch
    %52 = sbr.rel (0) target = $region57
  $region56: #{_lambda_.9} parent=0 // pred_region
    _
  $region57: #{_lambda_.9} parent=0 // pred_fallthru
    _
  // Predicated region
  $region58: #{_lambda_.9} parent=0 // pred_check
    _
  $region59: #{_lambda_.9} parent=0 // pred_check_branch
    %54 = sbr.rel (0) target = $region61
  $region60: #{_lambda_.9} parent=0 // pred_region
    _
  $region61: #{_lambda_.9} parent=0 // pred_fallthru
    _
  // Predicated region
  $region62: #{_lambda_.9} parent=0 // pred_check
    _
  $region63: #{_lambda_.9} parent=0 // pred_check_branch
    %56 = sbr.rel (0) target = $region65
  $region64: #{_lambda_.9} parent=0 // pred_region
    _
  $region65: #{_lambda_.9} parent=0 // pred_fallthru
    _
  // Predicated region
  $region66: #{_lambda_.9} parent=0 // pred_check
    _
  $region67: #{_lambda_.9} parent=0 // pred_check_branch
    %58 = sbr.rel (0) target = $region69
  $region68: #{_lambda_.9} parent=0 // pred_region
    _
  $region69: #{_lambda_.9} parent=0 // pred_fallthru
    _
  // Predicated region
  $region70: #{_lambda_.9} parent=0 // pred_check
    _
  $region71: #{_lambda_.9} parent=0 // pred_check_branch
    %60 = sbr.rel (0) target = $region73
  $region72: #{_lambda_.9} parent=0 // pred_region
    _
  $region73: #{_lambda_.9} parent=0 // pred_fallthru
    _
  %v61 = vld [vmem:[%s0] sm:$0xf]
  %v62 = vld [vmem:[%s0 + $0x4] sm:$0xf]
  %v63 = vld [vmem:[%s1] sm:$0xff]
  %v64 = vld [vmem:[%s1 + $0x8] sm:$0xff]
  %v65 = vld [vmem:[%s1 + $0x10] sm:$0xff]
  %v66 = vld [vmem:[%s1 + $0x18] sm:$0xff]
  %v67 = vld [vmem:[%s2] sm:$0xff]
  %v68 = vld [vmem:[%s2 + $0x8] sm:$0xff]
  %v69 = vld [vmem:[%s2 + $0x10] sm:$0xff]
  %v70 = vld [vmem:[%s2 + $0x18] sm:$0xff]
  %v71 = vld [vmem:[%s3] sm:$0x1]
  %v73 = vlaneseq
  %v74 = vshrl.u32 %v73, 7
  %v75 = vsub.s32 0, %v74
  %v76 = vrot.slane %v71, %v75
  %v80 = vcombine.low %v61, %v62
  %vm81 = vcmask 261120
  %v82 = vsel %vm81, %v80, 0
  %84 = vmatprep.subr.mxu0 0.0
  %85 = vmatpush1.msra.mxu0 0.0
  %86 = vmatprep.subr.mxu0 0.0
  %87 = vmatpush1.msra.mxu0 0.0
  %88 = vmatprep.subr.mxu0 0.0
  %89 = vmatpush1.msra.mxu0 0.0
  %90 = vmatprep.subr.mxu0 0.0
  %91 = vmatpush1.msra.mxu0 0.0
  %92 = vmatprep.subr.mxu0 0.0
  %93 = vmatpush1.msra.mxu0 0.0
  %94 = vmatprep.subr.mxu0 0.0
  %95 = vmatpush1.msra.mxu0 0.0
  %96 = vmatprep.subr.mxu0 0.0
  %97 = vmatpush1.msra.mxu0 0.0
  %98 = vmatprep.subr.mxu0 0.0
  %99 = vmatpush1.msra.mxu0 0.0
  %100 = vmatprep.subr.mxu0 0.0
  %101 = vmatpush1.msra.mxu0 0.0
  %102 = vmatprep.subr.mxu0 0.0
  %103 = vmatpush1.msra.mxu0 0.0
  %104 = vmatprep.subr.mxu0 0.0
  %105 = vmatpush1.msra.mxu0 0.0
  %106 = vmatprep.subr.mxu0 0.0
  %107 = vmatpush1.msra.mxu0 0.0
  %108 = vmatprep.subr.mxu0 0.0
  %109 = vmatpush1.msra.mxu0 %v70
  %110 = vmatprep.subr.mxu0 0.0
  %111 = vmatpush1.msra.mxu0 %v69
  %112 = vmatprep.subr.mxu0 0.0
  %113 = vmatpush1.msra.mxu0 %v68
  %114 = vmatprep.subr.mxu0 0.0
  %115 = vmatpush1.msra.mxu0 %v67
  %116 = vmatprep.subr.mxu0 0.0
  %117 = vmatpush2.msra.mxu0 0.0
  %118 = vmatprep.subr.mxu0 0.0
  %119 = vmatpush2.msra.mxu0 0.0
  %120 = vmatprep.subr.mxu0 0.0
  %121 = vmatpush2.msra.mxu0 0.0
  %122 = vmatprep.subr.mxu0 0.0
  %123 = vmatpush2.msra.mxu0 0.0
  %124 = vmatprep.subr.mxu0 0.0
  %125 = vmatpush2.msra.mxu0 0.0
  %126 = vmatprep.subr.mxu0 0.0
  %127 = vmatpush2.msra.mxu0 0.0
  %128 = vmatprep.subr.mxu0 0.0
  %129 = vmatpush2.msra.mxu0 0.0
  %130 = vmatprep.subr.mxu0 0.0
  %131 = vmatpush2.msra.mxu0 0.0
  %132 = vmatprep.subr.mxu0 0.0
  %133 = vmatpush2.msra.mxu0 0.0
  %134 = vmatprep.subr.mxu0 0.0
  %135 = vmatpush2.msra.mxu0 0.0
  %136 = vmatprep.subr.mxu0 0.0
  %137 = vmatpush2.msra.mxu0 0.0
  %138 = vmatprep.subr.mxu0 0.0
  %139 = vmatpush2.msra.mxu0 0.0
  %140 = vmatprep.subr.mxu0 0.0
  %141 = vmatpush2.msra.mxu0 0.0
  %142 = vmatprep.subr.mxu0 0.0
  %143 = vmatpush2.msra.mxu0 0.0
  %144 = vmatprep.subr.mxu0 0.0
  %145 = vmatpush2.msra.mxu0 0.0
  %146 = vmatprep.subr.mxu0 0.0
  %147 = vmatpush2.msra.mxu0 0.0
  %148 = vmatprep.mubr.f32.mxu0 0.0
  %149 = vmatmul.mubr.f32.gmra.mxu0 %v82
  %v150 = vpop.f32.mrf.mxu0
  %v151 = vadd.f32 %v76, %v150
  %v152 = vpop.f32.mrf.mxu0
  %153 = vdwg.mxu0
  %v154 = vld [vmem:[%s4] sm:$0xff]
  %v155 = vld [vmem:[%s4 + $0x8] sm:$0xff]
  %v156 = vld [vmem:[%s4 + $0x10] sm:$0xff]
  %v157 = vld [vmem:[%s4 + $0x18] sm:$0xff]
  %v158 = vld [vmem:[%s5] sm:$0x1]
  %v160 = vlaneseq
  %v161 = vshrl.u32 %v160, 7
  %v162 = vsub.s32 0, %v161
  %v163 = vrot.slane %v158, %v162
  %v166 = vsel %vm81, %v63, 0
  %v169 = vsel %vm81, %v64, 0
  %v172 = vsel %vm81, %v65, 0
  %v175 = vsel %vm81, %v66, 0
  %177 = vmatprep.subr.mxu0 0.0
  %178 = vmatpush1.msra.mxu0 0.0
  %179 = vmatprep.subr.mxu0 0.0
  %180 = vmatpush1.msra.mxu0 0.0
  %181 = vmatprep.subr.mxu0 0.0
  %182 = vmatpush1.msra.mxu0 0.0
  %183 = vmatprep.subr.mxu0 0.0
  %184 = vmatpush1.msra.mxu0 0.0
  %185 = vmatprep.subr.mxu0 0.0
  %186 = vmatpush1.msra.mxu0 0.0
  %187 = vmatprep.subr.mxu0 0.0
  %188 = vmatpush1.msra.mxu0 0.0
  %189 = vmatprep.subr.mxu0 0.0
  %190 = vmatpush1.msra.mxu0 0.0
  %191 = vmatprep.subr.mxu0 0.0
  %192 = vmatpush1.msra.mxu0 0.0
  %193 = vmatprep.subr.mxu0 0.0
  %194 = vmatpush1.msra.mxu0 0.0
  %195 = vmatprep.subr.mxu0 0.0
  %196 = vmatpush1.msra.mxu0 0.0
  %197 = vmatprep.subr.mxu0 0.0
  %198 = vmatpush1.msra.mxu0 0.0
  %199 = vmatprep.subr.mxu0 0.0
  %200 = vmatpush1.msra.mxu0 0.0
  %201 = vmatprep.subr.mxu0 0.0
  %202 = vmatpush1.msra.mxu0 %v157
  %203 = vmatprep.subr.mxu0 0.0
  %204 = vmatpush1.msra.mxu0 %v156
  %205 = vmatprep.subr.mxu0 0.0
  %206 = vmatpush1.msra.mxu0 %v155
  %207 = vmatprep.subr.mxu0 0.0
  %208 = vmatpush1.msra.mxu0 %v154
  %209 = vmatprep.subr.mxu0 0.0
  %210 = vmatpush2.msra.mxu0 0.0
  %211 = vmatprep.subr.mxu0 0.0
  %212 = vmatpush2.msra.mxu0 0.0
  %213 = vmatprep.subr.mxu0 0.0
  %214 = vmatpush2.msra.mxu0 0.0
  %215 = vmatprep.subr.mxu0 0.0
  %216 = vmatpush2.msra.mxu0 0.0
  %217 = vmatprep.subr.mxu0 0.0
  %218 = vmatpush2.msra.mxu0 0.0
  %219 = vmatprep.subr.mxu0 0.0
  %220 = vmatpush2.msra.mxu0 0.0
  %221 = vmatprep.subr.mxu0 0.0
  %222 = vmatpush2.msra.mxu0 0.0
  %223 = vmatprep.subr.mxu0 0.0
  %224 = vmatpush2.msra.mxu0 0.0
  %225 = vmatprep.subr.mxu0 0.0
  %226 = vmatpush2.msra.mxu0 0.0
  %227 = vmatprep.subr.mxu0 0.0
  %228 = vmatpush2.msra.mxu0 0.0
  %229 = vmatprep.subr.mxu0 0.0
  %230 = vmatpush2.msra.mxu0 0.0
  %231 = vmatprep.subr.mxu0 0.0
  %232 = vmatpush2.msra.mxu0 0.0
  %233 = vmatprep.subr.mxu0 0.0
  %234 = vmatpush2.msra.mxu0 0.0
  %235 = vmatprep.subr.mxu0 0.0
  %236 = vmatpush2.msra.mxu0 0.0
  %237 = vmatprep.subr.mxu0 0.0
  %238 = vmatpush2.msra.mxu0 0.0
  %239 = vmatprep.subr.mxu0 0.0
  %240 = vmatpush2.msra.mxu0 0.0
  %241 = vmatprep.mubr.f32.mxu0 0.0
  %242 = vmatmul.mubr.f32.gmra.mxu0 %v166
  %v243 = vpop.f32.mrf.mxu0
  %v244 = vadd.f32 %v163, %v243
  %v245 = vpop.f32.mrf.mxu0
  %246 = vmatprep.mubr.f32.mxu0 0.0
  %247 = vmatmul.mubr.f32.gmra.mxu0 %v169
  %v248 = vpop.f32.mrf.mxu0
  %v249 = vadd.f32 %v163, %v248
  %v250 = vpop.f32.mrf.mxu0
  %251 = vmatprep.mubr.f32.mxu0 0.0
  %252 = vmatmul.mubr.f32.gmra.mxu0 %v172
  %v253 = vpop.f32.mrf.mxu0
  %v254 = vadd.f32 %v163, %v253
  %v255 = vpop.f32.mrf.mxu0
  %256 = vmatprep.mubr.f32.mxu0 0.0
  %257 = vmatmul.mubr.f32.gmra.mxu0 %v175
  %v258 = vpop.f32.mrf.mxu0
  %v259 = vadd.f32 %v163, %v258
  %v260 = vpop.f32.mrf.mxu0
  %261 = vdwg.mxu0
  %v262 = vld [vmem:[%s6] sm:$0xff]
  %v263 = vld [vmem:[%s6 + $0x8] sm:$0xff]
  %v264 = vld [vmem:[%s6 + $0x10] sm:$0xff]
  %v265 = vld [vmem:[%s6 + $0x18] sm:$0xff]
  %v266 = vmul.f32 %v151, 0.35355338
  %vm267 = vcmask 64512
  %v269 = vsel %vm267, %v266, 0
  %v272 = vsel %vm267, %v244, 0
  %v275 = vsel %vm267, %v249, 0
  %277 = vmatprep.subr.mxu0 0.0
  %278 = vmatpush1.xpose.msra.mxu0 0.0
  %279 = vmatprep.subr.mxu0 0.0
  %280 = vmatpush1.xpose.msra.mxu0 0.0
  %281 = vmatprep.subr.mxu0 0.0
  %282 = vmatpush1.xpose.msra.mxu0 0.0
  %283 = vmatprep.subr.mxu0 0.0
  %284 = vmatpush1.xpose.msra.mxu0 0.0
  %285 = vmatprep.subr.mxu0 0.0
  %286 = vmatpush1.xpose.msra.mxu0 0.0
  %287 = vmatprep.subr.mxu0 0.0
  %288 = vmatpush1.xpose.msra.mxu0 0.0
  %289 = vmatprep.subr.mxu0 0.0
  %290 = vmatpush1.xpose.msra.mxu0 0.0
  %291 = vmatprep.subr.mxu0 0.0
  %292 = vmatpush1.xpose.msra.mxu0 0.0
  %293 = vmatprep.subr.mxu0 0.0
  %294 = vmatpush1.xpose.msra.mxu0 0.0
  %295 = vmatprep.subr.mxu0 0.0
  %296 = vmatpush1.xpose.msra.mxu0 0.0
  %297 = vmatprep.subr.mxu0 0.0
  %298 = vmatpush1.xpose.msra.mxu0 0.0
  %299 = vmatprep.subr.mxu0 0.0
  %300 = vmatpush1.xpose.msra.mxu0 0.0
  %301 = vmatprep.subr.mxu0 0.0
  %302 = vmatpush1.xpose.msra.mxu0 0.0
  %303 = vmatprep.subr.mxu0 0.0
  %304 = vmatpush1.xpose.msra.mxu0 0.0
  %305 = vmatprep.subr.mxu0 0.0
  %306 = vmatpush1.xpose.msra.mxu0 %v275
  %307 = vmatprep.subr.mxu0 0.0
  %308 = vmatpush1.xpose.msra.mxu0 %v272
  %309 = vmatprep.subr.mxu0 0.0
  %310 = vmatpush2.xpose.msra.mxu0 0.0
  %311 = vmatprep.subr.mxu0 0.0
  %312 = vmatpush2.xpose.msra.mxu0 0.0
  %313 = vmatprep.subr.mxu0 0.0
  %314 = vmatpush2.xpose.msra.mxu0 0.0
  %315 = vmatprep.subr.mxu0 0.0
  %316 = vmatpush2.xpose.msra.mxu0 0.0
  %317 = vmatprep.subr.mxu0 0.0
  %318 = vmatpush2.xpose.msra.mxu0 0.0
  %319 = vmatprep.subr.mxu0 0.0
  %320 = vmatpush2.xpose.msra.mxu0 0.0
  %321 = vmatprep.subr.mxu0 0.0
  %322 = vmatpush2.xpose.msra.mxu0 0.0
  %323 = vmatprep.subr.mxu0 0.0
  %324 = vmatpush2.xpose.msra.mxu0 0.0
  %325 = vmatprep.subr.mxu0 0.0
  %326 = vmatpush2.xpose.msra.mxu0 0.0
  %327 = vmatprep.subr.mxu0 0.0
  %328 = vmatpush2.xpose.msra.mxu0 0.0
  %329 = vmatprep.subr.mxu0 0.0
  %330 = vmatpush2.xpose.msra.mxu0 0.0
  %331 = vmatprep.subr.mxu0 0.0
  %332 = vmatpush2.xpose.msra.mxu0 0.0
  %333 = vmatprep.subr.mxu0 0.0
  %334 = vmatpush2.xpose.msra.mxu0 0.0
  %335 = vmatprep.subr.mxu0 0.0
  %336 = vmatpush2.xpose.msra.mxu0 0.0
  %337 = vmatprep.subr.mxu0 0.0
  %338 = vmatpush2.xpose.msra.mxu0 0.0
  %339 = vmatprep.subr.mxu0 0.0
  %340 = vmatpush2.xpose.msra.mxu0 0.0
  %341 = vmatprep.mubr.f32.mxu0 0.0
  %342 = vmatmul.mubr.f32.gmra.mxu0 %v269
  %v343 = vpop.f32.mrf.mxu0
  %v344 = vadd.f32 0.0, %v343
  %v345 = vpop.f32.mrf.mxu0
  %346 = vdwg.mxu0
  %vm347 = vcmask 125952
  %v348 = vsel %vm347, %v344, -inf
  %349 = vmax.xlane.f32.xlu0 %v348
  %v350 = vpop.xlane.xlu0 %349
  %v351 = vsub.f32 %v344, %v350
  %v352 = vmul.f32 %v351, 1.442695
  %v353 = vpow.pop %v352
  %v354 = vsel %vm347, %v353, 0.0
  %355 = vadd.xlane.f32.xlu0 %v354
  %v356 = vpop.xlane.xlu0 %355
  %v357 = vrcp.pop %v356
  %v358 = vmul.f32 %v353, %v357
  %v359 = vadd.f32 %v358, 0.0
  %360 = vrot.lane.b32.xlu0 %v244, 96
  %v361 = vpop.permute.xlu0 %360
  %362 = vrot.lane.b32.xlu0 %v249, 96
  %v363 = vpop.permute.xlu0 %362
  %vm366 = vcmask 130048
  %v368 = vsel %vm366, %v358, 0
  %370 = vmatprep.subr.mxu0 0.0
  %371 = vmatpush1.msra.mxu0 0.0
  %372 = vmatprep.subr.mxu0 0.0
  %373 = vmatpush1.msra.mxu0 0.0
  %374 = vmatprep.subr.mxu0 0.0
  %375 = vmatpush1.msra.mxu0 0.0
  %376 = vmatprep.subr.mxu0 0.0
  %377 = vmatpush1.msra.mxu0 0.0
  %378 = vmatprep.subr.mxu0 0.0
  %379 = vmatpush1.msra.mxu0 0.0
  %380 = vmatprep.subr.mxu0 0.0
  %381 = vmatpush1.msra.mxu0 0.0
  %382 = vmatprep.subr.mxu0 0.0
  %383 = vmatpush1.msra.mxu0 0.0
  %384 = vmatprep.subr.mxu0 0.0
  %385 = vmatpush1.msra.mxu0 0.0
  %386 = vmatprep.subr.mxu0 0.0
  %387 = vmatpush1.msra.mxu0 0.0
  %388 = vmatprep.subr.mxu0 0.0
  %389 = vmatpush1.msra.mxu0 0.0
  %390 = vmatprep.subr.mxu0 0.0
  %391 = vmatpush1.msra.mxu0 0.0
  %392 = vmatprep.subr.mxu0 0.0
  %393 = vmatpush1.msra.mxu0 0.0
  %394 = vmatprep.subr.mxu0 0.0
  %395 = vmatpush1.msra.mxu0 0.0
  %396 = vmatprep.subr.mxu0 0.0
  %397 = vmatpush1.msra.mxu0 0.0
  %398 = vmatprep.subr.mxu0 0.0
  %399 = vmatpush1.msra.mxu0 %v363
  %400 = vmatprep.subr.mxu0 0.0
  %401 = vmatpush1.msra.mxu0 %v361
  %402 = vmatprep.subr.mxu0 0.0
  %403 = vmatpush2.msra.mxu0 0.0
  %404 = vmatprep.subr.mxu0 0.0
  %405 = vmatpush2.msra.mxu0 0.0
  %406 = vmatprep.subr.mxu0 0.0
  %407 = vmatpush2.msra.mxu0 0.0
  %408 = vmatprep.subr.mxu0 0.0
  %409 = vmatpush2.msra.mxu0 0.0
  %410 = vmatprep.subr.mxu0 0.0
  %411 = vmatpush2.msra.mxu0 0.0
  %412 = vmatprep.subr.mxu0 0.0
  %413 = vmatpush2.msra.mxu0 0.0
  %414 = vmatprep.subr.mxu0 0.0
  %415 = vmatpush2.msra.mxu0 0.0
  %416 = vmatprep.subr.mxu0 0.0
  %417 = vmatpush2.msra.mxu0 0.0
  %418 = vmatprep.subr.mxu0 0.0
  %419 = vmatpush2.msra.mxu0 0.0
  %420 = vmatprep.subr.mxu0 0.0
  %421 = vmatpush2.msra.mxu0 0.0
  %422 = vmatprep.subr.mxu0 0.0
  %423 = vmatpush2.msra.mxu0 0.0
  %424 = vmatprep.subr.mxu0 0.0
  %425 = vmatpush2.msra.mxu0 0.0
  %426 = vmatprep.subr.mxu0 0.0
  %427 = vmatpush2.msra.mxu0 0.0
  %428 = vmatprep.subr.mxu0 0.0
  %429 = vmatpush2.msra.mxu0 0.0
  %430 = vmatprep.subr.mxu0 0.0
  %431 = vmatpush2.msra.mxu0 0.0
  %432 = vmatprep.subr.mxu0 0.0
  %433 = vmatpush2.msra.mxu0 0.0
  %434 = vmatprep.mubr.f32.mxu0 0.0
  %435 = vmatmul.mubr.f32.gmra.mxu0 %v368
  %v436 = vpop.f32.mrf.mxu0
  %v437 = vadd.f32 0.0, %v436
  %v438 = vpop.f32.mrf.mxu0
  %439 = vdwg.mxu0
  %440 = vrot.lane.b32.xlu0 %v266, 120
  %v441 = vpop.permute.xlu0 %440
  %442 = vrot.lane.b32.xlu0 %v244, 120
  %v443 = vpop.permute.xlu0 %442
  %444 = vrot.lane.b32.xlu0 %v249, 120
  %v445 = vpop.permute.xlu0 %444
  %v446 = vsel %vm267, %v441, 0
  %v448 = vsel %vm267, %v443, 0
  %v450 = vsel %vm267, %v445, 0
  %452 = vmatprep.subr.mxu0 0.0
  %453 = vmatpush1.xpose.msra.mxu0 0.0
  %454 = vmatprep.subr.mxu0 0.0
  %455 = vmatpush1.xpose.msra.mxu0 0.0
  %456 = vmatprep.subr.mxu0 0.0
  %457 = vmatpush1.xpose.msra.mxu0 0.0
  %458 = vmatprep.subr.mxu0 0.0
  %459 = vmatpush1.xpose.msra.mxu0 0.0
  %460 = vmatprep.subr.mxu0 0.0
  %461 = vmatpush1.xpose.msra.mxu0 0.0
  %462 = vmatprep.subr.mxu0 0.0
  %463 = vmatpush1.xpose.msra.mxu0 0.0
  %464 = vmatprep.subr.mxu0 0.0
  %465 = vmatpush1.xpose.msra.mxu0 0.0
  %466 = vmatprep.subr.mxu0 0.0
  %467 = vmatpush1.xpose.msra.mxu0 0.0
  %468 = vmatprep.subr.mxu0 0.0
  %469 = vmatpush1.xpose.msra.mxu0 0.0
  %470 = vmatprep.subr.mxu0 0.0
  %471 = vmatpush1.xpose.msra.mxu0 0.0
  %472 = vmatprep.subr.mxu0 0.0
  %473 = vmatpush1.xpose.msra.mxu0 0.0
  %474 = vmatprep.subr.mxu0 0.0
  %475 = vmatpush1.xpose.msra.mxu0 0.0
  %476 = vmatprep.subr.mxu0 0.0
  %477 = vmatpush1.xpose.msra.mxu0 0.0
  %478 = vmatprep.subr.mxu0 0.0
  %479 = vmatpush1.xpose.msra.mxu0 0.0
  %480 = vmatprep.subr.mxu0 0.0
  %481 = vmatpush1.xpose.msra.mxu0 %v450
  %482 = vmatprep.subr.mxu0 0.0
  %483 = vmatpush1.xpose.msra.mxu0 %v448
  %484 = vmatprep.subr.mxu0 0.0
  %485 = vmatpush2.xpose.msra.mxu0 0.0
  %486 = vmatprep.subr.mxu0 0.0
  %487 = vmatpush2.xpose.msra.mxu0 0.0
  %488 = vmatprep.subr.mxu0 0.0
  %489 = vmatpush2.xpose.msra.mxu0 0.0
  %490 = vmatprep.subr.mxu0 0.0
  %491 = vmatpush2.xpose.msra.mxu0 0.0
  %492 = vmatprep.subr.mxu0 0.0
  %493 = vmatpush2.xpose.msra.mxu0 0.0
  %494 = vmatprep.subr.mxu0 0.0
  %495 = vmatpush2.xpose.msra.mxu0 0.0
  %496 = vmatprep.subr.mxu0 0.0
  %497 = vmatpush2.xpose.msra.mxu0 0.0
  %498 = vmatprep.subr.mxu0 0.0
  %499 = vmatpush2.xpose.msra.mxu0 0.0
  %500 = vmatprep.subr.mxu0 0.0
  %501 = vmatpush2.xpose.msra.mxu0 0.0
  %502 = vmatprep.subr.mxu0 0.0
  %503 = vmatpush2.xpose.msra.mxu0 0.0
  %504 = vmatprep.subr.mxu0 0.0
  %505 = vmatpush2.xpose.msra.mxu0 0.0
  %506 = vmatprep.subr.mxu0 0.0
  %507 = vmatpush2.xpose.msra.mxu0 0.0
  %508 = vmatprep.subr.mxu0 0.0
  %509 = vmatpush2.xpose.msra.mxu0 0.0
  %510 = vmatprep.subr.mxu0 0.0
  %511 = vmatpush2.xpose.msra.mxu0 0.0
  %512 = vmatprep.subr.mxu0 0.0
  %513 = vmatpush2.xpose.msra.mxu0 0.0
  %514 = vmatprep.subr.mxu0 0.0
  %515 = vmatpush2.xpose.msra.mxu0 0.0
  %516 = vmatprep.mubr.f32.mxu0 0.0
  %517 = vmatmul.mubr.f32.gmra.mxu0 %v446
  %v518 = vpop.f32.mrf.mxu0
  %v519 = vadd.f32 0.0, %v518
  %v520 = vpop.f32.mrf.mxu0
  %521 = vdwg.mxu0
  %v522 = vsel %vm347, %v519, -inf
  %523 = vmax.xlane.f32.xlu0 %v522
  %v524 = vpop.xlane.xlu0 %523
  %v525 = vsub.f32 %v519, %v524
  %v526 = vmul.f32 %v525, 1.442695
  %v527 = vpow.pop %v526
  %v528 = vsel %vm347, %v527, 0.0
  %529 = vadd.xlane.f32.xlu0 %v528
  %v530 = vpop.xlane.xlu0 %529
  %v531 = vrcp.pop %v530
  %v532 = vmul.f32 %v527, %v531
  %v533 = vadd.f32 %v359, %v532
  %534 = vrot.lane.b32.xlu0 %v244, 88
  %v535 = vpop.permute.xlu0 %534
  %536 = vrot.lane.b32.xlu0 %v249, 88
  %v537 = vpop.permute.xlu0 %536
  %v541 = vsel %vm366, %v532, 0
  %543 = vmatprep.subr.mxu0 0.0
  %544 = vmatpush1.msra.mxu0 0.0
  %545 = vmatprep.subr.mxu0 0.0
  %546 = vmatpush1.msra.mxu0 0.0
  %547 = vmatprep.subr.mxu0 0.0
  %548 = vmatpush1.msra.mxu0 0.0
  %549 = vmatprep.subr.mxu0 0.0
  %550 = vmatpush1.msra.mxu0 0.0
  %551 = vmatprep.subr.mxu0 0.0
  %552 = vmatpush1.msra.mxu0 0.0
  %553 = vmatprep.subr.mxu0 0.0
  %554 = vmatpush1.msra.mxu0 0.0
  %555 = vmatprep.subr.mxu0 0.0
  %556 = vmatpush1.msra.mxu0 0.0
  %557 = vmatprep.subr.mxu0 0.0
  %558 = vmatpush1.msra.mxu0 0.0
  %559 = vmatprep.subr.mxu0 0.0
  %560 = vmatpush1.msra.mxu0 0.0
  %561 = vmatprep.subr.mxu0 0.0
  %562 = vmatpush1.msra.mxu0 0.0
  %563 = vmatprep.subr.mxu0 0.0
  %564 = vmatpush1.msra.mxu0 0.0
  %565 = vmatprep.subr.mxu0 0.0
  %566 = vmatpush1.msra.mxu0 0.0
  %567 = vmatprep.subr.mxu0 0.0
  %568 = vmatpush1.msra.mxu0 0.0
  %569 = vmatprep.subr.mxu0 0.0
  %570 = vmatpush1.msra.mxu0 0.0
  %571 = vmatprep.subr.mxu0 0.0
  %572 = vmatpush1.msra.mxu0 %v537
  %573 = vmatprep.subr.mxu0 0.0
  %574 = vmatpush1.msra.mxu0 %v535
  %575 = vmatprep.subr.mxu0 0.0
  %576 = vmatpush2.msra.mxu0 0.0
  %577 = vmatprep.subr.mxu0 0.0
  %578 = vmatpush2.msra.mxu0 0.0
  %579 = vmatprep.subr.mxu0 0.0
  %580 = vmatpush2.msra.mxu0 0.0
  %581 = vmatprep.subr.mxu0 0.0
  %582 = vmatpush2.msra.mxu0 0.0
  %583 = vmatprep.subr.mxu0 0.0
  %584 = vmatpush2.msra.mxu0 0.0
  %585 = vmatprep.subr.mxu0 0.0
  %586 = vmatpush2.msra.mxu0 0.0
  %587 = vmatprep.subr.mxu0 0.0
  %588 = vmatpush2.msra.mxu0 0.0
  %589 = vmatprep.subr.mxu0 0.0
  %590 = vmatpush2.msra.mxu0 0.0
  %591 = vmatprep.subr.mxu0 0.0
  %592 = vmatpush2.msra.mxu0 0.0
  %593 = vmatprep.subr.mxu0 0.0
  %594 = vmatpush2.msra.mxu0 0.0
  %595 = vmatprep.subr.mxu0 0.0
  %596 = vmatpush2.msra.mxu0 0.0
  %597 = vmatprep.subr.mxu0 0.0
  %598 = vmatpush2.msra.mxu0 0.0
  %599 = vmatprep.subr.mxu0 0.0
  %600 = vmatpush2.msra.mxu0 0.0
  %601 = vmatprep.subr.mxu0 0.0
  %602 = vmatpush2.msra.mxu0 0.0
  %603 = vmatprep.subr.mxu0 0.0
  %604 = vmatpush2.msra.mxu0 0.0
  %605 = vmatprep.subr.mxu0 0.0
  %606 = vmatpush2.msra.mxu0 0.0
  %607 = vmatprep.mubr.f32.mxu0 0.0
  %608 = vmatmul.mubr.f32.gmra.mxu0 %v541
  %v609 = vpop.f32.mrf.mxu0
  %v610 = vadd.f32 0.0, %v609
  %v611 = vpop.f32.mrf.mxu0
  %612 = vdwg.mxu0
  %v614 = vsel %vm267, %v610, 0
  %616 = vmatprep.subr.mxu0 0.0
  %617 = vmatpush1.msra.mxu0 0.0
  %618 = vmatprep.subr.mxu0 0.0
  %619 = vmatpush1.msra.mxu0 0.0
  %620 = vmatprep.subr.mxu0 0.0
  %621 = vmatpush1.msra.mxu0 0.0
  %622 = vmatprep.subr.mxu0 0.0
  %623 = vmatpush1.msra.mxu0 0.0
  %624 = vmatprep.subr.mxu0 0.0
  %625 = vmatpush1.msra.mxu0 0.0
  %626 = vmatprep.subr.mxu0 0.0
  %627 = vmatpush1.msra.mxu0 0.0
  %628 = vmatprep.subr.mxu0 0.0
  %629 = vmatpush1.msra.mxu0 0.0
  %630 = vmatprep.subr.mxu0 0.0
  %631 = vmatpush1.msra.mxu0 0.0
  %632 = vmatprep.subr.mxu0 0.0
  %633 = vmatpush1.msra.mxu0 0.0
  %634 = vmatprep.subr.mxu0 0.0
  %635 = vmatpush1.msra.mxu0 0.0
  %636 = vmatprep.subr.mxu0 0.0
  %637 = vmatpush1.msra.mxu0 0.0
  %638 = vmatprep.subr.mxu0 0.0
  %639 = vmatpush1.msra.mxu0 0.0
  %640 = vmatprep.subr.mxu0 0.0
  %641 = vmatpush1.msra.mxu0 0.0
  %642 = vmatprep.subr.mxu0 0.0
  %643 = vmatpush1.msra.mxu0 0.0
  %644 = vmatprep.subr.mxu0 0.0
  %645 = vmatpush1.msra.mxu0 0.0
  %646 = vmatprep.subr.mxu0 0.0
  %647 = vmatpush1.msra.mxu0 %v263
  %648 = vmatprep.subr.mxu0 0.0
  %649 = vmatpush2.msra.mxu0 0.0
  %650 = vmatprep.subr.mxu0 0.0
  %651 = vmatpush2.msra.mxu0 0.0
  %652 = vmatprep.subr.mxu0 0.0
  %653 = vmatpush2.msra.mxu0 0.0
  %654 = vmatprep.subr.mxu0 0.0
  %655 = vmatpush2.msra.mxu0 0.0
  %656 = vmatprep.subr.mxu0 0.0
  %657 = vmatpush2.msra.mxu0 0.0
  %658 = vmatprep.subr.mxu0 0.0
  %659 = vmatpush2.msra.mxu0 0.0
  %660 = vmatprep.subr.mxu0 0.0
  %661 = vmatpush2.msra.mxu0 0.0
  %662 = vmatprep.subr.mxu0 0.0
  %663 = vmatpush2.msra.mxu0 0.0
  %664 = vmatprep.subr.mxu0 0.0
  %665 = vmatpush2.msra.mxu0 0.0
  %666 = vmatprep.subr.mxu0 0.0
  %667 = vmatpush2.msra.mxu0 0.0
  %668 = vmatprep.subr.mxu0 0.0
  %669 = vmatpush2.msra.mxu0 0.0
  %670 = vmatprep.subr.mxu0 0.0
  %671 = vmatpush2.msra.mxu0 0.0
  %672 = vmatprep.subr.mxu0 0.0
  %673 = vmatpush2.msra.mxu0 0.0
  %674 = vmatprep.subr.mxu0 0.0
  %675 = vmatpush2.msra.mxu0 0.0
  %676 = vmatprep.subr.mxu0 0.0
  %677 = vmatpush2.msra.mxu0 0.0
  %678 = vmatprep.subr.mxu0 0.0
  %679 = vmatpush2.msra.mxu0 0.0
  %680 = vmatprep.mubr.f32.mxu0 0.0
  %681 = vmatmul.mubr.f32.gmra.mxu0 %v614
  %v682 = vpop.f32.mrf.mxu0
  %v683 = vadd.f32 0.0, %v682
  %v684 = vpop.f32.mrf.mxu0
  %685 = vdwg.mxu0
  %v687 = vsel %vm267, %v437, 0
  %689 = vmatprep.subr.mxu0 0.0
  %690 = vmatpush1.msra.mxu0 0.0
  %691 = vmatprep.subr.mxu0 0.0
  %692 = vmatpush1.msra.mxu0 0.0
  %693 = vmatprep.subr.mxu0 0.0
  %694 = vmatpush1.msra.mxu0 0.0
  %695 = vmatprep.subr.mxu0 0.0
  %696 = vmatpush1.msra.mxu0 0.0
  %697 = vmatprep.subr.mxu0 0.0
  %698 = vmatpush1.msra.mxu0 0.0
  %699 = vmatprep.subr.mxu0 0.0
  %700 = vmatpush1.msra.mxu0 0.0
  %701 = vmatprep.subr.mxu0 0.0
  %702 = vmatpush1.msra.mxu0 0.0
  %703 = vmatprep.subr.mxu0 0.0
  %704 = vmatpush1.msra.mxu0 0.0
  %705 = vmatprep.subr.mxu0 0.0
  %706 = vmatpush1.msra.mxu0 0.0
  %707 = vmatprep.subr.mxu0 0.0
  %708 = vmatpush1.msra.mxu0 0.0
  %709 = vmatprep.subr.mxu0 0.0
  %710 = vmatpush1.msra.mxu0 0.0
  %711 = vmatprep.subr.mxu0 0.0
  %712 = vmatpush1.msra.mxu0 0.0
  %713 = vmatprep.subr.mxu0 0.0
  %714 = vmatpush1.msra.mxu0 0.0
  %715 = vmatprep.subr.mxu0 0.0
  %716 = vmatpush1.msra.mxu0 0.0
  %717 = vmatprep.subr.mxu0 0.0
  %718 = vmatpush1.msra.mxu0 0.0
  %719 = vmatprep.subr.mxu0 0.0
  %720 = vmatpush1.msra.mxu0 %v262
  %721 = vmatprep.subr.mxu0 0.0
  %722 = vmatpush2.msra.mxu0 0.0
  %723 = vmatprep.subr.mxu0 0.0
  %724 = vmatpush2.msra.mxu0 0.0
  %725 = vmatprep.subr.mxu0 0.0
  %726 = vmatpush2.msra.mxu0 0.0
  %727 = vmatprep.subr.mxu0 0.0
  %728 = vmatpush2.msra.mxu0 0.0
  %729 = vmatprep.subr.mxu0 0.0
  %730 = vmatpush2.msra.mxu0 0.0
  %731 = vmatprep.subr.mxu0 0.0
  %732 = vmatpush2.msra.mxu0 0.0
  %733 = vmatprep.subr.mxu0 0.0
  %734 = vmatpush2.msra.mxu0 0.0
  %735 = vmatprep.subr.mxu0 0.0
  %736 = vmatpush2.msra.mxu0 0.0
  %737 = vmatprep.subr.mxu0 0.0
  %738 = vmatpush2.msra.mxu0 0.0
  %739 = vmatprep.subr.mxu0 0.0
  %740 = vmatpush2.msra.mxu0 0.0
  %741 = vmatprep.subr.mxu0 0.0
  %742 = vmatpush2.msra.mxu0 0.0
  %743 = vmatprep.subr.mxu0 0.0
  %744 = vmatpush2.msra.mxu0 0.0
  %745 = vmatprep.subr.mxu0 0.0
  %746 = vmatpush2.msra.mxu0 0.0
  %747 = vmatprep.subr.mxu0 0.0
  %748 = vmatpush2.msra.mxu0 0.0
  %749 = vmatprep.subr.mxu0 0.0
  %750 = vmatpush2.msra.mxu0 0.0
  %751 = vmatprep.subr.mxu0 0.0
  %752 = vmatpush2.msra.mxu0 0.0
  %753 = vmatprep.mubr.f32.mxu0 0.0
  %754 = vmatmul.mubr.f32.gmra.mxu0 %v687
  %v755 = vpop.f32.mrf.mxu0
  %v756 = vadd.f32 %v683, %v755
  %v757 = vpop.f32.mrf.mxu0
  %758 = vdwg.mxu0
  %759 = vrot.lane.b32.xlu0 %v266, 112
  %v760 = vpop.permute.xlu0 %759
  %761 = vrot.lane.b32.xlu0 %v244, 112
  %v762 = vpop.permute.xlu0 %761
  %763 = vrot.lane.b32.xlu0 %v249, 112
  %v764 = vpop.permute.xlu0 %763
  %v765 = vsel %vm267, %v760, 0
  %v767 = vsel %vm267, %v762, 0
  %v769 = vsel %vm267, %v764, 0
  %771 = vmatprep.subr.mxu0 0.0
  %772 = vmatpush1.xpose.msra.mxu0 0.0
  %773 = vmatprep.subr.mxu0 0.0
  %774 = vmatpush1.xpose.msra.mxu0 0.0
  %775 = vmatprep.subr.mxu0 0.0
  %776 = vmatpush1.xpose.msra.mxu0 0.0
  %777 = vmatprep.subr.mxu0 0.0
  %778 = vmatpush1.xpose.msra.mxu0 0.0
  %779 = vmatprep.subr.mxu0 0.0
  %780 = vmatpush1.xpose.msra.mxu0 0.0
  %781 = vmatprep.subr.mxu0 0.0
  %782 = vmatpush1.xpose.msra.mxu0 0.0
  %783 = vmatprep.subr.mxu0 0.0
  %784 = vmatpush1.xpose.msra.mxu0 0.0
  %785 = vmatprep.subr.mxu0 0.0
  %786 = vmatpush1.xpose.msra.mxu0 0.0
  %787 = vmatprep.subr.mxu0 0.0
  %788 = vmatpush1.xpose.msra.mxu0 0.0
  %789 = vmatprep.subr.mxu0 0.0
  %790 = vmatpush1.xpose.msra.mxu0 0.0
  %791 = vmatprep.subr.mxu0 0.0
  %792 = vmatpush1.xpose.msra.mxu0 0.0
  %793 = vmatprep.subr.mxu0 0.0
  %794 = vmatpush1.xpose.msra.mxu0 0.0
  %795 = vmatprep.subr.mxu0 0.0
  %796 = vmatpush1.xpose.msra.mxu0 0.0
  %797 = vmatprep.subr.mxu0 0.0
  %798 = vmatpush1.xpose.msra.mxu0 0.0
  %799 = vmatprep.subr.mxu0 0.0
  %800 = vmatpush1.xpose.msra.mxu0 %v769
  %801 = vmatprep.subr.mxu0 0.0
  %802 = vmatpush1.xpose.msra.mxu0 %v767
  %803 = vmatprep.subr.mxu0 0.0
  %804 = vmatpush2.xpose.msra.mxu0 0.0
  %805 = vmatprep.subr.mxu0 0.0
  %806 = vmatpush2.xpose.msra.mxu0 0.0
  %807 = vmatprep.subr.mxu0 0.0
  %808 = vmatpush2.xpose.msra.mxu0 0.0
  %809 = vmatprep.subr.mxu0 0.0
  %810 = vmatpush2.xpose.msra.mxu0 0.0
  %811 = vmatprep.subr.mxu0 0.0
  %812 = vmatpush2.xpose.msra.mxu0 0.0
  %813 = vmatprep.subr.mxu0 0.0
  %814 = vmatpush2.xpose.msra.mxu0 0.0
  %815 = vmatprep.subr.mxu0 0.0
  %816 = vmatpush2.xpose.msra.mxu0 0.0
  %817 = vmatprep.subr.mxu0 0.0
  %818 = vmatpush2.xpose.msra.mxu0 0.0
  %819 = vmatprep.subr.mxu0 0.0
  %820 = vmatpush2.xpose.msra.mxu0 0.0
  %821 = vmatprep.subr.mxu0 0.0
  %822 = vmatpush2.xpose.msra.mxu0 0.0
  %823 = vmatprep.subr.mxu0 0.0
  %824 = vmatpush2.xpose.msra.mxu0 0.0
  %825 = vmatprep.subr.mxu0 0.0
  %826 = vmatpush2.xpose.msra.mxu0 0.0
  %827 = vmatprep.subr.mxu0 0.0
  %828 = vmatpush2.xpose.msra.mxu0 0.0
  %829 = vmatprep.subr.mxu0 0.0
  %830 = vmatpush2.xpose.msra.mxu0 0.0
  %831 = vmatprep.subr.mxu0 0.0
  %832 = vmatpush2.xpose.msra.mxu0 0.0
  %833 = vmatprep.subr.mxu0 0.0
  %834 = vmatpush2.xpose.msra.mxu0 0.0
  %835 = vmatprep.mubr.f32.mxu0 0.0
  %836 = vmatmul.mubr.f32.gmra.mxu0 %v765
  %v837 = vpop.f32.mrf.mxu0
  %v838 = vadd.f32 0.0, %v837
  %v839 = vpop.f32.mrf.mxu0
  %840 = vdwg.mxu0
  %v841 = vsel %vm347, %v838, -inf
  %842 = vmax.xlane.f32.xlu0 %v841
  %v843 = vpop.xlane.xlu0 %842
  %v844 = vsub.f32 %v838, %v843
  %v845 = vmul.f32 %v844, 1.442695
  %v846 = vpow.pop %v845
  %v847 = vsel %vm347, %v846, 0.0
  %848 = vadd.xlane.f32.xlu0 %v847
  %v849 = vpop.xlane.xlu0 %848
  %v850 = vrcp.pop %v849
  %v851 = vmul.f32 %v846, %v850
  %v852 = vadd.f32 %v533, %v851
  %853 = vrot.lane.b32.xlu0 %v244, 80
  %v854 = vpop.permute.xlu0 %853
  %855 = vrot.lane.b32.xlu0 %v249, 80
  %v856 = vpop.permute.xlu0 %855
  %v860 = vsel %vm366, %v851, 0
  %862 = vmatprep.subr.mxu0 0.0
  %863 = vmatpush1.msra.mxu0 0.0
  %864 = vmatprep.subr.mxu0 0.0
  %865 = vmatpush1.msra.mxu0 0.0
  %866 = vmatprep.subr.mxu0 0.0
  %867 = vmatpush1.msra.mxu0 0.0
  %868 = vmatprep.subr.mxu0 0.0
  %869 = vmatpush1.msra.mxu0 0.0
  %870 = vmatprep.subr.mxu0 0.0
  %871 = vmatpush1.msra.mxu0 0.0
  %872 = vmatprep.subr.mxu0 0.0
  %873 = vmatpush1.msra.mxu0 0.0
  %874 = vmatprep.subr.mxu0 0.0
  %875 = vmatpush1.msra.mxu0 0.0
  %876 = vmatprep.subr.mxu0 0.0
  %877 = vmatpush1.msra.mxu0 0.0
  %878 = vmatprep.subr.mxu0 0.0
  %879 = vmatpush1.msra.mxu0 0.0
  %880 = vmatprep.subr.mxu0 0.0
  %881 = vmatpush1.msra.mxu0 0.0
  %882 = vmatprep.subr.mxu0 0.0
  %883 = vmatpush1.msra.mxu0 0.0
  %884 = vmatprep.subr.mxu0 0.0
  %885 = vmatpush1.msra.mxu0 0.0
  %886 = vmatprep.subr.mxu0 0.0
  %887 = vmatpush1.msra.mxu0 0.0
  %888 = vmatprep.subr.mxu0 0.0
  %889 = vmatpush1.msra.mxu0 0.0
  %890 = vmatprep.subr.mxu0 0.0
  %891 = vmatpush1.msra.mxu0 %v856
  %892 = vmatprep.subr.mxu0 0.0
  %893 = vmatpush1.msra.mxu0 %v854
  %894 = vmatprep.subr.mxu0 0.0
  %895 = vmatpush2.msra.mxu0 0.0
  %896 = vmatprep.subr.mxu0 0.0
  %897 = vmatpush2.msra.mxu0 0.0
  %898 = vmatprep.subr.mxu0 0.0
  %899 = vmatpush2.msra.mxu0 0.0
  %900 = vmatprep.subr.mxu0 0.0
  %901 = vmatpush2.msra.mxu0 0.0
  %902 = vmatprep.subr.mxu0 0.0
  %903 = vmatpush2.msra.mxu0 0.0
  %904 = vmatprep.subr.mxu0 0.0
  %905 = vmatpush2.msra.mxu0 0.0
  %906 = vmatprep.subr.mxu0 0.0
  %907 = vmatpush2.msra.mxu0 0.0
  %908 = vmatprep.subr.mxu0 0.0
  %909 = vmatpush2.msra.mxu0 0.0
  %910 = vmatprep.subr.mxu0 0.0
  %911 = vmatpush2.msra.mxu0 0.0
  %912 = vmatprep.subr.mxu0 0.0
  %913 = vmatpush2.msra.mxu0 0.0
  %914 = vmatprep.subr.mxu0 0.0
  %915 = vmatpush2.msra.mxu0 0.0
  %916 = vmatprep.subr.mxu0 0.0
  %917 = vmatpush2.msra.mxu0 0.0
  %918 = vmatprep.subr.mxu0 0.0
  %919 = vmatpush2.msra.mxu0 0.0
  %920 = vmatprep.subr.mxu0 0.0
  %921 = vmatpush2.msra.mxu0 0.0
  %922 = vmatprep.subr.mxu0 0.0
  %923 = vmatpush2.msra.mxu0 0.0
  %924 = vmatprep.subr.mxu0 0.0
  %925 = vmatpush2.msra.mxu0 0.0
  %926 = vmatprep.mubr.f32.mxu0 0.0
  %927 = vmatmul.mubr.f32.gmra.mxu0 %v860
  %v928 = vpop.f32.mrf.mxu0
  %v929 = vadd.f32 0.0, %v928
  %v930 = vpop.f32.mrf.mxu0
  %931 = vdwg.mxu0
  %v933 = vsel %vm267, %v929, 0
  %935 = vmatprep.subr.mxu0 0.0
  %936 = vmatpush1.msra.mxu0 0.0
  %937 = vmatprep.subr.mxu0 0.0
  %938 = vmatpush1.msra.mxu0 0.0
  %939 = vmatprep.subr.mxu0 0.0
  %940 = vmatpush1.msra.mxu0 0.0
  %941 = vmatprep.subr.mxu0 0.0
  %942 = vmatpush1.msra.mxu0 0.0
  %943 = vmatprep.subr.mxu0 0.0
  %944 = vmatpush1.msra.mxu0 0.0
  %945 = vmatprep.subr.mxu0 0.0
  %946 = vmatpush1.msra.mxu0 0.0
  %947 = vmatprep.subr.mxu0 0.0
  %948 = vmatpush1.msra.mxu0 0.0
  %949 = vmatprep.subr.mxu0 0.0
  %950 = vmatpush1.msra.mxu0 0.0
  %951 = vmatprep.subr.mxu0 0.0
  %952 = vmatpush1.msra.mxu0 0.0
  %953 = vmatprep.subr.mxu0 0.0
  %954 = vmatpush1.msra.mxu0 0.0
  %955 = vmatprep.subr.mxu0 0.0
  %956 = vmatpush1.msra.mxu0 0.0
  %957 = vmatprep.subr.mxu0 0.0
  %958 = vmatpush1.msra.mxu0 0.0
  %959 = vmatprep.subr.mxu0 0.0
  %960 = vmatpush1.msra.mxu0 0.0
  %961 = vmatprep.subr.mxu0 0.0
  %962 = vmatpush1.msra.mxu0 0.0
  %963 = vmatprep.subr.mxu0 0.0
  %964 = vmatpush1.msra.mxu0 0.0
  %965 = vmatprep.subr.mxu0 0.0
  %966 = vmatpush1.msra.mxu0 %v264
  %967 = vmatprep.subr.mxu0 0.0
  %968 = vmatpush2.msra.mxu0 0.0
  %969 = vmatprep.subr.mxu0 0.0
  %970 = vmatpush2.msra.mxu0 0.0
  %971 = vmatprep.subr.mxu0 0.0
  %972 = vmatpush2.msra.mxu0 0.0
  %973 = vmatprep.subr.mxu0 0.0
  %974 = vmatpush2.msra.mxu0 0.0
  %975 = vmatprep.subr.mxu0 0.0
  %976 = vmatpush2.msra.mxu0 0.0
  %977 = vmatprep.subr.mxu0 0.0
  %978 = vmatpush2.msra.mxu0 0.0
  %979 = vmatprep.subr.mxu0 0.0
  %980 = vmatpush2.msra.mxu0 0.0
  %981 = vmatprep.subr.mxu0 0.0
  %982 = vmatpush2.msra.mxu0 0.0
  %983 = vmatprep.subr.mxu0 0.0
  %984 = vmatpush2.msra.mxu0 0.0
  %985 = vmatprep.subr.mxu0 0.0
  %986 = vmatpush2.msra.mxu0 0.0
  %987 = vmatprep.subr.mxu0 0.0
  %988 = vmatpush2.msra.mxu0 0.0
  %989 = vmatprep.subr.mxu0 0.0
  %990 = vmatpush2.msra.mxu0 0.0
  %991 = vmatprep.subr.mxu0 0.0
  %992 = vmatpush2.msra.mxu0 0.0
  %993 = vmatprep.subr.mxu0 0.0
  %994 = vmatpush2.msra.mxu0 0.0
  %995 = vmatprep.subr.mxu0 0.0
  %996 = vmatpush2.msra.mxu0 0.0
  %997 = vmatprep.subr.mxu0 0.0
  %998 = vmatpush2.msra.mxu0 0.0
  %999 = vmatprep.mubr.f32.mxu0 0.0
  %1000 = vmatmul.mubr.f32.gmra.mxu0 %v933
  %v1001 = vpop.f32.mrf.mxu0
  %v1002 = vadd.f32 0.0, %v1001
  %v1003 = vpop.f32.mrf.mxu0
  %1004 = vdwg.mxu0
  %v1005 = vadd.f32 %v756, %v1002
  %1006 = vrot.lane.b32.xlu0 %v266, 104
  %v1007 = vpop.permute.xlu0 %1006
  %1008 = vrot.lane.b32.xlu0 %v244, 104
  %v1009 = vpop.permute.xlu0 %1008
  %1010 = vrot.lane.b32.xlu0 %v249, 104
  %v1011 = vpop.permute.xlu0 %1010
  %v1012 = vsel %vm267, %v1007, 0
  %v1014 = vsel %vm267, %v1009, 0
  %v1016 = vsel %vm267, %v1011, 0
  %1018 = vmatprep.subr.mxu0 0.0
  %1019 = vmatpush1.xpose.msra.mxu0 0.0
  %1020 = vmatprep.subr.mxu0 0.0
  %1021 = vmatpush1.xpose.msra.mxu0 0.0
  %1022 = vmatprep.subr.mxu0 0.0
  %1023 = vmatpush1.xpose.msra.mxu0 0.0
  %1024 = vmatprep.subr.mxu0 0.0
  %1025 = vmatpush1.xpose.msra.mxu0 0.0
  %1026 = vmatprep.subr.mxu0 0.0
  %1027 = vmatpush1.xpose.msra.mxu0 0.0
  %1028 = vmatprep.subr.mxu0 0.0
  %1029 = vmatpush1.xpose.msra.mxu0 0.0
  %1030 = vmatprep.subr.mxu0 0.0
  %1031 = vmatpush1.xpose.msra.mxu0 0.0
  %1032 = vmatprep.subr.mxu0 0.0
  %1033 = vmatpush1.xpose.msra.mxu0 0.0
  %1034 = vmatprep.subr.mxu0 0.0
  %1035 = vmatpush1.xpose.msra.mxu0 0.0
  %1036 = vmatprep.subr.mxu0 0.0
  %1037 = vmatpush1.xpose.msra.mxu0 0.0
  %1038 = vmatprep.subr.mxu0 0.0
  %1039 = vmatpush1.xpose.msra.mxu0 0.0
  %1040 = vmatprep.subr.mxu0 0.0
  %1041 = vmatpush1.xpose.msra.mxu0 0.0
  %1042 = vmatprep.subr.mxu0 0.0
  %1043 = vmatpush1.xpose.msra.mxu0 0.0
  %1044 = vmatprep.subr.mxu0 0.0
  %1045 = vmatpush1.xpose.msra.mxu0 0.0
  %1046 = vmatprep.subr.mxu0 0.0
  %1047 = vmatpush1.xpose.msra.mxu0 %v1016
  %1048 = vmatprep.subr.mxu0 0.0
  %1049 = vmatpush1.xpose.msra.mxu0 %v1014
  %1050 = vmatprep.subr.mxu0 0.0
  %1051 = vmatpush2.xpose.msra.mxu0 0.0
  %1052 = vmatprep.subr.mxu0 0.0
  %1053 = vmatpush2.xpose.msra.mxu0 0.0
  %1054 = vmatprep.subr.mxu0 0.0
  %1055 = vmatpush2.xpose.msra.mxu0 0.0
  %1056 = vmatprep.subr.mxu0 0.0
  %1057 = vmatpush2.xpose.msra.mxu0 0.0
  %1058 = vmatprep.subr.mxu0 0.0
  %1059 = vmatpush2.xpose.msra.mxu0 0.0
  %1060 = vmatprep.subr.mxu0 0.0
  %1061 = vmatpush2.xpose.msra.mxu0 0.0
  %1062 = vmatprep.subr.mxu0 0.0
  %1063 = vmatpush2.xpose.msra.mxu0 0.0
  %1064 = vmatprep.subr.mxu0 0.0
  %1065 = vmatpush2.xpose.msra.mxu0 0.0
  %1066 = vmatprep.subr.mxu0 0.0
  %1067 = vmatpush2.xpose.msra.mxu0 0.0
  %1068 = vmatprep.subr.mxu0 0.0
  %1069 = vmatpush2.xpose.msra.mxu0 0.0
  %1070 = vmatprep.subr.mxu0 0.0
  %1071 = vmatpush2.xpose.msra.mxu0 0.0
  %1072 = vmatprep.subr.mxu0 0.0
  %1073 = vmatpush2.xpose.msra.mxu0 0.0
  %1074 = vmatprep.subr.mxu0 0.0
  %1075 = vmatpush2.xpose.msra.mxu0 0.0
  %1076 = vmatprep.subr.mxu0 0.0
  %1077 = vmatpush2.xpose.msra.mxu0 0.0
  %1078 = vmatprep.subr.mxu0 0.0
  %1079 = vmatpush2.xpose.msra.mxu0 0.0
  %1080 = vmatprep.subr.mxu0 0.0
  %1081 = vmatpush2.xpose.msra.mxu0 0.0
  %1082 = vmatprep.mubr.f32.mxu0 0.0
  %1083 = vmatmul.mubr.f32.gmra.mxu0 %v1012
  %v1084 = vpop.f32.mrf.mxu0
  %v1085 = vadd.f32 0.0, %v1084
  %v1086 = vpop.f32.mrf.mxu0
  %1087 = vdwg.mxu0
  %v1088 = vsel %vm347, %v1085, -inf
  %1089 = vmax.xlane.f32.xlu0 %v1088
  %v1090 = vpop.xlane.xlu0 %1089
  %v1091 = vsub.f32 %v1085, %v1090
  %v1092 = vmul.f32 %v1091, 1.442695
  %v1093 = vpow.pop %v1092
  %v1094 = vsel %vm347, %v1093, 0.0
  %1095 = vadd.xlane.f32.xlu0 %v1094
  %v1096 = vpop.xlane.xlu0 %1095
  %v1097 = vrcp.pop %v1096
  %v1098 = vmul.f32 %v1093, %v1097
  %v1099 = vadd.f32 %v852, %v1098
  %1100 = vrot.lane.b32.xlu0 %v244, 72
  %v1101 = vpop.permute.xlu0 %1100
  %1102 = vrot.lane.b32.xlu0 %v249, 72
  %v1103 = vpop.permute.xlu0 %1102
  %v1107 = vsel %vm366, %v1098, 0
  %1109 = vmatprep.subr.mxu0 0.0
  %1110 = vmatpush1.msra.mxu0 0.0
  %1111 = vmatprep.subr.mxu0 0.0
  %1112 = vmatpush1.msra.mxu0 0.0
  %1113 = vmatprep.subr.mxu0 0.0
  %1114 = vmatpush1.msra.mxu0 0.0
  %1115 = vmatprep.subr.mxu0 0.0
  %1116 = vmatpush1.msra.mxu0 0.0
  %1117 = vmatprep.subr.mxu0 0.0
  %1118 = vmatpush1.msra.mxu0 0.0
  %1119 = vmatprep.subr.mxu0 0.0
  %1120 = vmatpush1.msra.mxu0 0.0
  %1121 = vmatprep.subr.mxu0 0.0
  %1122 = vmatpush1.msra.mxu0 0.0
  %1123 = vmatprep.subr.mxu0 0.0
  %1124 = vmatpush1.msra.mxu0 0.0
  %1125 = vmatprep.subr.mxu0 0.0
  %1126 = vmatpush1.msra.mxu0 0.0
  %1127 = vmatprep.subr.mxu0 0.0
  %1128 = vmatpush1.msra.mxu0 0.0
  %1129 = vmatprep.subr.mxu0 0.0
  %1130 = vmatpush1.msra.mxu0 0.0
  %1131 = vmatprep.subr.mxu0 0.0
  %1132 = vmatpush1.msra.mxu0 0.0
  %1133 = vmatprep.subr.mxu0 0.0
  %1134 = vmatpush1.msra.mxu0 0.0
  %1135 = vmatprep.subr.mxu0 0.0
  %1136 = vmatpush1.msra.mxu0 0.0
  %1137 = vmatprep.subr.mxu0 0.0
  %1138 = vmatpush1.msra.mxu0 %v1103
  %1139 = vmatprep.subr.mxu0 0.0
  %1140 = vmatpush1.msra.mxu0 %v1101
  %1141 = vmatprep.subr.mxu0 0.0
  %1142 = vmatpush2.msra.mxu0 0.0
  %1143 = vmatprep.subr.mxu0 0.0
  %1144 = vmatpush2.msra.mxu0 0.0
  %1145 = vmatprep.subr.mxu0 0.0
  %1146 = vmatpush2.msra.mxu0 0.0
  %1147 = vmatprep.subr.mxu0 0.0
  %1148 = vmatpush2.msra.mxu0 0.0
  %1149 = vmatprep.subr.mxu0 0.0
  %1150 = vmatpush2.msra.mxu0 0.0
  %1151 = vmatprep.subr.mxu0 0.0
  %1152 = vmatpush2.msra.mxu0 0.0
  %1153 = vmatprep.subr.mxu0 0.0
  %1154 = vmatpush2.msra.mxu0 0.0
  %1155 = vmatprep.subr.mxu0 0.0
  %1156 = vmatpush2.msra.mxu0 0.0
  %1157 = vmatprep.subr.mxu0 0.0
  %1158 = vmatpush2.msra.mxu0 0.0
  %1159 = vmatprep.subr.mxu0 0.0
  %1160 = vmatpush2.msra.mxu0 0.0
  %1161 = vmatprep.subr.mxu0 0.0
  %1162 = vmatpush2.msra.mxu0 0.0
  %1163 = vmatprep.subr.mxu0 0.0
  %1164 = vmatpush2.msra.mxu0 0.0
  %1165 = vmatprep.subr.mxu0 0.0
  %1166 = vmatpush2.msra.mxu0 0.0
  %1167 = vmatprep.subr.mxu0 0.0
  %1168 = vmatpush2.msra.mxu0 0.0
  %1169 = vmatprep.subr.mxu0 0.0
  %1170 = vmatpush2.msra.mxu0 0.0
  %1171 = vmatprep.subr.mxu0 0.0
  %1172 = vmatpush2.msra.mxu0 0.0
  %1173 = vmatprep.mubr.f32.mxu0 0.0
  %1174 = vmatmul.mubr.f32.gmra.mxu0 %v1107
  %v1175 = vpop.f32.mrf.mxu0
  %v1176 = vadd.f32 0.0, %v1175
  %v1177 = vpop.f32.mrf.mxu0
  %1178 = vdwg.mxu0
  %v1180 = vsel %vm267, %v1176, 0
  %1182 = vmatprep.subr.mxu0 0.0
  %1183 = vmatpush1.msra.mxu0 0.0
  %1184 = vmatprep.subr.mxu0 0.0
  %1185 = vmatpush1.msra.mxu0 0.0
  %1186 = vmatprep.subr.mxu0 0.0
  %1187 = vmatpush1.msra.mxu0 0.0
  %1188 = vmatprep.subr.mxu0 0.0
  %1189 = vmatpush1.msra.mxu0 0.0
  %1190 = vmatprep.subr.mxu0 0.0
  %1191 = vmatpush1.msra.mxu0 0.0
  %1192 = vmatprep.subr.mxu0 0.0
  %1193 = vmatpush1.msra.mxu0 0.0
  %1194 = vmatprep.subr.mxu0 0.0
  %1195 = vmatpush1.msra.mxu0 0.0
  %1196 = vmatprep.subr.mxu0 0.0
  %1197 = vmatpush1.msra.mxu0 0.0
  %1198 = vmatprep.subr.mxu0 0.0
  %1199 = vmatpush1.msra.mxu0 0.0
  %1200 = vmatprep.subr.mxu0 0.0
  %1201 = vmatpush1.msra.mxu0 0.0
  %1202 = vmatprep.subr.mxu0 0.0
  %1203 = vmatpush1.msra.mxu0 0.0
  %1204 = vmatprep.subr.mxu0 0.0
  %1205 = vmatpush1.msra.mxu0 0.0
  %1206 = vmatprep.subr.mxu0 0.0
  %1207 = vmatpush1.msra.mxu0 0.0
  %1208 = vmatprep.subr.mxu0 0.0
  %1209 = vmatpush1.msra.mxu0 0.0
  %1210 = vmatprep.subr.mxu0 0.0
  %1211 = vmatpush1.msra.mxu0 0.0
  %1212 = vmatprep.subr.mxu0 0.0
  %1213 = vmatpush1.msra.mxu0 %v265
  %1214 = vmatprep.subr.mxu0 0.0
  %1215 = vmatpush2.msra.mxu0 0.0
  %1216 = vmatprep.subr.mxu0 0.0
  %1217 = vmatpush2.msra.mxu0 0.0
  %1218 = vmatprep.subr.mxu0 0.0
  %1219 = vmatpush2.msra.mxu0 0.0
  %1220 = vmatprep.subr.mxu0 0.0
  %1221 = vmatpush2.msra.mxu0 0.0
  %1222 = vmatprep.subr.mxu0 0.0
  %1223 = vmatpush2.msra.mxu0 0.0
  %1224 = vmatprep.subr.mxu0 0.0
  %1225 = vmatpush2.msra.mxu0 0.0
  %1226 = vmatprep.subr.mxu0 0.0
  %1227 = vmatpush2.msra.mxu0 0.0
  %1228 = vmatprep.subr.mxu0 0.0
  %1229 = vmatpush2.msra.mxu0 0.0
  %1230 = vmatprep.subr.mxu0 0.0
  %1231 = vmatpush2.msra.mxu0 0.0
  %1232 = vmatprep.subr.mxu0 0.0
  %1233 = vmatpush2.msra.mxu0 0.0
  %1234 = vmatprep.subr.mxu0 0.0
  %1235 = vmatpush2.msra.mxu0 0.0
  %1236 = vmatprep.subr.mxu0 0.0
  %1237 = vmatpush2.msra.mxu0 0.0
  %1238 = vmatprep.subr.mxu0 0.0
  %1239 = vmatpush2.msra.mxu0 0.0
  %1240 = vmatprep.subr.mxu0 0.0
  %1241 = vmatpush2.msra.mxu0 0.0
  %1242 = vmatprep.subr.mxu0 0.0
  %1243 = vmatpush2.msra.mxu0 0.0
  %1244 = vmatprep.subr.mxu0 0.0
  %1245 = vmatpush2.msra.mxu0 0.0
  %1246 = vmatprep.mubr.f32.mxu0 0.0
  %1247 = vmatmul.mubr.f32.gmra.mxu0 %v1180
  %v1248 = vpop.f32.mrf.mxu0
  %v1249 = vadd.f32 0.0, %v1248
  %v1250 = vpop.f32.mrf.mxu0
  %1251 = vdwg.mxu0
  %v1252 = vadd.f32 %v1005, %v1249
  %v1253 = vmul.f32 %v1099, 0.25
  %v1254 = vrot.slane %v266, 4
  %v1255 = vsel %vm267, %v1254, 0
  %v1258 = vsel %vm267, %v254, 0
  %v1261 = vsel %vm267, %v259, 0
  %1263 = vmatprep.subr.mxu0 0.0
  %1264 = vmatpush1.xpose.msra.mxu0 0.0
  %1265 = vmatprep.subr.mxu0 0.0
  %1266 = vmatpush1.xpose.msra.mxu0 0.0
  %1267 = vmatprep.subr.mxu0 0.0
  %1268 = vmatpush1.xpose.msra.mxu0 0.0
  %1269 = vmatprep.subr.mxu0 0.0
  %1270 = vmatpush1.xpose.msra.mxu0 0.0
  %1271 = vmatprep.subr.mxu0 0.0
  %1272 = vmatpush1.xpose.msra.mxu0 0.0
  %1273 = vmatprep.subr.mxu0 0.0
  %1274 = vmatpush1.xpose.msra.mxu0 0.0
  %1275 = vmatprep.subr.mxu0 0.0
  %1276 = vmatpush1.xpose.msra.mxu0 0.0
  %1277 = vmatprep.subr.mxu0 0.0
  %1278 = vmatpush1.xpose.msra.mxu0 0.0
  %1279 = vmatprep.subr.mxu0 0.0
  %1280 = vmatpush1.xpose.msra.mxu0 0.0
  %1281 = vmatprep.subr.mxu0 0.0
  %1282 = vmatpush1.xpose.msra.mxu0 0.0
  %1283 = vmatprep.subr.mxu0 0.0
  %1284 = vmatpush1.xpose.msra.mxu0 0.0
  %1285 = vmatprep.subr.mxu0 0.0
  %1286 = vmatpush1.xpose.msra.mxu0 0.0
  %1287 = vmatprep.subr.mxu0 0.0
  %1288 = vmatpush1.xpose.msra.mxu0 0.0
  %1289 = vmatprep.subr.mxu0 0.0
  %1290 = vmatpush1.xpose.msra.mxu0 0.0
  %1291 = vmatprep.subr.mxu0 0.0
  %1292 = vmatpush1.xpose.msra.mxu0 %v1261
  %1293 = vmatprep.subr.mxu0 0.0
  %1294 = vmatpush1.xpose.msra.mxu0 %v1258
  %1295 = vmatprep.subr.mxu0 0.0
  %1296 = vmatpush2.xpose.msra.mxu0 0.0
  %1297 = vmatprep.subr.mxu0 0.0
  %1298 = vmatpush2.xpose.msra.mxu0 0.0
  %1299 = vmatprep.subr.mxu0 0.0
  %1300 = vmatpush2.xpose.msra.mxu0 0.0
  %1301 = vmatprep.subr.mxu0 0.0
  %1302 = vmatpush2.xpose.msra.mxu0 0.0
  %1303 = vmatprep.subr.mxu0 0.0
  %1304 = vmatpush2.xpose.msra.mxu0 0.0
  %1305 = vmatprep.subr.mxu0 0.0
  %1306 = vmatpush2.xpose.msra.mxu0 0.0
  %1307 = vmatprep.subr.mxu0 0.0
  %1308 = vmatpush2.xpose.msra.mxu0 0.0
  %1309 = vmatprep.subr.mxu0 0.0
  %1310 = vmatpush2.xpose.msra.mxu0 0.0
  %1311 = vmatprep.subr.mxu0 0.0
  %1312 = vmatpush2.xpose.msra.mxu0 0.0
  %1313 = vmatprep.subr.mxu0 0.0
  %1314 = vmatpush2.xpose.msra.mxu0 0.0
  %1315 = vmatprep.subr.mxu0 0.0
  %1316 = vmatpush2.xpose.msra.mxu0 0.0
  %1317 = vmatprep.subr.mxu0 0.0
  %1318 = vmatpush2.xpose.msra.mxu0 0.0
  %1319 = vmatprep.subr.mxu0 0.0
  %1320 = vmatpush2.xpose.msra.mxu0 0.0
  %1321 = vmatprep.subr.mxu0 0.0
  %1322 = vmatpush2.xpose.msra.mxu0 0.0
  %1323 = vmatprep.subr.mxu0 0.0
  %1324 = vmatpush2.xpose.msra.mxu0 0.0
  %1325 = vmatprep.subr.mxu0 0.0
  %1326 = vmatpush2.xpose.msra.mxu0 0.0
  %1327 = vmatprep.mubr.f32.mxu0 0.0
  %1328 = vmatmul.mubr.f32.gmra.mxu0 %v1255
  %v1329 = vpop.f32.mrf.mxu0
  %v1330 = vadd.f32 0.0, %v1329
  %v1331 = vpop.f32.mrf.mxu0
  %1332 = vdwg.mxu0
  %v1333 = vsel %vm347, %v1330, -inf
  %1334 = vmax.xlane.f32.xlu0 %v1333
  %v1335 = vpop.xlane.xlu0 %1334
  %v1336 = vsub.f32 %v1330, %v1335
  %v1337 = vmul.f32 %v1336, 1.442695
  %v1338 = vpow.pop %v1337
  %v1339 = vsel %vm347, %v1338, 0.0
  %1340 = vadd.xlane.f32.xlu0 %v1339
  %v1341 = vpop.xlane.xlu0 %1340
  %v1342 = vrcp.pop %v1341
  %v1343 = vmul.f32 %v1338, %v1342
  %v1344 = vadd.f32 %v1343, 0.0
  %1345 = vrot.lane.b32.xlu0 %v254, 96
  %v1346 = vpop.permute.xlu0 %1345
  %1347 = vrot.lane.b32.xlu0 %v259, 96
  %v1348 = vpop.permute.xlu0 %1347
  %v1352 = vsel %vm366, %v1343, 0
  %1354 = vmatprep.subr.mxu0 0.0
  %1355 = vmatpush1.msra.mxu0 0.0
  %1356 = vmatprep.subr.mxu0 0.0
  %1357 = vmatpush1.msra.mxu0 0.0
  %1358 = vmatprep.subr.mxu0 0.0
  %1359 = vmatpush1.msra.mxu0 0.0
  %1360 = vmatprep.subr.mxu0 0.0
  %1361 = vmatpush1.msra.mxu0 0.0
  %1362 = vmatprep.subr.mxu0 0.0
  %1363 = vmatpush1.msra.mxu0 0.0
  %1364 = vmatprep.subr.mxu0 0.0
  %1365 = vmatpush1.msra.mxu0 0.0
  %1366 = vmatprep.subr.mxu0 0.0
  %1367 = vmatpush1.msra.mxu0 0.0
  %1368 = vmatprep.subr.mxu0 0.0
  %1369 = vmatpush1.msra.mxu0 0.0
  %1370 = vmatprep.subr.mxu0 0.0
  %1371 = vmatpush1.msra.mxu0 0.0
  %1372 = vmatprep.subr.mxu0 0.0
  %1373 = vmatpush1.msra.mxu0 0.0
  %1374 = vmatprep.subr.mxu0 0.0
  %1375 = vmatpush1.msra.mxu0 0.0
  %1376 = vmatprep.subr.mxu0 0.0
  %1377 = vmatpush1.msra.mxu0 0.0
  %1378 = vmatprep.subr.mxu0 0.0
  %1379 = vmatpush1.msra.mxu0 0.0
  %1380 = vmatprep.subr.mxu0 0.0
  %1381 = vmatpush1.msra.mxu0 0.0
  %1382 = vmatprep.subr.mxu0 0.0
  %1383 = vmatpush1.msra.mxu0 %v1348
  %1384 = vmatprep.subr.mxu0 0.0
  %1385 = vmatpush1.msra.mxu0 %v1346
  %1386 = vmatprep.subr.mxu0 0.0
  %1387 = vmatpush2.msra.mxu0 0.0
  %1388 = vmatprep.subr.mxu0 0.0
  %1389 = vmatpush2.msra.mxu0 0.0
  %1390 = vmatprep.subr.mxu0 0.0
  %1391 = vmatpush2.msra.mxu0 0.0
  %1392 = vmatprep.subr.mxu0 0.0
  %1393 = vmatpush2.msra.mxu0 0.0
  %1394 = vmatprep.subr.mxu0 0.0
  %1395 = vmatpush2.msra.mxu0 0.0
  %1396 = vmatprep.subr.mxu0 0.0
  %1397 = vmatpush2.msra.mxu0 0.0
  %1398 = vmatprep.subr.mxu0 0.0
  %1399 = vmatpush2.msra.mxu0 0.0
  %1400 = vmatprep.subr.mxu0 0.0
  %1401 = vmatpush2.msra.mxu0 0.0
  %1402 = vmatprep.subr.mxu0 0.0
  %1403 = vmatpush2.msra.mxu0 0.0
  %1404 = vmatprep.subr.mxu0 0.0
  %1405 = vmatpush2.msra.mxu0 0.0
  %1406 = vmatprep.subr.mxu0 0.0
  %1407 = vmatpush2.msra.mxu0 0.0
  %1408 = vmatprep.subr.mxu0 0.0
  %1409 = vmatpush2.msra.mxu0 0.0
  %1410 = vmatprep.subr.mxu0 0.0
  %1411 = vmatpush2.msra.mxu0 0.0
  %1412 = vmatprep.subr.mxu0 0.0
  %1413 = vmatpush2.msra.mxu0 0.0
  %1414 = vmatprep.subr.mxu0 0.0
  %1415 = vmatpush2.msra.mxu0 0.0
  %1416 = vmatprep.subr.mxu0 0.0
  %1417 = vmatpush2.msra.mxu0 0.0
  %1418 = vmatprep.mubr.f32.mxu0 0.0
  %1419 = vmatmul.mubr.f32.gmra.mxu0 %v1352
  %v1420 = vpop.f32.mrf.mxu0
  %v1421 = vadd.f32 0.0, %v1420
  %v1422 = vpop.f32.mrf.mxu0
  %1423 = vdwg.mxu0
  %1424 = vrot.lane.b32.xlu0 %v1254, 120
  %v1425 = vpop.permute.xlu0 %1424
  %1426 = vrot.lane.b32.xlu0 %v254, 120
  %v1427 = vpop.permute.xlu0 %1426
  %1428 = vrot.lane.b32.xlu0 %v259, 120
  %v1429 = vpop.permute.xlu0 %1428
  %v1430 = vsel %vm267, %v1425, 0
  %v1432 = vsel %vm267, %v1427, 0
  %v1434 = vsel %vm267, %v1429, 0
  %1436 = vmatprep.subr.mxu0 0.0
  %1437 = vmatpush1.xpose.msra.mxu0 0.0
  %1438 = vmatprep.subr.mxu0 0.0
  %1439 = vmatpush1.xpose.msra.mxu0 0.0
  %1440 = vmatprep.subr.mxu0 0.0
  %1441 = vmatpush1.xpose.msra.mxu0 0.0
  %1442 = vmatprep.subr.mxu0 0.0
  %1443 = vmatpush1.xpose.msra.mxu0 0.0
  %1444 = vmatprep.subr.mxu0 0.0
  %1445 = vmatpush1.xpose.msra.mxu0 0.0
  %1446 = vmatprep.subr.mxu0 0.0
  %1447 = vmatpush1.xpose.msra.mxu0 0.0
  %1448 = vmatprep.subr.mxu0 0.0
  %1449 = vmatpush1.xpose.msra.mxu0 0.0
  %1450 = vmatprep.subr.mxu0 0.0
  %1451 = vmatpush1.xpose.msra.mxu0 0.0
  %1452 = vmatprep.subr.mxu0 0.0
  %1453 = vmatpush1.xpose.msra.mxu0 0.0
  %1454 = vmatprep.subr.mxu0 0.0
  %1455 = vmatpush1.xpose.msra.mxu0 0.0
  %1456 = vmatprep.subr.mxu0 0.0
  %1457 = vmatpush1.xpose.msra.mxu0 0.0
  %1458 = vmatprep.subr.mxu0 0.0
  %1459 = vmatpush1.xpose.msra.mxu0 0.0
  %1460 = vmatprep.subr.mxu0 0.0
  %1461 = vmatpush1.xpose.msra.mxu0 0.0
  %1462 = vmatprep.subr.mxu0 0.0
  %1463 = vmatpush1.xpose.msra.mxu0 0.0
  %1464 = vmatprep.subr.mxu0 0.0
  %1465 = vmatpush1.xpose.msra.mxu0 %v1434
  %1466 = vmatprep.subr.mxu0 0.0
  %1467 = vmatpush1.xpose.msra.mxu0 %v1432
  %1468 = vmatprep.subr.mxu0 0.0
  %1469 = vmatpush2.xpose.msra.mxu0 0.0
  %1470 = vmatprep.subr.mxu0 0.0
  %1471 = vmatpush2.xpose.msra.mxu0 0.0
  %1472 = vmatprep.subr.mxu0 0.0
  %1473 = vmatpush2.xpose.msra.mxu0 0.0
  %1474 = vmatprep.subr.mxu0 0.0
  %1475 = vmatpush2.xpose.msra.mxu0 0.0
  %1476 = vmatprep.subr.mxu0 0.0
  %1477 = vmatpush2.xpose.msra.mxu0 0.0
  %1478 = vmatprep.subr.mxu0 0.0
  %1479 = vmatpush2.xpose.msra.mxu0 0.0
  %1480 = vmatprep.subr.mxu0 0.0
  %1481 = vmatpush2.xpose.msra.mxu0 0.0
  %1482 = vmatprep.subr.mxu0 0.0
  %1483 = vmatpush2.xpose.msra.mxu0 0.0
  %1484 = vmatprep.subr.mxu0 0.0
  %1485 = vmatpush2.xpose.msra.mxu0 0.0
  %1486 = vmatprep.subr.mxu0 0.0
  %1487 = vmatpush2.xpose.msra.mxu0 0.0
  %1488 = vmatprep.subr.mxu0 0.0
  %1489 = vmatpush2.xpose.msra.mxu0 0.0
  %1490 = vmatprep.subr.mxu0 0.0
  %1491 = vmatpush2.xpose.msra.mxu0 0.0
  %1492 = vmatprep.subr.mxu0 0.0
  %1493 = vmatpush2.xpose.msra.mxu0 0.0
  %1494 = vmatprep.subr.mxu0 0.0
  %1495 = vmatpush2.xpose.msra.mxu0 0.0
  %1496 = vmatprep.subr.mxu0 0.0
  %1497 = vmatpush2.xpose.msra.mxu0 0.0
  %1498 = vmatprep.subr.mxu0 0.0
  %1499 = vmatpush2.xpose.msra.mxu0 0.0
  %1500 = vmatprep.mubr.f32.mxu0 0.0
  %1501 = vmatmul.mubr.f32.gmra.mxu0 %v1430
  %v1502 = vpop.f32.mrf.mxu0
  %v1503 = vadd.f32 0.0, %v1502
  %v1504 = vpop.f32.mrf.mxu0
  %1505 = vdwg.mxu0
  %v1506 = vsel %vm347, %v1503, -inf
  %1507 = vmax.xlane.f32.xlu0 %v1506
  %v1508 = vpop.xlane.xlu0 %1507
  %v1509 = vsub.f32 %v1503, %v1508
  %v1510 = vmul.f32 %v1509, 1.442695
  %v1511 = vpow.pop %v1510
  %v1512 = vsel %vm347, %v1511, 0.0
  %1513 = vadd.xlane.f32.xlu0 %v1512
  %v1514 = vpop.xlane.xlu0 %1513
  %v1515 = vrcp.pop %v1514
  %v1516 = vmul.f32 %v1511, %v1515
  %v1517 = vadd.f32 %v1344, %v1516
  %1518 = vrot.lane.b32.xlu0 %v254, 88
  %v1519 = vpop.permute.xlu0 %1518
  %1520 = vrot.lane.b32.xlu0 %v259, 88
  %v1521 = vpop.permute.xlu0 %1520
  %v1525 = vsel %vm366, %v1516, 0
  %1527 = vmatprep.subr.mxu0 0.0
  %1528 = vmatpush1.msra.mxu0 0.0
  %1529 = vmatprep.subr.mxu0 0.0
  %1530 = vmatpush1.msra.mxu0 0.0
  %1531 = vmatprep.subr.mxu0 0.0
  %1532 = vmatpush1.msra.mxu0 0.0
  %1533 = vmatprep.subr.mxu0 0.0
  %1534 = vmatpush1.msra.mxu0 0.0
  %1535 = vmatprep.subr.mxu0 0.0
  %1536 = vmatpush1.msra.mxu0 0.0
  %1537 = vmatprep.subr.mxu0 0.0
  %1538 = vmatpush1.msra.mxu0 0.0
  %1539 = vmatprep.subr.mxu0 0.0
  %1540 = vmatpush1.msra.mxu0 0.0
  %1541 = vmatprep.subr.mxu0 0.0
  %1542 = vmatpush1.msra.mxu0 0.0
  %1543 = vmatprep.subr.mxu0 0.0
  %1544 = vmatpush1.msra.mxu0 0.0
  %1545 = vmatprep.subr.mxu0 0.0
  %1546 = vmatpush1.msra.mxu0 0.0
  %1547 = vmatprep.subr.mxu0 0.0
  %1548 = vmatpush1.msra.mxu0 0.0
  %1549 = vmatprep.subr.mxu0 0.0
  %1550 = vmatpush1.msra.mxu0 0.0
  %1551 = vmatprep.subr.mxu0 0.0
  %1552 = vmatpush1.msra.mxu0 0.0
  %1553 = vmatprep.subr.mxu0 0.0
  %1554 = vmatpush1.msra.mxu0 0.0
  %1555 = vmatprep.subr.mxu0 0.0
  %1556 = vmatpush1.msra.mxu0 %v1521
  %1557 = vmatprep.subr.mxu0 0.0
  %1558 = vmatpush1.msra.mxu0 %v1519
  %1559 = vmatprep.subr.mxu0 0.0
  %1560 = vmatpush2.msra.mxu0 0.0
  %1561 = vmatprep.subr.mxu0 0.0
  %1562 = vmatpush2.msra.mxu0 0.0
  %1563 = vmatprep.subr.mxu0 0.0
  %1564 = vmatpush2.msra.mxu0 0.0
  %1565 = vmatprep.subr.mxu0 0.0
  %1566 = vmatpush2.msra.mxu0 0.0
  %1567 = vmatprep.subr.mxu0 0.0
  %1568 = vmatpush2.msra.mxu0 0.0
  %1569 = vmatprep.subr.mxu0 0.0
  %1570 = vmatpush2.msra.mxu0 0.0
  %1571 = vmatprep.subr.mxu0 0.0
  %1572 = vmatpush2.msra.mxu0 0.0
  %1573 = vmatprep.subr.mxu0 0.0
  %1574 = vmatpush2.msra.mxu0 0.0
  %1575 = vmatprep.subr.mxu0 0.0
  %1576 = vmatpush2.msra.mxu0 0.0
  %1577 = vmatprep.subr.mxu0 0.0
  %1578 = vmatpush2.msra.mxu0 0.0
  %1579 = vmatprep.subr.mxu0 0.0
  %1580 = vmatpush2.msra.mxu0 0.0
  %1581 = vmatprep.subr.mxu0 0.0
  %1582 = vmatpush2.msra.mxu0 0.0
  %1583 = vmatprep.subr.mxu0 0.0
  %1584 = vmatpush2.msra.mxu0 0.0
  %1585 = vmatprep.subr.mxu0 0.0
  %1586 = vmatpush2.msra.mxu0 0.0
  %1587 = vmatprep.subr.mxu0 0.0
  %1588 = vmatpush2.msra.mxu0 0.0
  %1589 = vmatprep.subr.mxu0 0.0
  %1590 = vmatpush2.msra.mxu0 0.0
  %1591 = vmatprep.mubr.f32.mxu0 0.0
  %1592 = vmatmul.mubr.f32.gmra.mxu0 %v1525
  %v1593 = vpop.f32.mrf.mxu0
  %v1594 = vadd.f32 0.0, %v1593
  %v1595 = vpop.f32.mrf.mxu0
  %1596 = vdwg.mxu0
  %v1598 = vsel %vm267, %v1594, 0
  %1600 = vmatprep.subr.mxu0 0.0
  %1601 = vmatpush1.msra.mxu0 0.0
  %1602 = vmatprep.subr.mxu0 0.0
  %1603 = vmatpush1.msra.mxu0 0.0
  %1604 = vmatprep.subr.mxu0 0.0
  %1605 = vmatpush1.msra.mxu0 0.0
  %1606 = vmatprep.subr.mxu0 0.0
  %1607 = vmatpush1.msra.mxu0 0.0
  %1608 = vmatprep.subr.mxu0 0.0
  %1609 = vmatpush1.msra.mxu0 0.0
  %1610 = vmatprep.subr.mxu0 0.0
  %1611 = vmatpush1.msra.mxu0 0.0
  %1612 = vmatprep.subr.mxu0 0.0
  %1613 = vmatpush1.msra.mxu0 0.0
  %1614 = vmatprep.subr.mxu0 0.0
  %1615 = vmatpush1.msra.mxu0 0.0
  %1616 = vmatprep.subr.mxu0 0.0
  %1617 = vmatpush1.msra.mxu0 0.0
  %1618 = vmatprep.subr.mxu0 0.0
  %1619 = vmatpush1.msra.mxu0 0.0
  %1620 = vmatprep.subr.mxu0 0.0
  %1621 = vmatpush1.msra.mxu0 0.0
  %1622 = vmatprep.subr.mxu0 0.0
  %1623 = vmatpush1.msra.mxu0 0.0
  %1624 = vmatprep.subr.mxu0 0.0
  %1625 = vmatpush1.msra.mxu0 0.0
  %1626 = vmatprep.subr.mxu0 0.0
  %1627 = vmatpush1.msra.mxu0 0.0
  %1628 = vmatprep.subr.mxu0 0.0
  %1629 = vmatpush1.msra.mxu0 0.0
  %1630 = vmatprep.subr.mxu0 0.0
  %1631 = vmatpush1.msra.mxu0 %v263
  %1632 = vmatprep.subr.mxu0 0.0
  %1633 = vmatpush2.msra.mxu0 0.0
  %1634 = vmatprep.subr.mxu0 0.0
  %1635 = vmatpush2.msra.mxu0 0.0
  %1636 = vmatprep.subr.mxu0 0.0
  %1637 = vmatpush2.msra.mxu0 0.0
  %1638 = vmatprep.subr.mxu0 0.0
  %1639 = vmatpush2.msra.mxu0 0.0
  %1640 = vmatprep.subr.mxu0 0.0
  %1641 = vmatpush2.msra.mxu0 0.0
  %1642 = vmatprep.subr.mxu0 0.0
  %1643 = vmatpush2.msra.mxu0 0.0
  %1644 = vmatprep.subr.mxu0 0.0
  %1645 = vmatpush2.msra.mxu0 0.0
  %1646 = vmatprep.subr.mxu0 0.0
  %1647 = vmatpush2.msra.mxu0 0.0
  %1648 = vmatprep.subr.mxu0 0.0
  %1649 = vmatpush2.msra.mxu0 0.0
  %1650 = vmatprep.subr.mxu0 0.0
  %1651 = vmatpush2.msra.mxu0 0.0
  %1652 = vmatprep.subr.mxu0 0.0
  %1653 = vmatpush2.msra.mxu0 0.0
  %1654 = vmatprep.subr.mxu0 0.0
  %1655 = vmatpush2.msra.mxu0 0.0
  %1656 = vmatprep.subr.mxu0 0.0
  %1657 = vmatpush2.msra.mxu0 0.0
  %1658 = vmatprep.subr.mxu0 0.0
  %1659 = vmatpush2.msra.mxu0 0.0
  %1660 = vmatprep.subr.mxu0 0.0
  %1661 = vmatpush2.msra.mxu0 0.0
  %1662 = vmatprep.subr.mxu0 0.0
  %1663 = vmatpush2.msra.mxu0 0.0
  %1664 = vmatprep.mubr.f32.mxu0 0.0
  %1665 = vmatmul.mubr.f32.gmra.mxu0 %v1598
  %v1666 = vpop.f32.mrf.mxu0
  %v1667 = vadd.f32 0.0, %v1666
  %v1668 = vpop.f32.mrf.mxu0
  %1669 = vdwg.mxu0
  %v1671 = vsel %vm267, %v1421, 0
  %1673 = vmatprep.subr.mxu0 0.0
  %1674 = vmatpush1.msra.mxu0 0.0
  %1675 = vmatprep.subr.mxu0 0.0
  %1676 = vmatpush1.msra.mxu0 0.0
  %1677 = vmatprep.subr.mxu0 0.0
  %1678 = vmatpush1.msra.mxu0 0.0
  %1679 = vmatprep.subr.mxu0 0.0
  %1680 = vmatpush1.msra.mxu0 0.0
  %1681 = vmatprep.subr.mxu0 0.0
  %1682 = vmatpush1.msra.mxu0 0.0
  %1683 = vmatprep.subr.mxu0 0.0
  %1684 = vmatpush1.msra.mxu0 0.0
  %1685 = vmatprep.subr.mxu0 0.0
  %1686 = vmatpush1.msra.mxu0 0.0
  %1687 = vmatprep.subr.mxu0 0.0
  %1688 = vmatpush1.msra.mxu0 0.0
  %1689 = vmatprep.subr.mxu0 0.0
  %1690 = vmatpush1.msra.mxu0 0.0
  %1691 = vmatprep.subr.mxu0 0.0
  %1692 = vmatpush1.msra.mxu0 0.0
  %1693 = vmatprep.subr.mxu0 0.0
  %1694 = vmatpush1.msra.mxu0 0.0
  %1695 = vmatprep.subr.mxu0 0.0
  %1696 = vmatpush1.msra.mxu0 0.0
  %1697 = vmatprep.subr.mxu0 0.0
  %1698 = vmatpush1.msra.mxu0 0.0
  %1699 = vmatprep.subr.mxu0 0.0
  %1700 = vmatpush1.msra.mxu0 0.0
  %1701 = vmatprep.subr.mxu0 0.0
  %1702 = vmatpush1.msra.mxu0 0.0
  %1703 = vmatprep.subr.mxu0 0.0
  %1704 = vmatpush1.msra.mxu0 %v262
  %1705 = vmatprep.subr.mxu0 0.0
  %1706 = vmatpush2.msra.mxu0 0.0
  %1707 = vmatprep.subr.mxu0 0.0
  %1708 = vmatpush2.msra.mxu0 0.0
  %1709 = vmatprep.subr.mxu0 0.0
  %1710 = vmatpush2.msra.mxu0 0.0
  %1711 = vmatprep.subr.mxu0 0.0
  %1712 = vmatpush2.msra.mxu0 0.0
  %1713 = vmatprep.subr.mxu0 0.0
  %1714 = vmatpush2.msra.mxu0 0.0
  %1715 = vmatprep.subr.mxu0 0.0
  %1716 = vmatpush2.msra.mxu0 0.0
  %1717 = vmatprep.subr.mxu0 0.0
  %1718 = vmatpush2.msra.mxu0 0.0
  %1719 = vmatprep.subr.mxu0 0.0
  %1720 = vmatpush2.msra.mxu0 0.0
  %1721 = vmatprep.subr.mxu0 0.0
  %1722 = vmatpush2.msra.mxu0 0.0
  %1723 = vmatprep.subr.mxu0 0.0
  %1724 = vmatpush2.msra.mxu0 0.0
  %1725 = vmatprep.subr.mxu0 0.0
  %1726 = vmatpush2.msra.mxu0 0.0
  %1727 = vmatprep.subr.mxu0 0.0
  %1728 = vmatpush2.msra.mxu0 0.0
  %1729 = vmatprep.subr.mxu0 0.0
  %1730 = vmatpush2.msra.mxu0 0.0
  %1731 = vmatprep.subr.mxu0 0.0
  %1732 = vmatpush2.msra.mxu0 0.0
  %1733 = vmatprep.subr.mxu0 0.0
  %1734 = vmatpush2.msra.mxu0 0.0
  %1735 = vmatprep.subr.mxu0 0.0
  %1736 = vmatpush2.msra.mxu0 0.0
  %1737 = vmatprep.mubr.f32.mxu0 0.0
  %1738 = vmatmul.mubr.f32.gmra.mxu0 %v1671
  %v1739 = vpop.f32.mrf.mxu0
  %v1740 = vadd.f32 %v1667, %v1739
  %v1741 = vpop.f32.mrf.mxu0
  %1742 = vdwg.mxu0
  %1743 = vrot.lane.b32.xlu0 %v1254, 112
  %v1744 = vpop.permute.xlu0 %1743
  %1745 = vrot.lane.b32.xlu0 %v254, 112
  %v1746 = vpop.permute.xlu0 %1745
  %1747 = vrot.lane.b32.xlu0 %v259, 112
  %v1748 = vpop.permute.xlu0 %1747
  %v1749 = vsel %vm267, %v1744, 0
  %v1751 = vsel %vm267, %v1746, 0
  %v1753 = vsel %vm267, %v1748, 0
  %1755 = vmatprep.subr.mxu0 0.0
  %1756 = vmatpush1.xpose.msra.mxu0 0.0
  %1757 = vmatprep.subr.mxu0 0.0
  %1758 = vmatpush1.xpose.msra.mxu0 0.0
  %1759 = vmatprep.subr.mxu0 0.0
  %1760 = vmatpush1.xpose.msra.mxu0 0.0
  %1761 = vmatprep.subr.mxu0 0.0
  %1762 = vmatpush1.xpose.msra.mxu0 0.0
  %1763 = vmatprep.subr.mxu0 0.0
  %1764 = vmatpush1.xpose.msra.mxu0 0.0
  %1765 = vmatprep.subr.mxu0 0.0
  %1766 = vmatpush1.xpose.msra.mxu0 0.0
  %1767 = vmatprep.subr.mxu0 0.0
  %1768 = vmatpush1.xpose.msra.mxu0 0.0
  %1769 = vmatprep.subr.mxu0 0.0
  %1770 = vmatpush1.xpose.msra.mxu0 0.0
  %1771 = vmatprep.subr.mxu0 0.0
  %1772 = vmatpush1.xpose.msra.mxu0 0.0
  %1773 = vmatprep.subr.mxu0 0.0
  %1774 = vmatpush1.xpose.msra.mxu0 0.0
  %1775 = vmatprep.subr.mxu0 0.0
  %1776 = vmatpush1.xpose.msra.mxu0 0.0
  %1777 = vmatprep.subr.mxu0 0.0
  %1778 = vmatpush1.xpose.msra.mxu0 0.0
  %1779 = vmatprep.subr.mxu0 0.0
  %1780 = vmatpush1.xpose.msra.mxu0 0.0
  %1781 = vmatprep.subr.mxu0 0.0
  %1782 = vmatpush1.xpose.msra.mxu0 0.0
  %1783 = vmatprep.subr.mxu0 0.0
  %1784 = vmatpush1.xpose.msra.mxu0 %v1753
  %1785 = vmatprep.subr.mxu0 0.0
  %1786 = vmatpush1.xpose.msra.mxu0 %v1751
  %1787 = vmatprep.subr.mxu0 0.0
  %1788 = vmatpush2.xpose.msra.mxu0 0.0
  %1789 = vmatprep.subr.mxu0 0.0
  %1790 = vmatpush2.xpose.msra.mxu0 0.0
  %1791 = vmatprep.subr.mxu0 0.0
  %1792 = vmatpush2.xpose.msra.mxu0 0.0
  %1793 = vmatprep.subr.mxu0 0.0
  %1794 = vmatpush2.xpose.msra.mxu0 0.0
  %1795 = vmatprep.subr.mxu0 0.0
  %1796 = vmatpush2.xpose.msra.mxu0 0.0
  %1797 = vmatprep.subr.mxu0 0.0
  %1798 = vmatpush2.xpose.msra.mxu0 0.0
  %1799 = vmatprep.subr.mxu0 0.0
  %1800 = vmatpush2.xpose.msra.mxu0 0.0
  %1801 = vmatprep.subr.mxu0 0.0
  %1802 = vmatpush2.xpose.msra.mxu0 0.0
  %1803 = vmatprep.subr.mxu0 0.0
  %1804 = vmatpush2.xpose.msra.mxu0 0.0
  %1805 = vmatprep.subr.mxu0 0.0
  %1806 = vmatpush2.xpose.msra.mxu0 0.0
  %1807 = vmatprep.subr.mxu0 0.0
  %1808 = vmatpush2.xpose.msra.mxu0 0.0
  %1809 = vmatprep.subr.mxu0 0.0
  %1810 = vmatpush2.xpose.msra.mxu0 0.0
  %1811 = vmatprep.subr.mxu0 0.0
  %1812 = vmatpush2.xpose.msra.mxu0 0.0
  %1813 = vmatprep.subr.mxu0 0.0
  %1814 = vmatpush2.xpose.msra.mxu0 0.0
  %1815 = vmatprep.subr.mxu0 0.0
  %1816 = vmatpush2.xpose.msra.mxu0 0.0
  %1817 = vmatprep.subr.mxu0 0.0
  %1818 = vmatpush2.xpose.msra.mxu0 0.0
  %1819 = vmatprep.mubr.f32.mxu0 0.0
  %1820 = vmatmul.mubr.f32.gmra.mxu0 %v1749
  %v1821 = vpop.f32.mrf.mxu0
  %v1822 = vadd.f32 0.0, %v1821
  %v1823 = vpop.f32.mrf.mxu0
  %1824 = vdwg.mxu0
  %v1825 = vsel %vm347, %v1822, -inf
  %1826 = vmax.xlane.f32.xlu0 %v1825
  %v1827 = vpop.xlane.xlu0 %1826
  %v1828 = vsub.f32 %v1822, %v1827
  %v1829 = vmul.f32 %v1828, 1.442695
  %v1830 = vpow.pop %v1829
  %v1831 = vsel %vm347, %v1830, 0.0
  %1832 = vadd.xlane.f32.xlu0 %v1831
  %v1833 = vpop.xlane.xlu0 %1832
  %v1834 = vrcp.pop %v1833
  %v1835 = vmul.f32 %v1830, %v1834
  %v1836 = vadd.f32 %v1517, %v1835
  %1837 = vrot.lane.b32.xlu0 %v254, 80
  %v1838 = vpop.permute.xlu0 %1837
  %1839 = vrot.lane.b32.xlu0 %v259, 80
  %v1840 = vpop.permute.xlu0 %1839
  %v1844 = vsel %vm366, %v1835, 0
  %1846 = vmatprep.subr.mxu0 0.0
  %1847 = vmatpush1.msra.mxu0 0.0
  %1848 = vmatprep.subr.mxu0 0.0
  %1849 = vmatpush1.msra.mxu0 0.0
  %1850 = vmatprep.subr.mxu0 0.0
  %1851 = vmatpush1.msra.mxu0 0.0
  %1852 = vmatprep.subr.mxu0 0.0
  %1853 = vmatpush1.msra.mxu0 0.0
  %1854 = vmatprep.subr.mxu0 0.0
  %1855 = vmatpush1.msra.mxu0 0.0
  %1856 = vmatprep.subr.mxu0 0.0
  %1857 = vmatpush1.msra.mxu0 0.0
  %1858 = vmatprep.subr.mxu0 0.0
  %1859 = vmatpush1.msra.mxu0 0.0
  %1860 = vmatprep.subr.mxu0 0.0
  %1861 = vmatpush1.msra.mxu0 0.0
  %1862 = vmatprep.subr.mxu0 0.0
  %1863 = vmatpush1.msra.mxu0 0.0
  %1864 = vmatprep.subr.mxu0 0.0
  %1865 = vmatpush1.msra.mxu0 0.0
  %1866 = vmatprep.subr.mxu0 0.0
  %1867 = vmatpush1.msra.mxu0 0.0
  %1868 = vmatprep.subr.mxu0 0.0
  %1869 = vmatpush1.msra.mxu0 0.0
  %1870 = vmatprep.subr.mxu0 0.0
  %1871 = vmatpush1.msra.mxu0 0.0
  %1872 = vmatprep.subr.mxu0 0.0
  %1873 = vmatpush1.msra.mxu0 0.0
  %1874 = vmatprep.subr.mxu0 0.0
  %1875 = vmatpush1.msra.mxu0 %v1840
  %1876 = vmatprep.subr.mxu0 0.0
  %1877 = vmatpush1.msra.mxu0 %v1838
  %1878 = vmatprep.subr.mxu0 0.0
  %1879 = vmatpush2.msra.mxu0 0.0
  %1880 = vmatprep.subr.mxu0 0.0
  %1881 = vmatpush2.msra.mxu0 0.0
  %1882 = vmatprep.subr.mxu0 0.0
  %1883 = vmatpush2.msra.mxu0 0.0
  %1884 = vmatprep.subr.mxu0 0.0
  %1885 = vmatpush2.msra.mxu0 0.0
  %1886 = vmatprep.subr.mxu0 0.0
  %1887 = vmatpush2.msra.mxu0 0.0
  %1888 = vmatprep.subr.mxu0 0.0
  %1889 = vmatpush2.msra.mxu0 0.0
  %1890 = vmatprep.subr.mxu0 0.0
  %1891 = vmatpush2.msra.mxu0 0.0
  %1892 = vmatprep.subr.mxu0 0.0
  %1893 = vmatpush2.msra.mxu0 0.0
  %1894 = vmatprep.subr.mxu0 0.0
  %1895 = vmatpush2.msra.mxu0 0.0
  %1896 = vmatprep.subr.mxu0 0.0
  %1897 = vmatpush2.msra.mxu0 0.0
  %1898 = vmatprep.subr.mxu0 0.0
  %1899 = vmatpush2.msra.mxu0 0.0
  %1900 = vmatprep.subr.mxu0 0.0
  %1901 = vmatpush2.msra.mxu0 0.0
  %1902 = vmatprep.subr.mxu0 0.0
  %1903 = vmatpush2.msra.mxu0 0.0
  %1904 = vmatprep.subr.mxu0 0.0
  %1905 = vmatpush2.msra.mxu0 0.0
  %1906 = vmatprep.subr.mxu0 0.0
  %1907 = vmatpush2.msra.mxu0 0.0
  %1908 = vmatprep.subr.mxu0 0.0
  %1909 = vmatpush2.msra.mxu0 0.0
  %1910 = vmatprep.mubr.f32.mxu0 0.0
  %1911 = vmatmul.mubr.f32.gmra.mxu0 %v1844
  %v1912 = vpop.f32.mrf.mxu0
  %v1913 = vadd.f32 0.0, %v1912
  %v1914 = vpop.f32.mrf.mxu0
  %1915 = vdwg.mxu0
  %v1917 = vsel %vm267, %v1913, 0
  %1919 = vmatprep.subr.mxu0 0.0
  %1920 = vmatpush1.msra.mxu0 0.0
  %1921 = vmatprep.subr.mxu0 0.0
  %1922 = vmatpush1.msra.mxu0 0.0
  %1923 = vmatprep.subr.mxu0 0.0
  %1924 = vmatpush1.msra.mxu0 0.0
  %1925 = vmatprep.subr.mxu0 0.0
  %1926 = vmatpush1.msra.mxu0 0.0
  %1927 = vmatprep.subr.mxu0 0.0
  %1928 = vmatpush1.msra.mxu0 0.0
  %1929 = vmatprep.subr.mxu0 0.0
  %1930 = vmatpush1.msra.mxu0 0.0
  %1931 = vmatprep.subr.mxu0 0.0
  %1932 = vmatpush1.msra.mxu0 0.0
  %1933 = vmatprep.subr.mxu0 0.0
  %1934 = vmatpush1.msra.mxu0 0.0
  %1935 = vmatprep.subr.mxu0 0.0
  %1936 = vmatpush1.msra.mxu0 0.0
  %1937 = vmatprep.subr.mxu0 0.0
  %1938 = vmatpush1.msra.mxu0 0.0
  %1939 = vmatprep.subr.mxu0 0.0
  %1940 = vmatpush1.msra.mxu0 0.0
  %1941 = vmatprep.subr.mxu0 0.0
  %1942 = vmatpush1.msra.mxu0 0.0
  %1943 = vmatprep.subr.mxu0 0.0
  %1944 = vmatpush1.msra.mxu0 0.0
  %1945 = vmatprep.subr.mxu0 0.0
  %1946 = vmatpush1.msra.mxu0 0.0
  %1947 = vmatprep.subr.mxu0 0.0
  %1948 = vmatpush1.msra.mxu0 0.0
  %1949 = vmatprep.subr.mxu0 0.0
  %1950 = vmatpush1.msra.mxu0 %v264
  %1951 = vmatprep.subr.mxu0 0.0
  %1952 = vmatpush2.msra.mxu0 0.0
  %1953 = vmatprep.subr.mxu0 0.0
  %1954 = vmatpush2.msra.mxu0 0.0
  %1955 = vmatprep.subr.mxu0 0.0
  %1956 = vmatpush2.msra.mxu0 0.0
  %1957 = vmatprep.subr.mxu0 0.0
  %1958 = vmatpush2.msra.mxu0 0.0
  %1959 = vmatprep.subr.mxu0 0.0
  %1960 = vmatpush2.msra.mxu0 0.0
  %1961 = vmatprep.subr.mxu0 0.0
  %1962 = vmatpush2.msra.mxu0 0.0
  %1963 = vmatprep.subr.mxu0 0.0
  %1964 = vmatpush2.msra.mxu0 0.0
  %1965 = vmatprep.subr.mxu0 0.0
  %1966 = vmatpush2.msra.mxu0 0.0
  %1967 = vmatprep.subr.mxu0 0.0
  %1968 = vmatpush2.msra.mxu0 0.0
  %1969 = vmatprep.subr.mxu0 0.0
  %1970 = vmatpush2.msra.mxu0 0.0
  %1971 = vmatprep.subr.mxu0 0.0
  %1972 = vmatpush2.msra.mxu0 0.0
  %1973 = vmatprep.subr.mxu0 0.0
  %1974 = vmatpush2.msra.mxu0 0.0
  %1975 = vmatprep.subr.mxu0 0.0
  %1976 = vmatpush2.msra.mxu0 0.0
  %1977 = vmatprep.subr.mxu0 0.0
  %1978 = vmatpush2.msra.mxu0 0.0
  %1979 = vmatprep.subr.mxu0 0.0
  %1980 = vmatpush2.msra.mxu0 0.0
  %1981 = vmatprep.subr.mxu0 0.0
  %1982 = vmatpush2.msra.mxu0 0.0
  %1983 = vmatprep.mubr.f32.mxu0 0.0
  %1984 = vmatmul.mubr.f32.gmra.mxu0 %v1917
  %v1985 = vpop.f32.mrf.mxu0
  %v1986 = vadd.f32 0.0, %v1985
  %v1987 = vpop.f32.mrf.mxu0
  %1988 = vdwg.mxu0
  %v1989 = vadd.f32 %v1740, %v1986
  %1990 = vrot.lane.b32.xlu0 %v1254, 104
  %v1991 = vpop.permute.xlu0 %1990
  %1992 = vrot.lane.b32.xlu0 %v254, 104
  %v1993 = vpop.permute.xlu0 %1992
  %1994 = vrot.lane.b32.xlu0 %v259, 104
  %v1995 = vpop.permute.xlu0 %1994
  %v1996 = vsel %vm267, %v1991, 0
  %v1998 = vsel %vm267, %v1993, 0
  %v2000 = vsel %vm267, %v1995, 0
  %2002 = vmatprep.subr.mxu0 0.0
  %2003 = vmatpush1.xpose.msra.mxu0 0.0
  %2004 = vmatprep.subr.mxu0 0.0
  %2005 = vmatpush1.xpose.msra.mxu0 0.0
  %2006 = vmatprep.subr.mxu0 0.0
  %2007 = vmatpush1.xpose.msra.mxu0 0.0
  %2008 = vmatprep.subr.mxu0 0.0
  %2009 = vmatpush1.xpose.msra.mxu0 0.0
  %2010 = vmatprep.subr.mxu0 0.0
  %2011 = vmatpush1.xpose.msra.mxu0 0.0
  %2012 = vmatprep.subr.mxu0 0.0
  %2013 = vmatpush1.xpose.msra.mxu0 0.0
  %2014 = vmatprep.subr.mxu0 0.0
  %2015 = vmatpush1.xpose.msra.mxu0 0.0
  %2016 = vmatprep.subr.mxu0 0.0
  %2017 = vmatpush1.xpose.msra.mxu0 0.0
  %2018 = vmatprep.subr.mxu0 0.0
  %2019 = vmatpush1.xpose.msra.mxu0 0.0
  %2020 = vmatprep.subr.mxu0 0.0
  %2021 = vmatpush1.xpose.msra.mxu0 0.0
  %2022 = vmatprep.subr.mxu0 0.0
  %2023 = vmatpush1.xpose.msra.mxu0 0.0
  %2024 = vmatprep.subr.mxu0 0.0
  %2025 = vmatpush1.xpose.msra.mxu0 0.0
  %2026 = vmatprep.subr.mxu0 0.0
  %2027 = vmatpush1.xpose.msra.mxu0 0.0
  %2028 = vmatprep.subr.mxu0 0.0
  %2029 = vmatpush1.xpose.msra.mxu0 0.0
  %2030 = vmatprep.subr.mxu0 0.0
  %2031 = vmatpush1.xpose.msra.mxu0 %v2000
  %2032 = vmatprep.subr.mxu0 0.0
  %2033 = vmatpush1.xpose.msra.mxu0 %v1998
  %2034 = vmatprep.subr.mxu0 0.0
  %2035 = vmatpush2.xpose.msra.mxu0 0.0
  %2036 = vmatprep.subr.mxu0 0.0
  %2037 = vmatpush2.xpose.msra.mxu0 0.0
  %2038 = vmatprep.subr.mxu0 0.0
  %2039 = vmatpush2.xpose.msra.mxu0 0.0
  %2040 = vmatprep.subr.mxu0 0.0
  %2041 = vmatpush2.xpose.msra.mxu0 0.0
  %2042 = vmatprep.subr.mxu0 0.0
  %2043 = vmatpush2.xpose.msra.mxu0 0.0
  %2044 = vmatprep.subr.mxu0 0.0
  %2045 = vmatpush2.xpose.msra.mxu0 0.0
  %2046 = vmatprep.subr.mxu0 0.0
  %2047 = vmatpush2.xpose.msra.mxu0 0.0
  %2048 = vmatprep.subr.mxu0 0.0
  %2049 = vmatpush2.xpose.msra.mxu0 0.0
  %2050 = vmatprep.subr.mxu0 0.0
  %2051 = vmatpush2.xpose.msra.mxu0 0.0
  %2052 = vmatprep.subr.mxu0 0.0
  %2053 = vmatpush2.xpose.msra.mxu0 0.0
  %2054 = vmatprep.subr.mxu0 0.0
  %2055 = vmatpush2.xpose.msra.mxu0 0.0
  %2056 = vmatprep.subr.mxu0 0.0
  %2057 = vmatpush2.xpose.msra.mxu0 0.0
  %2058 = vmatprep.subr.mxu0 0.0
  %2059 = vmatpush2.xpose.msra.mxu0 0.0
  %2060 = vmatprep.subr.mxu0 0.0
  %2061 = vmatpush2.xpose.msra.mxu0 0.0
  %2062 = vmatprep.subr.mxu0 0.0
  %2063 = vmatpush2.xpose.msra.mxu0 0.0
  %2064 = vmatprep.subr.mxu0 0.0
  %2065 = vmatpush2.xpose.msra.mxu0 0.0
  %2066 = vmatprep.mubr.f32.mxu0 0.0
  %2067 = vmatmul.mubr.f32.gmra.mxu0 %v1996
  %v2068 = vpop.f32.mrf.mxu0
  %v2069 = vadd.f32 0.0, %v2068
  %v2070 = vpop.f32.mrf.mxu0
  %2071 = vdwg.mxu0
  %v2072 = vsel %vm347, %v2069, -inf
  %2073 = vmax.xlane.f32.xlu0 %v2072
  %v2074 = vpop.xlane.xlu0 %2073
  %v2075 = vsub.f32 %v2069, %v2074
  %v2076 = vmul.f32 %v2075, 1.442695
  %v2077 = vpow.pop %v2076
  %v2078 = vsel %vm347, %v2077, 0.0
  %2079 = vadd.xlane.f32.xlu0 %v2078
  %v2080 = vpop.xlane.xlu0 %2079
  %v2081 = vrcp.pop %v2080
  %v2082 = vmul.f32 %v2077, %v2081
  %v2083 = vadd.f32 %v1836, %v2082
  %2084 = vrot.lane.b32.xlu0 %v254, 72
  %v2085 = vpop.permute.xlu0 %2084
  %2086 = vrot.lane.b32.xlu0 %v259, 72
  %v2087 = vpop.permute.xlu0 %2086
  %v2091 = vsel %vm366, %v2082, 0
  %2093 = vmatprep.subr.mxu0 0.0
  %2094 = vmatpush1.msra.mxu0 0.0
  %2095 = vmatprep.subr.mxu0 0.0
  %2096 = vmatpush1.msra.mxu0 0.0
  %2097 = vmatprep.subr.mxu0 0.0
  %2098 = vmatpush1.msra.mxu0 0.0
  %2099 = vmatprep.subr.mxu0 0.0
  %2100 = vmatpush1.msra.mxu0 0.0
  %2101 = vmatprep.subr.mxu0 0.0
  %2102 = vmatpush1.msra.mxu0 0.0
  %2103 = vmatprep.subr.mxu0 0.0
  %2104 = vmatpush1.msra.mxu0 0.0
  %2105 = vmatprep.subr.mxu0 0.0
  %2106 = vmatpush1.msra.mxu0 0.0
  %2107 = vmatprep.subr.mxu0 0.0
  %2108 = vmatpush1.msra.mxu0 0.0
  %2109 = vmatprep.subr.mxu0 0.0
  %2110 = vmatpush1.msra.mxu0 0.0
  %2111 = vmatprep.subr.mxu0 0.0
  %2112 = vmatpush1.msra.mxu0 0.0
  %2113 = vmatprep.subr.mxu0 0.0
  %2114 = vmatpush1.msra.mxu0 0.0
  %2115 = vmatprep.subr.mxu0 0.0
  %2116 = vmatpush1.msra.mxu0 0.0
  %2117 = vmatprep.subr.mxu0 0.0
  %2118 = vmatpush1.msra.mxu0 0.0
  %2119 = vmatprep.subr.mxu0 0.0
  %2120 = vmatpush1.msra.mxu0 0.0
  %2121 = vmatprep.subr.mxu0 0.0
  %2122 = vmatpush1.msra.mxu0 %v2087
  %2123 = vmatprep.subr.mxu0 0.0
  %2124 = vmatpush1.msra.mxu0 %v2085
  %2125 = vmatprep.subr.mxu0 0.0
  %2126 = vmatpush2.msra.mxu0 0.0
  %2127 = vmatprep.subr.mxu0 0.0
  %2128 = vmatpush2.msra.mxu0 0.0
  %2129 = vmatprep.subr.mxu0 0.0
  %2130 = vmatpush2.msra.mxu0 0.0
  %2131 = vmatprep.subr.mxu0 0.0
  %2132 = vmatpush2.msra.mxu0 0.0
  %2133 = vmatprep.subr.mxu0 0.0
  %2134 = vmatpush2.msra.mxu0 0.0
  %2135 = vmatprep.subr.mxu0 0.0
  %2136 = vmatpush2.msra.mxu0 0.0
  %2137 = vmatprep.subr.mxu0 0.0
  %2138 = vmatpush2.msra.mxu0 0.0
  %2139 = vmatprep.subr.mxu0 0.0
  %2140 = vmatpush2.msra.mxu0 0.0
  %2141 = vmatprep.subr.mxu0 0.0
  %2142 = vmatpush2.msra.mxu0 0.0
  %2143 = vmatprep.subr.mxu0 0.0
  %2144 = vmatpush2.msra.mxu0 0.0
  %2145 = vmatprep.subr.mxu0 0.0
  %2146 = vmatpush2.msra.mxu0 0.0
  %2147 = vmatprep.subr.mxu0 0.0
  %2148 = vmatpush2.msra.mxu0 0.0
  %2149 = vmatprep.subr.mxu0 0.0
  %2150 = vmatpush2.msra.mxu0 0.0
  %2151 = vmatprep.subr.mxu0 0.0
  %2152 = vmatpush2.msra.mxu0 0.0
  %2153 = vmatprep.subr.mxu0 0.0
  %2154 = vmatpush2.msra.mxu0 0.0
  %2155 = vmatprep.subr.mxu0 0.0
  %2156 = vmatpush2.msra.mxu0 0.0
  %2157 = vmatprep.mubr.f32.mxu0 0.0
  %2158 = vmatmul.mubr.f32.gmra.mxu0 %v2091
  %v2159 = vpop.f32.mrf.mxu0
  %v2160 = vadd.f32 0.0, %v2159
  %v2161 = vpop.f32.mrf.mxu0
  %2162 = vdwg.mxu0
  %v2164 = vsel %vm267, %v2160, 0
  %2166 = vmatprep.subr.mxu0 0.0
  %2167 = vmatpush1.msra.mxu0 0.0
  %2168 = vmatprep.subr.mxu0 0.0
  %2169 = vmatpush1.msra.mxu0 0.0
  %2170 = vmatprep.subr.mxu0 0.0
  %2171 = vmatpush1.msra.mxu0 0.0
  %2172 = vmatprep.subr.mxu0 0.0
  %2173 = vmatpush1.msra.mxu0 0.0
  %2174 = vmatprep.subr.mxu0 0.0
  %2175 = vmatpush1.msra.mxu0 0.0
  %2176 = vmatprep.subr.mxu0 0.0
  %2177 = vmatpush1.msra.mxu0 0.0
  %2178 = vmatprep.subr.mxu0 0.0
  %2179 = vmatpush1.msra.mxu0 0.0
  %2180 = vmatprep.subr.mxu0 0.0
  %2181 = vmatpush1.msra.mxu0 0.0
  %2182 = vmatprep.subr.mxu0 0.0
  %2183 = vmatpush1.msra.mxu0 0.0
  %2184 = vmatprep.subr.mxu0 0.0
  %2185 = vmatpush1.msra.mxu0 0.0
  %2186 = vmatprep.subr.mxu0 0.0
  %2187 = vmatpush1.msra.mxu0 0.0
  %2188 = vmatprep.subr.mxu0 0.0
  %2189 = vmatpush1.msra.mxu0 0.0
  %2190 = vmatprep.subr.mxu0 0.0
  %2191 = vmatpush1.msra.mxu0 0.0
  %2192 = vmatprep.subr.mxu0 0.0
  %2193 = vmatpush1.msra.mxu0 0.0
  %2194 = vmatprep.subr.mxu0 0.0
  %2195 = vmatpush1.msra.mxu0 0.0
  %2196 = vmatprep.subr.mxu0 0.0
  %2197 = vmatpush1.msra.mxu0 %v265
  %2198 = vmatprep.subr.mxu0 0.0
  %2199 = vmatpush2.msra.mxu0 0.0
  %2200 = vmatprep.subr.mxu0 0.0
  %2201 = vmatpush2.msra.mxu0 0.0
  %2202 = vmatprep.subr.mxu0 0.0
  %2203 = vmatpush2.msra.mxu0 0.0
  %2204 = vmatprep.subr.mxu0 0.0
  %2205 = vmatpush2.msra.mxu0 0.0
  %2206 = vmatprep.subr.mxu0 0.0
  %2207 = vmatpush2.msra.mxu0 0.0
  %2208 = vmatprep.subr.mxu0 0.0
  %2209 = vmatpush2.msra.mxu0 0.0
  %2210 = vmatprep.subr.mxu0 0.0
  %2211 = vmatpush2.msra.mxu0 0.0
  %2212 = vmatprep.subr.mxu0 0.0
  %2213 = vmatpush2.msra.mxu0 0.0
  %2214 = vmatprep.subr.mxu0 0.0
  %2215 = vmatpush2.msra.mxu0 0.0
  %2216 = vmatprep.subr.mxu0 0.0
  %2217 = vmatpush2.msra.mxu0 0.0
  %2218 = vmatprep.subr.mxu0 0.0
  %2219 = vmatpush2.msra.mxu0 0.0
  %2220 = vmatprep.subr.mxu0 0.0
  %2221 = vmatpush2.msra.mxu0 0.0
  %2222 = vmatprep.subr.mxu0 0.0
  %2223 = vmatpush2.msra.mxu0 0.0
  %2224 = vmatprep.subr.mxu0 0.0
  %2225 = vmatpush2.msra.mxu0 0.0
  %2226 = vmatprep.subr.mxu0 0.0
  %2227 = vmatpush2.msra.mxu0 0.0
  %2228 = vmatprep.subr.mxu0 0.0
  %2229 = vmatpush2.msra.mxu0 0.0
  %2230 = vmatprep.mubr.f32.mxu0 0.0
  %2231 = vmatmul.mubr.f32.gmra.mxu0 %v2164
  %v2232 = vpop.f32.mrf.mxu0
  %v2233 = vadd.f32 0.0, %v2232
  %v2234 = vpop.f32.mrf.mxu0
  %2235 = vdwg.mxu0
  %v2236 = vadd.f32 %v1989, %v2233
  %v2237 = vmul.f32 %v2083, 0.25
  %2238 = vst.msk [vmem:[%s19] sm:$0xf] %vm347, %v1253
  %2239 = vst.msk [vmem:[%s19 + $0x4] sm:$0xf] %vm347, %v2237
  %v2241 = vrot.slane %v2236, 4
  %vm2243 = vcmask 1043456
  %v2244 = vsel %vm2243, %v1252, %v2241
  %v2245 = vld [vmem:[%s7] sm:$0x1]
  %v2247 = vlaneseq
  %v2248 = vshrl.u32 %v2247, 7
  %v2249 = vsub.s32 0, %v2248
  %v2250 = vrot.slane %v2245, %v2249
  %v2252 = vadd.f32 %v2244, %v2250
  %v2253 = vld [vmem:[%s8] sm:$0x1]
  %v2254 = vld [vmem:[%s9] sm:$0x1]
  %v2255 = vsel %vm81, %v2252, 0.0
  %2256 = vadd.xlane.f32.xlu0 %v2255
  %v2257 = vpop.xlane.xlu0 %2256
  %v2258 = vrcp.pop 32.0
  %v2259 = vmul.f32 %v2257, %v2258
  %v2260 = vsub.f32 %v2252, %v2259
  %v2261 = vmul.f32 %v2260, %v2260
  %v2262 = vsel %vm81, %v2261, 0.0
  %2263 = vadd.xlane.f32.xlu0 %v2262
  %v2264 = vpop.xlane.xlu0 %2263
  %v2265 = vmul.f32 %v2264, %v2258
  %v2266 = vadd.f32 %v2265, 1e-05
  %v2267 = vrsqrt.pop %v2266
  %v2268 = vmul.f32 %v2260, %v2267
  %v2270 = vlaneseq
  %v2271 = vshrl.u32 %v2270, 7
  %v2272 = vsub.s32 0, %v2271
  %v2273 = vrot.slane %v2253, %v2272
  %v2275 = vmul.f32 %v2268, %v2273
  %v2277 = vlaneseq
  %v2278 = vshrl.u32 %v2277, 7
  %v2279 = vsub.s32 0, %v2278
  %v2280 = vrot.slane %v2254, %v2279
  %v2282 = vadd.f32 %v2275, %v2280
  %v2283 = vld [vmem:[%s10] sm:$0xff]
  %v2284 = vld [vmem:[%s10 + $0x8] sm:$0xff]
  %v2285 = vld [vmem:[%s10 + $0x10] sm:$0xff]
  %v2286 = vld [vmem:[%s10 + $0x18] sm:$0xff]
  %v2287 = vld [vmem:[%s11] sm:$0x1]
  %v2289 = vlaneseq
  %v2290 = vshrl.u32 %v2289, 7
  %v2291 = vsub.s32 0, %v2290
  %v2292 = vrot.slane %v2287, %v2291
  %v2295 = vsel %vm81, %v2282, 0
  %2297 = vmatprep.subr.mxu0 0.0
  %2298 = vmatpush1.msra.mxu0 0.0
  %2299 = vmatprep.subr.mxu0 0.0
  %2300 = vmatpush1.msra.mxu0 0.0
  %2301 = vmatprep.subr.mxu0 0.0
  %2302 = vmatpush1.msra.mxu0 0.0
  %2303 = vmatprep.subr.mxu0 0.0
  %2304 = vmatpush1.msra.mxu0 0.0
  %2305 = vmatprep.subr.mxu0 0.0
  %2306 = vmatpush1.msra.mxu0 0.0
  %2307 = vmatprep.subr.mxu0 0.0
  %2308 = vmatpush1.msra.mxu0 0.0
  %2309 = vmatprep.subr.mxu0 0.0
  %2310 = vmatpush1.msra.mxu0 0.0
  %2311 = vmatprep.subr.mxu0 0.0
  %2312 = vmatpush1.msra.mxu0 0.0
  %2313 = vmatprep.subr.mxu0 0.0
  %2314 = vmatpush1.msra.mxu0 0.0
  %2315 = vmatprep.subr.mxu0 0.0
  %2316 = vmatpush1.msra.mxu0 0.0
  %2317 = vmatprep.subr.mxu0 0.0
  %2318 = vmatpush1.msra.mxu0 0.0
  %2319 = vmatprep.subr.mxu0 0.0
  %2320 = vmatpush1.msra.mxu0 0.0
  %2321 = vmatprep.subr.mxu0 0.0
  %2322 = vmatpush1.msra.mxu0 %v2286
  %2323 = vmatprep.subr.mxu0 0.0
  %2324 = vmatpush1.msra.mxu0 %v2285
  %2325 = vmatprep.subr.mxu0 0.0
  %2326 = vmatpush1.msra.mxu0 %v2284
  %2327 = vmatprep.subr.mxu0 0.0
  %2328 = vmatpush1.msra.mxu0 %v2283
  %2329 = vmatprep.subr.mxu0 0.0
  %2330 = vmatpush2.msra.mxu0 0.0
  %2331 = vmatprep.subr.mxu0 0.0
  %2332 = vmatpush2.msra.mxu0 0.0
  %2333 = vmatprep.subr.mxu0 0.0
  %2334 = vmatpush2.msra.mxu0 0.0
  %2335 = vmatprep.subr.mxu0 0.0
  %2336 = vmatpush2.msra.mxu0 0.0
  %2337 = vmatprep.subr.mxu0 0.0
  %2338 = vmatpush2.msra.mxu0 0.0
  %2339 = vmatprep.subr.mxu0 0.0
  %2340 = vmatpush2.msra.mxu0 0.0
  %2341 = vmatprep.subr.mxu0 0.0
  %2342 = vmatpush2.msra.mxu0 0.0
  %2343 = vmatprep.subr.mxu0 0.0
  %2344 = vmatpush2.msra.mxu0 0.0
  %2345 = vmatprep.subr.mxu0 0.0
  %2346 = vmatpush2.msra.mxu0 0.0
  %2347 = vmatprep.subr.mxu0 0.0
  %2348 = vmatpush2.msra.mxu0 0.0
  %2349 = vmatprep.subr.mxu0 0.0
  %2350 = vmatpush2.msra.mxu0 0.0
  %2351 = vmatprep.subr.mxu0 0.0
  %2352 = vmatpush2.msra.mxu0 0.0
  %2353 = vmatprep.subr.mxu0 0.0
  %2354 = vmatpush2.msra.mxu0 0.0
  %2355 = vmatprep.subr.mxu0 0.0
  %2356 = vmatpush2.msra.mxu0 0.0
  %2357 = vmatprep.subr.mxu0 0.0
  %2358 = vmatpush2.msra.mxu0 0.0
  %2359 = vmatprep.subr.mxu0 0.0
  %2360 = vmatpush2.msra.mxu0 0.0
  %2361 = vmatprep.mubr.f32.mxu0 0.0
  %2362 = vmatmul.mubr.f32.gmra.mxu0 %v2295
  %v2363 = vpop.f32.mrf.mxu0
  %v2364 = vadd.f32 %v2292, %v2363
  %v2365 = vpop.f32.mrf.mxu0
  %2366 = vdwg.mxu0
  %v2367 = vmax.f32 %v2364, 0.0
  %v2368 = vld [vmem:[%s12] sm:$0xff]
  %v2369 = vld [vmem:[%s12 + $0x8] sm:$0xff]
  %v2370 = vld [vmem:[%s12 + $0x10] sm:$0xff]
  %v2371 = vld [vmem:[%s12 + $0x18] sm:$0xff]
  %v2372 = vld [vmem:[%s12 + $0x20] sm:$0xff]
  %v2373 = vld [vmem:[%s12 + $0x28] sm:$0xff]
  %v2374 = vld [vmem:[%s12 + $0x30] sm:$0xff]
  %v2375 = vld [vmem:[%s12 + $0x38] sm:$0xff]
  %v2376 = vld [vmem:[%s13] sm:$0x1]
  %v2378 = vlaneseq
  %v2379 = vshrl.u32 %v2378, 7
  %v2380 = vsub.s32 0, %v2379
  %v2381 = vrot.slane %v2376, %v2380
  %vm2383 = vcmask 523264
  %v2385 = vsel %vm2383, %v2367, 0
  %2387 = vmatprep.subr.mxu0 0.0
  %2388 = vmatpush1.msra.mxu0 0.0
  %2389 = vmatprep.subr.mxu0 0.0
  %2390 = vmatpush1.msra.mxu0 0.0
  %2391 = vmatprep.subr.mxu0 0.0
  %2392 = vmatpush1.msra.mxu0 0.0
  %2393 = vmatprep.subr.mxu0 0.0
  %2394 = vmatpush1.msra.mxu0 0.0
  %2395 = vmatprep.subr.mxu0 0.0
  %2396 = vmatpush1.msra.mxu0 0.0
  %2397 = vmatprep.subr.mxu0 0.0
  %2398 = vmatpush1.msra.mxu0 0.0
  %2399 = vmatprep.subr.mxu0 0.0
  %2400 = vmatpush1.msra.mxu0 0.0
  %2401 = vmatprep.subr.mxu0 0.0
  %2402 = vmatpush1.msra.mxu0 0.0
  %2403 = vmatprep.subr.mxu0 0.0
  %2404 = vmatpush1.msra.mxu0 %v2375
  %2405 = vmatprep.subr.mxu0 0.0
  %2406 = vmatpush1.msra.mxu0 %v2374
  %2407 = vmatprep.subr.mxu0 0.0
  %2408 = vmatpush1.msra.mxu0 %v2373
  %2409 = vmatprep.subr.mxu0 0.0
  %2410 = vmatpush1.msra.mxu0 %v2372
  %2411 = vmatprep.subr.mxu0 0.0
  %2412 = vmatpush1.msra.mxu0 %v2371
  %2413 = vmatprep.subr.mxu0 0.0
  %2414 = vmatpush1.msra.mxu0 %v2370
  %2415 = vmatprep.subr.mxu0 0.0
  %2416 = vmatpush1.msra.mxu0 %v2369
  %2417 = vmatprep.subr.mxu0 0.0
  %2418 = vmatpush1.msra.mxu0 %v2368
  %2419 = vmatprep.subr.mxu0 0.0
  %2420 = vmatpush2.msra.mxu0 0.0
  %2421 = vmatprep.subr.mxu0 0.0
  %2422 = vmatpush2.msra.mxu0 0.0
  %2423 = vmatprep.subr.mxu0 0.0
  %2424 = vmatpush2.msra.mxu0 0.0
  %2425 = vmatprep.subr.mxu0 0.0
  %2426 = vmatpush2.msra.mxu0 0.0
  %2427 = vmatprep.subr.mxu0 0.0
  %2428 = vmatpush2.msra.mxu0 0.0
  %2429 = vmatprep.subr.mxu0 0.0
  %2430 = vmatpush2.msra.mxu0 0.0
  %2431 = vmatprep.subr.mxu0 0.0
  %2432 = vmatpush2.msra.mxu0 0.0
  %2433 = vmatprep.subr.mxu0 0.0
  %2434 = vmatpush2.msra.mxu0 0.0
  %2435 = vmatprep.subr.mxu0 0.0
  %2436 = vmatpush2.msra.mxu0 0.0
  %2437 = vmatprep.subr.mxu0 0.0
  %2438 = vmatpush2.msra.mxu0 0.0
  %2439 = vmatprep.subr.mxu0 0.0
  %2440 = vmatpush2.msra.mxu0 0.0
  %2441 = vmatprep.subr.mxu0 0.0
  %2442 = vmatpush2.msra.mxu0 0.0
  %2443 = vmatprep.subr.mxu0 0.0
  %2444 = vmatpush2.msra.mxu0 0.0
  %2445 = vmatprep.subr.mxu0 0.0
  %2446 = vmatpush2.msra.mxu0 0.0
  %2447 = vmatprep.subr.mxu0 0.0
  %2448 = vmatpush2.msra.mxu0 0.0
  %2449 = vmatprep.subr.mxu0 0.0
  %2450 = vmatpush2.msra.mxu0 0.0
  %2451 = vmatprep.mubr.f32.mxu0 0.0
  %2452 = vmatmul.mubr.f32.gmra.mxu0 %v2385
  %v2453 = vpop.f32.mrf.mxu0
  %v2454 = vadd.f32 %v2381, %v2453
  %v2455 = vpop.f32.mrf.mxu0
  %2456 = vdwg.mxu0
  %v2457 = vadd.f32 %v2282, %v2454
  %v2458 = vld [vmem:[%s14] sm:$0x1]
  %v2459 = vld [vmem:[%s15] sm:$0x1]
  %v2460 = vsel %vm81, %v2457, 0.0
  %2461 = vadd.xlane.f32.xlu0 %v2460
  %v2462 = vpop.xlane.xlu0 %2461
  %v2463 = vmul.f32 %v2462, %v2258
  %v2464 = vsub.f32 %v2457, %v2463
  %v2465 = vmul.f32 %v2464, %v2464
  %v2466 = vsel %vm81, %v2465, 0.0
  %2467 = vadd.xlane.f32.xlu0 %v2466
  %v2468 = vpop.xlane.xlu0 %2467
  %v2469 = vmul.f32 %v2468, %v2258
  %v2470 = vadd.f32 %v2469, 1e-05
  %v2471 = vrsqrt.pop %v2470
  %v2472 = vmul.f32 %v2464, %v2471
  %v2474 = vlaneseq
  %v2475 = vshrl.u32 %v2474, 7
  %v2476 = vsub.s32 0, %v2475
  %v2477 = vrot.slane %v2458, %v2476
  %v2479 = vmul.f32 %v2472, %v2477
  %v2481 = vlaneseq
  %v2482 = vshrl.u32 %v2481, 7
  %v2483 = vsub.s32 0, %v2482
  %v2484 = vrot.slane %v2459, %v2483
  %v2486 = vadd.f32 %v2479, %v2484
  %v2488 = vcombine.high %v2486, %v2486
  %vm2490 = vcmask 257024
  %v2491 = vsel %vm2490, %v2486, 0.0
  %v2492 = vrot.slane %v2491, 4
  %v2493 = vadd.f32 %v2491, %v2492
  %v2494 = vrot.slane %v2493, 2
  %v2495 = vadd.f32 %v2493, %v2494
  %v2496 = vrot.slane %v2495, 1
  %v2497 = vadd.f32 %v2495, %v2496
  %v2498 = vsel %vm2490, %v2488, 0.0
  %v2499 = vrot.slane %v2498, 4
  %v2500 = vadd.f32 %v2498, %v2499
  %v2501 = vrot.slane %v2500, 2
  %v2502 = vadd.f32 %v2500, %v2501
  %v2503 = vrot.slane %v2502, 1
  %v2504 = vadd.f32 %v2502, %v2503
  %v2505 = vld [vmem:[%s16] sm:$0xff]
  %v2506 = vld [vmem:[%s16 + $0x8] sm:$0xff]
  %v2507 = vld [vmem:[%s16 + $0x10] sm:$0xff]
  %v2508 = vld [vmem:[%s16 + $0x18] sm:$0xff]
  %v2509 = vld [vmem:[%s17] sm:$0x1]
  %v2511 = vlaneseq
  %v2512 = vshrl.u32 %v2511, 7
  %v2513 = vsub.s32 0, %v2512
  %v2514 = vrot.slane %v2509, %v2513
  %vm2518 = vcmask 1041409
  %v2519 = vsel %vm2518, %v2504, %v2497
  %v2520 = vsel %vm81, %v2519, 0
  %2522 = vmatprep.subr.mxu0 0.0
  %2523 = vmatpush1.msra.mxu0 0.0
  %2524 = vmatprep.subr.mxu0 0.0
  %2525 = vmatpush1.msra.mxu0 0.0
  %2526 = vmatprep.subr.mxu0 0.0
  %2527 = vmatpush1.msra.mxu0 0.0
  %2528 = vmatprep.subr.mxu0 0.0
  %2529 = vmatpush1.msra.mxu0 0.0
  %2530 = vmatprep.subr.mxu0 0.0
  %2531 = vmatpush1.msra.mxu0 0.0
  %2532 = vmatprep.subr.mxu0 0.0
  %2533 = vmatpush1.msra.mxu0 0.0
  %2534 = vmatprep.subr.mxu0 0.0
  %2535 = vmatpush1.msra.mxu0 0.0
  %2536 = vmatprep.subr.mxu0 0.0
  %2537 = vmatpush1.msra.mxu0 0.0
  %2538 = vmatprep.subr.mxu0 0.0
  %2539 = vmatpush1.msra.mxu0 0.0
  %2540 = vmatprep.subr.mxu0 0.0
  %2541 = vmatpush1.msra.mxu0 0.0
  %2542 = vmatprep.subr.mxu0 0.0
  %2543 = vmatpush1.msra.mxu0 0.0
  %2544 = vmatprep.subr.mxu0 0.0
  %2545 = vmatpush1.msra.mxu0 0.0
  %2546 = vmatprep.subr.mxu0 0.0
  %2547 = vmatpush1.msra.mxu0 %v2508
  %2548 = vmatprep.subr.mxu0 0.0
  %2549 = vmatpush1.msra.mxu0 %v2507
  %2550 = vmatprep.subr.mxu0 0.0
  %2551 = vmatpush1.msra.mxu0 %v2506
  %2552 = vmatprep.subr.mxu0 0.0
  %2553 = vmatpush1.msra.mxu0 %v2505
  %2554 = vmatprep.subr.mxu0 0.0
  %2555 = vmatpush2.msra.mxu0 0.0
  %2556 = vmatprep.subr.mxu0 0.0
  %2557 = vmatpush2.msra.mxu0 0.0
  %2558 = vmatprep.subr.mxu0 0.0
  %2559 = vmatpush2.msra.mxu0 0.0
  %2560 = vmatprep.subr.mxu0 0.0
  %2561 = vmatpush2.msra.mxu0 0.0
  %2562 = vmatprep.subr.mxu0 0.0
  %2563 = vmatpush2.msra.mxu0 0.0
  %2564 = vmatprep.subr.mxu0 0.0
  %2565 = vmatpush2.msra.mxu0 0.0
  %2566 = vmatprep.subr.mxu0 0.0
  %2567 = vmatpush2.msra.mxu0 0.0
  %2568 = vmatprep.subr.mxu0 0.0
  %2569 = vmatpush2.msra.mxu0 0.0
  %2570 = vmatprep.subr.mxu0 0.0
  %2571 = vmatpush2.msra.mxu0 0.0
  %2572 = vmatprep.subr.mxu0 0.0
  %2573 = vmatpush2.msra.mxu0 0.0
  %2574 = vmatprep.subr.mxu0 0.0
  %2575 = vmatpush2.msra.mxu0 0.0
  %2576 = vmatprep.subr.mxu0 0.0
  %2577 = vmatpush2.msra.mxu0 0.0
  %2578 = vmatprep.subr.mxu0 0.0
  %2579 = vmatpush2.msra.mxu0 0.0
  %2580 = vmatprep.subr.mxu0 0.0
  %2581 = vmatpush2.msra.mxu0 0.0
  %2582 = vmatprep.subr.mxu0 0.0
  %2583 = vmatpush2.msra.mxu0 0.0
  %2584 = vmatprep.subr.mxu0 0.0
  %2585 = vmatpush2.msra.mxu0 0.0
  %2586 = vmatprep.mubr.f32.mxu0 0.0
  %2587 = vmatmul.mubr.f32.gmra.mxu0 %v2520
  %v2588 = vpop.f32.mrf.mxu0
  %v2589 = vadd.f32 %v2514, %v2588
  %v2590 = vpop.f32.mrf.mxu0
  %2591 = vdwg.mxu0
  %vm2592 = vcmask 17408
  %2593 = vst.msk [vmem:[%s18] sm:$0x3] %vm2592, %v2589
  // Predicated region
  $region74: #{_lambda_.9} parent=0 // pred_check
    _
  $region75: #{_lambda_.9} parent=0 // pred_check_branch
    %2595 = sbr.rel (0) target = $region77
  $region76: #{_lambda_.9} parent=0 // pred_region
    _
  $region77: #{_lambda_.9} parent=0 // pred_fallthru
    _
  // Predicated region
  $region78: #{_lambda_.9} parent=0 // pred_check
    _
  $region79: #{_lambda_.9} parent=0 // pred_check_branch
    %2597 = sbr.rel (0) target = $region81
  $region80: #{_lambda_.9} parent=0 // pred_region
    _
  $region81: #{_lambda_.9} parent=0 // pred_fallthru
    _
  // Predicated region
  $region82: #{_lambda_.9} parent=0 // pred_check
    _
  $region83: #{_lambda_.9} parent=0 // pred_check_branch
    %2599 = sbr.rel (0) target = $region85
  $region84: #{_lambda_.9} parent=0 // pred_region
    _
  $region85: #{_lambda_.9} parent=0 // pred_fallthru
    _
  // Predicated region
  $region86: #{_lambda_.9} parent=0 // pred_check
    _
  $region87: #{_lambda_.9} parent=0 // pred_check_branch
    %2601 = sbr.rel (0) target = $region89
  $region88: #{_lambda_.9} parent=0 // pred_region
    _
  $region89: #{_lambda_.9} parent=0 // pred_fallthru
    _

</llo_original>
